<compile_context>
chip_gen: v6e
topology: v6e:2x2x1
jax: 0.10.0
libtpu: 0.0.40
codegen_flags: <defaults>
</compile_context>

<pallas_src>
import functools

import jax
import jax.numpy as jnp
from jax.experimental import pallas as pl
from jax.experimental.pallas import tpu as pltpu


MXU_DTYPE = jnp.bfloat16          # matmul operand dtype (accumulation is f32)
EULER_STEP = 0.01                 # `h` in EulerReservoirCell.forward


def _round_up(x, m):
    return ((x + m - 1) // m) * m


def _tpu_generation_tuning():
    """(TILE_M, vmem_limit_bytes) per TPU generation."""
    try:
        kind = jax.devices()[0].device_kind.lower()
    except Exception:  # pragma: no cover - defensive
        kind = ""
    if "v5" in kind or "v6" in kind:
        # 128 MiB physical VMEM: bigger tiles + raised scoped limit.
        return 1024, 64 * 1024 * 1024
    # v7x (64 MiB physical VMEM) and unknown generations: stay conservative.
    return 512, 40 * 1024 * 1024


TILE_M, VMEM_LIMIT = _tpu_generation_tuning()


def _pick_tile(m):
    """Row-tile size: multiple of 16 (bf16 sublane pairs), capped at TILE_M,
    and split into >=2 grid steps when possible so v7x's two TensorCores both
    get work on the 'parallel' axis (extra ~0.35us/step is noise on v5e/v6e).
    """
    m16 = _round_up(m, 16)
    if m16 <= TILE_M:
        return max(16, _round_up(pl.cdiv(m16, 2), 16))
    return TILE_M


# ----------------------------- Pallas kernels -----------------------------

def _conv_relu_pool_kernel(x_ref, w_ref, b_ref, o_ref):
    """o[i] = max over pooling position p of relu(x[p, i] @ w + b).

    Grid = (m_tiles, P).  P = 4 when the conv is followed by a 2x2 max-pool
    (p indexes the pooling-window position), P = 1 otherwise.  The output
    block index depends only on the m tile, so it stays resident in VMEM
    across the innermost "arbitrary" p axis and acts as a running max.
    The store is bf16 (bf16 rounding is monotonic, so max-then-round equals
    round-then-max).
    """
    p = pl.program_id(1)
    y = jnp.dot(x_ref[...], w_ref[...], preferred_element_type=jnp.float32)
    y = jnp.maximum(y + b_ref[...], 0.0).astype(o_ref.dtype)

    @pl.when(p == 0)
    def _():
        o_ref[...] = y

    @pl.when(p > 0)
    def _():
        o_ref[...] = jnp.maximum(o_ref[...], y)


def _reservoir_readout_kernel(*refs, with_state):
    """Fused reservoir + readout.

    h      = tanh(feat @ Win + bin)
    net    = h @ Wk (+ s @ Wr when a state is supplied)
    out    = (s +) 0.01 * tanh(net)
    logits = out @ Wo + bo

    All lane dims are zero-padded to 128 (units -> u_pad, 10 -> 128) so every
    store is lane-dense; the padded weight columns are zero so real outputs
    are unchanged.
    """
    if with_state:
        (feat_ref, s_ref, win_ref, bin_ref, wk_ref, wr_ref,
         wo_ref, bo_ref, logits_ref) = refs
    else:
        (feat_ref, win_ref, bin_ref, wk_ref, wo_ref, bo_ref, logits_ref) = refs

    h = jnp.tanh(
        jnp.dot(feat_ref[...], win_ref[...],
                preferred_element_type=jnp.float32) + bin_ref[...])
    net = jnp.dot(h.astype(wk_ref.dtype), wk_ref[...],
                  preferred_element_type=jnp.float32)
    if with_state:
        s = s_ref[...]
        net = net + jnp.dot(s.astype(wr_ref.dtype), wr_ref[...],
                            preferred_element_type=jnp.float32)
        out = s + EULER_STEP * jnp.tanh(net)
    else:
        # states defaults to zeros in EuSNModel.forward, so s @ Wr == 0 and
        # the `s +` term vanishes for this single Euler step.
        out = EULER_STEP * jnp.tanh(net)

    logits_ref[...] = (
        jnp.dot(out.astype(wo_ref.dtype), wo_ref[...],
                preferred_element_type=jnp.float32) + bo_ref[...]
    ).astype(logits_ref.dtype)


# ------------------------------- wrappers ----------------------------------

def _conv_matmul(patches, w, b):
    """patches: (P, M, K) bf16, w: (K, N) bf16, b: (1, N) f32 -> (M, N) bf16."""
    P, M, K = patches.shape
    N = w.shape[1]
    tm = _pick_tile(M)
    grid_m = pl.cdiv(M, tm)
    m_pad = grid_m * tm
    if m_pad != M:
        patches = jnp.pad(patches, ((0, 0), (0, m_pad - M), (0, 0)))

    cost = pl.CostEstimate(
        flops=2 * m_pad * K * N * P,
        transcendentals=0,
        bytes_accessed=(P * m_pad * K + K * N + m_pad * N) * 2 + N * 4)

    out = pl.pallas_call(
        _conv_relu_pool_kernel,
        out_shape=jax.ShapeDtypeStruct((m_pad, N), MXU_DTYPE),
        grid=(grid_m, P),
        in_specs=[
            pl.BlockSpec((None, tm, K), lambda i, p: (p, i, 0)),
            pl.BlockSpec((K, N), lambda i, p: (0, 0)),
            pl.BlockSpec((1, N), lambda i, p: (0, 0)),
        ],
        out_specs=pl.BlockSpec((tm, N), lambda i, p: (i, 0)),
        compiler_params=pltpu.CompilerParams(
            dimension_semantics=("parallel", "arbitrary"),
            vmem_limit_bytes=VMEM_LIMIT),
        cost_estimate=cost,
    )(patches, w, b)
    return out[:M]


def conv3x3_relu(x_nhwc, w_mat, b, *, pool):
    """PyTorch Conv2d(3x3, stride 1, pad 1) + ReLU (+ fused 2x2 max-pool)."""
    x_nhwc = x_nhwc.astype(MXU_DTYPE)          # bf16 before the 9x expansion
    B, H, W, Cin = x_nhwc.shape
    Cout = w_mat.shape[1]
    xp = jnp.pad(x_nhwc, ((0, 0), (1, 1), (1, 1), (0, 0)))
    if pool:
        Ho, Wo = H // 2, W // 2
        # Build patches directly per pooling position (py, px) with combined
        # conv-tap + pooling strides; columns ordered (ky, kx, cin) to match
        # the weight matrix rows.
        parts = []
        for py in range(2):
            for px in range(2):
                cols = [xp[:, py + dy: py + dy + H - 1: 2,
                           px + dx: px + dx + W - 1: 2, :]
                        for dy in range(3) for dx in range(3)]
                parts.append(jnp.concatenate(cols, axis=-1)
                             .reshape(B * Ho * Wo, 9 * Cin))
        patches = jnp.stack(parts, axis=0)                 # (4, M, 9*Cin)
    else:
        Ho, Wo = H, W
        cols = [xp[:, dy:dy + H, dx:dx + W, :]
                for dy in range(3) for dx in range(3)]
        patches = jnp.concatenate(cols, axis=-1).reshape(1, B * H * W, 9 * Cin)
    y = _conv_matmul(patches, w_mat, b)
    return y.reshape(B, Ho, Wo, Cout)


def reservoir_readout(feat, params, states=None):
    """feat: (B, 6272) -> logits (B, 10) via the fused reservoir/readout kernel."""
    feat = feat.astype(MXU_DTYPE)
    B, Kf = feat.shape
    u_pad = params["res_k_w"].shape[0]
    tb = _pick_tile(B)
    grid_b = pl.cdiv(B, tb)
    b_pad = grid_b * tb
    if b_pad != B:
        feat = jnp.pad(feat, ((0, b_pad - B), (0, 0)))

    with_state = states is not None
    args = [feat]
    in_specs = [pl.BlockSpec((tb, Kf), lambda i: (i, 0))]
    if with_state:
        s = jnp.pad(states.astype(jnp.float32),
                    ((0, b_pad - B), (0, u_pad - states.shape[1])))
        args.append(s)
        in_specs.append(pl.BlockSpec((tb, u_pad), lambda i: (i, 0)))
    args += [params["res_in_w"], params["res_in_b"], params["res_k_w"]]
    in_specs += [pl.BlockSpec((Kf, u_pad), lambda i: (0, 0)),
                 pl.BlockSpec((1, u_pad), lambda i: (0, 0)),
                 pl.BlockSpec((u_pad, u_pad), lambda i: (0, 0))]
    if with_state:
        args.append(params["res_r_w"])
        in_specs.append(pl.BlockSpec((u_pad, u_pad), lambda i: (0, 0)))
    args += [params["readout_w"], params["readout_b"]]
    in_specs += [pl.BlockSpec((u_pad, 128), lambda i: (0, 0)),
                 pl.BlockSpec((1, 128), lambda i: (0, 0))]

    flops = 2 * b_pad * (Kf * u_pad
                         + u_pad * u_pad * (2 if with_state else 1)
                         + u_pad * 128)
    cost = pl.CostEstimate(
        flops=flops,
        transcendentals=2 * b_pad * u_pad,
        bytes_accessed=(b_pad * Kf + Kf * u_pad + 2 * u_pad * u_pad
                        + u_pad * 128) * 2 + b_pad * 128 * 4)

    logits = pl.pallas_call(
        functools.partial(_reservoir_readout_kernel, with_state=with_state),
        out_shape=jax.ShapeDtypeStruct((b_pad, 128), jnp.float32),
        grid=(grid_b,),
        in_specs=in_specs,
        out_specs=pl.BlockSpec((tb, 128), lambda i: (i, 0)),
        compiler_params=pltpu.CompilerParams(
            dimension_semantics=("parallel",),
            vmem_limit_bytes=VMEM_LIMIT),
        cost_estimate=cost,
    )(*args)
    return logits[:B, :10]


# ------------------------------- model --------------------------------------

def init_params(key, units):
    """Random params, stored pre-transposed / pre-reshaped / zero-padded."""
    u_pad = _round_up(units, 128)
    ks = jax.random.split(key, 12)

    def conv_params(kw, kb, cin, cout, scale):
        w = scale * jax.random.normal(kw, (cout, cin, 3, 3), jnp.float32)
        b = 0.01 * jax.random.normal(kb, (cout,), jnp.float32)
        wmat = jnp.transpose(w, (2, 3, 1, 0)).reshape(9 * cin, cout)
        return wmat.astype(MXU_DTYPE), b.reshape(1, cout)

    p = {}
    p["conv1_w"], p["conv1_b"] = conv_params(ks[0], ks[1], 1, 32, 0.1)
    p["conv2_w"], p["conv2_b"] = conv_params(ks[2], ks[3], 32, 64, 0.05)
    p["conv3_w"], p["conv3_b"] = conv_params(ks[4], ks[5], 64, 128, 0.05)

    # EulerReservoirCell + ReadoutLayer (independent keys; padded to 128 lanes).
    win = 0.01 * jax.random.normal(ks[6], (units, 6272), jnp.float32)
    bin_ = 0.01 * jax.random.normal(ks[7], (units,), jnp.float32)
    wk = 0.1 * jax.random.normal(ks[8], (units, units), jnp.float32)
    wr0 = jnp.sqrt(2.0 / units) * jax.random.normal(ks[9], (units, units),
                                                    jnp.float32)
    wr = (wr0 - wr0.T) * 0.5                       # antisymmetric, as in __init__
    wo = 0.1 * jax.random.normal(ks[10], (10, units), jnp.float32)
    bo = 0.01 * jax.random.normal(ks[11], (10,), jnp.float32)

    def pad2(m, rows, cols):
        return jnp.pad(m, ((0, rows - m.shape[0]), (0, cols - m.shape[1])))

    # Permute the input-kernel rows from PyTorch NCHW-flatten order
    # (c*49 + h*7 + w) to NHWC-flatten order (h*7*128 + w*128 + c) so the
    # conv output can be fed as x.reshape(B, -1) with no transpose.
    win_t = win.T                                          # (6272, units)
    win_nhwc = jnp.transpose(win_t.reshape(128, 7, 7, units),
                             (1, 2, 0, 3)).reshape(6272, units)

    p["res_in_w"] = pad2(win_nhwc, 6272, u_pad).astype(MXU_DTYPE)  # (6272, u_pad)
    p["res_in_b"] = jnp.pad(bin_, (0, u_pad - units)).reshape(1, u_pad)
    p["res_k_w"] = pad2(wk.T, u_pad, u_pad).astype(MXU_DTYPE)
    p["res_r_w"] = pad2(wr.T, u_pad, u_pad).astype(MXU_DTYPE)
    p["readout_w"] = pad2(wo.T, u_pad, 128).astype(MXU_DTYPE)      # (u_pad, 128)
    p["readout_b"] = jnp.pad(bo, (0, 128 - 10)).reshape(1, 128)
    return p


def eusn_forward(x_nchw, params, states=None):
    # Feature extractor: conv path in NHWC (channels on the lane axis).
    x = jnp.transpose(x_nchw, (0, 2, 3, 1))                           # (B,28,28,1)
    x = conv3x3_relu(x, params["conv1_w"], params["conv1_b"], pool=True)   # (B,14,14,32)
    x = conv3x3_relu(x, params["conv2_w"], params["conv2_b"], pool=False)  # (B,14,14,64)
    x = conv3x3_relu(x, params["conv3_w"], params["conv3_b"], pool=True)   # (B,7,7,128)

    B = x.shape[0]
    # NHWC flatten (res_in_w rows were permuted at init to match) — no transpose.
    feat = x.reshape(B, -1)                                           # (B, 6272)

    # Fused input-kernel + Euler step + readout.
    return reservoir_readout(feat, params, states)


if __name__ == "__main__":
    units = 64
    key = jax.random.PRNGKey(0)
    k_param, k_in = jax.random.split(key)
    params = init_params(k_param, units)

    # MNIST-shaped input (28x28 required: reservoir input_size is 6272).
    x = jax.random.normal(k_in, (2, 1, 28, 28), jnp.float32)

    @jax.jit
    def run(x, params):
        return eusn_forward(x, params)

    logits = run(x, params)
    jax.block_until_ready(logits)
    assert logits.shape == (2, 10) and logits.dtype == jnp.float32
    print("KERNEL_OK")
</pallas_src>

<mosaic_0001>
module attributes {stable_mosaic.version = 11 : i64} {
  func.func @_conv_relu_pool_kernel(%arg0: i32, %arg1: i32, %arg2: memref<1x208x9xbf16, #tpu.memory_space<vmem>>, %arg3: memref<9x32xbf16, #tpu.memory_space<vmem>>, %arg4: memref<1x32xf32, #tpu.memory_space<vmem>>, %arg5: memref<208x32xbf16, #tpu.memory_space<vmem>>) attributes {dimension_semantics = [#tpu.dimension_semantics<parallel>, #tpu.dimension_semantics<arbitrary>], iteration_bounds = array<i64: 2, 4>, scalar_prefetch = 0 : i64, scratch_operands = 0 : i64, tpu.core_type = #tpu.core_type<tc>, window_params = [{transform_indices = @transform_0, window_bounds = array<i64: 1, 208, 9>}, {pipeline_mode = #tpu.pipeline_mode<synchronous>, transform_indices = @transform_1, window_bounds = array<i64: 9, 32>}, {pipeline_mode = #tpu.pipeline_mode<synchronous>, transform_indices = @transform_2, window_bounds = array<i64: 1, 32>}, {transform_indices = @transform_3, window_bounds = array<i64: 208, 32>}]} {
    %c0 = arith.constant 0 : index
    %c0_0 = arith.constant 0 : index
    %c0_1 = arith.constant 0 : index
    %0 = vector.load %arg2[%c0, %c0_0, %c0_1] : memref<1x208x9xbf16, #tpu.memory_space<vmem>>, vector<1x208x9xbf16>
    %1 = vector.shape_cast %0 : vector<1x208x9xbf16> to vector<208x9xbf16>
    %c0_2 = arith.constant 0 : index
    %c0_3 = arith.constant 0 : index
    %2 = vector.load %arg3[%c0_2, %c0_3] : memref<9x32xbf16, #tpu.memory_space<vmem>>, vector<9x32xbf16>
    %cst = arith.constant dense<0.000000e+00> : vector<208x32xf32>
    %3 = tpu.matmul %1, %2, %cst {dimension_numbers = #tpu.dot_dimension_numbers<[1], [0], [0], [1], [0, 0, 1, 1], [], []>} : vector<208x9xbf16>, vector<9x32xbf16>, vector<208x32xf32> -> vector<208x32xf32>
    %c0_4 = arith.constant 0 : index
    %c0_5 = arith.constant 0 : index
    %4 = vector.load %arg4[%c0_4, %c0_5] : memref<1x32xf32, #tpu.memory_space<vmem>>, vector<1x32xf32>
    %5 = vector.broadcast %4 : vector<1x32xf32> to vector<208x32xf32>
    %6 = arith.addf %3, %5 : vector<208x32xf32>
    %cst_6 = arith.constant 0.000000e+00 : f32
    %7 = vector.broadcast %cst_6 : f32 to vector<208x32xf32>
    %8 = arith.maximumf %6, %7 : vector<208x32xf32>
    %9 = arith.truncf %8 : vector<208x32xf32> to vector<208x32xbf16>
    %c0_i32 = arith.constant 0 : i32
    %10 = arith.cmpi eq, %arg1, %c0_i32 : i32
    %11 = arith.extui %10 : i1 to i32
    %c0_i32_7 = arith.constant 0 : i32
    %12 = arith.cmpi ne, %11, %c0_i32_7 : i32
    scf.if %12 {
      %c0_10 = arith.constant 0 : index
      %c0_11 = arith.constant 0 : index
      %16 = vector.load %arg5[%c0_10, %c0_11] : memref<208x32xbf16, #tpu.memory_space<vmem>>, vector<208x32xbf16>
      tpu.vector_store %arg5[%c0_10, %c0_11], %9 {strides = array<i32>} : memref<208x32xbf16, #tpu.memory_space<vmem>>, vector<208x32xbf16>,
    } else {
    }
    %c0_i32_8 = arith.constant 0 : i32
    %13 = arith.cmpi sgt, %arg1, %c0_i32_8 : i32
    %14 = arith.extui %13 : i1 to i32
    %c0_i32_9 = arith.constant 0 : i32
    %15 = arith.cmpi ne, %14, %c0_i32_9 : i32
    scf.if %15 {
      %c0_10 = arith.constant 0 : index
      %c0_11 = arith.constant 0 : index
      %16 = vector.load %arg5[%c0_10, %c0_11] : memref<208x32xbf16, #tpu.memory_space<vmem>>, vector<208x32xbf16>
      %17 = arith.maximumf %16, %9 : vector<208x32xbf16>
      %c0_12 = arith.constant 0 : index
      %c0_13 = arith.constant 0 : index
      %18 = vector.load %arg5[%c0_12, %c0_13] : memref<208x32xbf16, #tpu.memory_space<vmem>>, vector<208x32xbf16>
      tpu.vector_store %arg5[%c0_12, %c0_13], %17 {strides = array<i32>} : memref<208x32xbf16, #tpu.memory_space<vmem>>, vector<208x32xbf16>,
    } else {
    }
    return
  }
  func.func @transform_0(%arg0: i32, %arg1: i32) -> (i32, i32, i32) {
    %c0_i32 = arith.constant 0 : i32
    %c0_i32_0 = arith.constant 0 : i32
    return %arg1, %arg0, %c0_i32 : i32, i32, i32
  }
  func.func @transform_1(%arg0: i32, %arg1: i32) -> (i32, i32) {
    %c0_i32 = arith.constant 0 : i32
    %c0_i32_0 = arith.constant 0 : i32
    %c0_i32_1 = arith.constant 0 : i32
    return %c0_i32, %c0_i32_0 : i32, i32
  }
  func.func @transform_2(%arg0: i32, %arg1: i32) -> (i32, i32) {
    %c0_i32 = arith.constant 0 : i32
    %c0_i32_0 = arith.constant 0 : i32
    %c0_i32_1 = arith.constant 0 : i32
    return %c0_i32, %c0_i32_0 : i32, i32
  }
  func.func @transform_3(%arg0: i32, %arg1: i32) -> (i32, i32) {
    %c0_i32 = arith.constant 0 : i32
    %c0_i32_0 = arith.constant 0 : i32
    return %arg0, %c0_i32 : i32, i32
  }
}

module attributes {stable_mosaic.version = 11 : i64} {
  func.func @_conv_relu_pool_kernel(%arg0: i32, %arg1: i32, %arg2: memref<1x208x288xbf16, #tpu.memory_space<vmem>>, %arg3: memref<288x64xbf16, #tpu.memory_space<vmem>>, %arg4: memref<1x64xf32, #tpu.memory_space<vmem>>, %arg5: memref<208x64xbf16, #tpu.memory_space<vmem>>) attributes {dimension_semantics = [#tpu.dimension_semantics<parallel>, #tpu.dimension_semantics<arbitrary>], iteration_bounds = array<i64: 2, 1>, scalar_prefetch = 0 : i64, scratch_operands = 0 : i64, tpu.core_type = #tpu.core_type<tc>, window_params = [{transform_indices = @transform_0, window_bounds = array<i64: 1, 208, 288>}, {pipeline_mode = #tpu.pipeline_mode<synchronous>, transform_indices = @transform_1, window_bounds = array<i64: 288, 64>}, {pipeline_mode = #tpu.pipeline_mode<synchronous>, transform_indices = @transform_2, window_bounds = array<i64: 1, 64>}, {transform_indices = @transform_3, window_bounds = array<i64: 208, 64>}]} {
    %c0 = arith.constant 0 : index
    %c0_0 = arith.constant 0 : index
    %c0_1 = arith.constant 0 : index
    %0 = vector.load %arg2[%c0, %c0_0, %c0_1] : memref<1x208x288xbf16, #tpu.memory_space<vmem>>, vector<1x208x288xbf16>
    %1 = vector.shape_cast %0 : vector<1x208x288xbf16> to vector<208x288xbf16>
    %c0_2 = arith.constant 0 : index
    %c0_3 = arith.constant 0 : index
    %2 = vector.load %arg3[%c0_2, %c0_3] : memref<288x64xbf16, #tpu.memory_space<vmem>>, vector<288x64xbf16>
    %cst = arith.constant dense<0.000000e+00> : vector<208x64xf32>
    %3 = tpu.matmul %1, %2, %cst {dimension_numbers = #tpu.dot_dimension_numbers<[1], [0], [0], [1], [0, 0, 1, 1], [], []>} : vector<208x288xbf16>, vector<288x64xbf16>, vector<208x64xf32> -> vector<208x64xf32>
    %c0_4 = arith.constant 0 : index
    %c0_5 = arith.constant 0 : index
    %4 = vector.load %arg4[%c0_4, %c0_5] : memref<1x64xf32, #tpu.memory_space<vmem>>, vector<1x64xf32>
    %5 = vector.broadcast %4 : vector<1x64xf32> to vector<208x64xf32>
    %6 = arith.addf %3, %5 : vector<208x64xf32>
    %cst_6 = arith.constant 0.000000e+00 : f32
    %7 = vector.broadcast %cst_6 : f32 to vector<208x64xf32>
    %8 = arith.maximumf %6, %7 : vector<208x64xf32>
    %9 = arith.truncf %8 : vector<208x64xf32> to vector<208x64xbf16>
    %c0_i32 = arith.constant 0 : i32
    %10 = arith.cmpi eq, %arg1, %c0_i32 : i32
    %11 = arith.extui %10 : i1 to i32
    %c0_i32_7 = arith.constant 0 : i32
    %12 = arith.cmpi ne, %11, %c0_i32_7 : i32
    scf.if %12 {
      %c0_10 = arith.constant 0 : index
      %c0_11 = arith.constant 0 : index
      %16 = vector.load %arg5[%c0_10, %c0_11] : memref<208x64xbf16, #tpu.memory_space<vmem>>, vector<208x64xbf16>
      tpu.vector_store %arg5[%c0_10, %c0_11], %9 {strides = array<i32>} : memref<208x64xbf16, #tpu.memory_space<vmem>>, vector<208x64xbf16>,
    } else {
    }
    %c0_i32_8 = arith.constant 0 : i32
    %13 = arith.cmpi sgt, %arg1, %c0_i32_8 : i32
    %14 = arith.extui %13 : i1 to i32
    %c0_i32_9 = arith.constant 0 : i32
    %15 = arith.cmpi ne, %14, %c0_i32_9 : i32
    scf.if %15 {
      %c0_10 = arith.constant 0 : index
      %c0_11 = arith.constant 0 : index
      %16 = vector.load %arg5[%c0_10, %c0_11] : memref<208x64xbf16, #tpu.memory_space<vmem>>, vector<208x64xbf16>
      %17 = arith.maximumf %16, %9 : vector<208x64xbf16>
      %c0_12 = arith.constant 0 : index
      %c0_13 = arith.constant 0 : index
      %18 = vector.load %arg5[%c0_12, %c0_13] : memref<208x64xbf16, #tpu.memory_space<vmem>>, vector<208x64xbf16>
      tpu.vector_store %arg5[%c0_12, %c0_13], %17 {strides = array<i32>} : memref<208x64xbf16, #tpu.memory_space<vmem>>, vector<208x64xbf16>,
    } else {
    }
    return
  }
  func.func @transform_0(%arg0: i32, %arg1: i32) -> (i32, i32, i32) {
    %c0_i32 = arith.constant 0 : i32
    %c0_i32_0 = arith.constant 0 : i32
    return %arg1, %arg0, %c0_i32 : i32, i32, i32
  }
  func.func @transform_1(%arg0: i32, %arg1: i32) -> (i32, i32) {
    %c0_i32 = arith.constant 0 : i32
    %c0_i32_0 = arith.constant 0 : i32
    %c0_i32_1 = arith.constant 0 : i32
    return %c0_i32, %c0_i32_0 : i32, i32
  }
  func.func @transform_2(%arg0: i32, %arg1: i32) -> (i32, i32) {
    %c0_i32 = arith.constant 0 : i32
    %c0_i32_0 = arith.constant 0 : i32
    %c0_i32_1 = arith.constant 0 : i32
    return %c0_i32, %c0_i32_0 : i32, i32
  }
  func.func @transform_3(%arg0: i32, %arg1: i32) -> (i32, i32) {
    %c0_i32 = arith.constant 0 : i32
    %c0_i32_0 = arith.constant 0 : i32
    return %arg0, %c0_i32 : i32, i32
  }
}

module attributes {stable_mosaic.version = 11 : i64} {
  func.func @_conv_relu_pool_kernel(%arg0: i32, %arg1: i32, %arg2: memref<1x64x576xbf16, #tpu.memory_space<vmem>>, %arg3: memref<576x128xbf16, #tpu.memory_space<vmem>>, %arg4: memref<1x128xf32, #tpu.memory_space<vmem>>, %arg5: memref<64x128xbf16, #tpu.memory_space<vmem>>) attributes {dimension_semantics = [#tpu.dimension_semantics<parallel>, #tpu.dimension_semantics<arbitrary>], iteration_bounds = array<i64: 2, 4>, scalar_prefetch = 0 : i64, scratch_operands = 0 : i64, tpu.core_type = #tpu.core_type<tc>, window_params = [{transform_indices = @transform_0, window_bounds = array<i64: 1, 64, 576>}, {pipeline_mode = #tpu.pipeline_mode<synchronous>, transform_indices = @transform_1, window_bounds = array<i64: 576, 128>}, {pipeline_mode = #tpu.pipeline_mode<synchronous>, transform_indices = @transform_2, window_bounds = array<i64: 1, 128>}, {transform_indices = @transform_3, window_bounds = array<i64: 64, 128>}]} {
    %c0 = arith.constant 0 : index
    %c0_0 = arith.constant 0 : index
    %c0_1 = arith.constant 0 : index
    %0 = vector.load %arg2[%c0, %c0_0, %c0_1] : memref<1x64x576xbf16, #tpu.memory_space<vmem>>, vector<1x64x576xbf16>
    %1 = vector.shape_cast %0 : vector<1x64x576xbf16> to vector<64x576xbf16>
    %c0_2 = arith.constant 0 : index
    %c0_3 = arith.constant 0 : index
    %2 = vector.load %arg3[%c0_2, %c0_3] : memref<576x128xbf16, #tpu.memory_space<vmem>>, vector<576x128xbf16>
    %cst = arith.constant dense<0.000000e+00> : vector<64x128xf32>
    %3 = tpu.matmul %1, %2, %cst {dimension_numbers = #tpu.dot_dimension_numbers<[1], [0], [0], [1], [0, 0, 1, 1], [], []>} : vector<64x576xbf16>, vector<576x128xbf16>, vector<64x128xf32> -> vector<64x128xf32>
    %c0_4 = arith.constant 0 : index
    %c0_5 = arith.constant 0 : index
    %4 = vector.load %arg4[%c0_4, %c0_5] : memref<1x128xf32, #tpu.memory_space<vmem>>, vector<1x128xf32>
    %5 = vector.broadcast %4 : vector<1x128xf32> to vector<64x128xf32>
    %6 = arith.addf %3, %5 : vector<64x128xf32>
    %cst_6 = arith.constant 0.000000e+00 : f32
    %7 = vector.broadcast %cst_6 : f32 to vector<64x128xf32>
    %8 = arith.maximumf %6, %7 : vector<64x128xf32>
    %9 = arith.truncf %8 : vector<64x128xf32> to vector<64x128xbf16>
    %c0_i32 = arith.constant 0 : i32
    %10 = arith.cmpi eq, %arg1, %c0_i32 : i32
    %11 = arith.extui %10 : i1 to i32
    %c0_i32_7 = arith.constant 0 : i32
    %12 = arith.cmpi ne, %11, %c0_i32_7 : i32
    scf.if %12 {
      %c0_10 = arith.constant 0 : index
      %c0_11 = arith.constant 0 : index
      %16 = vector.load %arg5[%c0_10, %c0_11] : memref<64x128xbf16, #tpu.memory_space<vmem>>, vector<64x128xbf16>
      tpu.vector_store %arg5[%c0_10, %c0_11], %9 {strides = array<i32>} : memref<64x128xbf16, #tpu.memory_space<vmem>>, vector<64x128xbf16>,
    } else {
    }
    %c0_i32_8 = arith.constant 0 : i32
    %13 = arith.cmpi sgt, %arg1, %c0_i32_8 : i32
    %14 = arith.extui %13 : i1 to i32
    %c0_i32_9 = arith.constant 0 : i32
    %15 = arith.cmpi ne, %14, %c0_i32_9 : i32
    scf.if %15 {
      %c0_10 = arith.constant 0 : index
      %c0_11 = arith.constant 0 : index
      %16 = vector.load %arg5[%c0_10, %c0_11] : memref<64x128xbf16, #tpu.memory_space<vmem>>, vector<64x128xbf16>
      %17 = arith.maximumf %16, %9 : vector<64x128xbf16>
      %c0_12 = arith.constant 0 : index
      %c0_13 = arith.constant 0 : index
      %18 = vector.load %arg5[%c0_12, %c0_13] : memref<64x128xbf16, #tpu.memory_space<vmem>>, vector<64x128xbf16>
      tpu.vector_store %arg5[%c0_12, %c0_13], %17 {strides = array<i32>} : memref<64x128xbf16, #tpu.memory_space<vmem>>, vector<64x128xbf16>,
    } else {
    }
    return
  }
  func.func @transform_0(%arg0: i32, %arg1: i32) -> (i32, i32, i32) {
    %c0_i32 = arith.constant 0 : i32
    %c0_i32_0 = arith.constant 0 : i32
    return %arg1, %arg0, %c0_i32 : i32, i32, i32
  }
  func.func @transform_1(%arg0: i32, %arg1: i32) -> (i32, i32) {
    %c0_i32 = arith.constant 0 : i32
    %c0_i32_0 = arith.constant 0 : i32
    %c0_i32_1 = arith.constant 0 : i32
    return %c0_i32, %c0_i32_0 : i32, i32
  }
  func.func @transform_2(%arg0: i32, %arg1: i32) -> (i32, i32) {
    %c0_i32 = arith.constant 0 : i32
    %c0_i32_0 = arith.constant 0 : i32
    %c0_i32_1 = arith.constant 0 : i32
    return %c0_i32, %c0_i32_0 : i32, i32
  }
  func.func @transform_3(%arg0: i32, %arg1: i32) -> (i32, i32) {
    %c0_i32 = arith.constant 0 : i32
    %c0_i32_0 = arith.constant 0 : i32
    return %arg0, %c0_i32 : i32, i32
  }
}

module attributes {stable_mosaic.version = 11 : i64} {
  func.func @_reservoir_readout_kernel(%arg0: i32, %arg1: memref<16x6272xbf16, #tpu.memory_space<vmem>>, %arg2: memref<6272x128xbf16, #tpu.memory_space<vmem>>, %arg3: memref<1x128xf32, #tpu.memory_space<vmem>>, %arg4: memref<128x128xbf16, #tpu.memory_space<vmem>>, %arg5: memref<128x128xbf16, #tpu.memory_space<vmem>>, %arg6: memref<1x128xf32, #tpu.memory_space<vmem>>, %arg7: memref<16x128xf32, #tpu.memory_space<vmem>>) attributes {dimension_semantics = [#tpu.dimension_semantics<parallel>], iteration_bounds = array<i64: 1>, scalar_prefetch = 0 : i64, scratch_operands = 0 : i64, tpu.core_type = #tpu.core_type<tc>, window_params = [{transform_indices = @transform_0, window_bounds = array<i64: 16, 6272>}, {pipeline_mode = #tpu.pipeline_mode<synchronous>, transform_indices = @transform_1, window_bounds = array<i64: 6272, 128>}, {pipeline_mode = #tpu.pipeline_mode<synchronous>, transform_indices = @transform_2, window_bounds = array<i64: 1, 128>}, {pipeline_mode = #tpu.pipeline_mode<synchronous>, transform_indices = @transform_3, window_bounds = array<i64: 128, 128>}, {pipeline_mode = #tpu.pipeline_mode<synchronous>, transform_indices = @transform_4, window_bounds = array<i64: 128, 128>}, {pipeline_mode = #tpu.pipeline_mode<synchronous>, transform_indices = @transform_5, window_bounds = array<i64: 1, 128>}, {transform_indices = @transform_6, window_bounds = array<i64: 16, 128>}]} {
    %c0 = arith.constant 0 : index
    %c0_0 = arith.constant 0 : index
    %0 = vector.load %arg1[%c0, %c0_0] : memref<16x6272xbf16, #tpu.memory_space<vmem>>, vector<16x6272xbf16>
    %c0_1 = arith.constant 0 : index
    %c0_2 = arith.constant 0 : index
    %1 = vector.load %arg2[%c0_1, %c0_2] : memref<6272x128xbf16, #tpu.memory_space<vmem>>, vector<6272x128xbf16>
    %cst = arith.constant dense<0.000000e+00> : vector<16x128xf32>
    %2 = tpu.matmul %0, %1, %cst {dimension_numbers = #tpu.dot_dimension_numbers<[1], [0], [0], [1], [0, 0, 1, 1], [], []>} : vector<16x6272xbf16>, vector<6272x128xbf16>, vector<16x128xf32> -> vector<16x128xf32>
    %c0_3 = arith.constant 0 : index
    %c0_4 = arith.constant 0 : index
    %3 = vector.load %arg3[%c0_3, %c0_4] : memref<1x128xf32, #tpu.memory_space<vmem>>, vector<1x128xf32>
    %4 = vector.broadcast %3 : vector<1x128xf32> to vector<16x128xf32>
    %5 = arith.addf %2, %4 : vector<16x128xf32>
    %6 = math.tanh %5 : vector<16x128xf32>
    %7 = arith.truncf %6 : vector<16x128xf32> to vector<16x128xbf16>
    %c0_5 = arith.constant 0 : index
    %c0_6 = arith.constant 0 : index
    %8 = vector.load %arg4[%c0_5, %c0_6] : memref<128x128xbf16, #tpu.memory_space<vmem>>, vector<128x128xbf16>
    %cst_7 = arith.constant dense<0.000000e+00> : vector<16x128xf32>
    %9 = tpu.matmul %7, %8, %cst_7 {dimension_numbers = #tpu.dot_dimension_numbers<[1], [0], [0], [1], [0, 0, 1, 1], [], []>} : vector<16x128xbf16>, vector<128x128xbf16>, vector<16x128xf32> -> vector<16x128xf32>
    %10 = math.tanh %9 : vector<16x128xf32>
    %cst_8 = arith.constant 0.00999999977 : f32
    %11 = vector.broadcast %cst_8 : f32 to vector<16x128xf32>
    %12 = arith.mulf %11, %10 : vector<16x128xf32>
    %13 = arith.truncf %12 : vector<16x128xf32> to vector<16x128xbf16>
    %c0_9 = arith.constant 0 : index
    %c0_10 = arith.constant 0 : index
    %14 = vector.load %arg5[%c0_9, %c0_10] : memref<128x128xbf16, #tpu.memory_space<vmem>>, vector<128x128xbf16>
    %cst_11 = arith.constant dense<0.000000e+00> : vector<16x128xf32>
    %15 = tpu.matmul %13, %14, %cst_11 {dimension_numbers = #tpu.dot_dimension_numbers<[1], [0], [0], [1], [0, 0, 1, 1], [], []>} : vector<16x128xbf16>, vector<128x128xbf16>, vector<16x128xf32> -> vector<16x128xf32>
    %c0_12 = arith.constant 0 : index
    %c0_13 = arith.constant 0 : index
    %16 = vector.load %arg6[%c0_12, %c0_13] : memref<1x128xf32, #tpu.memory_space<vmem>>, vector<1x128xf32>
    %17 = vector.broadcast %16 : vector<1x128xf32> to vector<16x128xf32>
    %18 = arith.addf %15, %17 : vector<16x128xf32>
    %c0_14 = arith.constant 0 : index
    %c0_15 = arith.constant 0 : index
    %19 = vector.load %arg7[%c0_14, %c0_15] : memref<16x128xf32, #tpu.memory_space<vmem>>, vector<16x128xf32>
    tpu.vector_store %arg7[%c0_14, %c0_15], %18 {strides = array<i32>} : memref<16x128xf32, #tpu.memory_space<vmem>>, vector<16x128xf32>,
    return
  }
  func.func @transform_0(%arg0: i32) -> (i32, i32) {
    %c0_i32 = arith.constant 0 : i32
    %c0_i32_0 = arith.constant 0 : i32
    return %arg0, %c0_i32 : i32, i32
  }
  func.func @transform_1(%arg0: i32) -> (i32, i32) {
    %c0_i32 = arith.constant 0 : i32
    %c0_i32_0 = arith.constant 0 : i32
    %c0_i32_1 = arith.constant 0 : i32
    return %c0_i32, %c0_i32_0 : i32, i32
  }
  func.func @transform_2(%arg0: i32) -> (i32, i32) {
    %c0_i32 = arith.constant 0 : i32
    %c0_i32_0 = arith.constant 0 : i32
    %c0_i32_1 = arith.constant 0 : i32
    return %c0_i32, %c0_i32_0 : i32, i32
  }
  func.func @transform_3(%arg0: i32) -> (i32, i32) {
    %c0_i32 = arith.constant 0 : i32
    %c0_i32_0 = arith.constant 0 : i32
    %c0_i32_1 = arith.constant 0 : i32
    return %c0_i32, %c0_i32_0 : i32, i32
  }
  func.func @transform_4(%arg0: i32) -> (i32, i32) {
    %c0_i32 = arith.constant 0 : i32
    %c0_i32_0 = arith.constant 0 : i32
    %c0_i32_1 = arith.constant 0 : i32
    return %c0_i32, %c0_i32_0 : i32, i32
  }
  func.func @transform_5(%arg0: i32) -> (i32, i32) {
    %c0_i32 = arith.constant 0 : i32
    %c0_i32_0 = arith.constant 0 : i32
    %c0_i32_1 = arith.constant 0 : i32
    return %c0_i32, %c0_i32_0 : i32, i32
  }
  func.func @transform_6(%arg0: i32) -> (i32, i32) {
    %c0_i32 = arith.constant 0 : i32
    %c0_i32_0 = arith.constant 0 : i32
    return %arg0, %c0_i32 : i32, i32
  }
}

</mosaic_0001>

<llo_original>
// kernel: run.4
$region0: #{run.4}
  #allocation0 [shape = 'u32[]', space=smem, size = 0x4, offset = 0x4, fixed_abs, tag = 'smem constant byte address 0x4 - core index']
  #allocation1 [shape = 'u32[144,128]{1,0:T(1,128)}', space=vmem, size = 0x12000, scoped, tag = 'internal scratch']
  %s0 = inlined_call_operand.vmem [shape: bf16[4,416,9], index: 0, kind: input, shape index: {}]
  %s1 = inlined_call_operand.vmem [shape: bf16[9,32], index: 1, kind: input, shape index: {}]
  %s2 = inlined_call_operand.vmem [shape: f32[1,32], index: 2, kind: input, shape index: {}]
  %s3 = inlined_call_operand.vmem [shape: bf16[416,32], index: 3, kind: output, shape index: {}]
  %s4 = sld [smem:[#allocation0]]
  $region53: #{run.4} parent=0
    _
  %s6 = ssub.s32 1, %s4
  %s7 = scalar_select 0, %s6, %s4
  loop: start=0, step=1, limit=10
  $region2: #{run.4} parent=0 // loop_pre_header
    _
  $region3: #{run.4} parent=0 // loop_header
    %s9 = sphi 0, %s13
    %p10 = scmp.ge.s32.totalorder %s9, 10
    %s16 = sphi 0, %s28
    %s17 = sphi 0, %s24
    %s18 = sphi 0, %s16
    %s19 = sphi 0, %s17
    %s20 = sphi 0, %s18
    %s21 = sphi 0, %s19
    %s33 = sphi 0, %s35
    %s36 = sphi 0, %s33
    %s37 = sphi 0, %s36
    %s53 = sphi 0, %s37
    %s57 = sphi 0, %s57
    %s59 = sphi 0, %s57
    %s60 = sphi 0, %s59
    %s74 = sphi 0, %s60
    %s78 = sphi 0, %s78
    %s80 = sphi 0, %s78
    %s81 = sphi 0, %s80
    %s95 = sphi 0, %s81
    %s101 = sphi 0, %s103
    %s104 = sphi 0, %s101
    %s105 = sphi 0, %s104
    %s121 = sphi 0, %s105
  $region4: #{run.4} parent=0 // loop_header_branch
    %12 = sbr.rel (%p10) target = $region8
  $region5: #{run.4} parent=0 // loop_body
    %s14 = ssub.s32 %s9, 1
    %s15 = ssub.s32 %s9, 2
    %s22 = sadd.s32 1, %s17
    %p23 = scmp.ge.s32.totalorder %s22, 4
    %s24 = scalar_select %p23, 0, %s22
    %s25 = sadd.s32 1, %s16
    %s26 = scalar_select %p23, %s25, %s16
    %p27 = scmp.ge.s32.totalorder %s26, 2
    %s28 = scalar_select %p27, 0, %s26
    %s29 = ssub.s32 %s17, %s24
    %s30 = ssub.s32 %s16, %s28
    %s31 = sor.u32 %s29, %s30
    %p32 = scmp.eq.s32.totalorder %s31, 0
    %s34 = sadd.s32 %s33, 1
    %s35 = scalar_select %p32, %s33, %s34
    %p38 = pneg %p32
    %p39 = scmp.eq.s32.totalorder %s9, 7
    %p40 = por %p38, %p39
    %p41 = scmp.ne.s32.totalorder %s33, %s36
    %p42 = scmp.eq.s32.totalorder %s9, 0
    %p43 = por %p41, %p42
    %p44 = scmp.ne.s32.totalorder %s33, %s36
    %p45 = scmp.eq.s32.totalorder %s14, 7
    %p46 = por %p44, %p45
    %p47 = scmp.ne.s32.totalorder %s36, %s37
    %p48 = scmp.eq.s32.totalorder %s14, 0
    %p49 = por %p47, %p48
    %p50 = scmp.ne.s32.totalorder %s36, %s37
    %p51 = scmp.eq.s32.totalorder %s15, 7
    %p52 = por %p50, %p51
    %p54 = scmp.ne.s32.totalorder %s37, %s53
    %p55 = scmp.eq.s32.totalorder %s15, 0
    %p56 = por %p54, %p55
    %s58 = sadd.s32 %s57, 1
    %p61 = scmp.eq.s32.totalorder %s9, 7
    %p62 = scmp.ne.s32.totalorder %s57, %s59
    %p63 = scmp.eq.s32.totalorder %s9, 0
    %p64 = por %p62, %p63
    %p65 = scmp.ne.s32.totalorder %s57, %s59
    %p66 = scmp.eq.s32.totalorder %s14, 7
    %p67 = por %p65, %p66
    %p68 = scmp.ne.s32.totalorder %s59, %s60
    %p69 = scmp.eq.s32.totalorder %s14, 0
    %p70 = por %p68, %p69
    %p71 = scmp.ne.s32.totalorder %s59, %s60
    %p72 = scmp.eq.s32.totalorder %s15, 7
    %p73 = por %p71, %p72
    %p75 = scmp.ne.s32.totalorder %s60, %s74
    %p76 = scmp.eq.s32.totalorder %s15, 0
    %p77 = por %p75, %p76
    %s79 = sadd.s32 %s78, 1
    %p82 = scmp.eq.s32.totalorder %s9, 7
    %p83 = scmp.ne.s32.totalorder %s78, %s80
    %p84 = scmp.eq.s32.totalorder %s9, 0
    %p85 = por %p83, %p84
    %p86 = scmp.ne.s32.totalorder %s78, %s80
    %p87 = scmp.eq.s32.totalorder %s14, 7
    %p88 = por %p86, %p87
    %p89 = scmp.ne.s32.totalorder %s80, %s81
    %p90 = scmp.eq.s32.totalorder %s14, 0
    %p91 = por %p89, %p90
    %p92 = scmp.ne.s32.totalorder %s80, %s81
    %p93 = scmp.eq.s32.totalorder %s15, 7
    %p94 = por %p92, %p93
    %p96 = scmp.ne.s32.totalorder %s81, %s95
    %p97 = scmp.eq.s32.totalorder %s15, 0
    %p98 = por %p96, %p97
    %s99 = ssub.s32 %s16, %s28
    %p100 = scmp.eq.s32.totalorder %s99, 0
    %s102 = sadd.s32 %s101, 1
    %s103 = scalar_select %p100, %s101, %s102
    %p106 = pneg %p100
    %p107 = scmp.eq.s32.totalorder %s9, 7
    %p108 = por %p106, %p107
    %p109 = scmp.ne.s32.totalorder %s101, %s104
    %p110 = scmp.eq.s32.totalorder %s9, 0
    %p111 = por %p109, %p110
    %p112 = scmp.ne.s32.totalorder %s101, %s104
    %p113 = scmp.eq.s32.totalorder %s14, 7
    %p114 = por %p112, %p113
    %p115 = scmp.ne.s32.totalorder %s104, %s105
    %p116 = scmp.eq.s32.totalorder %s14, 0
    %p117 = por %p115, %p116
    %p118 = scmp.ne.s32.totalorder %s104, %s105
    %p119 = scmp.eq.s32.totalorder %s15, 7
    %p120 = por %p118, %p119
    %p122 = scmp.ne.s32.totalorder %s105, %s121
    %p123 = scmp.eq.s32.totalorder %s15, 0
    %p124 = por %p122, %p123
    %p125 = scmp.le.s32.totalorder 1, %s9
    %p126 = scmp.lt.s32.totalorder %s9, 9
    %p127 = pnand %p125, %p126
    %p128 = pneg %p127
    // Predicated region
    $region9: #{run.4} parent=5 // pred_check
      _
    $region10: #{run.4} parent=5 // pred_check_branch
      %130 = sbr.rel (%p127) target = $region12
    $region11: #{run.4} parent=5 // pred_region
      %s131 = ssub.s32 %s9, 1
      // Predicated region
      $region13: #{run.4} parent=11 // pred_check
        %p132 = pneg %p70
      $region14: #{run.4} parent=11 // pred_check_branch
        %134 = sbr.rel (%p132) target = $region16
      $region15: #{run.4} parent=11 // pred_region
        _
      $region16: #{run.4} parent=11 // pred_fallthru
        _
      // Predicated region
      $region17: #{run.4} parent=11 // pred_check
        %p135 = pneg %p91
      $region18: #{run.4} parent=11 // pred_check_branch
        %137 = sbr.rel (%p135) target = $region20
      $region19: #{run.4} parent=11 // pred_region
        _
      $region20: #{run.4} parent=11 // pred_fallthru
        _
    $region12: #{run.4} parent=5 // pred_fallthru
      _
    %p138 = scmp.lt.s32.totalorder %s9, 8
    // Predicated region
    $region21: #{run.4} parent=5 // pred_check
      %p139 = pneg %p138
    $region22: #{run.4} parent=5 // pred_check_branch
      %141 = sbr.rel (%p139) target = $region24
    $region23: #{run.4} parent=5 // pred_region
      // Predicated region
      $region25: #{run.4} parent=23 // pred_check
        %p142 = pneg %p43
      $region26: #{run.4} parent=23 // pred_check_branch
        %144 = sbr.rel (%p142) target = $region28
      $region27: #{run.4} parent=23 // pred_region
        %s145 = smul.u32 26, %s16
        %p146 = scmp.lt.s32.totalorder %s17, 3
        %s147 = scalar_select %p146, %s17, 3
        %p148 = scmp.lt.s32.totalorder %s145, 51
        %s149 = scalar_select %p148, %s145, 51
        %s150 = smul.addr %s147, 52
        %s151 = sadd.s32 %s149, %s150
        %s152 = smul.addr %s151, 4
        %s153 = scalar_lea.vmem %s0, %s152
        %s154 = smul.u32 26, %s16
      $region28: #{run.4} parent=23 // pred_fallthru
        _
    $region24: #{run.4} parent=5 // pred_fallthru
      _
    %p155 = scmp.le.s32.totalorder 1, %s9
    %p156 = scmp.lt.s32.totalorder %s9, 9
    %p157 = pnand %p155, %p156
    %p158 = pneg %p157
    // Predicated region
    $region29: #{run.4} parent=5 // pred_check
      _
    $region30: #{run.4} parent=5 // pred_check_branch
      %160 = sbr.rel (%p157) target = $region32
    $region31: #{run.4} parent=5 // pred_region
      %s161 = ssub.s32 %s9, 1
      %s162 = smul.u32 26, %s18
      %p163 = scmp.lt.s32.totalorder %s19, 3
      %s164 = scalar_select %p163, %s19, 3
      %p165 = scmp.lt.s32.totalorder %s162, 51
      %s166 = scalar_select %p165, %s162, 51
      %s167 = smul.addr %s164, 52
      %s168 = sadd.s32 %s166, %s167
      %s169 = smul.addr %s168, 4
      %s170 = scalar_lea.vmem %s0, %s169
      %p171 = pneg %p49
      %p172 = pneg %p46
      %p173 = pneg %p70
      %p174 = pneg %p67
      %p175 = pneg %p91
      %p176 = pneg %p88
      %p177 = pneg %p117
      %p178 = pneg %p114
      %s179 = smul.u32 26, %s18
      %p180 = scmp.lt.s32.totalorder %s179, 51
      %s181 = scalar_select %p180, %s179, 51
      %s182 = smul.addr %s181, 4
      %s183 = scalar_lea.vmem %s3, %s182
      %s184 = smul.u32 26, %s18
      %p185 = scmp.lt.s32.totalorder %s19, 3
      %s186 = scalar_select %p185, %s19, 3
      %p187 = scmp.lt.s32.totalorder %s184, 51
      %s188 = scalar_select %p187, %s184, 51
      %s189 = smul.addr %s186, 52
      %s190 = sadd.s32 %s188, %s189
      %s191 = smul.addr %s190, 4
      %s192 = scalar_lea.vmem %s0, %s191
      %s193 = smul.u32 26, %s18
      %s194 = smul.u32 26, %s18
      %p195 = scmp.lt.s32.totalorder %s194, 51
      %s196 = scalar_select %p195, %s194, 51
      %s197 = smul.addr %s196, 4
      %s198 = scalar_lea.vmem %s3, %s197
      %s199 = smul.u32 26, %s18
      %v201 = vld [vmem:[%s192] sm:$0xf]
      %v202 = vld [vmem:[%s192 + $0x4] sm:$0xf]
      %v203 = vld [vmem:[%s192 + $0x8] sm:$0xf]
      %v204 = vld [vmem:[%s192 + $0xc] sm:$0xf]
      %v205 = vld [vmem:[%s192 + $0x10] sm:$0xf]
      %v206 = vld [vmem:[%s192 + $0x14] sm:$0xf]
      %v207 = vld [vmem:[%s192 + $0x18] sm:$0xf]
      %v208 = vld [vmem:[%s192 + $0x1c] sm:$0xf]
      %v209 = vld [vmem:[%s192 + $0x20] sm:$0xf]
      %v210 = vld [vmem:[%s192 + $0x24] sm:$0xf]
      %v211 = vld [vmem:[%s192 + $0x28] sm:$0xf]
      %v212 = vld [vmem:[%s192 + $0x2c] sm:$0xf]
      %v213 = vld [vmem:[%s192 + $0x30] sm:$0xf]
      %v214 = vld [vmem:[%s192 + $0x34] sm:$0xf]
      %v215 = vld [vmem:[%s192 + $0x38] sm:$0xf]
      %v216 = vld [vmem:[%s192 + $0x3c] sm:$0xf]
      %v217 = vld [vmem:[%s192 + $0x40] sm:$0xf]
      %v218 = vld [vmem:[%s192 + $0x44] sm:$0xf]
      %v219 = vld [vmem:[%s192 + $0x48] sm:$0xf]
      %v220 = vld [vmem:[%s192 + $0x4c] sm:$0xf]
      %v221 = vld [vmem:[%s192 + $0x50] sm:$0xf]
      %v222 = vld [vmem:[%s192 + $0x54] sm:$0xf]
      %v223 = vld [vmem:[%s192 + $0x58] sm:$0xf]
      %v224 = vld [vmem:[%s192 + $0x5c] sm:$0xf]
      %v225 = vld [vmem:[%s192 + $0x60] sm:$0xf]
      %v226 = vld [vmem:[%s192 + $0x64] sm:$0xf]
      %v227 = vld [vmem:[%s1] sm:$0xf]
      %v228 = vld [vmem:[%s1 + $0x4] sm:$0x1]
      %v229 = vld [vmem:[%s2] sm:$0x1]
      %v231 = vlaneseq
      %v232 = vshrl.u32 %v231, 7
      %v233 = vsub.s32 0, %v232
      %v234 = vrot.slane %v229, %v233
      %v262 = vunpack.c.l.b16 %v201
      %v263 = vunpack.c.l.b16 %v202
      %v264 = vunpack.c.l.b16 %v203
      %v265 = vunpack.c.l.b16 %v204
      %v266 = vunpack.c.l.b16 %v205
      %v267 = vunpack.c.l.b16 %v206
      %v268 = vunpack.c.l.b16 %v207
      %v269 = vunpack.c.l.b16 %v208
      %v270 = vunpack.c.l.b16 %v209
      %v271 = vunpack.c.l.b16 %v210
      %v272 = vunpack.c.l.b16 %v211
      %v273 = vunpack.c.l.b16 %v212
      %v274 = vunpack.c.l.b16 %v213
      %v275 = vunpack.c.l.b16 %v214
      %v276 = vunpack.c.l.b16 %v215
      %v277 = vunpack.c.l.b16 %v216
      %v278 = vunpack.c.l.b16 %v217
      %v279 = vunpack.c.l.b16 %v218
      %v280 = vunpack.c.l.b16 %v219
      %v281 = vunpack.c.l.b16 %v220
      %v282 = vunpack.c.l.b16 %v221
      %v283 = vunpack.c.l.b16 %v222
      %v284 = vunpack.c.l.b16 %v223
      %v285 = vunpack.c.l.b16 %v224
      %v286 = vunpack.c.l.b16 %v225
      %v287 = vunpack.c.l.b16 %v226
      %v288 = vpack.c.b16 %v263, %v262
      %v289 = vpack.c.b16 %v265, %v264
      %v290 = vpack.c.b16 %v267, %v266
      %v291 = vpack.c.b16 %v269, %v268
      %v292 = vpack.c.b16 %v271, %v270
      %v293 = vpack.c.b16 %v273, %v272
      %v294 = vpack.c.b16 %v275, %v274
      %v295 = vpack.c.b16 %v277, %v276
      %v296 = vpack.c.b16 %v279, %v278
      %v297 = vpack.c.b16 %v281, %v280
      %v298 = vpack.c.b16 %v283, %v282
      %v299 = vpack.c.b16 %v285, %v284
      %v300 = vpack.c.b16 %v287, %v286
      %v303 = vunpack.c.l.b16 %v227
      %v304 = vunpack.c.l.b16 %v228
      %v305 = vpack.c.b16 %v304, %v303
      %vm306 = vcmask 72704
      %v308 = vsel %vm306, %v288, 0
      %v311 = vsel %vm306, %v289, 0
      %v314 = vsel %vm306, %v290, 0
      %v317 = vsel %vm306, %v291, 0
      %v320 = vsel %vm306, %v292, 0
      %v323 = vsel %vm306, %v293, 0
      %v326 = vsel %vm306, %v294, 0
      %v329 = vsel %vm306, %v295, 0
      %v332 = vsel %vm306, %v296, 0
      %v335 = vsel %vm306, %v297, 0
      %v338 = vsel %vm306, %v298, 0
      %v341 = vsel %vm306, %v299, 0
      %v344 = vsel %vm306, %v300, 0
      %vm346 = vcmask 1043456
      %vm347 = vcmask 1044480
      %v348 = vsel %vm346, 4294967295, 65535
      %v349 = vsel %vm347, %v348, 0
      %v351 = vand.u32 %v305, %v349
      %353 = vmatprep.subr.bf16.mxu0 0
      %354 = vmatpush1.bf16.msra.mxu0 0
      %355 = vmatprep.subr.bf16.mxu0 0
      %356 = vmatpush1.bf16.msra.mxu0 0
      %357 = vmatprep.subr.bf16.mxu0 0
      %358 = vmatpush1.bf16.msra.mxu0 0
      %359 = vmatprep.subr.bf16.mxu0 0
      %360 = vmatpush1.bf16.msra.mxu0 0
      %361 = vmatprep.subr.bf16.mxu0 0
      %362 = vmatpush1.bf16.msra.mxu0 0
      %363 = vmatprep.subr.bf16.mxu0 0
      %364 = vmatpush1.bf16.msra.mxu0 0
      %365 = vmatprep.subr.bf16.mxu0 0
      %366 = vmatpush1.bf16.msra.mxu0 0
      %367 = vmatprep.subr.bf16.mxu0 0
      %368 = vmatpush1.bf16.msra.mxu0 %v351
      %369 = vmatprep.subr.bf16.mxu0 0
      %370 = vmatpush2.bf16.msra.mxu0 0
      %371 = vmatprep.subr.bf16.mxu0 0
      %372 = vmatpush2.bf16.msra.mxu0 0
      %373 = vmatprep.subr.bf16.mxu0 0
      %374 = vmatpush2.bf16.msra.mxu0 0
      %375 = vmatprep.subr.bf16.mxu0 0
      %376 = vmatpush2.bf16.msra.mxu0 0
      %377 = vmatprep.subr.bf16.mxu0 0
      %378 = vmatpush2.bf16.msra.mxu0 0
      %379 = vmatprep.subr.bf16.mxu0 0
      %380 = vmatpush2.bf16.msra.mxu0 0
      %381 = vmatprep.subr.bf16.mxu0 0
      %382 = vmatpush2.bf16.msra.mxu0 0
      %383 = vmatprep.subr.bf16.mxu0 0
      %384 = vmatpush2.bf16.msra.mxu0 0
      %385 = vmatprep.mubr.bf16.mxu0 0
      %386 = vmatmul.mubr.bf16.gmra.mxu0 %v308
      %v387 = vpop.f32.mrf.mxu0
      %v388 = vadd.f32 %v234, %v387
      %v389 = vpop.f32.mrf.mxu0
      %v390 = vpop.f32.mrf.mxu0
      %v391 = vadd.f32 %v234, %v390
      %v392 = vpop.f32.mrf.mxu0
      %393 = vmatprep.mubr.bf16.mxu0 0
      %394 = vmatmul.mubr.bf16.gmra.mxu0 %v311
      %v395 = vpop.f32.mrf.mxu0
      %v396 = vadd.f32 %v234, %v395
      %v397 = vpop.f32.mrf.mxu0
      %v398 = vpop.f32.mrf.mxu0
      %v399 = vadd.f32 %v234, %v398
      %v400 = vpop.f32.mrf.mxu0
      %401 = vmatprep.mubr.bf16.mxu0 0
      %402 = vmatmul.mubr.bf16.gmra.mxu0 %v314
      %v403 = vpop.f32.mrf.mxu0
      %v404 = vadd.f32 %v234, %v403
      %v405 = vpop.f32.mrf.mxu0
      %v406 = vpop.f32.mrf.mxu0
      %v407 = vadd.f32 %v234, %v406
      %v408 = vpop.f32.mrf.mxu0
      %409 = vmatprep.mubr.bf16.mxu0 0
      %410 = vmatmul.mubr.bf16.gmra.mxu0 %v317
      %v411 = vpop.f32.mrf.mxu0
      %v412 = vadd.f32 %v234, %v411
      %v413 = vpop.f32.mrf.mxu0
      %v414 = vpop.f32.mrf.mxu0
      %v415 = vadd.f32 %v234, %v414
      %v416 = vpop.f32.mrf.mxu0
      %417 = vmatprep.mubr.bf16.mxu0 0
      %418 = vmatmul.mubr.bf16.gmra.mxu0 %v320
      %v419 = vpop.f32.mrf.mxu0
      %v420 = vadd.f32 %v234, %v419
      %v421 = vpop.f32.mrf.mxu0
      %v422 = vpop.f32.mrf.mxu0
      %v423 = vadd.f32 %v234, %v422
      %v424 = vpop.f32.mrf.mxu0
      %425 = vmatprep.mubr.bf16.mxu0 0
      %426 = vmatmul.mubr.bf16.gmra.mxu0 %v323
      %v427 = vpop.f32.mrf.mxu0
      %v428 = vadd.f32 %v234, %v427
      %v429 = vpop.f32.mrf.mxu0
      %v430 = vpop.f32.mrf.mxu0
      %v431 = vadd.f32 %v234, %v430
      %v432 = vpop.f32.mrf.mxu0
      %433 = vmatprep.mubr.bf16.mxu0 0
      %434 = vmatmul.mubr.bf16.gmra.mxu0 %v326
      %v435 = vpop.f32.mrf.mxu0
      %v436 = vadd.f32 %v234, %v435
      %v437 = vpop.f32.mrf.mxu0
      %v438 = vpop.f32.mrf.mxu0
      %v439 = vadd.f32 %v234, %v438
      %v440 = vpop.f32.mrf.mxu0
      %441 = vmatprep.mubr.bf16.mxu0 0
      %442 = vmatmul.mubr.bf16.gmra.mxu0 %v329
      %v443 = vpop.f32.mrf.mxu0
      %v444 = vadd.f32 %v234, %v443
      %v445 = vpop.f32.mrf.mxu0
      %v446 = vpop.f32.mrf.mxu0
      %v447 = vadd.f32 %v234, %v446
      %v448 = vpop.f32.mrf.mxu0
      %449 = vmatprep.mubr.bf16.mxu0 0
      %450 = vmatmul.mubr.bf16.gmra.mxu0 %v332
      %v451 = vpop.f32.mrf.mxu0
      %v452 = vadd.f32 %v234, %v451
      %v453 = vpop.f32.mrf.mxu0
      %v454 = vpop.f32.mrf.mxu0
      %v455 = vadd.f32 %v234, %v454
      %v456 = vpop.f32.mrf.mxu0
      %457 = vmatprep.mubr.bf16.mxu0 0
      %458 = vmatmul.mubr.bf16.gmra.mxu0 %v335
      %v459 = vpop.f32.mrf.mxu0
      %v460 = vadd.f32 %v234, %v459
      %v461 = vpop.f32.mrf.mxu0
      %v462 = vpop.f32.mrf.mxu0
      %v463 = vadd.f32 %v234, %v462
      %v464 = vpop.f32.mrf.mxu0
      %465 = vmatprep.mubr.bf16.mxu0 0
      %466 = vmatmul.mubr.bf16.gmra.mxu0 %v338
      %v467 = vpop.f32.mrf.mxu0
      %v468 = vadd.f32 %v234, %v467
      %v469 = vpop.f32.mrf.mxu0
      %v470 = vpop.f32.mrf.mxu0
      %v471 = vadd.f32 %v234, %v470
      %v472 = vpop.f32.mrf.mxu0
      %473 = vmatprep.mubr.bf16.mxu0 0
      %474 = vmatmul.mubr.bf16.gmra.mxu0 %v341
      %v475 = vpop.f32.mrf.mxu0
      %v476 = vadd.f32 %v234, %v475
      %v477 = vpop.f32.mrf.mxu0
      %v478 = vpop.f32.mrf.mxu0
      %v479 = vadd.f32 %v234, %v478
      %v480 = vpop.f32.mrf.mxu0
      %481 = vmatprep.mubr.bf16.mxu0 0
      %482 = vmatmul.mubr.bf16.gmra.mxu0 %v344
      %v483 = vpop.f32.mrf.mxu0
      %v484 = vadd.f32 %v234, %v483
      %v485 = vpop.f32.mrf.mxu0
      %v486 = vpop.f32.mrf.mxu0
      %v487 = vadd.f32 %v234, %v486
      %v488 = vpop.f32.mrf.mxu0
      %489 = vdwg.mxu0
      %v490 = vmax.f32 %v388, 0.0
      %v491 = vmax.f32 %v391, 0.0
      %v492 = vmax.f32 %v396, 0.0
      %v493 = vmax.f32 %v399, 0.0
      %v494 = vmax.f32 %v404, 0.0
      %v495 = vmax.f32 %v407, 0.0
      %v496 = vmax.f32 %v412, 0.0
      %v497 = vmax.f32 %v415, 0.0
      %v498 = vmax.f32 %v420, 0.0
      %v499 = vmax.f32 %v423, 0.0
      %v500 = vmax.f32 %v428, 0.0
      %v501 = vmax.f32 %v431, 0.0
      %v502 = vmax.f32 %v436, 0.0
      %v503 = vmax.f32 %v439, 0.0
      %v504 = vmax.f32 %v444, 0.0
      %v505 = vmax.f32 %v447, 0.0
      %v506 = vmax.f32 %v452, 0.0
      %v507 = vmax.f32 %v455, 0.0
      %v508 = vmax.f32 %v460, 0.0
      %v509 = vmax.f32 %v463, 0.0
      %v510 = vmax.f32 %v468, 0.0
      %v511 = vmax.f32 %v471, 0.0
      %v512 = vmax.f32 %v476, 0.0
      %v513 = vmax.f32 %v479, 0.0
      %v514 = vmax.f32 %v484, 0.0
      %v515 = vmax.f32 %v487, 0.0
      %v516 = vpack.c.bf16 %v491, %v490
      %v517 = vpack.c.bf16 %v493, %v492
      %v518 = vpack.c.bf16 %v495, %v494
      %v519 = vpack.c.bf16 %v497, %v496
      %v520 = vpack.c.bf16 %v499, %v498
      %v521 = vpack.c.bf16 %v501, %v500
      %v522 = vpack.c.bf16 %v503, %v502
      %v523 = vpack.c.bf16 %v505, %v504
      %v524 = vpack.c.bf16 %v507, %v506
      %v525 = vpack.c.bf16 %v509, %v508
      %v526 = vpack.c.bf16 %v511, %v510
      %v527 = vpack.c.bf16 %v513, %v512
      %v528 = vpack.c.bf16 %v515, %v514
      %p529 = scmp.eq.s32.totalorder %s19, 0
      // Predicated region
      $region33: #{run.4} parent=31 // pred_check
        %p530 = pneg %p529
      $region34: #{run.4} parent=31 // pred_check_branch
        %532 = sbr.rel (%p530) target = $region36
      $region35: #{run.4} parent=31 // pred_region
        %v546 = vunpack.c.l.b16 %v516
        %v547 = vunpack.c.h.b16 %v516
        %v548 = vunpack.c.l.b16 %v517
        %v549 = vunpack.c.h.b16 %v517
        %v550 = vunpack.c.l.b16 %v518
        %v551 = vunpack.c.h.b16 %v518
        %v552 = vunpack.c.l.b16 %v519
        %v553 = vunpack.c.h.b16 %v519
        %v554 = vunpack.c.l.b16 %v520
        %v555 = vunpack.c.h.b16 %v520
        %v556 = vunpack.c.l.b16 %v521
        %v557 = vunpack.c.h.b16 %v521
        %v558 = vunpack.c.l.b16 %v522
        %v559 = vunpack.c.h.b16 %v522
        %v560 = vunpack.c.l.b16 %v523
        %v561 = vunpack.c.h.b16 %v523
        %v562 = vunpack.c.l.b16 %v524
        %v563 = vunpack.c.h.b16 %v524
        %v564 = vunpack.c.l.b16 %v525
        %v565 = vunpack.c.h.b16 %v525
        %v566 = vunpack.c.l.b16 %v526
        %v567 = vunpack.c.h.b16 %v526
        %v568 = vunpack.c.l.b16 %v527
        %v569 = vunpack.c.h.b16 %v527
        %v570 = vunpack.c.l.b16 %v528
        %v571 = vunpack.c.h.b16 %v528
        %v572 = vpack.c.b16 %v546, %v546
        %v573 = vpack.c.b16 %v547, %v547
        %v574 = vpack.c.b16 %v548, %v548
        %v575 = vpack.c.b16 %v549, %v549
        %v576 = vpack.c.b16 %v550, %v550
        %v577 = vpack.c.b16 %v551, %v551
        %v578 = vpack.c.b16 %v552, %v552
        %v579 = vpack.c.b16 %v553, %v553
        %v580 = vpack.c.b16 %v554, %v554
        %v581 = vpack.c.b16 %v555, %v555
        %v582 = vpack.c.b16 %v556, %v556
        %v583 = vpack.c.b16 %v557, %v557
        %v584 = vpack.c.b16 %v558, %v558
        %v585 = vpack.c.b16 %v559, %v559
        %v586 = vpack.c.b16 %v560, %v560
        %v587 = vpack.c.b16 %v561, %v561
        %v588 = vpack.c.b16 %v562, %v562
        %v589 = vpack.c.b16 %v563, %v563
        %v590 = vpack.c.b16 %v564, %v564
        %v591 = vpack.c.b16 %v565, %v565
        %v592 = vpack.c.b16 %v566, %v566
        %v593 = vpack.c.b16 %v567, %v567
        %v594 = vpack.c.b16 %v568, %v568
        %v595 = vpack.c.b16 %v569, %v569
        %v596 = vpack.c.b16 %v570, %v570
        %v597 = vpack.c.b16 %v571, %v571
        %vm624 = vcmask 257024
        %625 = vst.msk [vmem:[%s198] sm:$0xf] %vm624, %v572
        %626 = vst.msk [vmem:[%s198 + $0x4] sm:$0xf] %vm624, %v573
        %627 = vst.msk [vmem:[%s198 + $0x8] sm:$0xf] %vm624, %v574
        %628 = vst.msk [vmem:[%s198 + $0xc] sm:$0xf] %vm624, %v575
        %629 = vst.msk [vmem:[%s198 + $0x10] sm:$0xf] %vm624, %v576
        %630 = vst.msk [vmem:[%s198 + $0x14] sm:$0xf] %vm624, %v577
        %631 = vst.msk [vmem:[%s198 + $0x18] sm:$0xf] %vm624, %v578
        %632 = vst.msk [vmem:[%s198 + $0x1c] sm:$0xf] %vm624, %v579
        %633 = vst.msk [vmem:[%s198 + $0x20] sm:$0xf] %vm624, %v580
        %634 = vst.msk [vmem:[%s198 + $0x24] sm:$0xf] %vm624, %v581
        %635 = vst.msk [vmem:[%s198 + $0x28] sm:$0xf] %vm624, %v582
        %636 = vst.msk [vmem:[%s198 + $0x2c] sm:$0xf] %vm624, %v583
        %637 = vst.msk [vmem:[%s198 + $0x30] sm:$0xf] %vm624, %v584
        %638 = vst.msk [vmem:[%s198 + $0x34] sm:$0xf] %vm624, %v585
        %639 = vst.msk [vmem:[%s198 + $0x38] sm:$0xf] %vm624, %v586
        %640 = vst.msk [vmem:[%s198 + $0x3c] sm:$0xf] %vm624, %v587
        %641 = vst.msk [vmem:[%s198 + $0x40] sm:$0xf] %vm624, %v588
        %642 = vst.msk [vmem:[%s198 + $0x44] sm:$0xf] %vm624, %v589
        %643 = vst.msk [vmem:[%s198 + $0x48] sm:$0xf] %vm624, %v590
        %644 = vst.msk [vmem:[%s198 + $0x4c] sm:$0xf] %vm624, %v591
        %645 = vst.msk [vmem:[%s198 + $0x50] sm:$0xf] %vm624, %v592
        %646 = vst.msk [vmem:[%s198 + $0x54] sm:$0xf] %vm624, %v593
        %647 = vst.msk [vmem:[%s198 + $0x58] sm:$0xf] %vm624, %v594
        %648 = vst.msk [vmem:[%s198 + $0x5c] sm:$0xf] %vm624, %v595
        %649 = vst.msk [vmem:[%s198 + $0x60] sm:$0xf] %vm624, %v596
        %650 = vst.msk [vmem:[%s198 + $0x64] sm:$0xf] %vm624, %v597
      $region36: #{run.4} parent=31 // pred_fallthru
        _
      %p651 = scmp.gt.s32.totalorder %s19, 0
      // Predicated region
      $region37: #{run.4} parent=31 // pred_check
        %p652 = pneg %p651
      $region38: #{run.4} parent=31 // pred_check_branch
        %654 = sbr.rel (%p652) target = $region40
      $region39: #{run.4} parent=31 // pred_region
        %v655 = vld [vmem:[%s198] sm:$0xf]
        %v656 = vld [vmem:[%s198 + $0x4] sm:$0xf]
        %v657 = vld [vmem:[%s198 + $0x8] sm:$0xf]
        %v658 = vld [vmem:[%s198 + $0xc] sm:$0xf]
        %v659 = vld [vmem:[%s198 + $0x10] sm:$0xf]
        %v660 = vld [vmem:[%s198 + $0x14] sm:$0xf]
        %v661 = vld [vmem:[%s198 + $0x18] sm:$0xf]
        %v662 = vld [vmem:[%s198 + $0x1c] sm:$0xf]
        %v663 = vld [vmem:[%s198 + $0x20] sm:$0xf]
        %v664 = vld [vmem:[%s198 + $0x24] sm:$0xf]
        %v665 = vld [vmem:[%s198 + $0x28] sm:$0xf]
        %v666 = vld [vmem:[%s198 + $0x2c] sm:$0xf]
        %v667 = vld [vmem:[%s198 + $0x30] sm:$0xf]
        %v668 = vld [vmem:[%s198 + $0x34] sm:$0xf]
        %v669 = vld [vmem:[%s198 + $0x38] sm:$0xf]
        %v670 = vld [vmem:[%s198 + $0x3c] sm:$0xf]
        %v671 = vld [vmem:[%s198 + $0x40] sm:$0xf]
        %v672 = vld [vmem:[%s198 + $0x44] sm:$0xf]
        %v673 = vld [vmem:[%s198 + $0x48] sm:$0xf]
        %v674 = vld [vmem:[%s198 + $0x4c] sm:$0xf]
        %v675 = vld [vmem:[%s198 + $0x50] sm:$0xf]
        %v676 = vld [vmem:[%s198 + $0x54] sm:$0xf]
        %v677 = vld [vmem:[%s198 + $0x58] sm:$0xf]
        %v678 = vld [vmem:[%s198 + $0x5c] sm:$0xf]
        %v679 = vld [vmem:[%s198 + $0x60] sm:$0xf]
        %v680 = vld [vmem:[%s198 + $0x64] sm:$0xf]
        %v694 = vunpack.c.l.b16 %v516
        %v695 = vunpack.c.h.b16 %v516
        %v696 = vunpack.c.l.b16 %v517
        %v697 = vunpack.c.h.b16 %v517
        %v698 = vunpack.c.l.b16 %v518
        %v699 = vunpack.c.h.b16 %v518
        %v700 = vunpack.c.l.b16 %v519
        %v701 = vunpack.c.h.b16 %v519
        %v702 = vunpack.c.l.b16 %v520
        %v703 = vunpack.c.h.b16 %v520
        %v704 = vunpack.c.l.b16 %v521
        %v705 = vunpack.c.h.b16 %v521
        %v706 = vunpack.c.l.b16 %v522
        %v707 = vunpack.c.h.b16 %v522
        %v708 = vunpack.c.l.b16 %v523
        %v709 = vunpack.c.h.b16 %v523
        %v710 = vunpack.c.l.b16 %v524
        %v711 = vunpack.c.h.b16 %v524
        %v712 = vunpack.c.l.b16 %v525
        %v713 = vunpack.c.h.b16 %v525
        %v714 = vunpack.c.l.b16 %v526
        %v715 = vunpack.c.h.b16 %v526
        %v716 = vunpack.c.l.b16 %v527
        %v717 = vunpack.c.h.b16 %v527
        %v718 = vunpack.c.l.b16 %v528
        %v719 = vunpack.c.h.b16 %v528
        %v720 = vpack.c.b16 %v694, %v694
        %v721 = vpack.c.b16 %v695, %v695
        %v722 = vpack.c.b16 %v696, %v696
        %v723 = vpack.c.b16 %v697, %v697
        %v724 = vpack.c.b16 %v698, %v698
        %v725 = vpack.c.b16 %v699, %v699
        %v726 = vpack.c.b16 %v700, %v700
        %v727 = vpack.c.b16 %v701, %v701
        %v728 = vpack.c.b16 %v702, %v702
        %v729 = vpack.c.b16 %v703, %v703
        %v730 = vpack.c.b16 %v704, %v704
        %v731 = vpack.c.b16 %v705, %v705
        %v732 = vpack.c.b16 %v706, %v706
        %v733 = vpack.c.b16 %v707, %v707
        %v734 = vpack.c.b16 %v708, %v708
        %v735 = vpack.c.b16 %v709, %v709
        %v736 = vpack.c.b16 %v710, %v710
        %v737 = vpack.c.b16 %v711, %v711
        %v738 = vpack.c.b16 %v712, %v712
        %v739 = vpack.c.b16 %v713, %v713
        %v740 = vpack.c.b16 %v714, %v714
        %v741 = vpack.c.b16 %v715, %v715
        %v742 = vpack.c.b16 %v716, %v716
        %v743 = vpack.c.b16 %v717, %v717
        %v744 = vpack.c.b16 %v718, %v718
        %v745 = vpack.c.b16 %v719, %v719
        %v772 = vmax.bf16 %v655, %v720
        %v773 = vmax.bf16 %v656, %v721
        %v774 = vmax.bf16 %v657, %v722
        %v775 = vmax.bf16 %v658, %v723
        %v776 = vmax.bf16 %v659, %v724
        %v777 = vmax.bf16 %v660, %v725
        %v778 = vmax.bf16 %v661, %v726
        %v779 = vmax.bf16 %v662, %v727
        %v780 = vmax.bf16 %v663, %v728
        %v781 = vmax.bf16 %v664, %v729
        %v782 = vmax.bf16 %v665, %v730
        %v783 = vmax.bf16 %v666, %v731
        %v784 = vmax.bf16 %v667, %v732
        %v785 = vmax.bf16 %v668, %v733
        %v786 = vmax.bf16 %v669, %v734
        %v787 = vmax.bf16 %v670, %v735
        %v788 = vmax.bf16 %v671, %v736
        %v789 = vmax.bf16 %v672, %v737
        %v790 = vmax.bf16 %v673, %v738
        %v791 = vmax.bf16 %v674, %v739
        %v792 = vmax.bf16 %v675, %v740
        %v793 = vmax.bf16 %v676, %v741
        %v794 = vmax.bf16 %v677, %v742
        %v795 = vmax.bf16 %v678, %v743
        %v796 = vmax.bf16 %v679, %v744
        %v797 = vmax.bf16 %v680, %v745
        %vm798 = vcmask 257024
        %799 = vst.msk [vmem:[%s198] sm:$0xf] %vm798, %v772
        %800 = vst.msk [vmem:[%s198 + $0x4] sm:$0xf] %vm798, %v773
        %801 = vst.msk [vmem:[%s198 + $0x8] sm:$0xf] %vm798, %v774
        %802 = vst.msk [vmem:[%s198 + $0xc] sm:$0xf] %vm798, %v775
        %803 = vst.msk [vmem:[%s198 + $0x10] sm:$0xf] %vm798, %v776
        %804 = vst.msk [vmem:[%s198 + $0x14] sm:$0xf] %vm798, %v777
        %805 = vst.msk [vmem:[%s198 + $0x18] sm:$0xf] %vm798, %v778
        %806 = vst.msk [vmem:[%s198 + $0x1c] sm:$0xf] %vm798, %v779
        %807 = vst.msk [vmem:[%s198 + $0x20] sm:$0xf] %vm798, %v780
        %808 = vst.msk [vmem:[%s198 + $0x24] sm:$0xf] %vm798, %v781
        %809 = vst.msk [vmem:[%s198 + $0x28] sm:$0xf] %vm798, %v782
        %810 = vst.msk [vmem:[%s198 + $0x2c] sm:$0xf] %vm798, %v783
        %811 = vst.msk [vmem:[%s198 + $0x30] sm:$0xf] %vm798, %v784
        %812 = vst.msk [vmem:[%s198 + $0x34] sm:$0xf] %vm798, %v785
        %813 = vst.msk [vmem:[%s198 + $0x38] sm:$0xf] %vm798, %v786
        %814 = vst.msk [vmem:[%s198 + $0x3c] sm:$0xf] %vm798, %v787
        %815 = vst.msk [vmem:[%s198 + $0x40] sm:$0xf] %vm798, %v788
        %816 = vst.msk [vmem:[%s198 + $0x44] sm:$0xf] %vm798, %v789
        %817 = vst.msk [vmem:[%s198 + $0x48] sm:$0xf] %vm798, %v790
        %818 = vst.msk [vmem:[%s198 + $0x4c] sm:$0xf] %vm798, %v791
        %819 = vst.msk [vmem:[%s198 + $0x50] sm:$0xf] %vm798, %v792
        %820 = vst.msk [vmem:[%s198 + $0x54] sm:$0xf] %vm798, %v793
        %821 = vst.msk [vmem:[%s198 + $0x58] sm:$0xf] %vm798, %v794
        %822 = vst.msk [vmem:[%s198 + $0x5c] sm:$0xf] %vm798, %v795
        %823 = vst.msk [vmem:[%s198 + $0x60] sm:$0xf] %vm798, %v796
        %824 = vst.msk [vmem:[%s198 + $0x64] sm:$0xf] %vm798, %v797
      $region40: #{run.4} parent=31 // pred_fallthru
        _
      %s825 = smul.u32 26, %s18
      %p826 = scmp.lt.s32.totalorder %s825, 51
      %s827 = scalar_select %p826, %s825, 51
      %s828 = smul.addr %s827, 4
      %s829 = scalar_lea.vmem %s3, %s828
      // Predicated region
      $region41: #{run.4} parent=31 // pred_check
        %p830 = pneg %p114
      $region42: #{run.4} parent=31 // pred_check_branch
        %832 = sbr.rel (%p830) target = $region44
      $region43: #{run.4} parent=31 // pred_region
        %s833 = smul.u32 26, %s18
      $region44: #{run.4} parent=31 // pred_fallthru
        _
    $region32: #{run.4} parent=5 // pred_fallthru
      _
    %p834 = scmp.le.s32.totalorder 2, %s9
    // Predicated region
    $region45: #{run.4} parent=5 // pred_check
      %p835 = pneg %p834
    $region46: #{run.4} parent=5 // pred_check_branch
      %837 = sbr.rel (%p835) target = $region48
    $region47: #{run.4} parent=5 // pred_region
      %s838 = ssub.s32 %s9, 2
      // Predicated region
      $region49: #{run.4} parent=47 // pred_check
        %p839 = pneg %p120
      $region50: #{run.4} parent=47 // pred_check_branch
        %841 = sbr.rel (%p839) target = $region52
      $region51: #{run.4} parent=47 // pred_region
        %s842 = smul.u32 26, %s20
        %p843 = scmp.lt.s32.totalorder %s842, 51
        %s844 = scalar_select %p843, %s842, 51
        %s845 = smul.addr %s844, 4
        %s846 = scalar_lea.vmem %s3, %s845
      $region52: #{run.4} parent=47 // pred_fallthru
        _
    $region48: #{run.4} parent=5 // pred_fallthru
      _
  $region6: #{run.4} parent=0 // loop_footer
    %s13 = sadd.s32 1, %s9
  $region7: #{run.4} parent=0 // loop_footer_branch
    %8 = sbr.rel target = $region3
  $region8: #{run.4} parent=0 // loop_exit
    _

// kernel: run.5
$region0: #{run.5}
  #allocation0 [shape = 'u32[]', space=smem, size = 0x4, offset = 0x4, fixed_abs, tag = 'smem constant byte address 0x4 - core index']
  #allocation1 [shape = 'u32[144,128]{1,0:T(1,128)}', space=vmem, size = 0x12000, scoped, tag = 'internal scratch']
  %s0 = inlined_call_operand.vmem [shape: bf16[1,416,288], index: 0, kind: input, shape index: {}]
  %s1 = inlined_call_operand.vmem [shape: bf16[288,64], index: 1, kind: input, shape index: {}]
  %s2 = inlined_call_operand.vmem [shape: f32[1,64], index: 2, kind: input, shape index: {}]
  %s3 = inlined_call_operand.vmem [shape: bf16[416,64], index: 3, kind: output, shape index: {}]
  %s4 = sld [smem:[#allocation0]]
  $region53: #{run.5} parent=0
    _
  %s6 = ssub.s32 1, %s4
  %s7 = scalar_select 0, %s6, %s4
  loop: start=0, step=1, limit=4
  $region2: #{run.5} parent=0 // loop_pre_header
    _
  $region3: #{run.5} parent=0 // loop_header
    %s9 = sphi 0, %s13
    %p10 = scmp.ge.s32.totalorder %s9, 4
    %s16 = sphi 0, %s28
    %s17 = sphi 0, %s24
    %s18 = sphi 0, %s16
    %s19 = sphi 0, %s17
    %s20 = sphi 0, %s18
    %s21 = sphi 0, %s19
    %s33 = sphi 0, %s35
    %s36 = sphi 0, %s33
    %s37 = sphi 0, %s36
    %s53 = sphi 0, %s37
    %s57 = sphi 0, %s57
    %s59 = sphi 0, %s57
    %s60 = sphi 0, %s59
    %s74 = sphi 0, %s60
    %s78 = sphi 0, %s78
    %s80 = sphi 0, %s78
    %s81 = sphi 0, %s80
    %s95 = sphi 0, %s81
    %s101 = sphi 0, %s103
    %s104 = sphi 0, %s101
    %s105 = sphi 0, %s104
    %s121 = sphi 0, %s105
  $region4: #{run.5} parent=0 // loop_header_branch
    %12 = sbr.rel (%p10) target = $region8
  $region5: #{run.5} parent=0 // loop_body
    %s14 = ssub.s32 %s9, 1
    %s15 = ssub.s32 %s9, 2
    %s22 = sadd.s32 1, %s17
    %p23 = scmp.ge.s32.totalorder %s22, 1
    %s24 = scalar_select %p23, 0, %s22
    %s25 = sadd.s32 1, %s16
    %s26 = scalar_select %p23, %s25, %s16
    %p27 = scmp.ge.s32.totalorder %s26, 2
    %s28 = scalar_select %p27, 0, %s26
    %s29 = ssub.s32 %s17, %s24
    %s30 = ssub.s32 %s16, %s28
    %s31 = sor.u32 %s29, %s30
    %p32 = scmp.eq.s32.totalorder %s31, 0
    %s34 = sadd.s32 %s33, 1
    %s35 = scalar_select %p32, %s33, %s34
    %p38 = pneg %p32
    %p39 = scmp.eq.s32.totalorder %s9, 1
    %p40 = por %p38, %p39
    %p41 = scmp.ne.s32.totalorder %s33, %s36
    %p42 = scmp.eq.s32.totalorder %s9, 0
    %p43 = por %p41, %p42
    %p44 = scmp.ne.s32.totalorder %s33, %s36
    %p45 = scmp.eq.s32.totalorder %s14, 1
    %p46 = por %p44, %p45
    %p47 = scmp.ne.s32.totalorder %s36, %s37
    %p48 = scmp.eq.s32.totalorder %s14, 0
    %p49 = por %p47, %p48
    %p50 = scmp.ne.s32.totalorder %s36, %s37
    %p51 = scmp.eq.s32.totalorder %s15, 1
    %p52 = por %p50, %p51
    %p54 = scmp.ne.s32.totalorder %s37, %s53
    %p55 = scmp.eq.s32.totalorder %s15, 0
    %p56 = por %p54, %p55
    %s58 = sadd.s32 %s57, 1
    %p61 = scmp.eq.s32.totalorder %s9, 1
    %p62 = scmp.ne.s32.totalorder %s57, %s59
    %p63 = scmp.eq.s32.totalorder %s9, 0
    %p64 = por %p62, %p63
    %p65 = scmp.ne.s32.totalorder %s57, %s59
    %p66 = scmp.eq.s32.totalorder %s14, 1
    %p67 = por %p65, %p66
    %p68 = scmp.ne.s32.totalorder %s59, %s60
    %p69 = scmp.eq.s32.totalorder %s14, 0
    %p70 = por %p68, %p69
    %p71 = scmp.ne.s32.totalorder %s59, %s60
    %p72 = scmp.eq.s32.totalorder %s15, 1
    %p73 = por %p71, %p72
    %p75 = scmp.ne.s32.totalorder %s60, %s74
    %p76 = scmp.eq.s32.totalorder %s15, 0
    %p77 = por %p75, %p76
    %s79 = sadd.s32 %s78, 1
    %p82 = scmp.eq.s32.totalorder %s9, 1
    %p83 = scmp.ne.s32.totalorder %s78, %s80
    %p84 = scmp.eq.s32.totalorder %s9, 0
    %p85 = por %p83, %p84
    %p86 = scmp.ne.s32.totalorder %s78, %s80
    %p87 = scmp.eq.s32.totalorder %s14, 1
    %p88 = por %p86, %p87
    %p89 = scmp.ne.s32.totalorder %s80, %s81
    %p90 = scmp.eq.s32.totalorder %s14, 0
    %p91 = por %p89, %p90
    %p92 = scmp.ne.s32.totalorder %s80, %s81
    %p93 = scmp.eq.s32.totalorder %s15, 1
    %p94 = por %p92, %p93
    %p96 = scmp.ne.s32.totalorder %s81, %s95
    %p97 = scmp.eq.s32.totalorder %s15, 0
    %p98 = por %p96, %p97
    %s99 = ssub.s32 %s16, %s28
    %p100 = scmp.eq.s32.totalorder %s99, 0
    %s102 = sadd.s32 %s101, 1
    %s103 = scalar_select %p100, %s101, %s102
    %p106 = pneg %p100
    %p107 = scmp.eq.s32.totalorder %s9, 1
    %p108 = por %p106, %p107
    %p109 = scmp.ne.s32.totalorder %s101, %s104
    %p110 = scmp.eq.s32.totalorder %s9, 0
    %p111 = por %p109, %p110
    %p112 = scmp.ne.s32.totalorder %s101, %s104
    %p113 = scmp.eq.s32.totalorder %s14, 1
    %p114 = por %p112, %p113
    %p115 = scmp.ne.s32.totalorder %s104, %s105
    %p116 = scmp.eq.s32.totalorder %s14, 0
    %p117 = por %p115, %p116
    %p118 = scmp.ne.s32.totalorder %s104, %s105
    %p119 = scmp.eq.s32.totalorder %s15, 1
    %p120 = por %p118, %p119
    %p122 = scmp.ne.s32.totalorder %s105, %s121
    %p123 = scmp.eq.s32.totalorder %s15, 0
    %p124 = por %p122, %p123
    %p125 = scmp.le.s32.totalorder 1, %s9
    %p126 = scmp.lt.s32.totalorder %s9, 3
    %p127 = pnand %p125, %p126
    %p128 = pneg %p127
    // Predicated region
    $region9: #{run.5} parent=5 // pred_check
      _
    $region10: #{run.5} parent=5 // pred_check_branch
      %130 = sbr.rel (%p127) target = $region12
    $region11: #{run.5} parent=5 // pred_region
      %s131 = ssub.s32 %s9, 1
      // Predicated region
      $region13: #{run.5} parent=11 // pred_check
        %p132 = pneg %p70
      $region14: #{run.5} parent=11 // pred_check_branch
        %134 = sbr.rel (%p132) target = $region16
      $region15: #{run.5} parent=11 // pred_region
        _
      $region16: #{run.5} parent=11 // pred_fallthru
        _
      // Predicated region
      $region17: #{run.5} parent=11 // pred_check
        %p135 = pneg %p91
      $region18: #{run.5} parent=11 // pred_check_branch
        %137 = sbr.rel (%p135) target = $region20
      $region19: #{run.5} parent=11 // pred_region
        _
      $region20: #{run.5} parent=11 // pred_fallthru
        _
    $region12: #{run.5} parent=5 // pred_fallthru
      _
    %p138 = scmp.lt.s32.totalorder %s9, 2
    // Predicated region
    $region21: #{run.5} parent=5 // pred_check
      %p139 = pneg %p138
    $region22: #{run.5} parent=5 // pred_check_branch
      %141 = sbr.rel (%p139) target = $region24
    $region23: #{run.5} parent=5 // pred_region
      // Predicated region
      $region25: #{run.5} parent=23 // pred_check
        %p142 = pneg %p43
      $region26: #{run.5} parent=23 // pred_check_branch
        %144 = sbr.rel (%p142) target = $region28
      $region27: #{run.5} parent=23 // pred_region
        %s145 = smul.u32 26, %s16
        %p146 = scmp.lt.s32.totalorder %s17, 0
        %s147 = scalar_select %p146, %s17, 0
        %p148 = scmp.lt.s32.totalorder %s145, 51
        %s149 = scalar_select %p148, %s145, 51
        %s150 = smul.addr %s149, 3
        %s151 = smul.addr %s147, 156
        %s152 = sadd.s32 %s150, %s151
        %s153 = smul.addr %s152, 4
        %s154 = scalar_lea.vmem %s0, %s153
        %s155 = smul.u32 26, %s16
      $region28: #{run.5} parent=23 // pred_fallthru
        _
    $region24: #{run.5} parent=5 // pred_fallthru
      _
    %p156 = scmp.le.s32.totalorder 1, %s9
    %p157 = scmp.lt.s32.totalorder %s9, 3
    %p158 = pnand %p156, %p157
    %p159 = pneg %p158
    // Predicated region
    $region29: #{run.5} parent=5 // pred_check
      _
    $region30: #{run.5} parent=5 // pred_check_branch
      %161 = sbr.rel (%p158) target = $region32
    $region31: #{run.5} parent=5 // pred_region
      %s162 = ssub.s32 %s9, 1
      %s163 = smul.u32 26, %s18
      %p164 = scmp.lt.s32.totalorder %s19, 0
      %s165 = scalar_select %p164, %s19, 0
      %p166 = scmp.lt.s32.totalorder %s163, 51
      %s167 = scalar_select %p166, %s163, 51
      %s168 = smul.addr %s167, 3
      %s169 = smul.addr %s165, 156
      %s170 = sadd.s32 %s168, %s169
      %s171 = smul.addr %s170, 4
      %s172 = scalar_lea.vmem %s0, %s171
      %p173 = pneg %p49
      %p174 = pneg %p46
      %p175 = pneg %p70
      %p176 = pneg %p67
      %p177 = pneg %p91
      %p178 = pneg %p88
      %p179 = pneg %p117
      %p180 = pneg %p114
      %s181 = smul.u32 26, %s18
      %p182 = scmp.lt.s32.totalorder %s181, 51
      %s183 = scalar_select %p182, %s181, 51
      %s184 = smul.addr %s183, 4
      %s185 = scalar_lea.vmem %s3, %s184
      %s186 = smul.u32 26, %s18
      %p187 = scmp.lt.s32.totalorder %s19, 0
      %s188 = scalar_select %p187, %s19, 0
      %p189 = scmp.lt.s32.totalorder %s186, 51
      %s190 = scalar_select %p189, %s186, 51
      %s191 = smul.addr %s190, 3
      %s192 = smul.addr %s188, 156
      %s193 = sadd.s32 %s191, %s192
      %s194 = smul.addr %s193, 4
      %s195 = scalar_lea.vmem %s0, %s194
      %s196 = smul.u32 26, %s18
      %s197 = smul.u32 26, %s18
      %p198 = scmp.lt.s32.totalorder %s197, 51
      %s199 = scalar_select %p198, %s197, 51
      %s200 = smul.addr %s199, 4
      %s201 = scalar_lea.vmem %s3, %s200
      %s202 = smul.u32 26, %s18
      %v204 = vld [vmem:[%s195] sm:$0xff]
      %v205 = vld [vmem:[%s195 + $0x8] sm:$0xf]
      %v206 = vld [vmem:[%s195 + $0xc] sm:$0xff]
      %v207 = vld [vmem:[%s195 + $0x14] sm:$0xf]
      %v208 = vld [vmem:[%s195 + $0x18] sm:$0xff]
      %v209 = vld [vmem:[%s195 + $0x20] sm:$0xf]
      %v210 = vld [vmem:[%s195 + $0x24] sm:$0xff]
      %v211 = vld [vmem:[%s195 + $0x2c] sm:$0xf]
      %v212 = vld [vmem:[%s195 + $0x30] sm:$0xff]
      %v213 = vld [vmem:[%s195 + $0x38] sm:$0xf]
      %v214 = vld [vmem:[%s195 + $0x3c] sm:$0xff]
      %v215 = vld [vmem:[%s195 + $0x44] sm:$0xf]
      %v216 = vld [vmem:[%s195 + $0x48] sm:$0xff]
      %v217 = vld [vmem:[%s195 + $0x50] sm:$0xf]
      %v218 = vld [vmem:[%s195 + $0x54] sm:$0xff]
      %v219 = vld [vmem:[%s195 + $0x5c] sm:$0xf]
      %v220 = vld [vmem:[%s195 + $0x60] sm:$0xff]
      %v221 = vld [vmem:[%s195 + $0x68] sm:$0xf]
      %v222 = vld [vmem:[%s195 + $0x6c] sm:$0xff]
      %v223 = vld [vmem:[%s195 + $0x74] sm:$0xf]
      %v224 = vld [vmem:[%s195 + $0x78] sm:$0xff]
      %v225 = vld [vmem:[%s195 + $0x80] sm:$0xf]
      %v226 = vld [vmem:[%s195 + $0x84] sm:$0xff]
      %v227 = vld [vmem:[%s195 + $0x8c] sm:$0xf]
      %v228 = vld [vmem:[%s195 + $0x90] sm:$0xff]
      %v229 = vld [vmem:[%s195 + $0x98] sm:$0xf]
      %v230 = vld [vmem:[%s195 + $0x9c] sm:$0xff]
      %v231 = vld [vmem:[%s195 + $0xa4] sm:$0xf]
      %v232 = vld [vmem:[%s195 + $0xa8] sm:$0xff]
      %v233 = vld [vmem:[%s195 + $0xb0] sm:$0xf]
      %v234 = vld [vmem:[%s195 + $0xb4] sm:$0xff]
      %v235 = vld [vmem:[%s195 + $0xbc] sm:$0xf]
      %v236 = vld [vmem:[%s195 + $0xc0] sm:$0xff]
      %v237 = vld [vmem:[%s195 + $0xc8] sm:$0xf]
      %v238 = vld [vmem:[%s195 + $0xcc] sm:$0xff]
      %v239 = vld [vmem:[%s195 + $0xd4] sm:$0xf]
      %v240 = vld [vmem:[%s195 + $0xd8] sm:$0xff]
      %v241 = vld [vmem:[%s195 + $0xe0] sm:$0xf]
      %v242 = vld [vmem:[%s195 + $0xe4] sm:$0xff]
      %v243 = vld [vmem:[%s195 + $0xec] sm:$0xf]
      %v244 = vld [vmem:[%s195 + $0xf0] sm:$0xff]
      %v245 = vld [vmem:[%s195 + $0xf8] sm:$0xf]
      %v246 = vld [vmem:[%s195 + $0xfc] sm:$0xff]
      %v247 = vld [vmem:[%s195 + $0x104] sm:$0xf]
      %v248 = vld [vmem:[%s195 + $0x108] sm:$0xff]
      %v249 = vld [vmem:[%s195 + $0x110] sm:$0xf]
      %v250 = vld [vmem:[%s195 + $0x114] sm:$0xff]
      %v251 = vld [vmem:[%s195 + $0x11c] sm:$0xf]
      %v252 = vld [vmem:[%s195 + $0x120] sm:$0xff]
      %v253 = vld [vmem:[%s195 + $0x128] sm:$0xf]
      %v254 = vld [vmem:[%s195 + $0x12c] sm:$0xff]
      %v255 = vld [vmem:[%s195 + $0x134] sm:$0xf]
      %v256 = vld [vmem:[%s1] sm:$0xf]
      %v257 = vld [vmem:[%s1 + $0x4] sm:$0xf]
      %v258 = vld [vmem:[%s1 + $0x8] sm:$0xf]
      %v259 = vld [vmem:[%s1 + $0xc] sm:$0xf]
      %v260 = vld [vmem:[%s1 + $0x10] sm:$0xf]
      %v261 = vld [vmem:[%s1 + $0x14] sm:$0xf]
      %v262 = vld [vmem:[%s1 + $0x18] sm:$0xf]
      %v263 = vld [vmem:[%s1 + $0x1c] sm:$0xf]
      %v264 = vld [vmem:[%s1 + $0x20] sm:$0xf]
      %v265 = vld [vmem:[%s1 + $0x24] sm:$0xf]
      %v266 = vld [vmem:[%s1 + $0x28] sm:$0xf]
      %v267 = vld [vmem:[%s1 + $0x2c] sm:$0xf]
      %v268 = vld [vmem:[%s1 + $0x30] sm:$0xf]
      %v269 = vld [vmem:[%s1 + $0x34] sm:$0xf]
      %v270 = vld [vmem:[%s1 + $0x38] sm:$0xf]
      %v271 = vld [vmem:[%s1 + $0x3c] sm:$0xf]
      %v272 = vld [vmem:[%s1 + $0x40] sm:$0xf]
      %v273 = vld [vmem:[%s1 + $0x44] sm:$0xf]
      %v274 = vld [vmem:[%s1 + $0x48] sm:$0xf]
      %v275 = vld [vmem:[%s1 + $0x4c] sm:$0xf]
      %v276 = vld [vmem:[%s1 + $0x50] sm:$0xf]
      %v277 = vld [vmem:[%s1 + $0x54] sm:$0xf]
      %v278 = vld [vmem:[%s1 + $0x58] sm:$0xf]
      %v279 = vld [vmem:[%s1 + $0x5c] sm:$0xf]
      %v280 = vld [vmem:[%s1 + $0x60] sm:$0xf]
      %v281 = vld [vmem:[%s1 + $0x64] sm:$0xf]
      %v282 = vld [vmem:[%s1 + $0x68] sm:$0xf]
      %v283 = vld [vmem:[%s1 + $0x6c] sm:$0xf]
      %v284 = vld [vmem:[%s1 + $0x70] sm:$0xf]
      %v285 = vld [vmem:[%s1 + $0x74] sm:$0xf]
      %v286 = vld [vmem:[%s1 + $0x78] sm:$0xf]
      %v287 = vld [vmem:[%s1 + $0x7c] sm:$0xf]
      %v288 = vld [vmem:[%s1 + $0x80] sm:$0xf]
      %v289 = vld [vmem:[%s1 + $0x84] sm:$0xf]
      %v290 = vld [vmem:[%s1 + $0x88] sm:$0xf]
      %v291 = vld [vmem:[%s1 + $0x8c] sm:$0xf]
      %v292 = vld [vmem:[%s2] sm:$0x1]
      %v294 = vlaneseq
      %v295 = vshrl.u32 %v294, 7
      %v296 = vsub.s32 0, %v295
      %v297 = vrot.slane %v292, %v296
      %v351 = vunpack.c.l.b16 %v204
      %v352 = vunpack.c.h.b16 %v204
      %v353 = vunpack.c.l.b16 %v205
      %v354 = vunpack.c.l.b16 %v206
      %v355 = vunpack.c.h.b16 %v206
      %v356 = vunpack.c.l.b16 %v207
      %v357 = vunpack.c.l.b16 %v208
      %v358 = vunpack.c.h.b16 %v208
      %v359 = vunpack.c.l.b16 %v209
      %v360 = vunpack.c.l.b16 %v210
      %v361 = vunpack.c.h.b16 %v210
      %v362 = vunpack.c.l.b16 %v211
      %v363 = vunpack.c.l.b16 %v212
      %v364 = vunpack.c.h.b16 %v212
      %v365 = vunpack.c.l.b16 %v213
      %v366 = vunpack.c.l.b16 %v214
      %v367 = vunpack.c.h.b16 %v214
      %v368 = vunpack.c.l.b16 %v215
      %v369 = vunpack.c.l.b16 %v216
      %v370 = vunpack.c.h.b16 %v216
      %v371 = vunpack.c.l.b16 %v217
      %v372 = vunpack.c.l.b16 %v218
      %v373 = vunpack.c.h.b16 %v218
      %v374 = vunpack.c.l.b16 %v219
      %v375 = vunpack.c.l.b16 %v220
      %v376 = vunpack.c.h.b16 %v220
      %v377 = vunpack.c.l.b16 %v221
      %v378 = vunpack.c.l.b16 %v222
      %v379 = vunpack.c.h.b16 %v222
      %v380 = vunpack.c.l.b16 %v223
      %v381 = vunpack.c.l.b16 %v224
      %v382 = vunpack.c.h.b16 %v224
      %v383 = vunpack.c.l.b16 %v225
      %v384 = vunpack.c.l.b16 %v226
      %v385 = vunpack.c.h.b16 %v226
      %v386 = vunpack.c.l.b16 %v227
      %v387 = vunpack.c.l.b16 %v228
      %v388 = vunpack.c.h.b16 %v228
      %v389 = vunpack.c.l.b16 %v229
      %v390 = vunpack.c.l.b16 %v230
      %v391 = vunpack.c.h.b16 %v230
      %v392 = vunpack.c.l.b16 %v231
      %v393 = vunpack.c.l.b16 %v232
      %v394 = vunpack.c.h.b16 %v232
      %v395 = vunpack.c.l.b16 %v233
      %v396 = vunpack.c.l.b16 %v234
      %v397 = vunpack.c.h.b16 %v234
      %v398 = vunpack.c.l.b16 %v235
      %v399 = vunpack.c.l.b16 %v236
      %v400 = vunpack.c.h.b16 %v236
      %v401 = vunpack.c.l.b16 %v237
      %v402 = vunpack.c.l.b16 %v238
      %v403 = vunpack.c.h.b16 %v238
      %v404 = vunpack.c.l.b16 %v239
      %v405 = vunpack.c.l.b16 %v240
      %v406 = vunpack.c.h.b16 %v240
      %v407 = vunpack.c.l.b16 %v241
      %v408 = vunpack.c.l.b16 %v242
      %v409 = vunpack.c.h.b16 %v242
      %v410 = vunpack.c.l.b16 %v243
      %v411 = vunpack.c.l.b16 %v244
      %v412 = vunpack.c.h.b16 %v244
      %v413 = vunpack.c.l.b16 %v245
      %v414 = vunpack.c.l.b16 %v246
      %v415 = vunpack.c.h.b16 %v246
      %v416 = vunpack.c.l.b16 %v247
      %v417 = vunpack.c.l.b16 %v248
      %v418 = vunpack.c.h.b16 %v248
      %v419 = vunpack.c.l.b16 %v249
      %v420 = vunpack.c.l.b16 %v250
      %v421 = vunpack.c.h.b16 %v250
      %v422 = vunpack.c.l.b16 %v251
      %v423 = vunpack.c.l.b16 %v252
      %v424 = vunpack.c.h.b16 %v252
      %v425 = vunpack.c.l.b16 %v253
      %v426 = vunpack.c.l.b16 %v254
      %v427 = vunpack.c.h.b16 %v254
      %v428 = vunpack.c.l.b16 %v255
      %v429 = vpack.c.b16 %v354, %v351
      %v430 = vpack.c.b16 %v355, %v352
      %v431 = vpack.c.b16 %v356, %v353
      %v432 = vpack.c.b16 %v360, %v357
      %v433 = vpack.c.b16 %v361, %v358
      %v434 = vpack.c.b16 %v362, %v359
      %v435 = vpack.c.b16 %v366, %v363
      %v436 = vpack.c.b16 %v367, %v364
      %v437 = vpack.c.b16 %v368, %v365
      %v438 = vpack.c.b16 %v372, %v369
      %v439 = vpack.c.b16 %v373, %v370
      %v440 = vpack.c.b16 %v374, %v371
      %v441 = vpack.c.b16 %v378, %v375
      %v442 = vpack.c.b16 %v379, %v376
      %v443 = vpack.c.b16 %v380, %v377
      %v444 = vpack.c.b16 %v384, %v381
      %v445 = vpack.c.b16 %v385, %v382
      %v446 = vpack.c.b16 %v386, %v383
      %v447 = vpack.c.b16 %v390, %v387
      %v448 = vpack.c.b16 %v391, %v388
      %v449 = vpack.c.b16 %v392, %v389
      %v450 = vpack.c.b16 %v396, %v393
      %v451 = vpack.c.b16 %v397, %v394
      %v452 = vpack.c.b16 %v398, %v395
      %v453 = vpack.c.b16 %v402, %v399
      %v454 = vpack.c.b16 %v403, %v400
      %v455 = vpack.c.b16 %v404, %v401
      %v456 = vpack.c.b16 %v408, %v405
      %v457 = vpack.c.b16 %v409, %v406
      %v458 = vpack.c.b16 %v410, %v407
      %v459 = vpack.c.b16 %v414, %v411
      %v460 = vpack.c.b16 %v415, %v412
      %v461 = vpack.c.b16 %v416, %v413
      %v462 = vpack.c.b16 %v420, %v417
      %v463 = vpack.c.b16 %v421, %v418
      %v464 = vpack.c.b16 %v422, %v419
      %v465 = vpack.c.b16 %v426, %v423
      %v466 = vpack.c.b16 %v427, %v424
      %v467 = vpack.c.b16 %v428, %v425
      %v530 = vunpack.c.l.b16 %v256
      %v531 = vunpack.c.l.b16 %v257
      %v532 = vunpack.c.l.b16 %v258
      %v533 = vunpack.c.l.b16 %v259
      %v534 = vunpack.c.l.b16 %v260
      %v535 = vunpack.c.l.b16 %v261
      %v536 = vunpack.c.l.b16 %v262
      %v537 = vunpack.c.l.b16 %v263
      %v538 = vunpack.c.l.b16 %v264
      %v539 = vunpack.c.l.b16 %v265
      %v540 = vunpack.c.l.b16 %v266
      %v541 = vunpack.c.l.b16 %v267
      %v542 = vunpack.c.l.b16 %v268
      %v543 = vunpack.c.l.b16 %v269
      %v544 = vunpack.c.l.b16 %v270
      %v545 = vunpack.c.l.b16 %v271
      %v546 = vunpack.c.l.b16 %v272
      %v547 = vunpack.c.l.b16 %v273
      %v548 = vunpack.c.l.b16 %v274
      %v549 = vunpack.c.l.b16 %v275
      %v550 = vunpack.c.l.b16 %v276
      %v551 = vunpack.c.l.b16 %v277
      %v552 = vunpack.c.l.b16 %v278
      %v553 = vunpack.c.l.b16 %v279
      %v554 = vunpack.c.l.b16 %v280
      %v555 = vunpack.c.l.b16 %v281
      %v556 = vunpack.c.l.b16 %v282
      %v557 = vunpack.c.l.b16 %v283
      %v558 = vunpack.c.l.b16 %v284
      %v559 = vunpack.c.l.b16 %v285
      %v560 = vunpack.c.l.b16 %v286
      %v561 = vunpack.c.l.b16 %v287
      %v562 = vunpack.c.l.b16 %v288
      %v563 = vunpack.c.l.b16 %v289
      %v564 = vunpack.c.l.b16 %v290
      %v565 = vunpack.c.l.b16 %v291
      %v566 = vpack.c.b16 %v531, %v530
      %v567 = vpack.c.b16 %v533, %v532
      %v568 = vpack.c.b16 %v535, %v534
      %v569 = vpack.c.b16 %v537, %v536
      %v570 = vpack.c.b16 %v539, %v538
      %v571 = vpack.c.b16 %v541, %v540
      %v572 = vpack.c.b16 %v543, %v542
      %v573 = vpack.c.b16 %v545, %v544
      %v574 = vpack.c.b16 %v547, %v546
      %v575 = vpack.c.b16 %v549, %v548
      %v576 = vpack.c.b16 %v551, %v550
      %v577 = vpack.c.b16 %v553, %v552
      %v578 = vpack.c.b16 %v555, %v554
      %v579 = vpack.c.b16 %v557, %v556
      %v580 = vpack.c.b16 %v559, %v558
      %v581 = vpack.c.b16 %v561, %v560
      %v582 = vpack.c.b16 %v563, %v562
      %v583 = vpack.c.b16 %v565, %v564
      %vm602 = vcmask 261120
      %v604 = vsel %vm602, %v431, 0
      %v607 = vsel %vm602, %v434, 0
      %v610 = vsel %vm602, %v437, 0
      %v613 = vsel %vm602, %v440, 0
      %v616 = vsel %vm602, %v443, 0
      %v619 = vsel %vm602, %v446, 0
      %v622 = vsel %vm602, %v449, 0
      %v625 = vsel %vm602, %v452, 0
      %v628 = vsel %vm602, %v455, 0
      %v631 = vsel %vm602, %v458, 0
      %v634 = vsel %vm602, %v461, 0
      %v637 = vsel %vm602, %v464, 0
      %v640 = vsel %vm602, %v467, 0
      %642 = vmatprep.subr.bf16.mxu0 0
      %643 = vmatpush1.bf16.msra.mxu0 %v573
      %644 = vmatprep.subr.bf16.mxu0 0
      %645 = vmatpush1.bf16.msra.mxu0 %v572
      %646 = vmatprep.subr.bf16.mxu0 0
      %647 = vmatpush1.bf16.msra.mxu0 %v571
      %648 = vmatprep.subr.bf16.mxu0 0
      %649 = vmatpush1.bf16.msra.mxu0 %v570
      %650 = vmatprep.subr.bf16.mxu0 0
      %651 = vmatpush1.bf16.msra.mxu0 %v569
      %652 = vmatprep.subr.bf16.mxu0 0
      %653 = vmatpush1.bf16.msra.mxu0 %v568
      %654 = vmatprep.subr.bf16.mxu0 0
      %655 = vmatpush1.bf16.msra.mxu0 %v567
      %656 = vmatprep.subr.bf16.mxu0 0
      %657 = vmatpush1.bf16.msra.mxu0 %v566
      %658 = vmatprep.subr.bf16.mxu0 0
      %659 = vmatpush2.bf16.msra.mxu0 %v581
      %660 = vmatprep.subr.bf16.mxu0 0
      %661 = vmatpush2.bf16.msra.mxu0 %v580
      %662 = vmatprep.subr.bf16.mxu0 0
      %663 = vmatpush2.bf16.msra.mxu0 %v579
      %664 = vmatprep.subr.bf16.mxu0 0
      %665 = vmatpush2.bf16.msra.mxu0 %v578
      %666 = vmatprep.subr.bf16.mxu0 0
      %667 = vmatpush2.bf16.msra.mxu0 %v577
      %668 = vmatprep.subr.bf16.mxu0 0
      %669 = vmatpush2.bf16.msra.mxu0 %v576
      %670 = vmatprep.subr.bf16.mxu0 0
      %671 = vmatpush2.bf16.msra.mxu0 %v575
      %672 = vmatprep.subr.bf16.mxu0 0
      %673 = vmatpush2.bf16.msra.mxu0 %v574
      %674 = vmatprep.mubr.bf16.mxu0 %v430
      %675 = vmatmul.mubr.bf16.gmra.mxu0 %v429
      %v676 = vpop.f32.mrf.mxu0
      %v677 = vadd.f32 %v297, %v676
      %v678 = vpop.f32.mrf.mxu0
      %v679 = vpop.f32.mrf.mxu0
      %v680 = vadd.f32 %v297, %v679
      %v681 = vpop.f32.mrf.mxu0
      %682 = vmatprep.mubr.bf16.mxu0 %v433
      %683 = vmatmul.mubr.bf16.gmra.mxu0 %v432
      %v684 = vpop.f32.mrf.mxu0
      %v685 = vadd.f32 %v297, %v684
      %v686 = vpop.f32.mrf.mxu0
      %v687 = vpop.f32.mrf.mxu0
      %v688 = vadd.f32 %v297, %v687
      %v689 = vpop.f32.mrf.mxu0
      %690 = vmatprep.mubr.bf16.mxu0 %v436
      %691 = vmatmul.mubr.bf16.gmra.mxu0 %v435
      %v692 = vpop.f32.mrf.mxu0
      %v693 = vadd.f32 %v297, %v692
      %v694 = vpop.f32.mrf.mxu0
      %v695 = vpop.f32.mrf.mxu0
      %v696 = vadd.f32 %v297, %v695
      %v697 = vpop.f32.mrf.mxu0
      %698 = vmatprep.mubr.bf16.mxu0 %v439
      %699 = vmatmul.mubr.bf16.gmra.mxu0 %v438
      %v700 = vpop.f32.mrf.mxu0
      %v701 = vadd.f32 %v297, %v700
      %v702 = vpop.f32.mrf.mxu0
      %v703 = vpop.f32.mrf.mxu0
      %v704 = vadd.f32 %v297, %v703
      %v705 = vpop.f32.mrf.mxu0
      %706 = vmatprep.mubr.bf16.mxu0 %v442
      %707 = vmatmul.mubr.bf16.gmra.mxu0 %v441
      %v708 = vpop.f32.mrf.mxu0
      %v709 = vadd.f32 %v297, %v708
      %v710 = vpop.f32.mrf.mxu0
      %v711 = vpop.f32.mrf.mxu0
      %v712 = vadd.f32 %v297, %v711
      %v713 = vpop.f32.mrf.mxu0
      %714 = vmatprep.mubr.bf16.mxu0 %v445
      %715 = vmatmul.mubr.bf16.gmra.mxu0 %v444
      %v716 = vpop.f32.mrf.mxu0
      %v717 = vadd.f32 %v297, %v716
      %v718 = vpop.f32.mrf.mxu0
      %v719 = vpop.f32.mrf.mxu0
      %v720 = vadd.f32 %v297, %v719
      %v721 = vpop.f32.mrf.mxu0
      %722 = vmatprep.mubr.bf16.mxu0 %v448
      %723 = vmatmul.mubr.bf16.gmra.mxu0 %v447
      %v724 = vpop.f32.mrf.mxu0
      %v725 = vadd.f32 %v297, %v724
      %v726 = vpop.f32.mrf.mxu0
      %v727 = vpop.f32.mrf.mxu0
      %v728 = vadd.f32 %v297, %v727
      %v729 = vpop.f32.mrf.mxu0
      %730 = vmatprep.mubr.bf16.mxu0 %v451
      %731 = vmatmul.mubr.bf16.gmra.mxu0 %v450
      %v732 = vpop.f32.mrf.mxu0
      %v733 = vadd.f32 %v297, %v732
      %v734 = vpop.f32.mrf.mxu0
      %v735 = vpop.f32.mrf.mxu0
      %v736 = vadd.f32 %v297, %v735
      %v737 = vpop.f32.mrf.mxu0
      %738 = vmatprep.mubr.bf16.mxu0 %v454
      %739 = vmatmul.mubr.bf16.gmra.mxu0 %v453
      %v740 = vpop.f32.mrf.mxu0
      %v741 = vadd.f32 %v297, %v740
      %v742 = vpop.f32.mrf.mxu0
      %v743 = vpop.f32.mrf.mxu0
      %v744 = vadd.f32 %v297, %v743
      %v745 = vpop.f32.mrf.mxu0
      %746 = vmatprep.mubr.bf16.mxu0 %v457
      %747 = vmatmul.mubr.bf16.gmra.mxu0 %v456
      %v748 = vpop.f32.mrf.mxu0
      %v749 = vadd.f32 %v297, %v748
      %v750 = vpop.f32.mrf.mxu0
      %v751 = vpop.f32.mrf.mxu0
      %v752 = vadd.f32 %v297, %v751
      %v753 = vpop.f32.mrf.mxu0
      %754 = vmatprep.mubr.bf16.mxu0 %v460
      %755 = vmatmul.mubr.bf16.gmra.mxu0 %v459
      %v756 = vpop.f32.mrf.mxu0
      %v757 = vadd.f32 %v297, %v756
      %v758 = vpop.f32.mrf.mxu0
      %v759 = vpop.f32.mrf.mxu0
      %v760 = vadd.f32 %v297, %v759
      %v761 = vpop.f32.mrf.mxu0
      %762 = vmatprep.mubr.bf16.mxu0 %v463
      %763 = vmatmul.mubr.bf16.gmra.mxu0 %v462
      %v764 = vpop.f32.mrf.mxu0
      %v765 = vadd.f32 %v297, %v764
      %v766 = vpop.f32.mrf.mxu0
      %v767 = vpop.f32.mrf.mxu0
      %v768 = vadd.f32 %v297, %v767
      %v769 = vpop.f32.mrf.mxu0
      %770 = vmatprep.mubr.bf16.mxu0 %v466
      %771 = vmatmul.mubr.bf16.gmra.mxu0 %v465
      %v772 = vpop.f32.mrf.mxu0
      %v773 = vadd.f32 %v297, %v772
      %v774 = vpop.f32.mrf.mxu0
      %v775 = vpop.f32.mrf.mxu0
      %v776 = vadd.f32 %v297, %v775
      %v777 = vpop.f32.mrf.mxu0
      %778 = vdwg.mxu0
      %779 = vmatprep.subr.bf16.mxu0 0
      %780 = vmatpush1.bf16.msra.mxu0 0
      %781 = vmatprep.subr.bf16.mxu0 0
      %782 = vmatpush1.bf16.msra.mxu0 0
      %783 = vmatprep.subr.bf16.mxu0 0
      %784 = vmatpush1.bf16.msra.mxu0 0
      %785 = vmatprep.subr.bf16.mxu0 0
      %786 = vmatpush1.bf16.msra.mxu0 0
      %787 = vmatprep.subr.bf16.mxu0 0
      %788 = vmatpush1.bf16.msra.mxu0 0
      %789 = vmatprep.subr.bf16.mxu0 0
      %790 = vmatpush1.bf16.msra.mxu0 0
      %791 = vmatprep.subr.bf16.mxu0 0
      %792 = vmatpush1.bf16.msra.mxu0 %v583
      %793 = vmatprep.subr.bf16.mxu0 0
      %794 = vmatpush1.bf16.msra.mxu0 %v582
      %795 = vmatprep.subr.bf16.mxu0 0
      %796 = vmatpush2.bf16.msra.mxu0 0
      %797 = vmatprep.subr.bf16.mxu0 0
      %798 = vmatpush2.bf16.msra.mxu0 0
      %799 = vmatprep.subr.bf16.mxu0 0
      %800 = vmatpush2.bf16.msra.mxu0 0
      %801 = vmatprep.subr.bf16.mxu0 0
      %802 = vmatpush2.bf16.msra.mxu0 0
      %803 = vmatprep.subr.bf16.mxu0 0
      %804 = vmatpush2.bf16.msra.mxu0 0
      %805 = vmatprep.subr.bf16.mxu0 0
      %806 = vmatpush2.bf16.msra.mxu0 0
      %807 = vmatprep.subr.bf16.mxu0 0
      %808 = vmatpush2.bf16.msra.mxu0 0
      %809 = vmatprep.subr.bf16.mxu0 0
      %810 = vmatpush2.bf16.msra.mxu0 0
      %811 = vmatprep.mubr.bf16.mxu0 0
      %812 = vmatmul.mubr.bf16.gmra.mxu0 %v604
      %v813 = vpop.f32.mrf.mxu0
      %v814 = vadd.f32 %v677, %v813
      %v815 = vpop.f32.mrf.mxu0
      %v816 = vpop.f32.mrf.mxu0
      %v817 = vadd.f32 %v680, %v816
      %v818 = vpop.f32.mrf.mxu0
      %819 = vmatprep.mubr.bf16.mxu0 0
      %820 = vmatmul.mubr.bf16.gmra.mxu0 %v607
      %v821 = vpop.f32.mrf.mxu0
      %v822 = vadd.f32 %v685, %v821
      %v823 = vpop.f32.mrf.mxu0
      %v824 = vpop.f32.mrf.mxu0
      %v825 = vadd.f32 %v688, %v824
      %v826 = vpop.f32.mrf.mxu0
      %827 = vmatprep.mubr.bf16.mxu0 0
      %828 = vmatmul.mubr.bf16.gmra.mxu0 %v610
      %v829 = vpop.f32.mrf.mxu0
      %v830 = vadd.f32 %v693, %v829
      %v831 = vpop.f32.mrf.mxu0
      %v832 = vpop.f32.mrf.mxu0
      %v833 = vadd.f32 %v696, %v832
      %v834 = vpop.f32.mrf.mxu0
      %835 = vmatprep.mubr.bf16.mxu0 0
      %836 = vmatmul.mubr.bf16.gmra.mxu0 %v613
      %v837 = vpop.f32.mrf.mxu0
      %v838 = vadd.f32 %v701, %v837
      %v839 = vpop.f32.mrf.mxu0
      %v840 = vpop.f32.mrf.mxu0
      %v841 = vadd.f32 %v704, %v840
      %v842 = vpop.f32.mrf.mxu0
      %843 = vmatprep.mubr.bf16.mxu0 0
      %844 = vmatmul.mubr.bf16.gmra.mxu0 %v616
      %v845 = vpop.f32.mrf.mxu0
      %v846 = vadd.f32 %v709, %v845
      %v847 = vpop.f32.mrf.mxu0
      %v848 = vpop.f32.mrf.mxu0
      %v849 = vadd.f32 %v712, %v848
      %v850 = vpop.f32.mrf.mxu0
      %851 = vmatprep.mubr.bf16.mxu0 0
      %852 = vmatmul.mubr.bf16.gmra.mxu0 %v619
      %v853 = vpop.f32.mrf.mxu0
      %v854 = vadd.f32 %v717, %v853
      %v855 = vpop.f32.mrf.mxu0
      %v856 = vpop.f32.mrf.mxu0
      %v857 = vadd.f32 %v720, %v856
      %v858 = vpop.f32.mrf.mxu0
      %859 = vmatprep.mubr.bf16.mxu0 0
      %860 = vmatmul.mubr.bf16.gmra.mxu0 %v622
      %v861 = vpop.f32.mrf.mxu0
      %v862 = vadd.f32 %v725, %v861
      %v863 = vpop.f32.mrf.mxu0
      %v864 = vpop.f32.mrf.mxu0
      %v865 = vadd.f32 %v728, %v864
      %v866 = vpop.f32.mrf.mxu0
      %867 = vmatprep.mubr.bf16.mxu0 0
      %868 = vmatmul.mubr.bf16.gmra.mxu0 %v625
      %v869 = vpop.f32.mrf.mxu0
      %v870 = vadd.f32 %v733, %v869
      %v871 = vpop.f32.mrf.mxu0
      %v872 = vpop.f32.mrf.mxu0
      %v873 = vadd.f32 %v736, %v872
      %v874 = vpop.f32.mrf.mxu0
      %875 = vmatprep.mubr.bf16.mxu0 0
      %876 = vmatmul.mubr.bf16.gmra.mxu0 %v628
      %v877 = vpop.f32.mrf.mxu0
      %v878 = vadd.f32 %v741, %v877
      %v879 = vpop.f32.mrf.mxu0
      %v880 = vpop.f32.mrf.mxu0
      %v881 = vadd.f32 %v744, %v880
      %v882 = vpop.f32.mrf.mxu0
      %883 = vmatprep.mubr.bf16.mxu0 0
      %884 = vmatmul.mubr.bf16.gmra.mxu0 %v631
      %v885 = vpop.f32.mrf.mxu0
      %v886 = vadd.f32 %v749, %v885
      %v887 = vpop.f32.mrf.mxu0
      %v888 = vpop.f32.mrf.mxu0
      %v889 = vadd.f32 %v752, %v888
      %v890 = vpop.f32.mrf.mxu0
      %891 = vmatprep.mubr.bf16.mxu0 0
      %892 = vmatmul.mubr.bf16.gmra.mxu0 %v634
      %v893 = vpop.f32.mrf.mxu0
      %v894 = vadd.f32 %v757, %v893
      %v895 = vpop.f32.mrf.mxu0
      %v896 = vpop.f32.mrf.mxu0
      %v897 = vadd.f32 %v760, %v896
      %v898 = vpop.f32.mrf.mxu0
      %899 = vmatprep.mubr.bf16.mxu0 0
      %900 = vmatmul.mubr.bf16.gmra.mxu0 %v637
      %v901 = vpop.f32.mrf.mxu0
      %v902 = vadd.f32 %v765, %v901
      %v903 = vpop.f32.mrf.mxu0
      %v904 = vpop.f32.mrf.mxu0
      %v905 = vadd.f32 %v768, %v904
      %v906 = vpop.f32.mrf.mxu0
      %907 = vmatprep.mubr.bf16.mxu0 0
      %908 = vmatmul.mubr.bf16.gmra.mxu0 %v640
      %v909 = vpop.f32.mrf.mxu0
      %v910 = vadd.f32 %v773, %v909
      %v911 = vpop.f32.mrf.mxu0
      %v912 = vpop.f32.mrf.mxu0
      %v913 = vadd.f32 %v776, %v912
      %v914 = vpop.f32.mrf.mxu0
      %915 = vdwg.mxu0
      %v916 = vmax.f32 %v814, 0.0
      %v917 = vmax.f32 %v817, 0.0
      %v918 = vmax.f32 %v822, 0.0
      %v919 = vmax.f32 %v825, 0.0
      %v920 = vmax.f32 %v830, 0.0
      %v921 = vmax.f32 %v833, 0.0
      %v922 = vmax.f32 %v838, 0.0
      %v923 = vmax.f32 %v841, 0.0
      %v924 = vmax.f32 %v846, 0.0
      %v925 = vmax.f32 %v849, 0.0
      %v926 = vmax.f32 %v854, 0.0
      %v927 = vmax.f32 %v857, 0.0
      %v928 = vmax.f32 %v862, 0.0
      %v929 = vmax.f32 %v865, 0.0
      %v930 = vmax.f32 %v870, 0.0
      %v931 = vmax.f32 %v873, 0.0
      %v932 = vmax.f32 %v878, 0.0
      %v933 = vmax.f32 %v881, 0.0
      %v934 = vmax.f32 %v886, 0.0
      %v935 = vmax.f32 %v889, 0.0
      %v936 = vmax.f32 %v894, 0.0
      %v937 = vmax.f32 %v897, 0.0
      %v938 = vmax.f32 %v902, 0.0
      %v939 = vmax.f32 %v905, 0.0
      %v940 = vmax.f32 %v910, 0.0
      %v941 = vmax.f32 %v913, 0.0
      %v942 = vpack.c.bf16 %v917, %v916
      %v943 = vpack.c.bf16 %v919, %v918
      %v944 = vpack.c.bf16 %v921, %v920
      %v945 = vpack.c.bf16 %v923, %v922
      %v946 = vpack.c.bf16 %v925, %v924
      %v947 = vpack.c.bf16 %v927, %v926
      %v948 = vpack.c.bf16 %v929, %v928
      %v949 = vpack.c.bf16 %v931, %v930
      %v950 = vpack.c.bf16 %v933, %v932
      %v951 = vpack.c.bf16 %v935, %v934
      %v952 = vpack.c.bf16 %v937, %v936
      %v953 = vpack.c.bf16 %v939, %v938
      %v954 = vpack.c.bf16 %v941, %v940
      %p955 = scmp.eq.s32.totalorder %s19, 0
      // Predicated region
      $region33: #{run.5} parent=31 // pred_check
        %p956 = pneg %p955
      $region34: #{run.5} parent=31 // pred_check_branch
        %958 = sbr.rel (%p956) target = $region36
      $region35: #{run.5} parent=31 // pred_region
        %v972 = vunpack.c.l.b16 %v942
        %v973 = vunpack.c.h.b16 %v942
        %v974 = vunpack.c.l.b16 %v943
        %v975 = vunpack.c.h.b16 %v943
        %v976 = vunpack.c.l.b16 %v944
        %v977 = vunpack.c.h.b16 %v944
        %v978 = vunpack.c.l.b16 %v945
        %v979 = vunpack.c.h.b16 %v945
        %v980 = vunpack.c.l.b16 %v946
        %v981 = vunpack.c.h.b16 %v946
        %v982 = vunpack.c.l.b16 %v947
        %v983 = vunpack.c.h.b16 %v947
        %v984 = vunpack.c.l.b16 %v948
        %v985 = vunpack.c.h.b16 %v948
        %v986 = vunpack.c.l.b16 %v949
        %v987 = vunpack.c.h.b16 %v949
        %v988 = vunpack.c.l.b16 %v950
        %v989 = vunpack.c.h.b16 %v950
        %v990 = vunpack.c.l.b16 %v951
        %v991 = vunpack.c.h.b16 %v951
        %v992 = vunpack.c.l.b16 %v952
        %v993 = vunpack.c.h.b16 %v952
        %v994 = vunpack.c.l.b16 %v953
        %v995 = vunpack.c.h.b16 %v953
        %v996 = vunpack.c.l.b16 %v954
        %v997 = vunpack.c.h.b16 %v954
        %v998 = vpack.c.b16 %v972, %v972
        %v999 = vpack.c.b16 %v973, %v973
        %v1000 = vpack.c.b16 %v974, %v974
        %v1001 = vpack.c.b16 %v975, %v975
        %v1002 = vpack.c.b16 %v976, %v976
        %v1003 = vpack.c.b16 %v977, %v977
        %v1004 = vpack.c.b16 %v978, %v978
        %v1005 = vpack.c.b16 %v979, %v979
        %v1006 = vpack.c.b16 %v980, %v980
        %v1007 = vpack.c.b16 %v981, %v981
        %v1008 = vpack.c.b16 %v982, %v982
        %v1009 = vpack.c.b16 %v983, %v983
        %v1010 = vpack.c.b16 %v984, %v984
        %v1011 = vpack.c.b16 %v985, %v985
        %v1012 = vpack.c.b16 %v986, %v986
        %v1013 = vpack.c.b16 %v987, %v987
        %v1014 = vpack.c.b16 %v988, %v988
        %v1015 = vpack.c.b16 %v989, %v989
        %v1016 = vpack.c.b16 %v990, %v990
        %v1017 = vpack.c.b16 %v991, %v991
        %v1018 = vpack.c.b16 %v992, %v992
        %v1019 = vpack.c.b16 %v993, %v993
        %v1020 = vpack.c.b16 %v994, %v994
        %v1021 = vpack.c.b16 %v995, %v995
        %v1022 = vpack.c.b16 %v996, %v996
        %v1023 = vpack.c.b16 %v997, %v997
        %vm1050 = vcmask 519168
        %1051 = vst.msk [vmem:[%s201] sm:$0xf] %vm1050, %v998
        %1052 = vst.msk [vmem:[%s201 + $0x4] sm:$0xf] %vm1050, %v999
        %1053 = vst.msk [vmem:[%s201 + $0x8] sm:$0xf] %vm1050, %v1000
        %1054 = vst.msk [vmem:[%s201 + $0xc] sm:$0xf] %vm1050, %v1001
        %1055 = vst.msk [vmem:[%s201 + $0x10] sm:$0xf] %vm1050, %v1002
        %1056 = vst.msk [vmem:[%s201 + $0x14] sm:$0xf] %vm1050, %v1003
        %1057 = vst.msk [vmem:[%s201 + $0x18] sm:$0xf] %vm1050, %v1004
        %1058 = vst.msk [vmem:[%s201 + $0x1c] sm:$0xf] %vm1050, %v1005
        %1059 = vst.msk [vmem:[%s201 + $0x20] sm:$0xf] %vm1050, %v1006
        %1060 = vst.msk [vmem:[%s201 + $0x24] sm:$0xf] %vm1050, %v1007
        %1061 = vst.msk [vmem:[%s201 + $0x28] sm:$0xf] %vm1050, %v1008
        %1062 = vst.msk [vmem:[%s201 + $0x2c] sm:$0xf] %vm1050, %v1009
        %1063 = vst.msk [vmem:[%s201 + $0x30] sm:$0xf] %vm1050, %v1010
        %1064 = vst.msk [vmem:[%s201 + $0x34] sm:$0xf] %vm1050, %v1011
        %1065 = vst.msk [vmem:[%s201 + $0x38] sm:$0xf] %vm1050, %v1012
        %1066 = vst.msk [vmem:[%s201 + $0x3c] sm:$0xf] %vm1050, %v1013
        %1067 = vst.msk [vmem:[%s201 + $0x40] sm:$0xf] %vm1050, %v1014
        %1068 = vst.msk [vmem:[%s201 + $0x44] sm:$0xf] %vm1050, %v1015
        %1069 = vst.msk [vmem:[%s201 + $0x48] sm:$0xf] %vm1050, %v1016
        %1070 = vst.msk [vmem:[%s201 + $0x4c] sm:$0xf] %vm1050, %v1017
        %1071 = vst.msk [vmem:[%s201 + $0x50] sm:$0xf] %vm1050, %v1018
        %1072 = vst.msk [vmem:[%s201 + $0x54] sm:$0xf] %vm1050, %v1019
        %1073 = vst.msk [vmem:[%s201 + $0x58] sm:$0xf] %vm1050, %v1020
        %1074 = vst.msk [vmem:[%s201 + $0x5c] sm:$0xf] %vm1050, %v1021
        %1075 = vst.msk [vmem:[%s201 + $0x60] sm:$0xf] %vm1050, %v1022
        %1076 = vst.msk [vmem:[%s201 + $0x64] sm:$0xf] %vm1050, %v1023
      $region36: #{run.5} parent=31 // pred_fallthru
        _
      %p1077 = scmp.gt.s32.totalorder %s19, 0
      // Predicated region
      $region37: #{run.5} parent=31 // pred_check
        %p1078 = pneg %p1077
      $region38: #{run.5} parent=31 // pred_check_branch
        %1080 = sbr.rel (%p1078) target = $region40
      $region39: #{run.5} parent=31 // pred_region
        %v1081 = vld [vmem:[%s201] sm:$0xf]
        %v1082 = vld [vmem:[%s201 + $0x4] sm:$0xf]
        %v1083 = vld [vmem:[%s201 + $0x8] sm:$0xf]
        %v1084 = vld [vmem:[%s201 + $0xc] sm:$0xf]
        %v1085 = vld [vmem:[%s201 + $0x10] sm:$0xf]
        %v1086 = vld [vmem:[%s201 + $0x14] sm:$0xf]
        %v1087 = vld [vmem:[%s201 + $0x18] sm:$0xf]
        %v1088 = vld [vmem:[%s201 + $0x1c] sm:$0xf]
        %v1089 = vld [vmem:[%s201 + $0x20] sm:$0xf]
        %v1090 = vld [vmem:[%s201 + $0x24] sm:$0xf]
        %v1091 = vld [vmem:[%s201 + $0x28] sm:$0xf]
        %v1092 = vld [vmem:[%s201 + $0x2c] sm:$0xf]
        %v1093 = vld [vmem:[%s201 + $0x30] sm:$0xf]
        %v1094 = vld [vmem:[%s201 + $0x34] sm:$0xf]
        %v1095 = vld [vmem:[%s201 + $0x38] sm:$0xf]
        %v1096 = vld [vmem:[%s201 + $0x3c] sm:$0xf]
        %v1097 = vld [vmem:[%s201 + $0x40] sm:$0xf]
        %v1098 = vld [vmem:[%s201 + $0x44] sm:$0xf]
        %v1099 = vld [vmem:[%s201 + $0x48] sm:$0xf]
        %v1100 = vld [vmem:[%s201 + $0x4c] sm:$0xf]
        %v1101 = vld [vmem:[%s201 + $0x50] sm:$0xf]
        %v1102 = vld [vmem:[%s201 + $0x54] sm:$0xf]
        %v1103 = vld [vmem:[%s201 + $0x58] sm:$0xf]
        %v1104 = vld [vmem:[%s201 + $0x5c] sm:$0xf]
        %v1105 = vld [vmem:[%s201 + $0x60] sm:$0xf]
        %v1106 = vld [vmem:[%s201 + $0x64] sm:$0xf]
        %v1120 = vunpack.c.l.b16 %v942
        %v1121 = vunpack.c.h.b16 %v942
        %v1122 = vunpack.c.l.b16 %v943
        %v1123 = vunpack.c.h.b16 %v943
        %v1124 = vunpack.c.l.b16 %v944
        %v1125 = vunpack.c.h.b16 %v944
        %v1126 = vunpack.c.l.b16 %v945
        %v1127 = vunpack.c.h.b16 %v945
        %v1128 = vunpack.c.l.b16 %v946
        %v1129 = vunpack.c.h.b16 %v946
        %v1130 = vunpack.c.l.b16 %v947
        %v1131 = vunpack.c.h.b16 %v947
        %v1132 = vunpack.c.l.b16 %v948
        %v1133 = vunpack.c.h.b16 %v948
        %v1134 = vunpack.c.l.b16 %v949
        %v1135 = vunpack.c.h.b16 %v949
        %v1136 = vunpack.c.l.b16 %v950
        %v1137 = vunpack.c.h.b16 %v950
        %v1138 = vunpack.c.l.b16 %v951
        %v1139 = vunpack.c.h.b16 %v951
        %v1140 = vunpack.c.l.b16 %v952
        %v1141 = vunpack.c.h.b16 %v952
        %v1142 = vunpack.c.l.b16 %v953
        %v1143 = vunpack.c.h.b16 %v953
        %v1144 = vunpack.c.l.b16 %v954
        %v1145 = vunpack.c.h.b16 %v954
        %v1146 = vpack.c.b16 %v1120, %v1120
        %v1147 = vpack.c.b16 %v1121, %v1121
        %v1148 = vpack.c.b16 %v1122, %v1122
        %v1149 = vpack.c.b16 %v1123, %v1123
        %v1150 = vpack.c.b16 %v1124, %v1124
        %v1151 = vpack.c.b16 %v1125, %v1125
        %v1152 = vpack.c.b16 %v1126, %v1126
        %v1153 = vpack.c.b16 %v1127, %v1127
        %v1154 = vpack.c.b16 %v1128, %v1128
        %v1155 = vpack.c.b16 %v1129, %v1129
        %v1156 = vpack.c.b16 %v1130, %v1130
        %v1157 = vpack.c.b16 %v1131, %v1131
        %v1158 = vpack.c.b16 %v1132, %v1132
        %v1159 = vpack.c.b16 %v1133, %v1133
        %v1160 = vpack.c.b16 %v1134, %v1134
        %v1161 = vpack.c.b16 %v1135, %v1135
        %v1162 = vpack.c.b16 %v1136, %v1136
        %v1163 = vpack.c.b16 %v1137, %v1137
        %v1164 = vpack.c.b16 %v1138, %v1138
        %v1165 = vpack.c.b16 %v1139, %v1139
        %v1166 = vpack.c.b16 %v1140, %v1140
        %v1167 = vpack.c.b16 %v1141, %v1141
        %v1168 = vpack.c.b16 %v1142, %v1142
        %v1169 = vpack.c.b16 %v1143, %v1143
        %v1170 = vpack.c.b16 %v1144, %v1144
        %v1171 = vpack.c.b16 %v1145, %v1145
        %v1198 = vmax.bf16 %v1081, %v1146
        %v1199 = vmax.bf16 %v1082, %v1147
        %v1200 = vmax.bf16 %v1083, %v1148
        %v1201 = vmax.bf16 %v1084, %v1149
        %v1202 = vmax.bf16 %v1085, %v1150
        %v1203 = vmax.bf16 %v1086, %v1151
        %v1204 = vmax.bf16 %v1087, %v1152
        %v1205 = vmax.bf16 %v1088, %v1153
        %v1206 = vmax.bf16 %v1089, %v1154
        %v1207 = vmax.bf16 %v1090, %v1155
        %v1208 = vmax.bf16 %v1091, %v1156
        %v1209 = vmax.bf16 %v1092, %v1157
        %v1210 = vmax.bf16 %v1093, %v1158
        %v1211 = vmax.bf16 %v1094, %v1159
        %v1212 = vmax.bf16 %v1095, %v1160
        %v1213 = vmax.bf16 %v1096, %v1161
        %v1214 = vmax.bf16 %v1097, %v1162
        %v1215 = vmax.bf16 %v1098, %v1163
        %v1216 = vmax.bf16 %v1099, %v1164
        %v1217 = vmax.bf16 %v1100, %v1165
        %v1218 = vmax.bf16 %v1101, %v1166
        %v1219 = vmax.bf16 %v1102, %v1167
        %v1220 = vmax.bf16 %v1103, %v1168
        %v1221 = vmax.bf16 %v1104, %v1169
        %v1222 = vmax.bf16 %v1105, %v1170
        %v1223 = vmax.bf16 %v1106, %v1171
        %vm1224 = vcmask 519168
        %1225 = vst.msk [vmem:[%s201] sm:$0xf] %vm1224, %v1198
        %1226 = vst.msk [vmem:[%s201 + $0x4] sm:$0xf] %vm1224, %v1199
        %1227 = vst.msk [vmem:[%s201 + $0x8] sm:$0xf] %vm1224, %v1200
        %1228 = vst.msk [vmem:[%s201 + $0xc] sm:$0xf] %vm1224, %v1201
        %1229 = vst.msk [vmem:[%s201 + $0x10] sm:$0xf] %vm1224, %v1202
        %1230 = vst.msk [vmem:[%s201 + $0x14] sm:$0xf] %vm1224, %v1203
        %1231 = vst.msk [vmem:[%s201 + $0x18] sm:$0xf] %vm1224, %v1204
        %1232 = vst.msk [vmem:[%s201 + $0x1c] sm:$0xf] %vm1224, %v1205
        %1233 = vst.msk [vmem:[%s201 + $0x20] sm:$0xf] %vm1224, %v1206
        %1234 = vst.msk [vmem:[%s201 + $0x24] sm:$0xf] %vm1224, %v1207
        %1235 = vst.msk [vmem:[%s201 + $0x28] sm:$0xf] %vm1224, %v1208
        %1236 = vst.msk [vmem:[%s201 + $0x2c] sm:$0xf] %vm1224, %v1209
        %1237 = vst.msk [vmem:[%s201 + $0x30] sm:$0xf] %vm1224, %v1210
        %1238 = vst.msk [vmem:[%s201 + $0x34] sm:$0xf] %vm1224, %v1211
        %1239 = vst.msk [vmem:[%s201 + $0x38] sm:$0xf] %vm1224, %v1212
        %1240 = vst.msk [vmem:[%s201 + $0x3c] sm:$0xf] %vm1224, %v1213
        %1241 = vst.msk [vmem:[%s201 + $0x40] sm:$0xf] %vm1224, %v1214
        %1242 = vst.msk [vmem:[%s201 + $0x44] sm:$0xf] %vm1224, %v1215
        %1243 = vst.msk [vmem:[%s201 + $0x48] sm:$0xf] %vm1224, %v1216
        %1244 = vst.msk [vmem:[%s201 + $0x4c] sm:$0xf] %vm1224, %v1217
        %1245 = vst.msk [vmem:[%s201 + $0x50] sm:$0xf] %vm1224, %v1218
        %1246 = vst.msk [vmem:[%s201 + $0x54] sm:$0xf] %vm1224, %v1219
        %1247 = vst.msk [vmem:[%s201 + $0x58] sm:$0xf] %vm1224, %v1220
        %1248 = vst.msk [vmem:[%s201 + $0x5c] sm:$0xf] %vm1224, %v1221
        %1249 = vst.msk [vmem:[%s201 + $0x60] sm:$0xf] %vm1224, %v1222
        %1250 = vst.msk [vmem:[%s201 + $0x64] sm:$0xf] %vm1224, %v1223
      $region40: #{run.5} parent=31 // pred_fallthru
        _
      %s1251 = smul.u32 26, %s18
      %p1252 = scmp.lt.s32.totalorder %s1251, 51
      %s1253 = scalar_select %p1252, %s1251, 51
      %s1254 = smul.addr %s1253, 4
      %s1255 = scalar_lea.vmem %s3, %s1254
      // Predicated region
      $region41: #{run.5} parent=31 // pred_check
        %p1256 = pneg %p114
      $region42: #{run.5} parent=31 // pred_check_branch
        %1258 = sbr.rel (%p1256) target = $region44
      $region43: #{run.5} parent=31 // pred_region
        %s1259 = smul.u32 26, %s18
      $region44: #{run.5} parent=31 // pred_fallthru
        _
    $region32: #{run.5} parent=5 // pred_fallthru
      _
    %p1260 = scmp.le.s32.totalorder 2, %s9
    // Predicated region
    $region45: #{run.5} parent=5 // pred_check
      %p1261 = pneg %p1260
    $region46: #{run.5} parent=5 // pred_check_branch
      %1263 = sbr.rel (%p1261) target = $region48
    $region47: #{run.5} parent=5 // pred_region
      %s1264 = ssub.s32 %s9, 2
      // Predicated region
      $region49: #{run.5} parent=47 // pred_check
        %p1265 = pneg %p120
      $region50: #{run.5} parent=47 // pred_check_branch
        %1267 = sbr.rel (%p1265) target = $region52
      $region51: #{run.5} parent=47 // pred_region
        %s1268 = smul.u32 26, %s20
        %p1269 = scmp.lt.s32.totalorder %s1268, 51
        %s1270 = scalar_select %p1269, %s1268, 51
        %s1271 = smul.addr %s1270, 4
        %s1272 = scalar_lea.vmem %s3, %s1271
      $region52: #{run.5} parent=47 // pred_fallthru
        _
    $region48: #{run.5} parent=5 // pred_fallthru
      _
  $region6: #{run.5} parent=0 // loop_footer
    %s13 = sadd.s32 1, %s9
  $region7: #{run.5} parent=0 // loop_footer_branch
    %8 = sbr.rel target = $region3
  $region8: #{run.5} parent=0 // loop_exit
    _

// kernel: run.6
$region0: #{run.6}
  #allocation0 [shape = 'u32[]', space=smem, size = 0x4, offset = 0x4, fixed_abs, tag = 'smem constant byte address 0x4 - core index']
  #allocation1 [shape = 'u32[144,128]{1,0:T(1,128)}', space=vmem, size = 0x12000, scoped, tag = 'internal scratch']
  %s0 = inlined_call_operand.vmem [shape: bf16[4,128,576], index: 0, kind: input, shape index: {}]
  %s1 = inlined_call_operand.vmem [shape: bf16[576,128], index: 1, kind: input, shape index: {}]
  %s2 = inlined_call_operand.vmem [shape: f32[1,128], index: 2, kind: input, shape index: {}]
  %s3 = inlined_call_operand.vmem [shape: bf16[128,128], index: 3, kind: output, shape index: {}]
  %s4 = sld [smem:[#allocation0]]
  $region53: #{run.6} parent=0
    _
  %s6 = ssub.s32 1, %s4
  %s7 = scalar_select 0, %s6, %s4
  loop: start=0, step=1, limit=10
  $region2: #{run.6} parent=0 // loop_pre_header
    _
  $region3: #{run.6} parent=0 // loop_header
    %s9 = sphi 0, %s13
    %p10 = scmp.ge.s32.totalorder %s9, 10
    %s16 = sphi 0, %s28
    %s17 = sphi 0, %s24
    %s18 = sphi 0, %s16
    %s19 = sphi 0, %s17
    %s20 = sphi 0, %s18
    %s21 = sphi 0, %s19
    %s33 = sphi 0, %s35
    %s36 = sphi 0, %s33
    %s37 = sphi 0, %s36
    %s53 = sphi 0, %s37
    %s57 = sphi 0, %s57
    %s59 = sphi 0, %s57
    %s60 = sphi 0, %s59
    %s74 = sphi 0, %s60
    %s78 = sphi 0, %s78
    %s80 = sphi 0, %s78
    %s81 = sphi 0, %s80
    %s95 = sphi 0, %s81
    %s101 = sphi 0, %s103
    %s104 = sphi 0, %s101
    %s105 = sphi 0, %s104
    %s121 = sphi 0, %s105
  $region4: #{run.6} parent=0 // loop_header_branch
    %12 = sbr.rel (%p10) target = $region8
  $region5: #{run.6} parent=0 // loop_body
    %s14 = ssub.s32 %s9, 1
    %s15 = ssub.s32 %s9, 2
    %s22 = sadd.s32 1, %s17
    %p23 = scmp.ge.s32.totalorder %s22, 4
    %s24 = scalar_select %p23, 0, %s22
    %s25 = sadd.s32 1, %s16
    %s26 = scalar_select %p23, %s25, %s16
    %p27 = scmp.ge.s32.totalorder %s26, 2
    %s28 = scalar_select %p27, 0, %s26
    %s29 = ssub.s32 %s17, %s24
    %s30 = ssub.s32 %s16, %s28
    %s31 = sor.u32 %s29, %s30
    %p32 = scmp.eq.s32.totalorder %s31, 0
    %s34 = sadd.s32 %s33, 1
    %s35 = scalar_select %p32, %s33, %s34
    %p38 = pneg %p32
    %p39 = scmp.eq.s32.totalorder %s9, 7
    %p40 = por %p38, %p39
    %p41 = scmp.ne.s32.totalorder %s33, %s36
    %p42 = scmp.eq.s32.totalorder %s9, 0
    %p43 = por %p41, %p42
    %p44 = scmp.ne.s32.totalorder %s33, %s36
    %p45 = scmp.eq.s32.totalorder %s14, 7
    %p46 = por %p44, %p45
    %p47 = scmp.ne.s32.totalorder %s36, %s37
    %p48 = scmp.eq.s32.totalorder %s14, 0
    %p49 = por %p47, %p48
    %p50 = scmp.ne.s32.totalorder %s36, %s37
    %p51 = scmp.eq.s32.totalorder %s15, 7
    %p52 = por %p50, %p51
    %p54 = scmp.ne.s32.totalorder %s37, %s53
    %p55 = scmp.eq.s32.totalorder %s15, 0
    %p56 = por %p54, %p55
    %s58 = sadd.s32 %s57, 1
    %p61 = scmp.eq.s32.totalorder %s9, 7
    %p62 = scmp.ne.s32.totalorder %s57, %s59
    %p63 = scmp.eq.s32.totalorder %s9, 0
    %p64 = por %p62, %p63
    %p65 = scmp.ne.s32.totalorder %s57, %s59
    %p66 = scmp.eq.s32.totalorder %s14, 7
    %p67 = por %p65, %p66
    %p68 = scmp.ne.s32.totalorder %s59, %s60
    %p69 = scmp.eq.s32.totalorder %s14, 0
    %p70 = por %p68, %p69
    %p71 = scmp.ne.s32.totalorder %s59, %s60
    %p72 = scmp.eq.s32.totalorder %s15, 7
    %p73 = por %p71, %p72
    %p75 = scmp.ne.s32.totalorder %s60, %s74
    %p76 = scmp.eq.s32.totalorder %s15, 0
    %p77 = por %p75, %p76
    %s79 = sadd.s32 %s78, 1
    %p82 = scmp.eq.s32.totalorder %s9, 7
    %p83 = scmp.ne.s32.totalorder %s78, %s80
    %p84 = scmp.eq.s32.totalorder %s9, 0
    %p85 = por %p83, %p84
    %p86 = scmp.ne.s32.totalorder %s78, %s80
    %p87 = scmp.eq.s32.totalorder %s14, 7
    %p88 = por %p86, %p87
    %p89 = scmp.ne.s32.totalorder %s80, %s81
    %p90 = scmp.eq.s32.totalorder %s14, 0
    %p91 = por %p89, %p90
    %p92 = scmp.ne.s32.totalorder %s80, %s81
    %p93 = scmp.eq.s32.totalorder %s15, 7
    %p94 = por %p92, %p93
    %p96 = scmp.ne.s32.totalorder %s81, %s95
    %p97 = scmp.eq.s32.totalorder %s15, 0
    %p98 = por %p96, %p97
    %s99 = ssub.s32 %s16, %s28
    %p100 = scmp.eq.s32.totalorder %s99, 0
    %s102 = sadd.s32 %s101, 1
    %s103 = scalar_select %p100, %s101, %s102
    %p106 = pneg %p100
    %p107 = scmp.eq.s32.totalorder %s9, 7
    %p108 = por %p106, %p107
    %p109 = scmp.ne.s32.totalorder %s101, %s104
    %p110 = scmp.eq.s32.totalorder %s9, 0
    %p111 = por %p109, %p110
    %p112 = scmp.ne.s32.totalorder %s101, %s104
    %p113 = scmp.eq.s32.totalorder %s14, 7
    %p114 = por %p112, %p113
    %p115 = scmp.ne.s32.totalorder %s104, %s105
    %p116 = scmp.eq.s32.totalorder %s14, 0
    %p117 = por %p115, %p116
    %p118 = scmp.ne.s32.totalorder %s104, %s105
    %p119 = scmp.eq.s32.totalorder %s15, 7
    %p120 = por %p118, %p119
    %p122 = scmp.ne.s32.totalorder %s105, %s121
    %p123 = scmp.eq.s32.totalorder %s15, 0
    %p124 = por %p122, %p123
    %p125 = scmp.le.s32.totalorder 1, %s9
    %p126 = scmp.lt.s32.totalorder %s9, 9
    %p127 = pnand %p125, %p126
    %p128 = pneg %p127
    // Predicated region
    $region9: #{run.6} parent=5 // pred_check
      _
    $region10: #{run.6} parent=5 // pred_check_branch
      %130 = sbr.rel (%p127) target = $region12
    $region11: #{run.6} parent=5 // pred_region
      %s131 = ssub.s32 %s9, 1
      // Predicated region
      $region13: #{run.6} parent=11 // pred_check
        %p132 = pneg %p70
      $region14: #{run.6} parent=11 // pred_check_branch
        %134 = sbr.rel (%p132) target = $region16
      $region15: #{run.6} parent=11 // pred_region
        _
      $region16: #{run.6} parent=11 // pred_fallthru
        _
      // Predicated region
      $region17: #{run.6} parent=11 // pred_check
        %p135 = pneg %p91
      $region18: #{run.6} parent=11 // pred_check_branch
        %137 = sbr.rel (%p135) target = $region20
      $region19: #{run.6} parent=11 // pred_region
        _
      $region20: #{run.6} parent=11 // pred_fallthru
        _
    $region12: #{run.6} parent=5 // pred_fallthru
      _
    %p138 = scmp.lt.s32.totalorder %s9, 8
    // Predicated region
    $region21: #{run.6} parent=5 // pred_check
      %p139 = pneg %p138
    $region22: #{run.6} parent=5 // pred_check_branch
      %141 = sbr.rel (%p139) target = $region24
    $region23: #{run.6} parent=5 // pred_region
      // Predicated region
      $region25: #{run.6} parent=23 // pred_check
        %p142 = pneg %p43
      $region26: #{run.6} parent=23 // pred_check_branch
        %144 = sbr.rel (%p142) target = $region28
      $region27: #{run.6} parent=23 // pred_region
        %s145 = smul.u32 8, %s16
        %p146 = scmp.lt.s32.totalorder %s17, 3
        %s147 = scalar_select %p146, %s17, 3
        %p148 = scmp.lt.s32.totalorder %s145, 15
        %s149 = scalar_select %p148, %s145, 15
        %s150 = smul.addr %s149, 5
        %s151 = smul.addr %s147, 80
        %s152 = sadd.s32 %s150, %s151
        %s153 = smul.addr %s152, 4
        %s154 = scalar_lea.vmem %s0, %s153
        %s155 = smul.u32 8, %s16
      $region28: #{run.6} parent=23 // pred_fallthru
        _
    $region24: #{run.6} parent=5 // pred_fallthru
      _
    %p156 = scmp.le.s32.totalorder 1, %s9
    %p157 = scmp.lt.s32.totalorder %s9, 9
    %p158 = pnand %p156, %p157
    %p159 = pneg %p158
    // Predicated region
    $region29: #{run.6} parent=5 // pred_check
      _
    $region30: #{run.6} parent=5 // pred_check_branch
      %161 = sbr.rel (%p158) target = $region32
    $region31: #{run.6} parent=5 // pred_region
      %s162 = ssub.s32 %s9, 1
      %s163 = smul.u32 8, %s18
      %p164 = scmp.lt.s32.totalorder %s19, 3
      %s165 = scalar_select %p164, %s19, 3
      %p166 = scmp.lt.s32.totalorder %s163, 15
      %s167 = scalar_select %p166, %s163, 15
      %s168 = smul.addr %s167, 5
      %s169 = smul.addr %s165, 80
      %s170 = sadd.s32 %s168, %s169
      %s171 = smul.addr %s170, 4
      %s172 = scalar_lea.vmem %s0, %s171
      %p173 = pneg %p49
      %p174 = pneg %p46
      %p175 = pneg %p70
      %p176 = pneg %p67
      %p177 = pneg %p91
      %p178 = pneg %p88
      %p179 = pneg %p117
      %p180 = pneg %p114
      %s181 = smul.u32 8, %s18
      %p182 = scmp.lt.s32.totalorder %s181, 15
      %s183 = scalar_select %p182, %s181, 15
      %s184 = smul.addr %s183, 4
      %s185 = scalar_lea.vmem %s3, %s184
      %s186 = smul.u32 8, %s18
      %p187 = scmp.lt.s32.totalorder %s19, 3
      %s188 = scalar_select %p187, %s19, 3
      %p189 = scmp.lt.s32.totalorder %s186, 15
      %s190 = scalar_select %p189, %s186, 15
      %s191 = smul.addr %s190, 5
      %s192 = smul.addr %s188, 80
      %s193 = sadd.s32 %s191, %s192
      %s194 = smul.addr %s193, 4
      %s195 = scalar_lea.vmem %s0, %s194
      %s196 = smul.u32 8, %s18
      %s197 = smul.u32 8, %s18
      %p198 = scmp.lt.s32.totalorder %s197, 15
      %s199 = scalar_select %p198, %s197, 15
      %s200 = smul.addr %s199, 4
      %s201 = scalar_lea.vmem %s3, %s200
      %s202 = smul.u32 8, %s18
      %v204 = vld [vmem:[%s195] sm:$0xff]
      %v205 = vld [vmem:[%s195 + $0x8] sm:$0xff]
      %v206 = vld [vmem:[%s195 + $0x10] sm:$0xf]
      %v207 = vld [vmem:[%s195 + $0x14] sm:$0xff]
      %v208 = vld [vmem:[%s195 + $0x1c] sm:$0xff]
      %v209 = vld [vmem:[%s195 + $0x24] sm:$0xf]
      %v210 = vld [vmem:[%s195 + $0x28] sm:$0xff]
      %v211 = vld [vmem:[%s195 + $0x30] sm:$0xff]
      %v212 = vld [vmem:[%s195 + $0x38] sm:$0xf]
      %v213 = vld [vmem:[%s195 + $0x3c] sm:$0xff]
      %v214 = vld [vmem:[%s195 + $0x44] sm:$0xff]
      %v215 = vld [vmem:[%s195 + $0x4c] sm:$0xf]
      %v216 = vld [vmem:[%s195 + $0x50] sm:$0xff]
      %v217 = vld [vmem:[%s195 + $0x58] sm:$0xff]
      %v218 = vld [vmem:[%s195 + $0x60] sm:$0xf]
      %v219 = vld [vmem:[%s195 + $0x64] sm:$0xff]
      %v220 = vld [vmem:[%s195 + $0x6c] sm:$0xff]
      %v221 = vld [vmem:[%s195 + $0x74] sm:$0xf]
      %v222 = vld [vmem:[%s195 + $0x78] sm:$0xff]
      %v223 = vld [vmem:[%s195 + $0x80] sm:$0xff]
      %v224 = vld [vmem:[%s195 + $0x88] sm:$0xf]
      %v225 = vld [vmem:[%s195 + $0x8c] sm:$0xff]
      %v226 = vld [vmem:[%s195 + $0x94] sm:$0xff]
      %v227 = vld [vmem:[%s195 + $0x9c] sm:$0xf]
      %v228 = vld [vmem:[%s1] sm:$0xf]
      %v229 = vld [vmem:[%s1 + $0x4] sm:$0xf]
      %v230 = vld [vmem:[%s1 + $0x8] sm:$0xf]
      %v231 = vld [vmem:[%s1 + $0xc] sm:$0xf]
      %v232 = vld [vmem:[%s1 + $0x10] sm:$0xf]
      %v233 = vld [vmem:[%s1 + $0x14] sm:$0xf]
      %v234 = vld [vmem:[%s1 + $0x18] sm:$0xf]
      %v235 = vld [vmem:[%s1 + $0x1c] sm:$0xf]
      %v236 = vld [vmem:[%s1 + $0x20] sm:$0xf]
      %v237 = vld [vmem:[%s1 + $0x24] sm:$0xf]
      %v238 = vld [vmem:[%s1 + $0x28] sm:$0xf]
      %v239 = vld [vmem:[%s1 + $0x2c] sm:$0xf]
      %v240 = vld [vmem:[%s1 + $0x30] sm:$0xf]
      %v241 = vld [vmem:[%s1 + $0x34] sm:$0xf]
      %v242 = vld [vmem:[%s1 + $0x38] sm:$0xf]
      %v243 = vld [vmem:[%s1 + $0x3c] sm:$0xf]
      %v244 = vld [vmem:[%s1 + $0x40] sm:$0xf]
      %v245 = vld [vmem:[%s1 + $0x44] sm:$0xf]
      %v246 = vld [vmem:[%s1 + $0x48] sm:$0xf]
      %v247 = vld [vmem:[%s1 + $0x4c] sm:$0xf]
      %v248 = vld [vmem:[%s1 + $0x50] sm:$0xf]
      %v249 = vld [vmem:[%s1 + $0x54] sm:$0xf]
      %v250 = vld [vmem:[%s1 + $0x58] sm:$0xf]
      %v251 = vld [vmem:[%s1 + $0x5c] sm:$0xf]
      %v252 = vld [vmem:[%s1 + $0x60] sm:$0xf]
      %v253 = vld [vmem:[%s1 + $0x64] sm:$0xf]
      %v254 = vld [vmem:[%s1 + $0x68] sm:$0xf]
      %v255 = vld [vmem:[%s1 + $0x6c] sm:$0xf]
      %v256 = vld [vmem:[%s1 + $0x70] sm:$0xf]
      %v257 = vld [vmem:[%s1 + $0x74] sm:$0xf]
      %v258 = vld [vmem:[%s1 + $0x78] sm:$0xf]
      %v259 = vld [vmem:[%s1 + $0x7c] sm:$0xf]
      %v260 = vld [vmem:[%s1 + $0x80] sm:$0xf]
      %v261 = vld [vmem:[%s1 + $0x84] sm:$0xf]
      %v262 = vld [vmem:[%s1 + $0x88] sm:$0xf]
      %v263 = vld [vmem:[%s1 + $0x8c] sm:$0xf]
      %v264 = vld [vmem:[%s1 + $0x90] sm:$0xf]
      %v265 = vld [vmem:[%s1 + $0x94] sm:$0xf]
      %v266 = vld [vmem:[%s1 + $0x98] sm:$0xf]
      %v267 = vld [vmem:[%s1 + $0x9c] sm:$0xf]
      %v268 = vld [vmem:[%s1 + $0xa0] sm:$0xf]
      %v269 = vld [vmem:[%s1 + $0xa4] sm:$0xf]
      %v270 = vld [vmem:[%s1 + $0xa8] sm:$0xf]
      %v271 = vld [vmem:[%s1 + $0xac] sm:$0xf]
      %v272 = vld [vmem:[%s1 + $0xb0] sm:$0xf]
      %v273 = vld [vmem:[%s1 + $0xb4] sm:$0xf]
      %v274 = vld [vmem:[%s1 + $0xb8] sm:$0xf]
      %v275 = vld [vmem:[%s1 + $0xbc] sm:$0xf]
      %v276 = vld [vmem:[%s1 + $0xc0] sm:$0xf]
      %v277 = vld [vmem:[%s1 + $0xc4] sm:$0xf]
      %v278 = vld [vmem:[%s1 + $0xc8] sm:$0xf]
      %v279 = vld [vmem:[%s1 + $0xcc] sm:$0xf]
      %v280 = vld [vmem:[%s1 + $0xd0] sm:$0xf]
      %v281 = vld [vmem:[%s1 + $0xd4] sm:$0xf]
      %v282 = vld [vmem:[%s1 + $0xd8] sm:$0xf]
      %v283 = vld [vmem:[%s1 + $0xdc] sm:$0xf]
      %v284 = vld [vmem:[%s1 + $0xe0] sm:$0xf]
      %v285 = vld [vmem:[%s1 + $0xe4] sm:$0xf]
      %v286 = vld [vmem:[%s1 + $0xe8] sm:$0xf]
      %v287 = vld [vmem:[%s1 + $0xec] sm:$0xf]
      %v288 = vld [vmem:[%s1 + $0xf0] sm:$0xf]
      %v289 = vld [vmem:[%s1 + $0xf4] sm:$0xf]
      %v290 = vld [vmem:[%s1 + $0xf8] sm:$0xf]
      %v291 = vld [vmem:[%s1 + $0xfc] sm:$0xf]
      %v292 = vld [vmem:[%s1 + $0x100] sm:$0xf]
      %v293 = vld [vmem:[%s1 + $0x104] sm:$0xf]
      %v294 = vld [vmem:[%s1 + $0x108] sm:$0xf]
      %v295 = vld [vmem:[%s1 + $0x10c] sm:$0xf]
      %v296 = vld [vmem:[%s1 + $0x110] sm:$0xf]
      %v297 = vld [vmem:[%s1 + $0x114] sm:$0xf]
      %v298 = vld [vmem:[%s1 + $0x118] sm:$0xf]
      %v299 = vld [vmem:[%s1 + $0x11c] sm:$0xf]
      %v300 = vld [vmem:[%s2] sm:$0x1]
      %v302 = vlaneseq
      %v303 = vshrl.u32 %v302, 7
      %v304 = vsub.s32 0, %v303
      %v305 = vrot.slane %v300, %v304
      %v331 = vunpack.c.l.b16 %v204
      %v332 = vunpack.c.h.b16 %v204
      %v333 = vunpack.c.l.b16 %v205
      %v334 = vunpack.c.h.b16 %v205
      %v335 = vunpack.c.l.b16 %v206
      %v336 = vunpack.c.l.b16 %v207
      %v337 = vunpack.c.h.b16 %v207
      %v338 = vunpack.c.l.b16 %v208
      %v339 = vunpack.c.h.b16 %v208
      %v340 = vunpack.c.l.b16 %v209
      %v341 = vunpack.c.l.b16 %v210
      %v342 = vunpack.c.h.b16 %v210
      %v343 = vunpack.c.l.b16 %v211
      %v344 = vunpack.c.h.b16 %v211
      %v345 = vunpack.c.l.b16 %v212
      %v346 = vunpack.c.l.b16 %v213
      %v347 = vunpack.c.h.b16 %v213
      %v348 = vunpack.c.l.b16 %v214
      %v349 = vunpack.c.h.b16 %v214
      %v350 = vunpack.c.l.b16 %v215
      %v351 = vunpack.c.l.b16 %v216
      %v352 = vunpack.c.h.b16 %v216
      %v353 = vunpack.c.l.b16 %v217
      %v354 = vunpack.c.h.b16 %v217
      %v355 = vunpack.c.l.b16 %v218
      %v356 = vunpack.c.l.b16 %v219
      %v357 = vunpack.c.h.b16 %v219
      %v358 = vunpack.c.l.b16 %v220
      %v359 = vunpack.c.h.b16 %v220
      %v360 = vunpack.c.l.b16 %v221
      %v361 = vunpack.c.l.b16 %v222
      %v362 = vunpack.c.h.b16 %v222
      %v363 = vunpack.c.l.b16 %v223
      %v364 = vunpack.c.h.b16 %v223
      %v365 = vunpack.c.l.b16 %v224
      %v366 = vunpack.c.l.b16 %v225
      %v367 = vunpack.c.h.b16 %v225
      %v368 = vunpack.c.l.b16 %v226
      %v369 = vunpack.c.h.b16 %v226
      %v370 = vunpack.c.l.b16 %v227
      %v371 = vpack.c.b16 %v336, %v331
      %v372 = vpack.c.b16 %v337, %v332
      %v373 = vpack.c.b16 %v338, %v333
      %v374 = vpack.c.b16 %v339, %v334
      %v375 = vpack.c.b16 %v340, %v335
      %v376 = vpack.c.b16 %v346, %v341
      %v377 = vpack.c.b16 %v347, %v342
      %v378 = vpack.c.b16 %v348, %v343
      %v379 = vpack.c.b16 %v349, %v344
      %v380 = vpack.c.b16 %v350, %v345
      %v381 = vpack.c.b16 %v356, %v351
      %v382 = vpack.c.b16 %v357, %v352
      %v383 = vpack.c.b16 %v358, %v353
      %v384 = vpack.c.b16 %v359, %v354
      %v385 = vpack.c.b16 %v360, %v355
      %v386 = vpack.c.b16 %v366, %v361
      %v387 = vpack.c.b16 %v367, %v362
      %v388 = vpack.c.b16 %v368, %v363
      %v389 = vpack.c.b16 %v369, %v364
      %v390 = vpack.c.b16 %v370, %v365
      %v479 = vunpack.c.l.b16 %v228
      %v480 = vunpack.c.l.b16 %v229
      %v481 = vunpack.c.l.b16 %v230
      %v482 = vunpack.c.l.b16 %v231
      %v483 = vunpack.c.l.b16 %v232
      %v484 = vunpack.c.l.b16 %v233
      %v485 = vunpack.c.l.b16 %v234
      %v486 = vunpack.c.l.b16 %v235
      %v487 = vunpack.c.l.b16 %v236
      %v488 = vunpack.c.l.b16 %v237
      %v489 = vunpack.c.l.b16 %v238
      %v490 = vunpack.c.l.b16 %v239
      %v491 = vunpack.c.l.b16 %v240
      %v492 = vunpack.c.l.b16 %v241
      %v493 = vunpack.c.l.b16 %v242
      %v494 = vunpack.c.l.b16 %v243
      %v495 = vunpack.c.l.b16 %v244
      %v496 = vunpack.c.l.b16 %v245
      %v497 = vunpack.c.l.b16 %v246
      %v498 = vunpack.c.l.b16 %v247
      %v499 = vunpack.c.l.b16 %v248
      %v500 = vunpack.c.l.b16 %v249
      %v501 = vunpack.c.l.b16 %v250
      %v502 = vunpack.c.l.b16 %v251
      %v503 = vunpack.c.l.b16 %v252
      %v504 = vunpack.c.l.b16 %v253
      %v505 = vunpack.c.l.b16 %v254
      %v506 = vunpack.c.l.b16 %v255
      %v507 = vunpack.c.l.b16 %v256
      %v508 = vunpack.c.l.b16 %v257
      %v509 = vunpack.c.l.b16 %v258
      %v510 = vunpack.c.l.b16 %v259
      %v511 = vunpack.c.l.b16 %v260
      %v512 = vunpack.c.l.b16 %v261
      %v513 = vunpack.c.l.b16 %v262
      %v514 = vunpack.c.l.b16 %v263
      %v515 = vunpack.c.l.b16 %v264
      %v516 = vunpack.c.l.b16 %v265
      %v517 = vunpack.c.l.b16 %v266
      %v518 = vunpack.c.l.b16 %v267
      %v519 = vunpack.c.l.b16 %v268
      %v520 = vunpack.c.l.b16 %v269
      %v521 = vunpack.c.l.b16 %v270
      %v522 = vunpack.c.l.b16 %v271
      %v523 = vunpack.c.l.b16 %v272
      %v524 = vunpack.c.l.b16 %v273
      %v525 = vunpack.c.l.b16 %v274
      %v526 = vunpack.c.l.b16 %v275
      %v527 = vunpack.c.l.b16 %v276
      %v528 = vunpack.c.l.b16 %v277
      %v529 = vunpack.c.l.b16 %v278
      %v530 = vunpack.c.l.b16 %v279
      %v531 = vunpack.c.l.b16 %v280
      %v532 = vunpack.c.l.b16 %v281
      %v533 = vunpack.c.l.b16 %v282
      %v534 = vunpack.c.l.b16 %v283
      %v535 = vunpack.c.l.b16 %v284
      %v536 = vunpack.c.l.b16 %v285
      %v537 = vunpack.c.l.b16 %v286
      %v538 = vunpack.c.l.b16 %v287
      %v539 = vunpack.c.l.b16 %v288
      %v540 = vunpack.c.l.b16 %v289
      %v541 = vunpack.c.l.b16 %v290
      %v542 = vunpack.c.l.b16 %v291
      %v543 = vunpack.c.l.b16 %v292
      %v544 = vunpack.c.l.b16 %v293
      %v545 = vunpack.c.l.b16 %v294
      %v546 = vunpack.c.l.b16 %v295
      %v547 = vunpack.c.l.b16 %v296
      %v548 = vunpack.c.l.b16 %v297
      %v549 = vunpack.c.l.b16 %v298
      %v550 = vunpack.c.l.b16 %v299
      %v551 = vpack.c.b16 %v480, %v479
      %v552 = vpack.c.b16 %v482, %v481
      %v553 = vpack.c.b16 %v484, %v483
      %v554 = vpack.c.b16 %v486, %v485
      %v555 = vpack.c.b16 %v488, %v487
      %v556 = vpack.c.b16 %v490, %v489
      %v557 = vpack.c.b16 %v492, %v491
      %v558 = vpack.c.b16 %v494, %v493
      %v559 = vpack.c.b16 %v496, %v495
      %v560 = vpack.c.b16 %v498, %v497
      %v561 = vpack.c.b16 %v500, %v499
      %v562 = vpack.c.b16 %v502, %v501
      %v563 = vpack.c.b16 %v504, %v503
      %v564 = vpack.c.b16 %v506, %v505
      %v565 = vpack.c.b16 %v508, %v507
      %v566 = vpack.c.b16 %v510, %v509
      %v567 = vpack.c.b16 %v512, %v511
      %v568 = vpack.c.b16 %v514, %v513
      %v569 = vpack.c.b16 %v516, %v515
      %v570 = vpack.c.b16 %v518, %v517
      %v571 = vpack.c.b16 %v520, %v519
      %v572 = vpack.c.b16 %v522, %v521
      %v573 = vpack.c.b16 %v524, %v523
      %v574 = vpack.c.b16 %v526, %v525
      %v575 = vpack.c.b16 %v528, %v527
      %v576 = vpack.c.b16 %v530, %v529
      %v577 = vpack.c.b16 %v532, %v531
      %v578 = vpack.c.b16 %v534, %v533
      %v579 = vpack.c.b16 %v536, %v535
      %v580 = vpack.c.b16 %v538, %v537
      %v581 = vpack.c.b16 %v540, %v539
      %v582 = vpack.c.b16 %v542, %v541
      %v583 = vpack.c.b16 %v544, %v543
      %v584 = vpack.c.b16 %v546, %v545
      %v585 = vpack.c.b16 %v548, %v547
      %v586 = vpack.c.b16 %v550, %v549
      %vm623 = vcmask 523264
      %v625 = vsel %vm623, %v375, 0
      %v628 = vsel %vm623, %v380, 0
      %v631 = vsel %vm623, %v385, 0
      %v634 = vsel %vm623, %v390, 0
      %636 = vmatprep.subr.bf16.mxu0 0
      %637 = vmatpush1.bf16.msra.mxu0 %v558
      %638 = vmatprep.subr.bf16.mxu0 0
      %639 = vmatpush1.bf16.msra.mxu0 %v557
      %640 = vmatprep.subr.bf16.mxu0 0
      %641 = vmatpush1.bf16.msra.mxu0 %v556
      %642 = vmatprep.subr.bf16.mxu0 0
      %643 = vmatpush1.bf16.msra.mxu0 %v555
      %644 = vmatprep.subr.bf16.mxu0 0
      %645 = vmatpush1.bf16.msra.mxu0 %v554
      %646 = vmatprep.subr.bf16.mxu0 0
      %647 = vmatpush1.bf16.msra.mxu0 %v553
      %648 = vmatprep.subr.bf16.mxu0 0
      %649 = vmatpush1.bf16.msra.mxu0 %v552
      %650 = vmatprep.subr.bf16.mxu0 0
      %651 = vmatpush1.bf16.msra.mxu0 %v551
      %652 = vmatprep.subr.bf16.mxu0 0
      %653 = vmatpush2.bf16.msra.mxu0 %v566
      %654 = vmatprep.subr.bf16.mxu0 0
      %655 = vmatpush2.bf16.msra.mxu0 %v565
      %656 = vmatprep.subr.bf16.mxu0 0
      %657 = vmatpush2.bf16.msra.mxu0 %v564
      %658 = vmatprep.subr.bf16.mxu0 0
      %659 = vmatpush2.bf16.msra.mxu0 %v563
      %660 = vmatprep.subr.bf16.mxu0 0
      %661 = vmatpush2.bf16.msra.mxu0 %v562
      %662 = vmatprep.subr.bf16.mxu0 0
      %663 = vmatpush2.bf16.msra.mxu0 %v561
      %664 = vmatprep.subr.bf16.mxu0 0
      %665 = vmatpush2.bf16.msra.mxu0 %v560
      %666 = vmatprep.subr.bf16.mxu0 0
      %667 = vmatpush2.bf16.msra.mxu0 %v559
      %668 = vmatprep.mubr.bf16.mxu0 %v372
      %669 = vmatmul.mubr.bf16.gmra.mxu0 %v371
      %v670 = vpop.f32.mrf.mxu0
      %v671 = vadd.f32 %v305, %v670
      %v672 = vpop.f32.mrf.mxu0
      %v673 = vpop.f32.mrf.mxu0
      %v674 = vadd.f32 %v305, %v673
      %v675 = vpop.f32.mrf.mxu0
      %676 = vmatprep.mubr.bf16.mxu0 %v377
      %677 = vmatmul.mubr.bf16.gmra.mxu0 %v376
      %v678 = vpop.f32.mrf.mxu0
      %v679 = vadd.f32 %v305, %v678
      %v680 = vpop.f32.mrf.mxu0
      %v681 = vpop.f32.mrf.mxu0
      %v682 = vadd.f32 %v305, %v681
      %v683 = vpop.f32.mrf.mxu0
      %684 = vmatprep.mubr.bf16.mxu0 %v382
      %685 = vmatmul.mubr.bf16.gmra.mxu0 %v381
      %v686 = vpop.f32.mrf.mxu0
      %v687 = vadd.f32 %v305, %v686
      %v688 = vpop.f32.mrf.mxu0
      %v689 = vpop.f32.mrf.mxu0
      %v690 = vadd.f32 %v305, %v689
      %v691 = vpop.f32.mrf.mxu0
      %692 = vmatprep.mubr.bf16.mxu0 %v387
      %693 = vmatmul.mubr.bf16.gmra.mxu0 %v386
      %v694 = vpop.f32.mrf.mxu0
      %v695 = vadd.f32 %v305, %v694
      %v696 = vpop.f32.mrf.mxu0
      %v697 = vpop.f32.mrf.mxu0
      %v698 = vadd.f32 %v305, %v697
      %v699 = vpop.f32.mrf.mxu0
      %700 = vdwg.mxu0
      %701 = vmatprep.subr.bf16.mxu0 0
      %702 = vmatpush1.bf16.msra.mxu0 %v574
      %703 = vmatprep.subr.bf16.mxu0 0
      %704 = vmatpush1.bf16.msra.mxu0 %v573
      %705 = vmatprep.subr.bf16.mxu0 0
      %706 = vmatpush1.bf16.msra.mxu0 %v572
      %707 = vmatprep.subr.bf16.mxu0 0
      %708 = vmatpush1.bf16.msra.mxu0 %v571
      %709 = vmatprep.subr.bf16.mxu0 0
      %710 = vmatpush1.bf16.msra.mxu0 %v570
      %711 = vmatprep.subr.bf16.mxu0 0
      %712 = vmatpush1.bf16.msra.mxu0 %v569
      %713 = vmatprep.subr.bf16.mxu0 0
      %714 = vmatpush1.bf16.msra.mxu0 %v568
      %715 = vmatprep.subr.bf16.mxu0 0
      %716 = vmatpush1.bf16.msra.mxu0 %v567
      %717 = vmatprep.subr.bf16.mxu0 0
      %718 = vmatpush2.bf16.msra.mxu0 %v582
      %719 = vmatprep.subr.bf16.mxu0 0
      %720 = vmatpush2.bf16.msra.mxu0 %v581
      %721 = vmatprep.subr.bf16.mxu0 0
      %722 = vmatpush2.bf16.msra.mxu0 %v580
      %723 = vmatprep.subr.bf16.mxu0 0
      %724 = vmatpush2.bf16.msra.mxu0 %v579
      %725 = vmatprep.subr.bf16.mxu0 0
      %726 = vmatpush2.bf16.msra.mxu0 %v578
      %727 = vmatprep.subr.bf16.mxu0 0
      %728 = vmatpush2.bf16.msra.mxu0 %v577
      %729 = vmatprep.subr.bf16.mxu0 0
      %730 = vmatpush2.bf16.msra.mxu0 %v576
      %731 = vmatprep.subr.bf16.mxu0 0
      %732 = vmatpush2.bf16.msra.mxu0 %v575
      %733 = vmatprep.mubr.bf16.mxu0 %v374
      %734 = vmatmul.mubr.bf16.gmra.mxu0 %v373
      %v735 = vpop.f32.mrf.mxu0
      %v736 = vadd.f32 %v671, %v735
      %v737 = vpop.f32.mrf.mxu0
      %v738 = vpop.f32.mrf.mxu0
      %v739 = vadd.f32 %v674, %v738
      %v740 = vpop.f32.mrf.mxu0
      %741 = vmatprep.mubr.bf16.mxu0 %v379
      %742 = vmatmul.mubr.bf16.gmra.mxu0 %v378
      %v743 = vpop.f32.mrf.mxu0
      %v744 = vadd.f32 %v679, %v743
      %v745 = vpop.f32.mrf.mxu0
      %v746 = vpop.f32.mrf.mxu0
      %v747 = vadd.f32 %v682, %v746
      %v748 = vpop.f32.mrf.mxu0
      %749 = vmatprep.mubr.bf16.mxu0 %v384
      %750 = vmatmul.mubr.bf16.gmra.mxu0 %v383
      %v751 = vpop.f32.mrf.mxu0
      %v752 = vadd.f32 %v687, %v751
      %v753 = vpop.f32.mrf.mxu0
      %v754 = vpop.f32.mrf.mxu0
      %v755 = vadd.f32 %v690, %v754
      %v756 = vpop.f32.mrf.mxu0
      %757 = vmatprep.mubr.bf16.mxu0 %v389
      %758 = vmatmul.mubr.bf16.gmra.mxu0 %v388
      %v759 = vpop.f32.mrf.mxu0
      %v760 = vadd.f32 %v695, %v759
      %v761 = vpop.f32.mrf.mxu0
      %v762 = vpop.f32.mrf.mxu0
      %v763 = vadd.f32 %v698, %v762
      %v764 = vpop.f32.mrf.mxu0
      %765 = vdwg.mxu0
      %766 = vmatprep.subr.bf16.mxu0 0
      %767 = vmatpush1.bf16.msra.mxu0 0
      %768 = vmatprep.subr.bf16.mxu0 0
      %769 = vmatpush1.bf16.msra.mxu0 0
      %770 = vmatprep.subr.bf16.mxu0 0
      %771 = vmatpush1.bf16.msra.mxu0 0
      %772 = vmatprep.subr.bf16.mxu0 0
      %773 = vmatpush1.bf16.msra.mxu0 0
      %774 = vmatprep.subr.bf16.mxu0 0
      %775 = vmatpush1.bf16.msra.mxu0 %v586
      %776 = vmatprep.subr.bf16.mxu0 0
      %777 = vmatpush1.bf16.msra.mxu0 %v585
      %778 = vmatprep.subr.bf16.mxu0 0
      %779 = vmatpush1.bf16.msra.mxu0 %v584
      %780 = vmatprep.subr.bf16.mxu0 0
      %781 = vmatpush1.bf16.msra.mxu0 %v583
      %782 = vmatprep.subr.bf16.mxu0 0
      %783 = vmatpush2.bf16.msra.mxu0 0
      %784 = vmatprep.subr.bf16.mxu0 0
      %785 = vmatpush2.bf16.msra.mxu0 0
      %786 = vmatprep.subr.bf16.mxu0 0
      %787 = vmatpush2.bf16.msra.mxu0 0
      %788 = vmatprep.subr.bf16.mxu0 0
      %789 = vmatpush2.bf16.msra.mxu0 0
      %790 = vmatprep.subr.bf16.mxu0 0
      %791 = vmatpush2.bf16.msra.mxu0 0
      %792 = vmatprep.subr.bf16.mxu0 0
      %793 = vmatpush2.bf16.msra.mxu0 0
      %794 = vmatprep.subr.bf16.mxu0 0
      %795 = vmatpush2.bf16.msra.mxu0 0
      %796 = vmatprep.subr.bf16.mxu0 0
      %797 = vmatpush2.bf16.msra.mxu0 0
      %798 = vmatprep.mubr.bf16.mxu0 0
      %799 = vmatmul.mubr.bf16.gmra.mxu0 %v625
      %v800 = vpop.f32.mrf.mxu0
      %v801 = vadd.f32 %v736, %v800
      %v802 = vpop.f32.mrf.mxu0
      %v803 = vpop.f32.mrf.mxu0
      %v804 = vadd.f32 %v739, %v803
      %v805 = vpop.f32.mrf.mxu0
      %806 = vmatprep.mubr.bf16.mxu0 0
      %807 = vmatmul.mubr.bf16.gmra.mxu0 %v628
      %v808 = vpop.f32.mrf.mxu0
      %v809 = vadd.f32 %v744, %v808
      %v810 = vpop.f32.mrf.mxu0
      %v811 = vpop.f32.mrf.mxu0
      %v812 = vadd.f32 %v747, %v811
      %v813 = vpop.f32.mrf.mxu0
      %814 = vmatprep.mubr.bf16.mxu0 0
      %815 = vmatmul.mubr.bf16.gmra.mxu0 %v631
      %v816 = vpop.f32.mrf.mxu0
      %v817 = vadd.f32 %v752, %v816
      %v818 = vpop.f32.mrf.mxu0
      %v819 = vpop.f32.mrf.mxu0
      %v820 = vadd.f32 %v755, %v819
      %v821 = vpop.f32.mrf.mxu0
      %822 = vmatprep.mubr.bf16.mxu0 0
      %823 = vmatmul.mubr.bf16.gmra.mxu0 %v634
      %v824 = vpop.f32.mrf.mxu0
      %v825 = vadd.f32 %v760, %v824
      %v826 = vpop.f32.mrf.mxu0
      %v827 = vpop.f32.mrf.mxu0
      %v828 = vadd.f32 %v763, %v827
      %v829 = vpop.f32.mrf.mxu0
      %830 = vdwg.mxu0
      %v831 = vmax.f32 %v801, 0.0
      %v832 = vmax.f32 %v804, 0.0
      %v833 = vmax.f32 %v809, 0.0
      %v834 = vmax.f32 %v812, 0.0
      %v835 = vmax.f32 %v817, 0.0
      %v836 = vmax.f32 %v820, 0.0
      %v837 = vmax.f32 %v825, 0.0
      %v838 = vmax.f32 %v828, 0.0
      %v839 = vpack.c.bf16 %v832, %v831
      %v840 = vpack.c.bf16 %v834, %v833
      %v841 = vpack.c.bf16 %v836, %v835
      %v842 = vpack.c.bf16 %v838, %v837
      %p843 = scmp.eq.s32.totalorder %s19, 0
      // Predicated region
      $region33: #{run.6} parent=31 // pred_check
        %p844 = pneg %p843
      $region34: #{run.6} parent=31 // pred_check_branch
        %846 = sbr.rel (%p844) target = $region36
      $region35: #{run.6} parent=31 // pred_region
        %v851 = vunpack.c.l.b16 %v839
        %v852 = vunpack.c.h.b16 %v839
        %v853 = vunpack.c.l.b16 %v840
        %v854 = vunpack.c.h.b16 %v840
        %v855 = vunpack.c.l.b16 %v841
        %v856 = vunpack.c.h.b16 %v841
        %v857 = vunpack.c.l.b16 %v842
        %v858 = vunpack.c.h.b16 %v842
        %v859 = vpack.c.b16 %v851, %v851
        %v860 = vpack.c.b16 %v852, %v852
        %v861 = vpack.c.b16 %v853, %v853
        %v862 = vpack.c.b16 %v854, %v854
        %v863 = vpack.c.b16 %v855, %v855
        %v864 = vpack.c.b16 %v856, %v856
        %v865 = vpack.c.b16 %v857, %v857
        %v866 = vpack.c.b16 %v858, %v858
        %875 = vst [vmem:[%s201] sm:$0xf] %v859
        %876 = vst [vmem:[%s201 + $0x4] sm:$0xf] %v860
        %877 = vst [vmem:[%s201 + $0x8] sm:$0xf] %v861
        %878 = vst [vmem:[%s201 + $0xc] sm:$0xf] %v862
        %879 = vst [vmem:[%s201 + $0x10] sm:$0xf] %v863
        %880 = vst [vmem:[%s201 + $0x14] sm:$0xf] %v864
        %881 = vst [vmem:[%s201 + $0x18] sm:$0xf] %v865
        %882 = vst [vmem:[%s201 + $0x1c] sm:$0xf] %v866
      $region36: #{run.6} parent=31 // pred_fallthru
        _
      %p883 = scmp.gt.s32.totalorder %s19, 0
      // Predicated region
      $region37: #{run.6} parent=31 // pred_check
        %p884 = pneg %p883
      $region38: #{run.6} parent=31 // pred_check_branch
        %886 = sbr.rel (%p884) target = $region40
      $region39: #{run.6} parent=31 // pred_region
        %v887 = vld [vmem:[%s201] sm:$0xf]
        %v888 = vld [vmem:[%s201 + $0x4] sm:$0xf]
        %v889 = vld [vmem:[%s201 + $0x8] sm:$0xf]
        %v890 = vld [vmem:[%s201 + $0xc] sm:$0xf]
        %v891 = vld [vmem:[%s201 + $0x10] sm:$0xf]
        %v892 = vld [vmem:[%s201 + $0x14] sm:$0xf]
        %v893 = vld [vmem:[%s201 + $0x18] sm:$0xf]
        %v894 = vld [vmem:[%s201 + $0x1c] sm:$0xf]
        %v899 = vunpack.c.l.b16 %v839
        %v900 = vunpack.c.h.b16 %v839
        %v901 = vunpack.c.l.b16 %v840
        %v902 = vunpack.c.h.b16 %v840
        %v903 = vunpack.c.l.b16 %v841
        %v904 = vunpack.c.h.b16 %v841
        %v905 = vunpack.c.l.b16 %v842
        %v906 = vunpack.c.h.b16 %v842
        %v907 = vpack.c.b16 %v899, %v899
        %v908 = vpack.c.b16 %v900, %v900
        %v909 = vpack.c.b16 %v901, %v901
        %v910 = vpack.c.b16 %v902, %v902
        %v911 = vpack.c.b16 %v903, %v903
        %v912 = vpack.c.b16 %v904, %v904
        %v913 = vpack.c.b16 %v905, %v905
        %v914 = vpack.c.b16 %v906, %v906
        %v923 = vmax.bf16 %v887, %v907
        %v924 = vmax.bf16 %v888, %v908
        %v925 = vmax.bf16 %v889, %v909
        %v926 = vmax.bf16 %v890, %v910
        %v927 = vmax.bf16 %v891, %v911
        %v928 = vmax.bf16 %v892, %v912
        %v929 = vmax.bf16 %v893, %v913
        %v930 = vmax.bf16 %v894, %v914
        %931 = vst [vmem:[%s201] sm:$0xf] %v923
        %932 = vst [vmem:[%s201 + $0x4] sm:$0xf] %v924
        %933 = vst [vmem:[%s201 + $0x8] sm:$0xf] %v925
        %934 = vst [vmem:[%s201 + $0xc] sm:$0xf] %v926
        %935 = vst [vmem:[%s201 + $0x10] sm:$0xf] %v927
        %936 = vst [vmem:[%s201 + $0x14] sm:$0xf] %v928
        %937 = vst [vmem:[%s201 + $0x18] sm:$0xf] %v929
        %938 = vst [vmem:[%s201 + $0x1c] sm:$0xf] %v930
      $region40: #{run.6} parent=31 // pred_fallthru
        _
      %s939 = smul.u32 8, %s18
      %p940 = scmp.lt.s32.totalorder %s939, 15
      %s941 = scalar_select %p940, %s939, 15
      %s942 = smul.addr %s941, 4
      %s943 = scalar_lea.vmem %s3, %s942
      // Predicated region
      $region41: #{run.6} parent=31 // pred_check
        %p944 = pneg %p114
      $region42: #{run.6} parent=31 // pred_check_branch
        %946 = sbr.rel (%p944) target = $region44
      $region43: #{run.6} parent=31 // pred_region
        %s947 = smul.u32 8, %s18
      $region44: #{run.6} parent=31 // pred_fallthru
        _
    $region32: #{run.6} parent=5 // pred_fallthru
      _
    %p948 = scmp.le.s32.totalorder 2, %s9
    // Predicated region
    $region45: #{run.6} parent=5 // pred_check
      %p949 = pneg %p948
    $region46: #{run.6} parent=5 // pred_check_branch
      %951 = sbr.rel (%p949) target = $region48
    $region47: #{run.6} parent=5 // pred_region
      %s952 = ssub.s32 %s9, 2
      // Predicated region
      $region49: #{run.6} parent=47 // pred_check
        %p953 = pneg %p120
      $region50: #{run.6} parent=47 // pred_check_branch
        %955 = sbr.rel (%p953) target = $region52
      $region51: #{run.6} parent=47 // pred_region
        %s956 = smul.u32 8, %s20
        %p957 = scmp.lt.s32.totalorder %s956, 15
        %s958 = scalar_select %p957, %s956, 15
        %s959 = smul.addr %s958, 4
        %s960 = scalar_lea.vmem %s3, %s959
      $region52: #{run.6} parent=47 // pred_fallthru
        _
    $region48: #{run.6} parent=5 // pred_fallthru
      _
  $region6: #{run.6} parent=0 // loop_footer
    %s13 = sadd.s32 1, %s9
  $region7: #{run.6} parent=0 // loop_footer_branch
    %8 = sbr.rel target = $region3
  $region8: #{run.6} parent=0 // loop_exit
    _

// kernel: run.7
$region0: #{run.7}
  #allocation0 [shape = 'u32[]', space=smem, size = 0x4, offset = 0x4, fixed_abs, tag = 'smem constant byte address 0x4 - core index']
  #allocation1 [shape = 'u32[144,128]{1,0:T(1,128)}', space=vmem, size = 0x12000, scoped, tag = 'internal scratch']
  %s0 = inlined_call_operand.vmem [shape: bf16[16,6272], index: 0, kind: input, shape index: {}]
  %s1 = inlined_call_operand.vmem [shape: bf16[6272,128], index: 1, kind: input, shape index: {}]
  %s2 = inlined_call_operand.vmem [shape: f32[1,128], index: 2, kind: input, shape index: {}]
  %s3 = inlined_call_operand.vmem [shape: bf16[128,128], index: 3, kind: input, shape index: {}]
  %s4 = inlined_call_operand.vmem [shape: bf16[128,128], index: 4, kind: input, shape index: {}]
  %s5 = inlined_call_operand.vmem [shape: f32[1,128], index: 5, kind: input, shape index: {}]
  %s6 = inlined_call_operand.vmem [shape: f32[16,128], index: 6, kind: output, shape index: {}]
  %s7 = sld [smem:[#allocation0]]
  $region34: #{run.7} parent=0
    _
  %s9 = ssub.s32 1, %s7
  %s10 = scalar_select 0, %s9, %s7
  // Predicated region
  $region2: #{run.7} parent=0 // pred_check
    _
  $region3: #{run.7} parent=0 // pred_check_branch
    %12 = sbr.rel (0) target = $region5
  $region4: #{run.7} parent=0 // pred_region
    _
  $region5: #{run.7} parent=0 // pred_fallthru
    _
  // Predicated region
  $region6: #{run.7} parent=0 // pred_check
    _
  $region7: #{run.7} parent=0 // pred_check_branch
    %14 = sbr.rel (0) target = $region9
  $region8: #{run.7} parent=0 // pred_region
    _
  $region9: #{run.7} parent=0 // pred_fallthru
    _
  // Predicated region
  $region10: #{run.7} parent=0 // pred_check
    _
  $region11: #{run.7} parent=0 // pred_check_branch
    %16 = sbr.rel (0) target = $region13
  $region12: #{run.7} parent=0 // pred_region
    _
  $region13: #{run.7} parent=0 // pred_fallthru
    _
  // Predicated region
  $region14: #{run.7} parent=0 // pred_check
    _
  $region15: #{run.7} parent=0 // pred_check_branch
    %18 = sbr.rel (0) target = $region17
  $region16: #{run.7} parent=0 // pred_region
    _
  $region17: #{run.7} parent=0 // pred_fallthru
    _
  // Predicated region
  $region18: #{run.7} parent=0 // pred_check
    _
  $region19: #{run.7} parent=0 // pred_check_branch
    %20 = sbr.rel (0) target = $region21
  $region20: #{run.7} parent=0 // pred_region
    _
  $region21: #{run.7} parent=0 // pred_fallthru
    _
  // Predicated region
  $region22: #{run.7} parent=0 // pred_check
    _
  $region23: #{run.7} parent=0 // pred_check_branch
    %22 = sbr.rel (0) target = $region25
  $region24: #{run.7} parent=0 // pred_region
    _
  $region25: #{run.7} parent=0 // pred_fallthru
    _
  %v24 = vld [vmem:[%s0] sm:$0xff]
  %v25 = vld [vmem:[%s0 + $0x8] sm:$0xff]
  %v26 = vld [vmem:[%s0 + $0x10] sm:$0xff]
  %v27 = vld [vmem:[%s0 + $0x18] sm:$0xff]
  %v28 = vld [vmem:[%s0 + $0x20] sm:$0xff]
  %v29 = vld [vmem:[%s0 + $0x28] sm:$0xff]
  %v30 = vld [vmem:[%s0 + $0x30] sm:$0xff]
  %v31 = vld [vmem:[%s0 + $0x38] sm:$0xff]
  %v32 = vld [vmem:[%s0 + $0x40] sm:$0xff]
  %v33 = vld [vmem:[%s0 + $0x48] sm:$0xff]
  %v34 = vld [vmem:[%s0 + $0x50] sm:$0xff]
  %v35 = vld [vmem:[%s0 + $0x58] sm:$0xff]
  %v36 = vld [vmem:[%s0 + $0x60] sm:$0xff]
  %v37 = vld [vmem:[%s0 + $0x68] sm:$0xff]
  %v38 = vld [vmem:[%s0 + $0x70] sm:$0xff]
  %v39 = vld [vmem:[%s0 + $0x78] sm:$0xff]
  %v40 = vld [vmem:[%s0 + $0x80] sm:$0xff]
  %v41 = vld [vmem:[%s0 + $0x88] sm:$0xff]
  %v42 = vld [vmem:[%s0 + $0x90] sm:$0xff]
  %v43 = vld [vmem:[%s0 + $0x98] sm:$0xff]
  %v44 = vld [vmem:[%s0 + $0xa0] sm:$0xff]
  %v45 = vld [vmem:[%s0 + $0xa8] sm:$0xff]
  %v46 = vld [vmem:[%s0 + $0xb0] sm:$0xff]
  %v47 = vld [vmem:[%s0 + $0xb8] sm:$0xff]
  %v48 = vld [vmem:[%s0 + $0xc0] sm:$0xf]
  %v49 = vld [vmem:[%s0 + $0xc4] sm:$0xff]
  %v50 = vld [vmem:[%s0 + $0xcc] sm:$0xff]
  %v51 = vld [vmem:[%s0 + $0xd4] sm:$0xff]
  %v52 = vld [vmem:[%s0 + $0xdc] sm:$0xff]
  %v53 = vld [vmem:[%s0 + $0xe4] sm:$0xff]
  %v54 = vld [vmem:[%s0 + $0xec] sm:$0xff]
  %v55 = vld [vmem:[%s0 + $0xf4] sm:$0xff]
  %v56 = vld [vmem:[%s0 + $0xfc] sm:$0xff]
  %v57 = vld [vmem:[%s0 + $0x104] sm:$0xff]
  %v58 = vld [vmem:[%s0 + $0x10c] sm:$0xff]
  %v59 = vld [vmem:[%s0 + $0x114] sm:$0xff]
  %v60 = vld [vmem:[%s0 + $0x11c] sm:$0xff]
  %v61 = vld [vmem:[%s0 + $0x124] sm:$0xff]
  %v62 = vld [vmem:[%s0 + $0x12c] sm:$0xff]
  %v63 = vld [vmem:[%s0 + $0x134] sm:$0xff]
  %v64 = vld [vmem:[%s0 + $0x13c] sm:$0xff]
  %v65 = vld [vmem:[%s0 + $0x144] sm:$0xff]
  %v66 = vld [vmem:[%s0 + $0x14c] sm:$0xff]
  %v67 = vld [vmem:[%s0 + $0x154] sm:$0xff]
  %v68 = vld [vmem:[%s0 + $0x15c] sm:$0xff]
  %v69 = vld [vmem:[%s0 + $0x164] sm:$0xff]
  %v70 = vld [vmem:[%s0 + $0x16c] sm:$0xff]
  %v71 = vld [vmem:[%s0 + $0x174] sm:$0xff]
  %v72 = vld [vmem:[%s0 + $0x17c] sm:$0xff]
  %v73 = vld [vmem:[%s0 + $0x184] sm:$0xf]
  %v74 = vld [vmem:[%s1] sm:$0xf]
  %v75 = vld [vmem:[%s1 + $0x4] sm:$0xf]
  %v76 = vld [vmem:[%s1 + $0x8] sm:$0xf]
  %v77 = vld [vmem:[%s1 + $0xc] sm:$0xf]
  %v78 = vld [vmem:[%s1 + $0x10] sm:$0xf]
  %v79 = vld [vmem:[%s1 + $0x14] sm:$0xf]
  %v80 = vld [vmem:[%s1 + $0x18] sm:$0xf]
  %v81 = vld [vmem:[%s1 + $0x1c] sm:$0xf]
  %v82 = vld [vmem:[%s1 + $0x20] sm:$0xf]
  %v83 = vld [vmem:[%s1 + $0x24] sm:$0xf]
  %v84 = vld [vmem:[%s1 + $0x28] sm:$0xf]
  %v85 = vld [vmem:[%s1 + $0x2c] sm:$0xf]
  %v86 = vld [vmem:[%s1 + $0x30] sm:$0xf]
  %v87 = vld [vmem:[%s1 + $0x34] sm:$0xf]
  %v88 = vld [vmem:[%s1 + $0x38] sm:$0xf]
  %v89 = vld [vmem:[%s1 + $0x3c] sm:$0xf]
  %v90 = vld [vmem:[%s1 + $0x40] sm:$0xf]
  %v91 = vld [vmem:[%s1 + $0x44] sm:$0xf]
  %v92 = vld [vmem:[%s1 + $0x48] sm:$0xf]
  %v93 = vld [vmem:[%s1 + $0x4c] sm:$0xf]
  %v94 = vld [vmem:[%s1 + $0x50] sm:$0xf]
  %v95 = vld [vmem:[%s1 + $0x54] sm:$0xf]
  %v96 = vld [vmem:[%s1 + $0x58] sm:$0xf]
  %v97 = vld [vmem:[%s1 + $0x5c] sm:$0xf]
  %v98 = vld [vmem:[%s1 + $0x60] sm:$0xf]
  %v99 = vld [vmem:[%s1 + $0x64] sm:$0xf]
  %v100 = vld [vmem:[%s1 + $0x68] sm:$0xf]
  %v101 = vld [vmem:[%s1 + $0x6c] sm:$0xf]
  %v102 = vld [vmem:[%s1 + $0x70] sm:$0xf]
  %v103 = vld [vmem:[%s1 + $0x74] sm:$0xf]
  %v104 = vld [vmem:[%s1 + $0x78] sm:$0xf]
  %v105 = vld [vmem:[%s1 + $0x7c] sm:$0xf]
  %v106 = vld [vmem:[%s1 + $0x80] sm:$0xf]
  %v107 = vld [vmem:[%s1 + $0x84] sm:$0xf]
  %v108 = vld [vmem:[%s1 + $0x88] sm:$0xf]
  %v109 = vld [vmem:[%s1 + $0x8c] sm:$0xf]
  %v110 = vld [vmem:[%s1 + $0x90] sm:$0xf]
  %v111 = vld [vmem:[%s1 + $0x94] sm:$0xf]
  %v112 = vld [vmem:[%s1 + $0x98] sm:$0xf]
  %v113 = vld [vmem:[%s1 + $0x9c] sm:$0xf]
  %v114 = vld [vmem:[%s1 + $0xa0] sm:$0xf]
  %v115 = vld [vmem:[%s1 + $0xa4] sm:$0xf]
  %v116 = vld [vmem:[%s1 + $0xa8] sm:$0xf]
  %v117 = vld [vmem:[%s1 + $0xac] sm:$0xf]
  %v118 = vld [vmem:[%s1 + $0xb0] sm:$0xf]
  %v119 = vld [vmem:[%s1 + $0xb4] sm:$0xf]
  %v120 = vld [vmem:[%s1 + $0xb8] sm:$0xf]
  %v121 = vld [vmem:[%s1 + $0xbc] sm:$0xf]
  %v122 = vld [vmem:[%s1 + $0xc0] sm:$0xf]
  %v123 = vld [vmem:[%s1 + $0xc4] sm:$0xf]
  %v124 = vld [vmem:[%s1 + $0xc8] sm:$0xf]
  %v125 = vld [vmem:[%s1 + $0xcc] sm:$0xf]
  %v126 = vld [vmem:[%s1 + $0xd0] sm:$0xf]
  %v127 = vld [vmem:[%s1 + $0xd4] sm:$0xf]
  %v128 = vld [vmem:[%s1 + $0xd8] sm:$0xf]
  %v129 = vld [vmem:[%s1 + $0xdc] sm:$0xf]
  %v130 = vld [vmem:[%s1 + $0xe0] sm:$0xf]
  %v131 = vld [vmem:[%s1 + $0xe4] sm:$0xf]
  %v132 = vld [vmem:[%s1 + $0xe8] sm:$0xf]
  %v133 = vld [vmem:[%s1 + $0xec] sm:$0xf]
  %v134 = vld [vmem:[%s1 + $0xf0] sm:$0xf]
  %v135 = vld [vmem:[%s1 + $0xf4] sm:$0xf]
  %v136 = vld [vmem:[%s1 + $0xf8] sm:$0xf]
  %v137 = vld [vmem:[%s1 + $0xfc] sm:$0xf]
  %v138 = vld [vmem:[%s1 + $0x100] sm:$0xf]
  %v139 = vld [vmem:[%s1 + $0x104] sm:$0xf]
  %v140 = vld [vmem:[%s1 + $0x108] sm:$0xf]
  %v141 = vld [vmem:[%s1 + $0x10c] sm:$0xf]
  %v142 = vld [vmem:[%s1 + $0x110] sm:$0xf]
  %v143 = vld [vmem:[%s1 + $0x114] sm:$0xf]
  %v144 = vld [vmem:[%s1 + $0x118] sm:$0xf]
  %v145 = vld [vmem:[%s1 + $0x11c] sm:$0xf]
  %v146 = vld [vmem:[%s1 + $0x120] sm:$0xf]
  %v147 = vld [vmem:[%s1 + $0x124] sm:$0xf]
  %v148 = vld [vmem:[%s1 + $0x128] sm:$0xf]
  %v149 = vld [vmem:[%s1 + $0x12c] sm:$0xf]
  %v150 = vld [vmem:[%s1 + $0x130] sm:$0xf]
  %v151 = vld [vmem:[%s1 + $0x134] sm:$0xf]
  %v152 = vld [vmem:[%s1 + $0x138] sm:$0xf]
  %v153 = vld [vmem:[%s1 + $0x13c] sm:$0xf]
  %v154 = vld [vmem:[%s1 + $0x140] sm:$0xf]
  %v155 = vld [vmem:[%s1 + $0x144] sm:$0xf]
  %v156 = vld [vmem:[%s1 + $0x148] sm:$0xf]
  %v157 = vld [vmem:[%s1 + $0x14c] sm:$0xf]
  %v158 = vld [vmem:[%s1 + $0x150] sm:$0xf]
  %v159 = vld [vmem:[%s1 + $0x154] sm:$0xf]
  %v160 = vld [vmem:[%s1 + $0x158] sm:$0xf]
  %v161 = vld [vmem:[%s1 + $0x15c] sm:$0xf]
  %v162 = vld [vmem:[%s1 + $0x160] sm:$0xf]
  %v163 = vld [vmem:[%s1 + $0x164] sm:$0xf]
  %v164 = vld [vmem:[%s1 + $0x168] sm:$0xf]
  %v165 = vld [vmem:[%s1 + $0x16c] sm:$0xf]
  %v166 = vld [vmem:[%s1 + $0x170] sm:$0xf]
  %v167 = vld [vmem:[%s1 + $0x174] sm:$0xf]
  %v168 = vld [vmem:[%s1 + $0x178] sm:$0xf]
  %v169 = vld [vmem:[%s1 + $0x17c] sm:$0xf]
  %v170 = vld [vmem:[%s1 + $0x180] sm:$0xf]
  %v171 = vld [vmem:[%s1 + $0x184] sm:$0xf]
  %v172 = vld [vmem:[%s1 + $0x188] sm:$0xf]
  %v173 = vld [vmem:[%s1 + $0x18c] sm:$0xf]
  %v174 = vld [vmem:[%s1 + $0x190] sm:$0xf]
  %v175 = vld [vmem:[%s1 + $0x194] sm:$0xf]
  %v176 = vld [vmem:[%s1 + $0x198] sm:$0xf]
  %v177 = vld [vmem:[%s1 + $0x19c] sm:$0xf]
  %v178 = vld [vmem:[%s1 + $0x1a0] sm:$0xf]
  %v179 = vld [vmem:[%s1 + $0x1a4] sm:$0xf]
  %v180 = vld [vmem:[%s1 + $0x1a8] sm:$0xf]
  %v181 = vld [vmem:[%s1 + $0x1ac] sm:$0xf]
  %v182 = vld [vmem:[%s1 + $0x1b0] sm:$0xf]
  %v183 = vld [vmem:[%s1 + $0x1b4] sm:$0xf]
  %v184 = vld [vmem:[%s1 + $0x1b8] sm:$0xf]
  %v185 = vld [vmem:[%s1 + $0x1bc] sm:$0xf]
  %v186 = vld [vmem:[%s1 + $0x1c0] sm:$0xf]
  %v187 = vld [vmem:[%s1 + $0x1c4] sm:$0xf]
  %v188 = vld [vmem:[%s1 + $0x1c8] sm:$0xf]
  %v189 = vld [vmem:[%s1 + $0x1cc] sm:$0xf]
  %v190 = vld [vmem:[%s1 + $0x1d0] sm:$0xf]
  %v191 = vld [vmem:[%s1 + $0x1d4] sm:$0xf]
  %v192 = vld [vmem:[%s1 + $0x1d8] sm:$0xf]
  %v193 = vld [vmem:[%s1 + $0x1dc] sm:$0xf]
  %v194 = vld [vmem:[%s1 + $0x1e0] sm:$0xf]
  %v195 = vld [vmem:[%s1 + $0x1e4] sm:$0xf]
  %v196 = vld [vmem:[%s1 + $0x1e8] sm:$0xf]
  %v197 = vld [vmem:[%s1 + $0x1ec] sm:$0xf]
  %v198 = vld [vmem:[%s1 + $0x1f0] sm:$0xf]
  %v199 = vld [vmem:[%s1 + $0x1f4] sm:$0xf]
  %v200 = vld [vmem:[%s1 + $0x1f8] sm:$0xf]
  %v201 = vld [vmem:[%s1 + $0x1fc] sm:$0xf]
  %v202 = vld [vmem:[%s1 + $0x200] sm:$0xf]
  %v203 = vld [vmem:[%s1 + $0x204] sm:$0xf]
  %v204 = vld [vmem:[%s1 + $0x208] sm:$0xf]
  %v205 = vld [vmem:[%s1 + $0x20c] sm:$0xf]
  %v206 = vld [vmem:[%s1 + $0x210] sm:$0xf]
  %v207 = vld [vmem:[%s1 + $0x214] sm:$0xf]
  %v208 = vld [vmem:[%s1 + $0x218] sm:$0xf]
  %v209 = vld [vmem:[%s1 + $0x21c] sm:$0xf]
  %v210 = vld [vmem:[%s1 + $0x220] sm:$0xf]
  %v211 = vld [vmem:[%s1 + $0x224] sm:$0xf]
  %v212 = vld [vmem:[%s1 + $0x228] sm:$0xf]
  %v213 = vld [vmem:[%s1 + $0x22c] sm:$0xf]
  %v214 = vld [vmem:[%s1 + $0x230] sm:$0xf]
  %v215 = vld [vmem:[%s1 + $0x234] sm:$0xf]
  %v216 = vld [vmem:[%s1 + $0x238] sm:$0xf]
  %v217 = vld [vmem:[%s1 + $0x23c] sm:$0xf]
  %v218 = vld [vmem:[%s1 + $0x240] sm:$0xf]
  %v219 = vld [vmem:[%s1 + $0x244] sm:$0xf]
  %v220 = vld [vmem:[%s1 + $0x248] sm:$0xf]
  %v221 = vld [vmem:[%s1 + $0x24c] sm:$0xf]
  %v222 = vld [vmem:[%s1 + $0x250] sm:$0xf]
  %v223 = vld [vmem:[%s1 + $0x254] sm:$0xf]
  %v224 = vld [vmem:[%s1 + $0x258] sm:$0xf]
  %v225 = vld [vmem:[%s1 + $0x25c] sm:$0xf]
  %v226 = vld [vmem:[%s1 + $0x260] sm:$0xf]
  %v227 = vld [vmem:[%s1 + $0x264] sm:$0xf]
  %v228 = vld [vmem:[%s1 + $0x268] sm:$0xf]
  %v229 = vld [vmem:[%s1 + $0x26c] sm:$0xf]
  %v230 = vld [vmem:[%s1 + $0x270] sm:$0xf]
  %v231 = vld [vmem:[%s1 + $0x274] sm:$0xf]
  %v232 = vld [vmem:[%s1 + $0x278] sm:$0xf]
  %v233 = vld [vmem:[%s1 + $0x27c] sm:$0xf]
  %v234 = vld [vmem:[%s1 + $0x280] sm:$0xf]
  %v235 = vld [vmem:[%s1 + $0x284] sm:$0xf]
  %v236 = vld [vmem:[%s1 + $0x288] sm:$0xf]
  %v237 = vld [vmem:[%s1 + $0x28c] sm:$0xf]
  %v238 = vld [vmem:[%s1 + $0x290] sm:$0xf]
  %v239 = vld [vmem:[%s1 + $0x294] sm:$0xf]
  %v240 = vld [vmem:[%s1 + $0x298] sm:$0xf]
  %v241 = vld [vmem:[%s1 + $0x29c] sm:$0xf]
  %v242 = vld [vmem:[%s1 + $0x2a0] sm:$0xf]
  %v243 = vld [vmem:[%s1 + $0x2a4] sm:$0xf]
  %v244 = vld [vmem:[%s1 + $0x2a8] sm:$0xf]
  %v245 = vld [vmem:[%s1 + $0x2ac] sm:$0xf]
  %v246 = vld [vmem:[%s1 + $0x2b0] sm:$0xf]
  %v247 = vld [vmem:[%s1 + $0x2b4] sm:$0xf]
  %v248 = vld [vmem:[%s1 + $0x2b8] sm:$0xf]
  %v249 = vld [vmem:[%s1 + $0x2bc] sm:$0xf]
  %v250 = vld [vmem:[%s1 + $0x2c0] sm:$0xf]
  %v251 = vld [vmem:[%s1 + $0x2c4] sm:$0xf]
  %v252 = vld [vmem:[%s1 + $0x2c8] sm:$0xf]
  %v253 = vld [vmem:[%s1 + $0x2cc] sm:$0xf]
  %v254 = vld [vmem:[%s1 + $0x2d0] sm:$0xf]
  %v255 = vld [vmem:[%s1 + $0x2d4] sm:$0xf]
  %v256 = vld [vmem:[%s1 + $0x2d8] sm:$0xf]
  %v257 = vld [vmem:[%s1 + $0x2dc] sm:$0xf]
  %v258 = vld [vmem:[%s1 + $0x2e0] sm:$0xf]
  %v259 = vld [vmem:[%s1 + $0x2e4] sm:$0xf]
  %v260 = vld [vmem:[%s1 + $0x2e8] sm:$0xf]
  %v261 = vld [vmem:[%s1 + $0x2ec] sm:$0xf]
  %v262 = vld [vmem:[%s1 + $0x2f0] sm:$0xf]
  %v263 = vld [vmem:[%s1 + $0x2f4] sm:$0xf]
  %v264 = vld [vmem:[%s1 + $0x2f8] sm:$0xf]
  %v265 = vld [vmem:[%s1 + $0x2fc] sm:$0xf]
  %v266 = vld [vmem:[%s1 + $0x300] sm:$0xf]
  %v267 = vld [vmem:[%s1 + $0x304] sm:$0xf]
  %v268 = vld [vmem:[%s1 + $0x308] sm:$0xf]
  %v269 = vld [vmem:[%s1 + $0x30c] sm:$0xf]
  %v270 = vld [vmem:[%s1 + $0x310] sm:$0xf]
  %v271 = vld [vmem:[%s1 + $0x314] sm:$0xf]
  %v272 = vld [vmem:[%s1 + $0x318] sm:$0xf]
  %v273 = vld [vmem:[%s1 + $0x31c] sm:$0xf]
  %v274 = vld [vmem:[%s1 + $0x320] sm:$0xf]
  %v275 = vld [vmem:[%s1 + $0x324] sm:$0xf]
  %v276 = vld [vmem:[%s1 + $0x328] sm:$0xf]
  %v277 = vld [vmem:[%s1 + $0x32c] sm:$0xf]
  %v278 = vld [vmem:[%s1 + $0x330] sm:$0xf]
  %v279 = vld [vmem:[%s1 + $0x334] sm:$0xf]
  %v280 = vld [vmem:[%s1 + $0x338] sm:$0xf]
  %v281 = vld [vmem:[%s1 + $0x33c] sm:$0xf]
  %v282 = vld [vmem:[%s1 + $0x340] sm:$0xf]
  %v283 = vld [vmem:[%s1 + $0x344] sm:$0xf]
  %v284 = vld [vmem:[%s1 + $0x348] sm:$0xf]
  %v285 = vld [vmem:[%s1 + $0x34c] sm:$0xf]
  %v286 = vld [vmem:[%s1 + $0x350] sm:$0xf]
  %v287 = vld [vmem:[%s1 + $0x354] sm:$0xf]
  %v288 = vld [vmem:[%s1 + $0x358] sm:$0xf]
  %v289 = vld [vmem:[%s1 + $0x35c] sm:$0xf]
  %v290 = vld [vmem:[%s1 + $0x360] sm:$0xf]
  %v291 = vld [vmem:[%s1 + $0x364] sm:$0xf]
  %v292 = vld [vmem:[%s1 + $0x368] sm:$0xf]
  %v293 = vld [vmem:[%s1 + $0x36c] sm:$0xf]
  %v294 = vld [vmem:[%s1 + $0x370] sm:$0xf]
  %v295 = vld [vmem:[%s1 + $0x374] sm:$0xf]
  %v296 = vld [vmem:[%s1 + $0x378] sm:$0xf]
  %v297 = vld [vmem:[%s1 + $0x37c] sm:$0xf]
  %v298 = vld [vmem:[%s1 + $0x380] sm:$0xf]
  %v299 = vld [vmem:[%s1 + $0x384] sm:$0xf]
  %v300 = vld [vmem:[%s1 + $0x388] sm:$0xf]
  %v301 = vld [vmem:[%s1 + $0x38c] sm:$0xf]
  %v302 = vld [vmem:[%s1 + $0x390] sm:$0xf]
  %v303 = vld [vmem:[%s1 + $0x394] sm:$0xf]
  %v304 = vld [vmem:[%s1 + $0x398] sm:$0xf]
  %v305 = vld [vmem:[%s1 + $0x39c] sm:$0xf]
  %v306 = vld [vmem:[%s1 + $0x3a0] sm:$0xf]
  %v307 = vld [vmem:[%s1 + $0x3a4] sm:$0xf]
  %v308 = vld [vmem:[%s1 + $0x3a8] sm:$0xf]
  %v309 = vld [vmem:[%s1 + $0x3ac] sm:$0xf]
  %v310 = vld [vmem:[%s1 + $0x3b0] sm:$0xf]
  %v311 = vld [vmem:[%s1 + $0x3b4] sm:$0xf]
  %v312 = vld [vmem:[%s1 + $0x3b8] sm:$0xf]
  %v313 = vld [vmem:[%s1 + $0x3bc] sm:$0xf]
  %v314 = vld [vmem:[%s1 + $0x3c0] sm:$0xf]
  %v315 = vld [vmem:[%s1 + $0x3c4] sm:$0xf]
  %v316 = vld [vmem:[%s1 + $0x3c8] sm:$0xf]
  %v317 = vld [vmem:[%s1 + $0x3cc] sm:$0xf]
  %v318 = vld [vmem:[%s1 + $0x3d0] sm:$0xf]
  %v319 = vld [vmem:[%s1 + $0x3d4] sm:$0xf]
  %v320 = vld [vmem:[%s1 + $0x3d8] sm:$0xf]
  %v321 = vld [vmem:[%s1 + $0x3dc] sm:$0xf]
  %v322 = vld [vmem:[%s1 + $0x3e0] sm:$0xf]
  %v323 = vld [vmem:[%s1 + $0x3e4] sm:$0xf]
  %v324 = vld [vmem:[%s1 + $0x3e8] sm:$0xf]
  %v325 = vld [vmem:[%s1 + $0x3ec] sm:$0xf]
  %v326 = vld [vmem:[%s1 + $0x3f0] sm:$0xf]
  %v327 = vld [vmem:[%s1 + $0x3f4] sm:$0xf]
  %v328 = vld [vmem:[%s1 + $0x3f8] sm:$0xf]
  %v329 = vld [vmem:[%s1 + $0x3fc] sm:$0xf]
  %v330 = vld [vmem:[%s1 + $0x400] sm:$0xf]
  %v331 = vld [vmem:[%s1 + $0x404] sm:$0xf]
  %v332 = vld [vmem:[%s1 + $0x408] sm:$0xf]
  %v333 = vld [vmem:[%s1 + $0x40c] sm:$0xf]
  %v334 = vld [vmem:[%s1 + $0x410] sm:$0xf]
  %v335 = vld [vmem:[%s1 + $0x414] sm:$0xf]
  %v336 = vld [vmem:[%s1 + $0x418] sm:$0xf]
  %v337 = vld [vmem:[%s1 + $0x41c] sm:$0xf]
  %v338 = vld [vmem:[%s1 + $0x420] sm:$0xf]
  %v339 = vld [vmem:[%s1 + $0x424] sm:$0xf]
  %v340 = vld [vmem:[%s1 + $0x428] sm:$0xf]
  %v341 = vld [vmem:[%s1 + $0x42c] sm:$0xf]
  %v342 = vld [vmem:[%s1 + $0x430] sm:$0xf]
  %v343 = vld [vmem:[%s1 + $0x434] sm:$0xf]
  %v344 = vld [vmem:[%s1 + $0x438] sm:$0xf]
  %v345 = vld [vmem:[%s1 + $0x43c] sm:$0xf]
  %v346 = vld [vmem:[%s1 + $0x440] sm:$0xf]
  %v347 = vld [vmem:[%s1 + $0x444] sm:$0xf]
  %v348 = vld [vmem:[%s1 + $0x448] sm:$0xf]
  %v349 = vld [vmem:[%s1 + $0x44c] sm:$0xf]
  %v350 = vld [vmem:[%s1 + $0x450] sm:$0xf]
  %v351 = vld [vmem:[%s1 + $0x454] sm:$0xf]
  %v352 = vld [vmem:[%s1 + $0x458] sm:$0xf]
  %v353 = vld [vmem:[%s1 + $0x45c] sm:$0xf]
  %v354 = vld [vmem:[%s1 + $0x460] sm:$0xf]
  %v355 = vld [vmem:[%s1 + $0x464] sm:$0xf]
  %v356 = vld [vmem:[%s1 + $0x468] sm:$0xf]
  %v357 = vld [vmem:[%s1 + $0x46c] sm:$0xf]
  %v358 = vld [vmem:[%s1 + $0x470] sm:$0xf]
  %v359 = vld [vmem:[%s1 + $0x474] sm:$0xf]
  %v360 = vld [vmem:[%s1 + $0x478] sm:$0xf]
  %v361 = vld [vmem:[%s1 + $0x47c] sm:$0xf]
  %v362 = vld [vmem:[%s1 + $0x480] sm:$0xf]
  %v363 = vld [vmem:[%s1 + $0x484] sm:$0xf]
  %v364 = vld [vmem:[%s1 + $0x488] sm:$0xf]
  %v365 = vld [vmem:[%s1 + $0x48c] sm:$0xf]
  %v366 = vld [vmem:[%s1 + $0x490] sm:$0xf]
  %v367 = vld [vmem:[%s1 + $0x494] sm:$0xf]
  %v368 = vld [vmem:[%s1 + $0x498] sm:$0xf]
  %v369 = vld [vmem:[%s1 + $0x49c] sm:$0xf]
  %v370 = vld [vmem:[%s1 + $0x4a0] sm:$0xf]
  %v371 = vld [vmem:[%s1 + $0x4a4] sm:$0xf]
  %v372 = vld [vmem:[%s1 + $0x4a8] sm:$0xf]
  %v373 = vld [vmem:[%s1 + $0x4ac] sm:$0xf]
  %v374 = vld [vmem:[%s1 + $0x4b0] sm:$0xf]
  %v375 = vld [vmem:[%s1 + $0x4b4] sm:$0xf]
  %v376 = vld [vmem:[%s1 + $0x4b8] sm:$0xf]
  %v377 = vld [vmem:[%s1 + $0x4bc] sm:$0xf]
  %v378 = vld [vmem:[%s1 + $0x4c0] sm:$0xf]
  %v379 = vld [vmem:[%s1 + $0x4c4] sm:$0xf]
  %v380 = vld [vmem:[%s1 + $0x4c8] sm:$0xf]
  %v381 = vld [vmem:[%s1 + $0x4cc] sm:$0xf]
  %v382 = vld [vmem:[%s1 + $0x4d0] sm:$0xf]
  %v383 = vld [vmem:[%s1 + $0x4d4] sm:$0xf]
  %v384 = vld [vmem:[%s1 + $0x4d8] sm:$0xf]
  %v385 = vld [vmem:[%s1 + $0x4dc] sm:$0xf]
  %v386 = vld [vmem:[%s1 + $0x4e0] sm:$0xf]
  %v387 = vld [vmem:[%s1 + $0x4e4] sm:$0xf]
  %v388 = vld [vmem:[%s1 + $0x4e8] sm:$0xf]
  %v389 = vld [vmem:[%s1 + $0x4ec] sm:$0xf]
  %v390 = vld [vmem:[%s1 + $0x4f0] sm:$0xf]
  %v391 = vld [vmem:[%s1 + $0x4f4] sm:$0xf]
  %v392 = vld [vmem:[%s1 + $0x4f8] sm:$0xf]
  %v393 = vld [vmem:[%s1 + $0x4fc] sm:$0xf]
  %v394 = vld [vmem:[%s1 + $0x500] sm:$0xf]
  %v395 = vld [vmem:[%s1 + $0x504] sm:$0xf]
  %v396 = vld [vmem:[%s1 + $0x508] sm:$0xf]
  %v397 = vld [vmem:[%s1 + $0x50c] sm:$0xf]
  %v398 = vld [vmem:[%s1 + $0x510] sm:$0xf]
  %v399 = vld [vmem:[%s1 + $0x514] sm:$0xf]
  %v400 = vld [vmem:[%s1 + $0x518] sm:$0xf]
  %v401 = vld [vmem:[%s1 + $0x51c] sm:$0xf]
  %v402 = vld [vmem:[%s1 + $0x520] sm:$0xf]
  %v403 = vld [vmem:[%s1 + $0x524] sm:$0xf]
  %v404 = vld [vmem:[%s1 + $0x528] sm:$0xf]
  %v405 = vld [vmem:[%s1 + $0x52c] sm:$0xf]
  %v406 = vld [vmem:[%s1 + $0x530] sm:$0xf]
  %v407 = vld [vmem:[%s1 + $0x534] sm:$0xf]
  %v408 = vld [vmem:[%s1 + $0x538] sm:$0xf]
  %v409 = vld [vmem:[%s1 + $0x53c] sm:$0xf]
  %v410 = vld [vmem:[%s1 + $0x540] sm:$0xf]
  %v411 = vld [vmem:[%s1 + $0x544] sm:$0xf]
  %v412 = vld [vmem:[%s1 + $0x548] sm:$0xf]
  %v413 = vld [vmem:[%s1 + $0x54c] sm:$0xf]
  %v414 = vld [vmem:[%s1 + $0x550] sm:$0xf]
  %v415 = vld [vmem:[%s1 + $0x554] sm:$0xf]
  %v416 = vld [vmem:[%s1 + $0x558] sm:$0xf]
  %v417 = vld [vmem:[%s1 + $0x55c] sm:$0xf]
  %v418 = vld [vmem:[%s1 + $0x560] sm:$0xf]
  %v419 = vld [vmem:[%s1 + $0x564] sm:$0xf]
  %v420 = vld [vmem:[%s1 + $0x568] sm:$0xf]
  %v421 = vld [vmem:[%s1 + $0x56c] sm:$0xf]
  %v422 = vld [vmem:[%s1 + $0x570] sm:$0xf]
  %v423 = vld [vmem:[%s1 + $0x574] sm:$0xf]
  %v424 = vld [vmem:[%s1 + $0x578] sm:$0xf]
  %v425 = vld [vmem:[%s1 + $0x57c] sm:$0xf]
  %v426 = vld [vmem:[%s1 + $0x580] sm:$0xf]
  %v427 = vld [vmem:[%s1 + $0x584] sm:$0xf]
  %v428 = vld [vmem:[%s1 + $0x588] sm:$0xf]
  %v429 = vld [vmem:[%s1 + $0x58c] sm:$0xf]
  %v430 = vld [vmem:[%s1 + $0x590] sm:$0xf]
  %v431 = vld [vmem:[%s1 + $0x594] sm:$0xf]
  %v432 = vld [vmem:[%s1 + $0x598] sm:$0xf]
  %v433 = vld [vmem:[%s1 + $0x59c] sm:$0xf]
  %v434 = vld [vmem:[%s1 + $0x5a0] sm:$0xf]
  %v435 = vld [vmem:[%s1 + $0x5a4] sm:$0xf]
  %v436 = vld [vmem:[%s1 + $0x5a8] sm:$0xf]
  %v437 = vld [vmem:[%s1 + $0x5ac] sm:$0xf]
  %v438 = vld [vmem:[%s1 + $0x5b0] sm:$0xf]
  %v439 = vld [vmem:[%s1 + $0x5b4] sm:$0xf]
  %v440 = vld [vmem:[%s1 + $0x5b8] sm:$0xf]
  %v441 = vld [vmem:[%s1 + $0x5bc] sm:$0xf]
  %v442 = vld [vmem:[%s1 + $0x5c0] sm:$0xf]
  %v443 = vld [vmem:[%s1 + $0x5c4] sm:$0xf]
  %v444 = vld [vmem:[%s1 + $0x5c8] sm:$0xf]
  %v445 = vld [vmem:[%s1 + $0x5cc] sm:$0xf]
  %v446 = vld [vmem:[%s1 + $0x5d0] sm:$0xf]
  %v447 = vld [vmem:[%s1 + $0x5d4] sm:$0xf]
  %v448 = vld [vmem:[%s1 + $0x5d8] sm:$0xf]
  %v449 = vld [vmem:[%s1 + $0x5dc] sm:$0xf]
  %v450 = vld [vmem:[%s1 + $0x5e0] sm:$0xf]
  %v451 = vld [vmem:[%s1 + $0x5e4] sm:$0xf]
  %v452 = vld [vmem:[%s1 + $0x5e8] sm:$0xf]
  %v453 = vld [vmem:[%s1 + $0x5ec] sm:$0xf]
  %v454 = vld [vmem:[%s1 + $0x5f0] sm:$0xf]
  %v455 = vld [vmem:[%s1 + $0x5f4] sm:$0xf]
  %v456 = vld [vmem:[%s1 + $0x5f8] sm:$0xf]
  %v457 = vld [vmem:[%s1 + $0x5fc] sm:$0xf]
  %v458 = vld [vmem:[%s1 + $0x600] sm:$0xf]
  %v459 = vld [vmem:[%s1 + $0x604] sm:$0xf]
  %v460 = vld [vmem:[%s1 + $0x608] sm:$0xf]
  %v461 = vld [vmem:[%s1 + $0x60c] sm:$0xf]
  %v462 = vld [vmem:[%s1 + $0x610] sm:$0xf]
  %v463 = vld [vmem:[%s1 + $0x614] sm:$0xf]
  %v464 = vld [vmem:[%s1 + $0x618] sm:$0xf]
  %v465 = vld [vmem:[%s1 + $0x61c] sm:$0xf]
  %v466 = vld [vmem:[%s1 + $0x620] sm:$0xf]
  %v467 = vld [vmem:[%s1 + $0x624] sm:$0xf]
  %v468 = vld [vmem:[%s1 + $0x628] sm:$0xf]
  %v469 = vld [vmem:[%s1 + $0x62c] sm:$0xf]
  %v470 = vld [vmem:[%s1 + $0x630] sm:$0xf]
  %v471 = vld [vmem:[%s1 + $0x634] sm:$0xf]
  %v472 = vld [vmem:[%s1 + $0x638] sm:$0xf]
  %v473 = vld [vmem:[%s1 + $0x63c] sm:$0xf]
  %v474 = vld [vmem:[%s1 + $0x640] sm:$0xf]
  %v475 = vld [vmem:[%s1 + $0x644] sm:$0xf]
  %v476 = vld [vmem:[%s1 + $0x648] sm:$0xf]
  %v477 = vld [vmem:[%s1 + $0x64c] sm:$0xf]
  %v478 = vld [vmem:[%s1 + $0x650] sm:$0xf]
  %v479 = vld [vmem:[%s1 + $0x654] sm:$0xf]
  %v480 = vld [vmem:[%s1 + $0x658] sm:$0xf]
  %v481 = vld [vmem:[%s1 + $0x65c] sm:$0xf]
  %v482 = vld [vmem:[%s1 + $0x660] sm:$0xf]
  %v483 = vld [vmem:[%s1 + $0x664] sm:$0xf]
  %v484 = vld [vmem:[%s1 + $0x668] sm:$0xf]
  %v485 = vld [vmem:[%s1 + $0x66c] sm:$0xf]
  %v486 = vld [vmem:[%s1 + $0x670] sm:$0xf]
  %v487 = vld [vmem:[%s1 + $0x674] sm:$0xf]
  %v488 = vld [vmem:[%s1 + $0x678] sm:$0xf]
  %v489 = vld [vmem:[%s1 + $0x67c] sm:$0xf]
  %v490 = vld [vmem:[%s1 + $0x680] sm:$0xf]
  %v491 = vld [vmem:[%s1 + $0x684] sm:$0xf]
  %v492 = vld [vmem:[%s1 + $0x688] sm:$0xf]
  %v493 = vld [vmem:[%s1 + $0x68c] sm:$0xf]
  %v494 = vld [vmem:[%s1 + $0x690] sm:$0xf]
  %v495 = vld [vmem:[%s1 + $0x694] sm:$0xf]
  %v496 = vld [vmem:[%s1 + $0x698] sm:$0xf]
  %v497 = vld [vmem:[%s1 + $0x69c] sm:$0xf]
  %v498 = vld [vmem:[%s1 + $0x6a0] sm:$0xf]
  %v499 = vld [vmem:[%s1 + $0x6a4] sm:$0xf]
  %v500 = vld [vmem:[%s1 + $0x6a8] sm:$0xf]
  %v501 = vld [vmem:[%s1 + $0x6ac] sm:$0xf]
  %v502 = vld [vmem:[%s1 + $0x6b0] sm:$0xf]
  %v503 = vld [vmem:[%s1 + $0x6b4] sm:$0xf]
  %v504 = vld [vmem:[%s1 + $0x6b8] sm:$0xf]
  %v505 = vld [vmem:[%s1 + $0x6bc] sm:$0xf]
  %v506 = vld [vmem:[%s1 + $0x6c0] sm:$0xf]
  %v507 = vld [vmem:[%s1 + $0x6c4] sm:$0xf]
  %v508 = vld [vmem:[%s1 + $0x6c8] sm:$0xf]
  %v509 = vld [vmem:[%s1 + $0x6cc] sm:$0xf]
  %v510 = vld [vmem:[%s1 + $0x6d0] sm:$0xf]
  %v511 = vld [vmem:[%s1 + $0x6d4] sm:$0xf]
  %v512 = vld [vmem:[%s1 + $0x6d8] sm:$0xf]
  %v513 = vld [vmem:[%s1 + $0x6dc] sm:$0xf]
  %v514 = vld [vmem:[%s1 + $0x6e0] sm:$0xf]
  %v515 = vld [vmem:[%s1 + $0x6e4] sm:$0xf]
  %v516 = vld [vmem:[%s1 + $0x6e8] sm:$0xf]
  %v517 = vld [vmem:[%s1 + $0x6ec] sm:$0xf]
  %v518 = vld [vmem:[%s1 + $0x6f0] sm:$0xf]
  %v519 = vld [vmem:[%s1 + $0x6f4] sm:$0xf]
  %v520 = vld [vmem:[%s1 + $0x6f8] sm:$0xf]
  %v521 = vld [vmem:[%s1 + $0x6fc] sm:$0xf]
  %v522 = vld [vmem:[%s1 + $0x700] sm:$0xf]
  %v523 = vld [vmem:[%s1 + $0x704] sm:$0xf]
  %v524 = vld [vmem:[%s1 + $0x708] sm:$0xf]
  %v525 = vld [vmem:[%s1 + $0x70c] sm:$0xf]
  %v526 = vld [vmem:[%s1 + $0x710] sm:$0xf]
  %v527 = vld [vmem:[%s1 + $0x714] sm:$0xf]
  %v528 = vld [vmem:[%s1 + $0x718] sm:$0xf]
  %v529 = vld [vmem:[%s1 + $0x71c] sm:$0xf]
  %v530 = vld [vmem:[%s1 + $0x720] sm:$0xf]
  %v531 = vld [vmem:[%s1 + $0x724] sm:$0xf]
  %v532 = vld [vmem:[%s1 + $0x728] sm:$0xf]
  %v533 = vld [vmem:[%s1 + $0x72c] sm:$0xf]
  %v534 = vld [vmem:[%s1 + $0x730] sm:$0xf]
  %v535 = vld [vmem:[%s1 + $0x734] sm:$0xf]
  %v536 = vld [vmem:[%s1 + $0x738] sm:$0xf]
  %v537 = vld [vmem:[%s1 + $0x73c] sm:$0xf]
  %v538 = vld [vmem:[%s1 + $0x740] sm:$0xf]
  %v539 = vld [vmem:[%s1 + $0x744] sm:$0xf]
  %v540 = vld [vmem:[%s1 + $0x748] sm:$0xf]
  %v541 = vld [vmem:[%s1 + $0x74c] sm:$0xf]
  %v542 = vld [vmem:[%s1 + $0x750] sm:$0xf]
  %v543 = vld [vmem:[%s1 + $0x754] sm:$0xf]
  %v544 = vld [vmem:[%s1 + $0x758] sm:$0xf]
  %v545 = vld [vmem:[%s1 + $0x75c] sm:$0xf]
  %v546 = vld [vmem:[%s1 + $0x760] sm:$0xf]
  %v547 = vld [vmem:[%s1 + $0x764] sm:$0xf]
  %v548 = vld [vmem:[%s1 + $0x768] sm:$0xf]
  %v549 = vld [vmem:[%s1 + $0x76c] sm:$0xf]
  %v550 = vld [vmem:[%s1 + $0x770] sm:$0xf]
  %v551 = vld [vmem:[%s1 + $0x774] sm:$0xf]
  %v552 = vld [vmem:[%s1 + $0x778] sm:$0xf]
  %v553 = vld [vmem:[%s1 + $0x77c] sm:$0xf]
  %v554 = vld [vmem:[%s1 + $0x780] sm:$0xf]
  %v555 = vld [vmem:[%s1 + $0x784] sm:$0xf]
  %v556 = vld [vmem:[%s1 + $0x788] sm:$0xf]
  %v557 = vld [vmem:[%s1 + $0x78c] sm:$0xf]
  %v558 = vld [vmem:[%s1 + $0x790] sm:$0xf]
  %v559 = vld [vmem:[%s1 + $0x794] sm:$0xf]
  %v560 = vld [vmem:[%s1 + $0x798] sm:$0xf]
  %v561 = vld [vmem:[%s1 + $0x79c] sm:$0xf]
  %v562 = vld [vmem:[%s1 + $0x7a0] sm:$0xf]
  %v563 = vld [vmem:[%s1 + $0x7a4] sm:$0xf]
  %v564 = vld [vmem:[%s1 + $0x7a8] sm:$0xf]
  %v565 = vld [vmem:[%s1 + $0x7ac] sm:$0xf]
  %v566 = vld [vmem:[%s1 + $0x7b0] sm:$0xf]
  %v567 = vld [vmem:[%s1 + $0x7b4] sm:$0xf]
  %v568 = vld [vmem:[%s1 + $0x7b8] sm:$0xf]
  %v569 = vld [vmem:[%s1 + $0x7bc] sm:$0xf]
  %v570 = vld [vmem:[%s1 + $0x7c0] sm:$0xf]
  %v571 = vld [vmem:[%s1 + $0x7c4] sm:$0xf]
  %v572 = vld [vmem:[%s1 + $0x7c8] sm:$0xf]
  %v573 = vld [vmem:[%s1 + $0x7cc] sm:$0xf]
  %v574 = vld [vmem:[%s1 + $0x7d0] sm:$0xf]
  %v575 = vld [vmem:[%s1 + $0x7d4] sm:$0xf]
  %v576 = vld [vmem:[%s1 + $0x7d8] sm:$0xf]
  %v577 = vld [vmem:[%s1 + $0x7dc] sm:$0xf]
  %v578 = vld [vmem:[%s1 + $0x7e0] sm:$0xf]
  %v579 = vld [vmem:[%s1 + $0x7e4] sm:$0xf]
  %v580 = vld [vmem:[%s1 + $0x7e8] sm:$0xf]
  %v581 = vld [vmem:[%s1 + $0x7ec] sm:$0xf]
  %v582 = vld [vmem:[%s1 + $0x7f0] sm:$0xf]
  %v583 = vld [vmem:[%s1 + $0x7f4] sm:$0xf]
  %v584 = vld [vmem:[%s1 + $0x7f8] sm:$0xf]
  %v585 = vld [vmem:[%s1 + $0x7fc] sm:$0xf]
  %v586 = vld [vmem:[%s1 + $0x800] sm:$0xf]
  %v587 = vld [vmem:[%s1 + $0x804] sm:$0xf]
  %v588 = vld [vmem:[%s1 + $0x808] sm:$0xf]
  %v589 = vld [vmem:[%s1 + $0x80c] sm:$0xf]
  %v590 = vld [vmem:[%s1 + $0x810] sm:$0xf]
  %v591 = vld [vmem:[%s1 + $0x814] sm:$0xf]
  %v592 = vld [vmem:[%s1 + $0x818] sm:$0xf]
  %v593 = vld [vmem:[%s1 + $0x81c] sm:$0xf]
  %v594 = vld [vmem:[%s1 + $0x820] sm:$0xf]
  %v595 = vld [vmem:[%s1 + $0x824] sm:$0xf]
  %v596 = vld [vmem:[%s1 + $0x828] sm:$0xf]
  %v597 = vld [vmem:[%s1 + $0x82c] sm:$0xf]
  %v598 = vld [vmem:[%s1 + $0x830] sm:$0xf]
  %v599 = vld [vmem:[%s1 + $0x834] sm:$0xf]
  %v600 = vld [vmem:[%s1 + $0x838] sm:$0xf]
  %v601 = vld [vmem:[%s1 + $0x83c] sm:$0xf]
  %v602 = vld [vmem:[%s1 + $0x840] sm:$0xf]
  %v603 = vld [vmem:[%s1 + $0x844] sm:$0xf]
  %v604 = vld [vmem:[%s1 + $0x848] sm:$0xf]
  %v605 = vld [vmem:[%s1 + $0x84c] sm:$0xf]
  %v606 = vld [vmem:[%s1 + $0x850] sm:$0xf]
  %v607 = vld [vmem:[%s1 + $0x854] sm:$0xf]
  %v608 = vld [vmem:[%s1 + $0x858] sm:$0xf]
  %v609 = vld [vmem:[%s1 + $0x85c] sm:$0xf]
  %v610 = vld [vmem:[%s1 + $0x860] sm:$0xf]
  %v611 = vld [vmem:[%s1 + $0x864] sm:$0xf]
  %v612 = vld [vmem:[%s1 + $0x868] sm:$0xf]
  %v613 = vld [vmem:[%s1 + $0x86c] sm:$0xf]
  %v614 = vld [vmem:[%s1 + $0x870] sm:$0xf]
  %v615 = vld [vmem:[%s1 + $0x874] sm:$0xf]
  %v616 = vld [vmem:[%s1 + $0x878] sm:$0xf]
  %v617 = vld [vmem:[%s1 + $0x87c] sm:$0xf]
  %v618 = vld [vmem:[%s1 + $0x880] sm:$0xf]
  %v619 = vld [vmem:[%s1 + $0x884] sm:$0xf]
  %v620 = vld [vmem:[%s1 + $0x888] sm:$0xf]
  %v621 = vld [vmem:[%s1 + $0x88c] sm:$0xf]
  %v622 = vld [vmem:[%s1 + $0x890] sm:$0xf]
  %v623 = vld [vmem:[%s1 + $0x894] sm:$0xf]
  %v624 = vld [vmem:[%s1 + $0x898] sm:$0xf]
  %v625 = vld [vmem:[%s1 + $0x89c] sm:$0xf]
  %v626 = vld [vmem:[%s1 + $0x8a0] sm:$0xf]
  %v627 = vld [vmem:[%s1 + $0x8a4] sm:$0xf]
  %v628 = vld [vmem:[%s1 + $0x8a8] sm:$0xf]
  %v629 = vld [vmem:[%s1 + $0x8ac] sm:$0xf]
  %v630 = vld [vmem:[%s1 + $0x8b0] sm:$0xf]
  %v631 = vld [vmem:[%s1 + $0x8b4] sm:$0xf]
  %v632 = vld [vmem:[%s1 + $0x8b8] sm:$0xf]
  %v633 = vld [vmem:[%s1 + $0x8bc] sm:$0xf]
  %v634 = vld [vmem:[%s1 + $0x8c0] sm:$0xf]
  %v635 = vld [vmem:[%s1 + $0x8c4] sm:$0xf]
  %v636 = vld [vmem:[%s1 + $0x8c8] sm:$0xf]
  %v637 = vld [vmem:[%s1 + $0x8cc] sm:$0xf]
  %v638 = vld [vmem:[%s1 + $0x8d0] sm:$0xf]
  %v639 = vld [vmem:[%s1 + $0x8d4] sm:$0xf]
  %v640 = vld [vmem:[%s1 + $0x8d8] sm:$0xf]
  %v641 = vld [vmem:[%s1 + $0x8dc] sm:$0xf]
  %v642 = vld [vmem:[%s1 + $0x8e0] sm:$0xf]
  %v643 = vld [vmem:[%s1 + $0x8e4] sm:$0xf]
  %v644 = vld [vmem:[%s1 + $0x8e8] sm:$0xf]
  %v645 = vld [vmem:[%s1 + $0x8ec] sm:$0xf]
  %v646 = vld [vmem:[%s1 + $0x8f0] sm:$0xf]
  %v647 = vld [vmem:[%s1 + $0x8f4] sm:$0xf]
  %v648 = vld [vmem:[%s1 + $0x8f8] sm:$0xf]
  %v649 = vld [vmem:[%s1 + $0x8fc] sm:$0xf]
  %v650 = vld [vmem:[%s1 + $0x900] sm:$0xf]
  %v651 = vld [vmem:[%s1 + $0x904] sm:$0xf]
  %v652 = vld [vmem:[%s1 + $0x908] sm:$0xf]
  %v653 = vld [vmem:[%s1 + $0x90c] sm:$0xf]
  %v654 = vld [vmem:[%s1 + $0x910] sm:$0xf]
  %v655 = vld [vmem:[%s1 + $0x914] sm:$0xf]
  %v656 = vld [vmem:[%s1 + $0x918] sm:$0xf]
  %v657 = vld [vmem:[%s1 + $0x91c] sm:$0xf]
  %v658 = vld [vmem:[%s1 + $0x920] sm:$0xf]
  %v659 = vld [vmem:[%s1 + $0x924] sm:$0xf]
  %v660 = vld [vmem:[%s1 + $0x928] sm:$0xf]
  %v661 = vld [vmem:[%s1 + $0x92c] sm:$0xf]
  %v662 = vld [vmem:[%s1 + $0x930] sm:$0xf]
  %v663 = vld [vmem:[%s1 + $0x934] sm:$0xf]
  %v664 = vld [vmem:[%s1 + $0x938] sm:$0xf]
  %v665 = vld [vmem:[%s1 + $0x93c] sm:$0xf]
  %v666 = vld [vmem:[%s1 + $0x940] sm:$0xf]
  %v667 = vld [vmem:[%s1 + $0x944] sm:$0xf]
  %v668 = vld [vmem:[%s1 + $0x948] sm:$0xf]
  %v669 = vld [vmem:[%s1 + $0x94c] sm:$0xf]
  %v670 = vld [vmem:[%s1 + $0x950] sm:$0xf]
  %v671 = vld [vmem:[%s1 + $0x954] sm:$0xf]
  %v672 = vld [vmem:[%s1 + $0x958] sm:$0xf]
  %v673 = vld [vmem:[%s1 + $0x95c] sm:$0xf]
  %v674 = vld [vmem:[%s1 + $0x960] sm:$0xf]
  %v675 = vld [vmem:[%s1 + $0x964] sm:$0xf]
  %v676 = vld [vmem:[%s1 + $0x968] sm:$0xf]
  %v677 = vld [vmem:[%s1 + $0x96c] sm:$0xf]
  %v678 = vld [vmem:[%s1 + $0x970] sm:$0xf]
  %v679 = vld [vmem:[%s1 + $0x974] sm:$0xf]
  %v680 = vld [vmem:[%s1 + $0x978] sm:$0xf]
  %v681 = vld [vmem:[%s1 + $0x97c] sm:$0xf]
  %v682 = vld [vmem:[%s1 + $0x980] sm:$0xf]
  %v683 = vld [vmem:[%s1 + $0x984] sm:$0xf]
  %v684 = vld [vmem:[%s1 + $0x988] sm:$0xf]
  %v685 = vld [vmem:[%s1 + $0x98c] sm:$0xf]
  %v686 = vld [vmem:[%s1 + $0x990] sm:$0xf]
  %v687 = vld [vmem:[%s1 + $0x994] sm:$0xf]
  %v688 = vld [vmem:[%s1 + $0x998] sm:$0xf]
  %v689 = vld [vmem:[%s1 + $0x99c] sm:$0xf]
  %v690 = vld [vmem:[%s1 + $0x9a0] sm:$0xf]
  %v691 = vld [vmem:[%s1 + $0x9a4] sm:$0xf]
  %v692 = vld [vmem:[%s1 + $0x9a8] sm:$0xf]
  %v693 = vld [vmem:[%s1 + $0x9ac] sm:$0xf]
  %v694 = vld [vmem:[%s1 + $0x9b0] sm:$0xf]
  %v695 = vld [vmem:[%s1 + $0x9b4] sm:$0xf]
  %v696 = vld [vmem:[%s1 + $0x9b8] sm:$0xf]
  %v697 = vld [vmem:[%s1 + $0x9bc] sm:$0xf]
  %v698 = vld [vmem:[%s1 + $0x9c0] sm:$0xf]
  %v699 = vld [vmem:[%s1 + $0x9c4] sm:$0xf]
  %v700 = vld [vmem:[%s1 + $0x9c8] sm:$0xf]
  %v701 = vld [vmem:[%s1 + $0x9cc] sm:$0xf]
  %v702 = vld [vmem:[%s1 + $0x9d0] sm:$0xf]
  %v703 = vld [vmem:[%s1 + $0x9d4] sm:$0xf]
  %v704 = vld [vmem:[%s1 + $0x9d8] sm:$0xf]
  %v705 = vld [vmem:[%s1 + $0x9dc] sm:$0xf]
  %v706 = vld [vmem:[%s1 + $0x9e0] sm:$0xf]
  %v707 = vld [vmem:[%s1 + $0x9e4] sm:$0xf]
  %v708 = vld [vmem:[%s1 + $0x9e8] sm:$0xf]
  %v709 = vld [vmem:[%s1 + $0x9ec] sm:$0xf]
  %v710 = vld [vmem:[%s1 + $0x9f0] sm:$0xf]
  %v711 = vld [vmem:[%s1 + $0x9f4] sm:$0xf]
  %v712 = vld [vmem:[%s1 + $0x9f8] sm:$0xf]
  %v713 = vld [vmem:[%s1 + $0x9fc] sm:$0xf]
  %v714 = vld [vmem:[%s1 + $0xa00] sm:$0xf]
  %v715 = vld [vmem:[%s1 + $0xa04] sm:$0xf]
  %v716 = vld [vmem:[%s1 + $0xa08] sm:$0xf]
  %v717 = vld [vmem:[%s1 + $0xa0c] sm:$0xf]
  %v718 = vld [vmem:[%s1 + $0xa10] sm:$0xf]
  %v719 = vld [vmem:[%s1 + $0xa14] sm:$0xf]
  %v720 = vld [vmem:[%s1 + $0xa18] sm:$0xf]
  %v721 = vld [vmem:[%s1 + $0xa1c] sm:$0xf]
  %v722 = vld [vmem:[%s1 + $0xa20] sm:$0xf]
  %v723 = vld [vmem:[%s1 + $0xa24] sm:$0xf]
  %v724 = vld [vmem:[%s1 + $0xa28] sm:$0xf]
  %v725 = vld [vmem:[%s1 + $0xa2c] sm:$0xf]
  %v726 = vld [vmem:[%s1 + $0xa30] sm:$0xf]
  %v727 = vld [vmem:[%s1 + $0xa34] sm:$0xf]
  %v728 = vld [vmem:[%s1 + $0xa38] sm:$0xf]
  %v729 = vld [vmem:[%s1 + $0xa3c] sm:$0xf]
  %v730 = vld [vmem:[%s1 + $0xa40] sm:$0xf]
  %v731 = vld [vmem:[%s1 + $0xa44] sm:$0xf]
  %v732 = vld [vmem:[%s1 + $0xa48] sm:$0xf]
  %v733 = vld [vmem:[%s1 + $0xa4c] sm:$0xf]
  %v734 = vld [vmem:[%s1 + $0xa50] sm:$0xf]
  %v735 = vld [vmem:[%s1 + $0xa54] sm:$0xf]
  %v736 = vld [vmem:[%s1 + $0xa58] sm:$0xf]
  %v737 = vld [vmem:[%s1 + $0xa5c] sm:$0xf]
  %v738 = vld [vmem:[%s1 + $0xa60] sm:$0xf]
  %v739 = vld [vmem:[%s1 + $0xa64] sm:$0xf]
  %v740 = vld [vmem:[%s1 + $0xa68] sm:$0xf]
  %v741 = vld [vmem:[%s1 + $0xa6c] sm:$0xf]
  %v742 = vld [vmem:[%s1 + $0xa70] sm:$0xf]
  %v743 = vld [vmem:[%s1 + $0xa74] sm:$0xf]
  %v744 = vld [vmem:[%s1 + $0xa78] sm:$0xf]
  %v745 = vld [vmem:[%s1 + $0xa7c] sm:$0xf]
  %v746 = vld [vmem:[%s1 + $0xa80] sm:$0xf]
  %v747 = vld [vmem:[%s1 + $0xa84] sm:$0xf]
  %v748 = vld [vmem:[%s1 + $0xa88] sm:$0xf]
  %v749 = vld [vmem:[%s1 + $0xa8c] sm:$0xf]
  %v750 = vld [vmem:[%s1 + $0xa90] sm:$0xf]
  %v751 = vld [vmem:[%s1 + $0xa94] sm:$0xf]
  %v752 = vld [vmem:[%s1 + $0xa98] sm:$0xf]
  %v753 = vld [vmem:[%s1 + $0xa9c] sm:$0xf]
  %v754 = vld [vmem:[%s1 + $0xaa0] sm:$0xf]
  %v755 = vld [vmem:[%s1 + $0xaa4] sm:$0xf]
  %v756 = vld [vmem:[%s1 + $0xaa8] sm:$0xf]
  %v757 = vld [vmem:[%s1 + $0xaac] sm:$0xf]
  %v758 = vld [vmem:[%s1 + $0xab0] sm:$0xf]
  %v759 = vld [vmem:[%s1 + $0xab4] sm:$0xf]
  %v760 = vld [vmem:[%s1 + $0xab8] sm:$0xf]
  %v761 = vld [vmem:[%s1 + $0xabc] sm:$0xf]
  %v762 = vld [vmem:[%s1 + $0xac0] sm:$0xf]
  %v763 = vld [vmem:[%s1 + $0xac4] sm:$0xf]
  %v764 = vld [vmem:[%s1 + $0xac8] sm:$0xf]
  %v765 = vld [vmem:[%s1 + $0xacc] sm:$0xf]
  %v766 = vld [vmem:[%s1 + $0xad0] sm:$0xf]
  %v767 = vld [vmem:[%s1 + $0xad4] sm:$0xf]
  %v768 = vld [vmem:[%s1 + $0xad8] sm:$0xf]
  %v769 = vld [vmem:[%s1 + $0xadc] sm:$0xf]
  %v770 = vld [vmem:[%s1 + $0xae0] sm:$0xf]
  %v771 = vld [vmem:[%s1 + $0xae4] sm:$0xf]
  %v772 = vld [vmem:[%s1 + $0xae8] sm:$0xf]
  %v773 = vld [vmem:[%s1 + $0xaec] sm:$0xf]
  %v774 = vld [vmem:[%s1 + $0xaf0] sm:$0xf]
  %v775 = vld [vmem:[%s1 + $0xaf4] sm:$0xf]
  %v776 = vld [vmem:[%s1 + $0xaf8] sm:$0xf]
  %v777 = vld [vmem:[%s1 + $0xafc] sm:$0xf]
  %v778 = vld [vmem:[%s1 + $0xb00] sm:$0xf]
  %v779 = vld [vmem:[%s1 + $0xb04] sm:$0xf]
  %v780 = vld [vmem:[%s1 + $0xb08] sm:$0xf]
  %v781 = vld [vmem:[%s1 + $0xb0c] sm:$0xf]
  %v782 = vld [vmem:[%s1 + $0xb10] sm:$0xf]
  %v783 = vld [vmem:[%s1 + $0xb14] sm:$0xf]
  %v784 = vld [vmem:[%s1 + $0xb18] sm:$0xf]
  %v785 = vld [vmem:[%s1 + $0xb1c] sm:$0xf]
  %v786 = vld [vmem:[%s1 + $0xb20] sm:$0xf]
  %v787 = vld [vmem:[%s1 + $0xb24] sm:$0xf]
  %v788 = vld [vmem:[%s1 + $0xb28] sm:$0xf]
  %v789 = vld [vmem:[%s1 + $0xb2c] sm:$0xf]
  %v790 = vld [vmem:[%s1 + $0xb30] sm:$0xf]
  %v791 = vld [vmem:[%s1 + $0xb34] sm:$0xf]
  %v792 = vld [vmem:[%s1 + $0xb38] sm:$0xf]
  %v793 = vld [vmem:[%s1 + $0xb3c] sm:$0xf]
  %v794 = vld [vmem:[%s1 + $0xb40] sm:$0xf]
  %v795 = vld [vmem:[%s1 + $0xb44] sm:$0xf]
  %v796 = vld [vmem:[%s1 + $0xb48] sm:$0xf]
  %v797 = vld [vmem:[%s1 + $0xb4c] sm:$0xf]
  %v798 = vld [vmem:[%s1 + $0xb50] sm:$0xf]
  %v799 = vld [vmem:[%s1 + $0xb54] sm:$0xf]
  %v800 = vld [vmem:[%s1 + $0xb58] sm:$0xf]
  %v801 = vld [vmem:[%s1 + $0xb5c] sm:$0xf]
  %v802 = vld [vmem:[%s1 + $0xb60] sm:$0xf]
  %v803 = vld [vmem:[%s1 + $0xb64] sm:$0xf]
  %v804 = vld [vmem:[%s1 + $0xb68] sm:$0xf]
  %v805 = vld [vmem:[%s1 + $0xb6c] sm:$0xf]
  %v806 = vld [vmem:[%s1 + $0xb70] sm:$0xf]
  %v807 = vld [vmem:[%s1 + $0xb74] sm:$0xf]
  %v808 = vld [vmem:[%s1 + $0xb78] sm:$0xf]
  %v809 = vld [vmem:[%s1 + $0xb7c] sm:$0xf]
  %v810 = vld [vmem:[%s1 + $0xb80] sm:$0xf]
  %v811 = vld [vmem:[%s1 + $0xb84] sm:$0xf]
  %v812 = vld [vmem:[%s1 + $0xb88] sm:$0xf]
  %v813 = vld [vmem:[%s1 + $0xb8c] sm:$0xf]
  %v814 = vld [vmem:[%s1 + $0xb90] sm:$0xf]
  %v815 = vld [vmem:[%s1 + $0xb94] sm:$0xf]
  %v816 = vld [vmem:[%s1 + $0xb98] sm:$0xf]
  %v817 = vld [vmem:[%s1 + $0xb9c] sm:$0xf]
  %v818 = vld [vmem:[%s1 + $0xba0] sm:$0xf]
  %v819 = vld [vmem:[%s1 + $0xba4] sm:$0xf]
  %v820 = vld [vmem:[%s1 + $0xba8] sm:$0xf]
  %v821 = vld [vmem:[%s1 + $0xbac] sm:$0xf]
  %v822 = vld [vmem:[%s1 + $0xbb0] sm:$0xf]
  %v823 = vld [vmem:[%s1 + $0xbb4] sm:$0xf]
  %v824 = vld [vmem:[%s1 + $0xbb8] sm:$0xf]
  %v825 = vld [vmem:[%s1 + $0xbbc] sm:$0xf]
  %v826 = vld [vmem:[%s1 + $0xbc0] sm:$0xf]
  %v827 = vld [vmem:[%s1 + $0xbc4] sm:$0xf]
  %v828 = vld [vmem:[%s1 + $0xbc8] sm:$0xf]
  %v829 = vld [vmem:[%s1 + $0xbcc] sm:$0xf]
  %v830 = vld [vmem:[%s1 + $0xbd0] sm:$0xf]
  %v831 = vld [vmem:[%s1 + $0xbd4] sm:$0xf]
  %v832 = vld [vmem:[%s1 + $0xbd8] sm:$0xf]
  %v833 = vld [vmem:[%s1 + $0xbdc] sm:$0xf]
  %v834 = vld [vmem:[%s1 + $0xbe0] sm:$0xf]
  %v835 = vld [vmem:[%s1 + $0xbe4] sm:$0xf]
  %v836 = vld [vmem:[%s1 + $0xbe8] sm:$0xf]
  %v837 = vld [vmem:[%s1 + $0xbec] sm:$0xf]
  %v838 = vld [vmem:[%s1 + $0xbf0] sm:$0xf]
  %v839 = vld [vmem:[%s1 + $0xbf4] sm:$0xf]
  %v840 = vld [vmem:[%s1 + $0xbf8] sm:$0xf]
  %v841 = vld [vmem:[%s1 + $0xbfc] sm:$0xf]
  %v842 = vld [vmem:[%s1 + $0xc00] sm:$0xf]
  %v843 = vld [vmem:[%s1 + $0xc04] sm:$0xf]
  %v844 = vld [vmem:[%s1 + $0xc08] sm:$0xf]
  %v845 = vld [vmem:[%s1 + $0xc0c] sm:$0xf]
  %v846 = vld [vmem:[%s1 + $0xc10] sm:$0xf]
  %v847 = vld [vmem:[%s1 + $0xc14] sm:$0xf]
  %v848 = vld [vmem:[%s1 + $0xc18] sm:$0xf]
  %v849 = vld [vmem:[%s1 + $0xc1c] sm:$0xf]
  %v850 = vld [vmem:[%s1 + $0xc20] sm:$0xf]
  %v851 = vld [vmem:[%s1 + $0xc24] sm:$0xf]
  %v852 = vld [vmem:[%s1 + $0xc28] sm:$0xf]
  %v853 = vld [vmem:[%s1 + $0xc2c] sm:$0xf]
  %v854 = vld [vmem:[%s1 + $0xc30] sm:$0xf]
  %v855 = vld [vmem:[%s1 + $0xc34] sm:$0xf]
  %v856 = vld [vmem:[%s1 + $0xc38] sm:$0xf]
  %v857 = vld [vmem:[%s1 + $0xc3c] sm:$0xf]
  %v858 = vld [vmem:[%s2] sm:$0x1]
  %v860 = vlaneseq
  %v861 = vshrl.u32 %v860, 7
  %v862 = vsub.s32 0, %v861
  %v863 = vrot.slane %v858, %v862
  %v915 = vunpack.c.l.b16 %v24
  %v916 = vunpack.c.h.b16 %v24
  %v917 = vunpack.c.l.b16 %v25
  %v918 = vunpack.c.h.b16 %v25
  %v919 = vunpack.c.l.b16 %v26
  %v920 = vunpack.c.h.b16 %v26
  %v921 = vunpack.c.l.b16 %v27
  %v922 = vunpack.c.h.b16 %v27
  %v923 = vunpack.c.l.b16 %v28
  %v924 = vunpack.c.h.b16 %v28
  %v925 = vunpack.c.l.b16 %v29
  %v926 = vunpack.c.h.b16 %v29
  %v927 = vunpack.c.l.b16 %v30
  %v928 = vunpack.c.h.b16 %v30
  %v929 = vunpack.c.l.b16 %v31
  %v930 = vunpack.c.h.b16 %v31
  %v931 = vunpack.c.l.b16 %v32
  %v932 = vunpack.c.h.b16 %v32
  %v933 = vunpack.c.l.b16 %v33
  %v934 = vunpack.c.h.b16 %v33
  %v935 = vunpack.c.l.b16 %v34
  %v936 = vunpack.c.h.b16 %v34
  %v937 = vunpack.c.l.b16 %v35
  %v938 = vunpack.c.h.b16 %v35
  %v939 = vunpack.c.l.b16 %v36
  %v940 = vunpack.c.h.b16 %v36
  %v941 = vunpack.c.l.b16 %v37
  %v942 = vunpack.c.h.b16 %v37
  %v943 = vunpack.c.l.b16 %v38
  %v944 = vunpack.c.h.b16 %v38
  %v945 = vunpack.c.l.b16 %v39
  %v946 = vunpack.c.h.b16 %v39
  %v947 = vunpack.c.l.b16 %v40
  %v948 = vunpack.c.h.b16 %v40
  %v949 = vunpack.c.l.b16 %v41
  %v950 = vunpack.c.h.b16 %v41
  %v951 = vunpack.c.l.b16 %v42
  %v952 = vunpack.c.h.b16 %v42
  %v953 = vunpack.c.l.b16 %v43
  %v954 = vunpack.c.h.b16 %v43
  %v955 = vunpack.c.l.b16 %v44
  %v956 = vunpack.c.h.b16 %v44
  %v957 = vunpack.c.l.b16 %v45
  %v958 = vunpack.c.h.b16 %v45
  %v959 = vunpack.c.l.b16 %v46
  %v960 = vunpack.c.h.b16 %v46
  %v961 = vunpack.c.l.b16 %v47
  %v962 = vunpack.c.h.b16 %v47
  %v963 = vunpack.c.l.b16 %v48
  %v964 = vunpack.c.l.b16 %v49
  %v965 = vunpack.c.h.b16 %v49
  %v966 = vunpack.c.l.b16 %v50
  %v967 = vunpack.c.h.b16 %v50
  %v968 = vunpack.c.l.b16 %v51
  %v969 = vunpack.c.h.b16 %v51
  %v970 = vunpack.c.l.b16 %v52
  %v971 = vunpack.c.h.b16 %v52
  %v972 = vunpack.c.l.b16 %v53
  %v973 = vunpack.c.h.b16 %v53
  %v974 = vunpack.c.l.b16 %v54
  %v975 = vunpack.c.h.b16 %v54
  %v976 = vunpack.c.l.b16 %v55
  %v977 = vunpack.c.h.b16 %v55
  %v978 = vunpack.c.l.b16 %v56
  %v979 = vunpack.c.h.b16 %v56
  %v980 = vunpack.c.l.b16 %v57
  %v981 = vunpack.c.h.b16 %v57
  %v982 = vunpack.c.l.b16 %v58
  %v983 = vunpack.c.h.b16 %v58
  %v984 = vunpack.c.l.b16 %v59
  %v985 = vunpack.c.h.b16 %v59
  %v986 = vunpack.c.l.b16 %v60
  %v987 = vunpack.c.h.b16 %v60
  %v988 = vunpack.c.l.b16 %v61
  %v989 = vunpack.c.h.b16 %v61
  %v990 = vunpack.c.l.b16 %v62
  %v991 = vunpack.c.h.b16 %v62
  %v992 = vunpack.c.l.b16 %v63
  %v993 = vunpack.c.h.b16 %v63
  %v994 = vunpack.c.l.b16 %v64
  %v995 = vunpack.c.h.b16 %v64
  %v996 = vunpack.c.l.b16 %v65
  %v997 = vunpack.c.h.b16 %v65
  %v998 = vunpack.c.l.b16 %v66
  %v999 = vunpack.c.h.b16 %v66
  %v1000 = vunpack.c.l.b16 %v67
  %v1001 = vunpack.c.h.b16 %v67
  %v1002 = vunpack.c.l.b16 %v68
  %v1003 = vunpack.c.h.b16 %v68
  %v1004 = vunpack.c.l.b16 %v69
  %v1005 = vunpack.c.h.b16 %v69
  %v1006 = vunpack.c.l.b16 %v70
  %v1007 = vunpack.c.h.b16 %v70
  %v1008 = vunpack.c.l.b16 %v71
  %v1009 = vunpack.c.h.b16 %v71
  %v1010 = vunpack.c.l.b16 %v72
  %v1011 = vunpack.c.h.b16 %v72
  %v1012 = vunpack.c.l.b16 %v73
  %v1013 = vpack.c.b16 %v964, %v915
  %v1014 = vpack.c.b16 %v965, %v916
  %v1015 = vpack.c.b16 %v966, %v917
  %v1016 = vpack.c.b16 %v967, %v918
  %v1017 = vpack.c.b16 %v968, %v919
  %v1018 = vpack.c.b16 %v969, %v920
  %v1019 = vpack.c.b16 %v970, %v921
  %v1020 = vpack.c.b16 %v971, %v922
  %v1021 = vpack.c.b16 %v972, %v923
  %v1022 = vpack.c.b16 %v973, %v924
  %v1023 = vpack.c.b16 %v974, %v925
  %v1024 = vpack.c.b16 %v975, %v926
  %v1025 = vpack.c.b16 %v976, %v927
  %v1026 = vpack.c.b16 %v977, %v928
  %v1027 = vpack.c.b16 %v978, %v929
  %v1028 = vpack.c.b16 %v979, %v930
  %v1029 = vpack.c.b16 %v980, %v931
  %v1030 = vpack.c.b16 %v981, %v932
  %v1031 = vpack.c.b16 %v982, %v933
  %v1032 = vpack.c.b16 %v983, %v934
  %v1033 = vpack.c.b16 %v984, %v935
  %v1034 = vpack.c.b16 %v985, %v936
  %v1035 = vpack.c.b16 %v986, %v937
  %v1036 = vpack.c.b16 %v987, %v938
  %v1037 = vpack.c.b16 %v988, %v939
  %v1038 = vpack.c.b16 %v989, %v940
  %v1039 = vpack.c.b16 %v990, %v941
  %v1040 = vpack.c.b16 %v991, %v942
  %v1041 = vpack.c.b16 %v992, %v943
  %v1042 = vpack.c.b16 %v993, %v944
  %v1043 = vpack.c.b16 %v994, %v945
  %v1044 = vpack.c.b16 %v995, %v946
  %v1045 = vpack.c.b16 %v996, %v947
  %v1046 = vpack.c.b16 %v997, %v948
  %v1047 = vpack.c.b16 %v998, %v949
  %v1048 = vpack.c.b16 %v999, %v950
  %v1049 = vpack.c.b16 %v1000, %v951
  %v1050 = vpack.c.b16 %v1001, %v952
  %v1051 = vpack.c.b16 %v1002, %v953
  %v1052 = vpack.c.b16 %v1003, %v954
  %v1053 = vpack.c.b16 %v1004, %v955
  %v1054 = vpack.c.b16 %v1005, %v956
  %v1055 = vpack.c.b16 %v1006, %v957
  %v1056 = vpack.c.b16 %v1007, %v958
  %v1057 = vpack.c.b16 %v1008, %v959
  %v1058 = vpack.c.b16 %v1009, %v960
  %v1059 = vpack.c.b16 %v1010, %v961
  %v1060 = vpack.c.b16 %v1011, %v962
  %v1061 = vpack.c.b16 %v1012, %v963
  %v1895 = vunpack.c.l.b16 %v74
  %v1896 = vunpack.c.l.b16 %v75
  %v1897 = vunpack.c.l.b16 %v76
  %v1898 = vunpack.c.l.b16 %v77
  %v1899 = vunpack.c.l.b16 %v78
  %v1900 = vunpack.c.l.b16 %v79
  %v1901 = vunpack.c.l.b16 %v80
  %v1902 = vunpack.c.l.b16 %v81
  %v1903 = vunpack.c.l.b16 %v82
  %v1904 = vunpack.c.l.b16 %v83
  %v1905 = vunpack.c.l.b16 %v84
  %v1906 = vunpack.c.l.b16 %v85
  %v1907 = vunpack.c.l.b16 %v86
  %v1908 = vunpack.c.l.b16 %v87
  %v1909 = vunpack.c.l.b16 %v88
  %v1910 = vunpack.c.l.b16 %v89
  %v1911 = vunpack.c.l.b16 %v90
  %v1912 = vunpack.c.l.b16 %v91
  %v1913 = vunpack.c.l.b16 %v92
  %v1914 = vunpack.c.l.b16 %v93
  %v1915 = vunpack.c.l.b16 %v94
  %v1916 = vunpack.c.l.b16 %v95
  %v1917 = vunpack.c.l.b16 %v96
  %v1918 = vunpack.c.l.b16 %v97
  %v1919 = vunpack.c.l.b16 %v98
  %v1920 = vunpack.c.l.b16 %v99
  %v1921 = vunpack.c.l.b16 %v100
  %v1922 = vunpack.c.l.b16 %v101
  %v1923 = vunpack.c.l.b16 %v102
  %v1924 = vunpack.c.l.b16 %v103
  %v1925 = vunpack.c.l.b16 %v104
  %v1926 = vunpack.c.l.b16 %v105
  %v1927 = vunpack.c.l.b16 %v106
  %v1928 = vunpack.c.l.b16 %v107
  %v1929 = vunpack.c.l.b16 %v108
  %v1930 = vunpack.c.l.b16 %v109
  %v1931 = vunpack.c.l.b16 %v110
  %v1932 = vunpack.c.l.b16 %v111
  %v1933 = vunpack.c.l.b16 %v112
  %v1934 = vunpack.c.l.b16 %v113
  %v1935 = vunpack.c.l.b16 %v114
  %v1936 = vunpack.c.l.b16 %v115
  %v1937 = vunpack.c.l.b16 %v116
  %v1938 = vunpack.c.l.b16 %v117
  %v1939 = vunpack.c.l.b16 %v118
  %v1940 = vunpack.c.l.b16 %v119
  %v1941 = vunpack.c.l.b16 %v120
  %v1942 = vunpack.c.l.b16 %v121
  %v1943 = vunpack.c.l.b16 %v122
  %v1944 = vunpack.c.l.b16 %v123
  %v1945 = vunpack.c.l.b16 %v124
  %v1946 = vunpack.c.l.b16 %v125
  %v1947 = vunpack.c.l.b16 %v126
  %v1948 = vunpack.c.l.b16 %v127
  %v1949 = vunpack.c.l.b16 %v128
  %v1950 = vunpack.c.l.b16 %v129
  %v1951 = vunpack.c.l.b16 %v130
  %v1952 = vunpack.c.l.b16 %v131
  %v1953 = vunpack.c.l.b16 %v132
  %v1954 = vunpack.c.l.b16 %v133
  %v1955 = vunpack.c.l.b16 %v134
  %v1956 = vunpack.c.l.b16 %v135
  %v1957 = vunpack.c.l.b16 %v136
  %v1958 = vunpack.c.l.b16 %v137
  %v1959 = vunpack.c.l.b16 %v138
  %v1960 = vunpack.c.l.b16 %v139
  %v1961 = vunpack.c.l.b16 %v140
  %v1962 = vunpack.c.l.b16 %v141
  %v1963 = vunpack.c.l.b16 %v142
  %v1964 = vunpack.c.l.b16 %v143
  %v1965 = vunpack.c.l.b16 %v144
  %v1966 = vunpack.c.l.b16 %v145
  %v1967 = vunpack.c.l.b16 %v146
  %v1968 = vunpack.c.l.b16 %v147
  %v1969 = vunpack.c.l.b16 %v148
  %v1970 = vunpack.c.l.b16 %v149
  %v1971 = vunpack.c.l.b16 %v150
  %v1972 = vunpack.c.l.b16 %v151
  %v1973 = vunpack.c.l.b16 %v152
  %v1974 = vunpack.c.l.b16 %v153
  %v1975 = vunpack.c.l.b16 %v154
  %v1976 = vunpack.c.l.b16 %v155
  %v1977 = vunpack.c.l.b16 %v156
  %v1978 = vunpack.c.l.b16 %v157
  %v1979 = vunpack.c.l.b16 %v158
  %v1980 = vunpack.c.l.b16 %v159
  %v1981 = vunpack.c.l.b16 %v160
  %v1982 = vunpack.c.l.b16 %v161
  %v1983 = vunpack.c.l.b16 %v162
  %v1984 = vunpack.c.l.b16 %v163
  %v1985 = vunpack.c.l.b16 %v164
  %v1986 = vunpack.c.l.b16 %v165
  %v1987 = vunpack.c.l.b16 %v166
  %v1988 = vunpack.c.l.b16 %v167
  %v1989 = vunpack.c.l.b16 %v168
  %v1990 = vunpack.c.l.b16 %v169
  %v1991 = vunpack.c.l.b16 %v170
  %v1992 = vunpack.c.l.b16 %v171
  %v1993 = vunpack.c.l.b16 %v172
  %v1994 = vunpack.c.l.b16 %v173
  %v1995 = vunpack.c.l.b16 %v174
  %v1996 = vunpack.c.l.b16 %v175
  %v1997 = vunpack.c.l.b16 %v176
  %v1998 = vunpack.c.l.b16 %v177
  %v1999 = vunpack.c.l.b16 %v178
  %v2000 = vunpack.c.l.b16 %v179
  %v2001 = vunpack.c.l.b16 %v180
  %v2002 = vunpack.c.l.b16 %v181
  %v2003 = vunpack.c.l.b16 %v182
  %v2004 = vunpack.c.l.b16 %v183
  %v2005 = vunpack.c.l.b16 %v184
  %v2006 = vunpack.c.l.b16 %v185
  %v2007 = vunpack.c.l.b16 %v186
  %v2008 = vunpack.c.l.b16 %v187
  %v2009 = vunpack.c.l.b16 %v188
  %v2010 = vunpack.c.l.b16 %v189
  %v2011 = vunpack.c.l.b16 %v190
  %v2012 = vunpack.c.l.b16 %v191
  %v2013 = vunpack.c.l.b16 %v192
  %v2014 = vunpack.c.l.b16 %v193
  %v2015 = vunpack.c.l.b16 %v194
  %v2016 = vunpack.c.l.b16 %v195
  %v2017 = vunpack.c.l.b16 %v196
  %v2018 = vunpack.c.l.b16 %v197
  %v2019 = vunpack.c.l.b16 %v198
  %v2020 = vunpack.c.l.b16 %v199
  %v2021 = vunpack.c.l.b16 %v200
  %v2022 = vunpack.c.l.b16 %v201
  %v2023 = vunpack.c.l.b16 %v202
  %v2024 = vunpack.c.l.b16 %v203
  %v2025 = vunpack.c.l.b16 %v204
  %v2026 = vunpack.c.l.b16 %v205
  %v2027 = vunpack.c.l.b16 %v206
  %v2028 = vunpack.c.l.b16 %v207
  %v2029 = vunpack.c.l.b16 %v208
  %v2030 = vunpack.c.l.b16 %v209
  %v2031 = vunpack.c.l.b16 %v210
  %v2032 = vunpack.c.l.b16 %v211
  %v2033 = vunpack.c.l.b16 %v212
  %v2034 = vunpack.c.l.b16 %v213
  %v2035 = vunpack.c.l.b16 %v214
  %v2036 = vunpack.c.l.b16 %v215
  %v2037 = vunpack.c.l.b16 %v216
  %v2038 = vunpack.c.l.b16 %v217
  %v2039 = vunpack.c.l.b16 %v218
  %v2040 = vunpack.c.l.b16 %v219
  %v2041 = vunpack.c.l.b16 %v220
  %v2042 = vunpack.c.l.b16 %v221
  %v2043 = vunpack.c.l.b16 %v222
  %v2044 = vunpack.c.l.b16 %v223
  %v2045 = vunpack.c.l.b16 %v224
  %v2046 = vunpack.c.l.b16 %v225
  %v2047 = vunpack.c.l.b16 %v226
  %v2048 = vunpack.c.l.b16 %v227
  %v2049 = vunpack.c.l.b16 %v228
  %v2050 = vunpack.c.l.b16 %v229
  %v2051 = vunpack.c.l.b16 %v230
  %v2052 = vunpack.c.l.b16 %v231
  %v2053 = vunpack.c.l.b16 %v232
  %v2054 = vunpack.c.l.b16 %v233
  %v2055 = vunpack.c.l.b16 %v234
  %v2056 = vunpack.c.l.b16 %v235
  %v2057 = vunpack.c.l.b16 %v236
  %v2058 = vunpack.c.l.b16 %v237
  %v2059 = vunpack.c.l.b16 %v238
  %v2060 = vunpack.c.l.b16 %v239
  %v2061 = vunpack.c.l.b16 %v240
  %v2062 = vunpack.c.l.b16 %v241
  %v2063 = vunpack.c.l.b16 %v242
  %v2064 = vunpack.c.l.b16 %v243
  %v2065 = vunpack.c.l.b16 %v244
  %v2066 = vunpack.c.l.b16 %v245
  %v2067 = vunpack.c.l.b16 %v246
  %v2068 = vunpack.c.l.b16 %v247
  %v2069 = vunpack.c.l.b16 %v248
  %v2070 = vunpack.c.l.b16 %v249
  %v2071 = vunpack.c.l.b16 %v250
  %v2072 = vunpack.c.l.b16 %v251
  %v2073 = vunpack.c.l.b16 %v252
  %v2074 = vunpack.c.l.b16 %v253
  %v2075 = vunpack.c.l.b16 %v254
  %v2076 = vunpack.c.l.b16 %v255
  %v2077 = vunpack.c.l.b16 %v256
  %v2078 = vunpack.c.l.b16 %v257
  %v2079 = vunpack.c.l.b16 %v258
  %v2080 = vunpack.c.l.b16 %v259
  %v2081 = vunpack.c.l.b16 %v260
  %v2082 = vunpack.c.l.b16 %v261
  %v2083 = vunpack.c.l.b16 %v262
  %v2084 = vunpack.c.l.b16 %v263
  %v2085 = vunpack.c.l.b16 %v264
  %v2086 = vunpack.c.l.b16 %v265
  %v2087 = vunpack.c.l.b16 %v266
  %v2088 = vunpack.c.l.b16 %v267
  %v2089 = vunpack.c.l.b16 %v268
  %v2090 = vunpack.c.l.b16 %v269
  %v2091 = vunpack.c.l.b16 %v270
  %v2092 = vunpack.c.l.b16 %v271
  %v2093 = vunpack.c.l.b16 %v272
  %v2094 = vunpack.c.l.b16 %v273
  %v2095 = vunpack.c.l.b16 %v274
  %v2096 = vunpack.c.l.b16 %v275
  %v2097 = vunpack.c.l.b16 %v276
  %v2098 = vunpack.c.l.b16 %v277
  %v2099 = vunpack.c.l.b16 %v278
  %v2100 = vunpack.c.l.b16 %v279
  %v2101 = vunpack.c.l.b16 %v280
  %v2102 = vunpack.c.l.b16 %v281
  %v2103 = vunpack.c.l.b16 %v282
  %v2104 = vunpack.c.l.b16 %v283
  %v2105 = vunpack.c.l.b16 %v284
  %v2106 = vunpack.c.l.b16 %v285
  %v2107 = vunpack.c.l.b16 %v286
  %v2108 = vunpack.c.l.b16 %v287
  %v2109 = vunpack.c.l.b16 %v288
  %v2110 = vunpack.c.l.b16 %v289
  %v2111 = vunpack.c.l.b16 %v290
  %v2112 = vunpack.c.l.b16 %v291
  %v2113 = vunpack.c.l.b16 %v292
  %v2114 = vunpack.c.l.b16 %v293
  %v2115 = vunpack.c.l.b16 %v294
  %v2116 = vunpack.c.l.b16 %v295
  %v2117 = vunpack.c.l.b16 %v296
  %v2118 = vunpack.c.l.b16 %v297
  %v2119 = vunpack.c.l.b16 %v298
  %v2120 = vunpack.c.l.b16 %v299
  %v2121 = vunpack.c.l.b16 %v300
  %v2122 = vunpack.c.l.b16 %v301
  %v2123 = vunpack.c.l.b16 %v302
  %v2124 = vunpack.c.l.b16 %v303
  %v2125 = vunpack.c.l.b16 %v304
  %v2126 = vunpack.c.l.b16 %v305
  %v2127 = vunpack.c.l.b16 %v306
  %v2128 = vunpack.c.l.b16 %v307
  %v2129 = vunpack.c.l.b16 %v308
  %v2130 = vunpack.c.l.b16 %v309
  %v2131 = vunpack.c.l.b16 %v310
  %v2132 = vunpack.c.l.b16 %v311
  %v2133 = vunpack.c.l.b16 %v312
  %v2134 = vunpack.c.l.b16 %v313
  %v2135 = vunpack.c.l.b16 %v314
  %v2136 = vunpack.c.l.b16 %v315
  %v2137 = vunpack.c.l.b16 %v316
  %v2138 = vunpack.c.l.b16 %v317
  %v2139 = vunpack.c.l.b16 %v318
  %v2140 = vunpack.c.l.b16 %v319
  %v2141 = vunpack.c.l.b16 %v320
  %v2142 = vunpack.c.l.b16 %v321
  %v2143 = vunpack.c.l.b16 %v322
  %v2144 = vunpack.c.l.b16 %v323
  %v2145 = vunpack.c.l.b16 %v324
  %v2146 = vunpack.c.l.b16 %v325
  %v2147 = vunpack.c.l.b16 %v326
  %v2148 = vunpack.c.l.b16 %v327
  %v2149 = vunpack.c.l.b16 %v328
  %v2150 = vunpack.c.l.b16 %v329
  %v2151 = vunpack.c.l.b16 %v330
  %v2152 = vunpack.c.l.b16 %v331
  %v2153 = vunpack.c.l.b16 %v332
  %v2154 = vunpack.c.l.b16 %v333
  %v2155 = vunpack.c.l.b16 %v334
  %v2156 = vunpack.c.l.b16 %v335
  %v2157 = vunpack.c.l.b16 %v336
  %v2158 = vunpack.c.l.b16 %v337
  %v2159 = vunpack.c.l.b16 %v338
  %v2160 = vunpack.c.l.b16 %v339
  %v2161 = vunpack.c.l.b16 %v340
  %v2162 = vunpack.c.l.b16 %v341
  %v2163 = vunpack.c.l.b16 %v342
  %v2164 = vunpack.c.l.b16 %v343
  %v2165 = vunpack.c.l.b16 %v344
  %v2166 = vunpack.c.l.b16 %v345
  %v2167 = vunpack.c.l.b16 %v346
  %v2168 = vunpack.c.l.b16 %v347
  %v2169 = vunpack.c.l.b16 %v348
  %v2170 = vunpack.c.l.b16 %v349
  %v2171 = vunpack.c.l.b16 %v350
  %v2172 = vunpack.c.l.b16 %v351
  %v2173 = vunpack.c.l.b16 %v352
  %v2174 = vunpack.c.l.b16 %v353
  %v2175 = vunpack.c.l.b16 %v354
  %v2176 = vunpack.c.l.b16 %v355
  %v2177 = vunpack.c.l.b16 %v356
  %v2178 = vunpack.c.l.b16 %v357
  %v2179 = vunpack.c.l.b16 %v358
  %v2180 = vunpack.c.l.b16 %v359
  %v2181 = vunpack.c.l.b16 %v360
  %v2182 = vunpack.c.l.b16 %v361
  %v2183 = vunpack.c.l.b16 %v362
  %v2184 = vunpack.c.l.b16 %v363
  %v2185 = vunpack.c.l.b16 %v364
  %v2186 = vunpack.c.l.b16 %v365
  %v2187 = vunpack.c.l.b16 %v366
  %v2188 = vunpack.c.l.b16 %v367
  %v2189 = vunpack.c.l.b16 %v368
  %v2190 = vunpack.c.l.b16 %v369
  %v2191 = vunpack.c.l.b16 %v370
  %v2192 = vunpack.c.l.b16 %v371
  %v2193 = vunpack.c.l.b16 %v372
  %v2194 = vunpack.c.l.b16 %v373
  %v2195 = vunpack.c.l.b16 %v374
  %v2196 = vunpack.c.l.b16 %v375
  %v2197 = vunpack.c.l.b16 %v376
  %v2198 = vunpack.c.l.b16 %v377
  %v2199 = vunpack.c.l.b16 %v378
  %v2200 = vunpack.c.l.b16 %v379
  %v2201 = vunpack.c.l.b16 %v380
  %v2202 = vunpack.c.l.b16 %v381
  %v2203 = vunpack.c.l.b16 %v382
  %v2204 = vunpack.c.l.b16 %v383
  %v2205 = vunpack.c.l.b16 %v384
  %v2206 = vunpack.c.l.b16 %v385
  %v2207 = vunpack.c.l.b16 %v386
  %v2208 = vunpack.c.l.b16 %v387
  %v2209 = vunpack.c.l.b16 %v388
  %v2210 = vunpack.c.l.b16 %v389
  %v2211 = vunpack.c.l.b16 %v390
  %v2212 = vunpack.c.l.b16 %v391
  %v2213 = vunpack.c.l.b16 %v392
  %v2214 = vunpack.c.l.b16 %v393
  %v2215 = vunpack.c.l.b16 %v394
  %v2216 = vunpack.c.l.b16 %v395
  %v2217 = vunpack.c.l.b16 %v396
  %v2218 = vunpack.c.l.b16 %v397
  %v2219 = vunpack.c.l.b16 %v398
  %v2220 = vunpack.c.l.b16 %v399
  %v2221 = vunpack.c.l.b16 %v400
  %v2222 = vunpack.c.l.b16 %v401
  %v2223 = vunpack.c.l.b16 %v402
  %v2224 = vunpack.c.l.b16 %v403
  %v2225 = vunpack.c.l.b16 %v404
  %v2226 = vunpack.c.l.b16 %v405
  %v2227 = vunpack.c.l.b16 %v406
  %v2228 = vunpack.c.l.b16 %v407
  %v2229 = vunpack.c.l.b16 %v408
  %v2230 = vunpack.c.l.b16 %v409
  %v2231 = vunpack.c.l.b16 %v410
  %v2232 = vunpack.c.l.b16 %v411
  %v2233 = vunpack.c.l.b16 %v412
  %v2234 = vunpack.c.l.b16 %v413
  %v2235 = vunpack.c.l.b16 %v414
  %v2236 = vunpack.c.l.b16 %v415
  %v2237 = vunpack.c.l.b16 %v416
  %v2238 = vunpack.c.l.b16 %v417
  %v2239 = vunpack.c.l.b16 %v418
  %v2240 = vunpack.c.l.b16 %v419
  %v2241 = vunpack.c.l.b16 %v420
  %v2242 = vunpack.c.l.b16 %v421
  %v2243 = vunpack.c.l.b16 %v422
  %v2244 = vunpack.c.l.b16 %v423
  %v2245 = vunpack.c.l.b16 %v424
  %v2246 = vunpack.c.l.b16 %v425
  %v2247 = vunpack.c.l.b16 %v426
  %v2248 = vunpack.c.l.b16 %v427
  %v2249 = vunpack.c.l.b16 %v428
  %v2250 = vunpack.c.l.b16 %v429
  %v2251 = vunpack.c.l.b16 %v430
  %v2252 = vunpack.c.l.b16 %v431
  %v2253 = vunpack.c.l.b16 %v432
  %v2254 = vunpack.c.l.b16 %v433
  %v2255 = vunpack.c.l.b16 %v434
  %v2256 = vunpack.c.l.b16 %v435
  %v2257 = vunpack.c.l.b16 %v436
  %v2258 = vunpack.c.l.b16 %v437
  %v2259 = vunpack.c.l.b16 %v438
  %v2260 = vunpack.c.l.b16 %v439
  %v2261 = vunpack.c.l.b16 %v440
  %v2262 = vunpack.c.l.b16 %v441
  %v2263 = vunpack.c.l.b16 %v442
  %v2264 = vunpack.c.l.b16 %v443
  %v2265 = vunpack.c.l.b16 %v444
  %v2266 = vunpack.c.l.b16 %v445
  %v2267 = vunpack.c.l.b16 %v446
  %v2268 = vunpack.c.l.b16 %v447
  %v2269 = vunpack.c.l.b16 %v448
  %v2270 = vunpack.c.l.b16 %v449
  %v2271 = vunpack.c.l.b16 %v450
  %v2272 = vunpack.c.l.b16 %v451
  %v2273 = vunpack.c.l.b16 %v452
  %v2274 = vunpack.c.l.b16 %v453
  %v2275 = vunpack.c.l.b16 %v454
  %v2276 = vunpack.c.l.b16 %v455
  %v2277 = vunpack.c.l.b16 %v456
  %v2278 = vunpack.c.l.b16 %v457
  %v2279 = vunpack.c.l.b16 %v458
  %v2280 = vunpack.c.l.b16 %v459
  %v2281 = vunpack.c.l.b16 %v460
  %v2282 = vunpack.c.l.b16 %v461
  %v2283 = vunpack.c.l.b16 %v462
  %v2284 = vunpack.c.l.b16 %v463
  %v2285 = vunpack.c.l.b16 %v464
  %v2286 = vunpack.c.l.b16 %v465
  %v2287 = vunpack.c.l.b16 %v466
  %v2288 = vunpack.c.l.b16 %v467
  %v2289 = vunpack.c.l.b16 %v468
  %v2290 = vunpack.c.l.b16 %v469
  %v2291 = vunpack.c.l.b16 %v470
  %v2292 = vunpack.c.l.b16 %v471
  %v2293 = vunpack.c.l.b16 %v472
  %v2294 = vunpack.c.l.b16 %v473
  %v2295 = vunpack.c.l.b16 %v474
  %v2296 = vunpack.c.l.b16 %v475
  %v2297 = vunpack.c.l.b16 %v476
  %v2298 = vunpack.c.l.b16 %v477
  %v2299 = vunpack.c.l.b16 %v478
  %v2300 = vunpack.c.l.b16 %v479
  %v2301 = vunpack.c.l.b16 %v480
  %v2302 = vunpack.c.l.b16 %v481
  %v2303 = vunpack.c.l.b16 %v482
  %v2304 = vunpack.c.l.b16 %v483
  %v2305 = vunpack.c.l.b16 %v484
  %v2306 = vunpack.c.l.b16 %v485
  %v2307 = vunpack.c.l.b16 %v486
  %v2308 = vunpack.c.l.b16 %v487
  %v2309 = vunpack.c.l.b16 %v488
  %v2310 = vunpack.c.l.b16 %v489
  %v2311 = vunpack.c.l.b16 %v490
  %v2312 = vunpack.c.l.b16 %v491
  %v2313 = vunpack.c.l.b16 %v492
  %v2314 = vunpack.c.l.b16 %v493
  %v2315 = vunpack.c.l.b16 %v494
  %v2316 = vunpack.c.l.b16 %v495
  %v2317 = vunpack.c.l.b16 %v496
  %v2318 = vunpack.c.l.b16 %v497
  %v2319 = vunpack.c.l.b16 %v498
  %v2320 = vunpack.c.l.b16 %v499
  %v2321 = vunpack.c.l.b16 %v500
  %v2322 = vunpack.c.l.b16 %v501
  %v2323 = vunpack.c.l.b16 %v502
  %v2324 = vunpack.c.l.b16 %v503
  %v2325 = vunpack.c.l.b16 %v504
  %v2326 = vunpack.c.l.b16 %v505
  %v2327 = vunpack.c.l.b16 %v506
  %v2328 = vunpack.c.l.b16 %v507
  %v2329 = vunpack.c.l.b16 %v508
  %v2330 = vunpack.c.l.b16 %v509
  %v2331 = vunpack.c.l.b16 %v510
  %v2332 = vunpack.c.l.b16 %v511
  %v2333 = vunpack.c.l.b16 %v512
  %v2334 = vunpack.c.l.b16 %v513
  %v2335 = vunpack.c.l.b16 %v514
  %v2336 = vunpack.c.l.b16 %v515
  %v2337 = vunpack.c.l.b16 %v516
  %v2338 = vunpack.c.l.b16 %v517
  %v2339 = vunpack.c.l.b16 %v518
  %v2340 = vunpack.c.l.b16 %v519
  %v2341 = vunpack.c.l.b16 %v520
  %v2342 = vunpack.c.l.b16 %v521
  %v2343 = vunpack.c.l.b16 %v522
  %v2344 = vunpack.c.l.b16 %v523
  %v2345 = vunpack.c.l.b16 %v524
  %v2346 = vunpack.c.l.b16 %v525
  %v2347 = vunpack.c.l.b16 %v526
  %v2348 = vunpack.c.l.b16 %v527
  %v2349 = vunpack.c.l.b16 %v528
  %v2350 = vunpack.c.l.b16 %v529
  %v2351 = vunpack.c.l.b16 %v530
  %v2352 = vunpack.c.l.b16 %v531
  %v2353 = vunpack.c.l.b16 %v532
  %v2354 = vunpack.c.l.b16 %v533
  %v2355 = vunpack.c.l.b16 %v534
  %v2356 = vunpack.c.l.b16 %v535
  %v2357 = vunpack.c.l.b16 %v536
  %v2358 = vunpack.c.l.b16 %v537
  %v2359 = vunpack.c.l.b16 %v538
  %v2360 = vunpack.c.l.b16 %v539
  %v2361 = vunpack.c.l.b16 %v540
  %v2362 = vunpack.c.l.b16 %v541
  %v2363 = vunpack.c.l.b16 %v542
  %v2364 = vunpack.c.l.b16 %v543
  %v2365 = vunpack.c.l.b16 %v544
  %v2366 = vunpack.c.l.b16 %v545
  %v2367 = vunpack.c.l.b16 %v546
  %v2368 = vunpack.c.l.b16 %v547
  %v2369 = vunpack.c.l.b16 %v548
  %v2370 = vunpack.c.l.b16 %v549
  %v2371 = vunpack.c.l.b16 %v550
  %v2372 = vunpack.c.l.b16 %v551
  %v2373 = vunpack.c.l.b16 %v552
  %v2374 = vunpack.c.l.b16 %v553
  %v2375 = vunpack.c.l.b16 %v554
  %v2376 = vunpack.c.l.b16 %v555
  %v2377 = vunpack.c.l.b16 %v556
  %v2378 = vunpack.c.l.b16 %v557
  %v2379 = vunpack.c.l.b16 %v558
  %v2380 = vunpack.c.l.b16 %v559
  %v2381 = vunpack.c.l.b16 %v560
  %v2382 = vunpack.c.l.b16 %v561
  %v2383 = vunpack.c.l.b16 %v562
  %v2384 = vunpack.c.l.b16 %v563
  %v2385 = vunpack.c.l.b16 %v564
  %v2386 = vunpack.c.l.b16 %v565
  %v2387 = vunpack.c.l.b16 %v566
  %v2388 = vunpack.c.l.b16 %v567
  %v2389 = vunpack.c.l.b16 %v568
  %v2390 = vunpack.c.l.b16 %v569
  %v2391 = vunpack.c.l.b16 %v570
  %v2392 = vunpack.c.l.b16 %v571
  %v2393 = vunpack.c.l.b16 %v572
  %v2394 = vunpack.c.l.b16 %v573
  %v2395 = vunpack.c.l.b16 %v574
  %v2396 = vunpack.c.l.b16 %v575
  %v2397 = vunpack.c.l.b16 %v576
  %v2398 = vunpack.c.l.b16 %v577
  %v2399 = vunpack.c.l.b16 %v578
  %v2400 = vunpack.c.l.b16 %v579
  %v2401 = vunpack.c.l.b16 %v580
  %v2402 = vunpack.c.l.b16 %v581
  %v2403 = vunpack.c.l.b16 %v582
  %v2404 = vunpack.c.l.b16 %v583
  %v2405 = vunpack.c.l.b16 %v584
  %v2406 = vunpack.c.l.b16 %v585
  %v2407 = vunpack.c.l.b16 %v586
  %v2408 = vunpack.c.l.b16 %v587
  %v2409 = vunpack.c.l.b16 %v588
  %v2410 = vunpack.c.l.b16 %v589
  %v2411 = vunpack.c.l.b16 %v590
  %v2412 = vunpack.c.l.b16 %v591
  %v2413 = vunpack.c.l.b16 %v592
  %v2414 = vunpack.c.l.b16 %v593
  %v2415 = vunpack.c.l.b16 %v594
  %v2416 = vunpack.c.l.b16 %v595
  %v2417 = vunpack.c.l.b16 %v596
  %v2418 = vunpack.c.l.b16 %v597
  %v2419 = vunpack.c.l.b16 %v598
  %v2420 = vunpack.c.l.b16 %v599
  %v2421 = vunpack.c.l.b16 %v600
  %v2422 = vunpack.c.l.b16 %v601
  %v2423 = vunpack.c.l.b16 %v602
  %v2424 = vunpack.c.l.b16 %v603
  %v2425 = vunpack.c.l.b16 %v604
  %v2426 = vunpack.c.l.b16 %v605
  %v2427 = vunpack.c.l.b16 %v606
  %v2428 = vunpack.c.l.b16 %v607
  %v2429 = vunpack.c.l.b16 %v608
  %v2430 = vunpack.c.l.b16 %v609
  %v2431 = vunpack.c.l.b16 %v610
  %v2432 = vunpack.c.l.b16 %v611
  %v2433 = vunpack.c.l.b16 %v612
  %v2434 = vunpack.c.l.b16 %v613
  %v2435 = vunpack.c.l.b16 %v614
  %v2436 = vunpack.c.l.b16 %v615
  %v2437 = vunpack.c.l.b16 %v616
  %v2438 = vunpack.c.l.b16 %v617
  %v2439 = vunpack.c.l.b16 %v618
  %v2440 = vunpack.c.l.b16 %v619
  %v2441 = vunpack.c.l.b16 %v620
  %v2442 = vunpack.c.l.b16 %v621
  %v2443 = vunpack.c.l.b16 %v622
  %v2444 = vunpack.c.l.b16 %v623
  %v2445 = vunpack.c.l.b16 %v624
  %v2446 = vunpack.c.l.b16 %v625
  %v2447 = vunpack.c.l.b16 %v626
  %v2448 = vunpack.c.l.b16 %v627
  %v2449 = vunpack.c.l.b16 %v628
  %v2450 = vunpack.c.l.b16 %v629
  %v2451 = vunpack.c.l.b16 %v630
  %v2452 = vunpack.c.l.b16 %v631
  %v2453 = vunpack.c.l.b16 %v632
  %v2454 = vunpack.c.l.b16 %v633
  %v2455 = vunpack.c.l.b16 %v634
  %v2456 = vunpack.c.l.b16 %v635
  %v2457 = vunpack.c.l.b16 %v636
  %v2458 = vunpack.c.l.b16 %v637
  %v2459 = vunpack.c.l.b16 %v638
  %v2460 = vunpack.c.l.b16 %v639
  %v2461 = vunpack.c.l.b16 %v640
  %v2462 = vunpack.c.l.b16 %v641
  %v2463 = vunpack.c.l.b16 %v642
  %v2464 = vunpack.c.l.b16 %v643
  %v2465 = vunpack.c.l.b16 %v644
  %v2466 = vunpack.c.l.b16 %v645
  %v2467 = vunpack.c.l.b16 %v646
  %v2468 = vunpack.c.l.b16 %v647
  %v2469 = vunpack.c.l.b16 %v648
  %v2470 = vunpack.c.l.b16 %v649
  %v2471 = vunpack.c.l.b16 %v650
  %v2472 = vunpack.c.l.b16 %v651
  %v2473 = vunpack.c.l.b16 %v652
  %v2474 = vunpack.c.l.b16 %v653
  %v2475 = vunpack.c.l.b16 %v654
  %v2476 = vunpack.c.l.b16 %v655
  %v2477 = vunpack.c.l.b16 %v656
  %v2478 = vunpack.c.l.b16 %v657
  %v2479 = vunpack.c.l.b16 %v658
  %v2480 = vunpack.c.l.b16 %v659
  %v2481 = vunpack.c.l.b16 %v660
  %v2482 = vunpack.c.l.b16 %v661
  %v2483 = vunpack.c.l.b16 %v662
  %v2484 = vunpack.c.l.b16 %v663
  %v2485 = vunpack.c.l.b16 %v664
  %v2486 = vunpack.c.l.b16 %v665
  %v2487 = vunpack.c.l.b16 %v666
  %v2488 = vunpack.c.l.b16 %v667
  %v2489 = vunpack.c.l.b16 %v668
  %v2490 = vunpack.c.l.b16 %v669
  %v2491 = vunpack.c.l.b16 %v670
  %v2492 = vunpack.c.l.b16 %v671
  %v2493 = vunpack.c.l.b16 %v672
  %v2494 = vunpack.c.l.b16 %v673
  %v2495 = vunpack.c.l.b16 %v674
  %v2496 = vunpack.c.l.b16 %v675
  %v2497 = vunpack.c.l.b16 %v676
  %v2498 = vunpack.c.l.b16 %v677
  %v2499 = vunpack.c.l.b16 %v678
  %v2500 = vunpack.c.l.b16 %v679
  %v2501 = vunpack.c.l.b16 %v680
  %v2502 = vunpack.c.l.b16 %v681
  %v2503 = vunpack.c.l.b16 %v682
  %v2504 = vunpack.c.l.b16 %v683
  %v2505 = vunpack.c.l.b16 %v684
  %v2506 = vunpack.c.l.b16 %v685
  %v2507 = vunpack.c.l.b16 %v686
  %v2508 = vunpack.c.l.b16 %v687
  %v2509 = vunpack.c.l.b16 %v688
  %v2510 = vunpack.c.l.b16 %v689
  %v2511 = vunpack.c.l.b16 %v690
  %v2512 = vunpack.c.l.b16 %v691
  %v2513 = vunpack.c.l.b16 %v692
  %v2514 = vunpack.c.l.b16 %v693
  %v2515 = vunpack.c.l.b16 %v694
  %v2516 = vunpack.c.l.b16 %v695
  %v2517 = vunpack.c.l.b16 %v696
  %v2518 = vunpack.c.l.b16 %v697
  %v2519 = vunpack.c.l.b16 %v698
  %v2520 = vunpack.c.l.b16 %v699
  %v2521 = vunpack.c.l.b16 %v700
  %v2522 = vunpack.c.l.b16 %v701
  %v2523 = vunpack.c.l.b16 %v702
  %v2524 = vunpack.c.l.b16 %v703
  %v2525 = vunpack.c.l.b16 %v704
  %v2526 = vunpack.c.l.b16 %v705
  %v2527 = vunpack.c.l.b16 %v706
  %v2528 = vunpack.c.l.b16 %v707
  %v2529 = vunpack.c.l.b16 %v708
  %v2530 = vunpack.c.l.b16 %v709
  %v2531 = vunpack.c.l.b16 %v710
  %v2532 = vunpack.c.l.b16 %v711
  %v2533 = vunpack.c.l.b16 %v712
  %v2534 = vunpack.c.l.b16 %v713
  %v2535 = vunpack.c.l.b16 %v714
  %v2536 = vunpack.c.l.b16 %v715
  %v2537 = vunpack.c.l.b16 %v716
  %v2538 = vunpack.c.l.b16 %v717
  %v2539 = vunpack.c.l.b16 %v718
  %v2540 = vunpack.c.l.b16 %v719
  %v2541 = vunpack.c.l.b16 %v720
  %v2542 = vunpack.c.l.b16 %v721
  %v2543 = vunpack.c.l.b16 %v722
  %v2544 = vunpack.c.l.b16 %v723
  %v2545 = vunpack.c.l.b16 %v724
  %v2546 = vunpack.c.l.b16 %v725
  %v2547 = vunpack.c.l.b16 %v726
  %v2548 = vunpack.c.l.b16 %v727
  %v2549 = vunpack.c.l.b16 %v728
  %v2550 = vunpack.c.l.b16 %v729
  %v2551 = vunpack.c.l.b16 %v730
  %v2552 = vunpack.c.l.b16 %v731
  %v2553 = vunpack.c.l.b16 %v732
  %v2554 = vunpack.c.l.b16 %v733
  %v2555 = vunpack.c.l.b16 %v734
  %v2556 = vunpack.c.l.b16 %v735
  %v2557 = vunpack.c.l.b16 %v736
  %v2558 = vunpack.c.l.b16 %v737
  %v2559 = vunpack.c.l.b16 %v738
  %v2560 = vunpack.c.l.b16 %v739
  %v2561 = vunpack.c.l.b16 %v740
  %v2562 = vunpack.c.l.b16 %v741
  %v2563 = vunpack.c.l.b16 %v742
  %v2564 = vunpack.c.l.b16 %v743
  %v2565 = vunpack.c.l.b16 %v744
  %v2566 = vunpack.c.l.b16 %v745
  %v2567 = vunpack.c.l.b16 %v746
  %v2568 = vunpack.c.l.b16 %v747
  %v2569 = vunpack.c.l.b16 %v748
  %v2570 = vunpack.c.l.b16 %v749
  %v2571 = vunpack.c.l.b16 %v750
  %v2572 = vunpack.c.l.b16 %v751
  %v2573 = vunpack.c.l.b16 %v752
  %v2574 = vunpack.c.l.b16 %v753
  %v2575 = vunpack.c.l.b16 %v754
  %v2576 = vunpack.c.l.b16 %v755
  %v2577 = vunpack.c.l.b16 %v756
  %v2578 = vunpack.c.l.b16 %v757
  %v2579 = vunpack.c.l.b16 %v758
  %v2580 = vunpack.c.l.b16 %v759
  %v2581 = vunpack.c.l.b16 %v760
  %v2582 = vunpack.c.l.b16 %v761
  %v2583 = vunpack.c.l.b16 %v762
  %v2584 = vunpack.c.l.b16 %v763
  %v2585 = vunpack.c.l.b16 %v764
  %v2586 = vunpack.c.l.b16 %v765
  %v2587 = vunpack.c.l.b16 %v766
  %v2588 = vunpack.c.l.b16 %v767
  %v2589 = vunpack.c.l.b16 %v768
  %v2590 = vunpack.c.l.b16 %v769
  %v2591 = vunpack.c.l.b16 %v770
  %v2592 = vunpack.c.l.b16 %v771
  %v2593 = vunpack.c.l.b16 %v772
  %v2594 = vunpack.c.l.b16 %v773
  %v2595 = vunpack.c.l.b16 %v774
  %v2596 = vunpack.c.l.b16 %v775
  %v2597 = vunpack.c.l.b16 %v776
  %v2598 = vunpack.c.l.b16 %v777
  %v2599 = vunpack.c.l.b16 %v778
  %v2600 = vunpack.c.l.b16 %v779
  %v2601 = vunpack.c.l.b16 %v780
  %v2602 = vunpack.c.l.b16 %v781
  %v2603 = vunpack.c.l.b16 %v782
  %v2604 = vunpack.c.l.b16 %v783
  %v2605 = vunpack.c.l.b16 %v784
  %v2606 = vunpack.c.l.b16 %v785
  %v2607 = vunpack.c.l.b16 %v786
  %v2608 = vunpack.c.l.b16 %v787
  %v2609 = vunpack.c.l.b16 %v788
  %v2610 = vunpack.c.l.b16 %v789
  %v2611 = vunpack.c.l.b16 %v790
  %v2612 = vunpack.c.l.b16 %v791
  %v2613 = vunpack.c.l.b16 %v792
  %v2614 = vunpack.c.l.b16 %v793
  %v2615 = vunpack.c.l.b16 %v794
  %v2616 = vunpack.c.l.b16 %v795
  %v2617 = vunpack.c.l.b16 %v796
  %v2618 = vunpack.c.l.b16 %v797
  %v2619 = vunpack.c.l.b16 %v798
  %v2620 = vunpack.c.l.b16 %v799
  %v2621 = vunpack.c.l.b16 %v800
  %v2622 = vunpack.c.l.b16 %v801
  %v2623 = vunpack.c.l.b16 %v802
  %v2624 = vunpack.c.l.b16 %v803
  %v2625 = vunpack.c.l.b16 %v804
  %v2626 = vunpack.c.l.b16 %v805
  %v2627 = vunpack.c.l.b16 %v806
  %v2628 = vunpack.c.l.b16 %v807
  %v2629 = vunpack.c.l.b16 %v808
  %v2630 = vunpack.c.l.b16 %v809
  %v2631 = vunpack.c.l.b16 %v810
  %v2632 = vunpack.c.l.b16 %v811
  %v2633 = vunpack.c.l.b16 %v812
  %v2634 = vunpack.c.l.b16 %v813
  %v2635 = vunpack.c.l.b16 %v814
  %v2636 = vunpack.c.l.b16 %v815
  %v2637 = vunpack.c.l.b16 %v816
  %v2638 = vunpack.c.l.b16 %v817
  %v2639 = vunpack.c.l.b16 %v818
  %v2640 = vunpack.c.l.b16 %v819
  %v2641 = vunpack.c.l.b16 %v820
  %v2642 = vunpack.c.l.b16 %v821
  %v2643 = vunpack.c.l.b16 %v822
  %v2644 = vunpack.c.l.b16 %v823
  %v2645 = vunpack.c.l.b16 %v824
  %v2646 = vunpack.c.l.b16 %v825
  %v2647 = vunpack.c.l.b16 %v826
  %v2648 = vunpack.c.l.b16 %v827
  %v2649 = vunpack.c.l.b16 %v828
  %v2650 = vunpack.c.l.b16 %v829
  %v2651 = vunpack.c.l.b16 %v830
  %v2652 = vunpack.c.l.b16 %v831
  %v2653 = vunpack.c.l.b16 %v832
  %v2654 = vunpack.c.l.b16 %v833
  %v2655 = vunpack.c.l.b16 %v834
  %v2656 = vunpack.c.l.b16 %v835
  %v2657 = vunpack.c.l.b16 %v836
  %v2658 = vunpack.c.l.b16 %v837
  %v2659 = vunpack.c.l.b16 %v838
  %v2660 = vunpack.c.l.b16 %v839
  %v2661 = vunpack.c.l.b16 %v840
  %v2662 = vunpack.c.l.b16 %v841
  %v2663 = vunpack.c.l.b16 %v842
  %v2664 = vunpack.c.l.b16 %v843
  %v2665 = vunpack.c.l.b16 %v844
  %v2666 = vunpack.c.l.b16 %v845
  %v2667 = vunpack.c.l.b16 %v846
  %v2668 = vunpack.c.l.b16 %v847
  %v2669 = vunpack.c.l.b16 %v848
  %v2670 = vunpack.c.l.b16 %v849
  %v2671 = vunpack.c.l.b16 %v850
  %v2672 = vunpack.c.l.b16 %v851
  %v2673 = vunpack.c.l.b16 %v852
  %v2674 = vunpack.c.l.b16 %v853
  %v2675 = vunpack.c.l.b16 %v854
  %v2676 = vunpack.c.l.b16 %v855
  %v2677 = vunpack.c.l.b16 %v856
  %v2678 = vunpack.c.l.b16 %v857
  %v2679 = vpack.c.b16 %v1896, %v1895
  %v2680 = vpack.c.b16 %v1898, %v1897
  %v2681 = vpack.c.b16 %v1900, %v1899
  %v2682 = vpack.c.b16 %v1902, %v1901
  %v2683 = vpack.c.b16 %v1904, %v1903
  %v2684 = vpack.c.b16 %v1906, %v1905
  %v2685 = vpack.c.b16 %v1908, %v1907
  %v2686 = vpack.c.b16 %v1910, %v1909
  %v2687 = vpack.c.b16 %v1912, %v1911
  %v2688 = vpack.c.b16 %v1914, %v1913
  %v2689 = vpack.c.b16 %v1916, %v1915
  %v2690 = vpack.c.b16 %v1918, %v1917
  %v2691 = vpack.c.b16 %v1920, %v1919
  %v2692 = vpack.c.b16 %v1922, %v1921
  %v2693 = vpack.c.b16 %v1924, %v1923
  %v2694 = vpack.c.b16 %v1926, %v1925
  %v2695 = vpack.c.b16 %v1928, %v1927
  %v2696 = vpack.c.b16 %v1930, %v1929
  %v2697 = vpack.c.b16 %v1932, %v1931
  %v2698 = vpack.c.b16 %v1934, %v1933
  %v2699 = vpack.c.b16 %v1936, %v1935
  %v2700 = vpack.c.b16 %v1938, %v1937
  %v2701 = vpack.c.b16 %v1940, %v1939
  %v2702 = vpack.c.b16 %v1942, %v1941
  %v2703 = vpack.c.b16 %v1944, %v1943
  %v2704 = vpack.c.b16 %v1946, %v1945
  %v2705 = vpack.c.b16 %v1948, %v1947
  %v2706 = vpack.c.b16 %v1950, %v1949
  %v2707 = vpack.c.b16 %v1952, %v1951
  %v2708 = vpack.c.b16 %v1954, %v1953
  %v2709 = vpack.c.b16 %v1956, %v1955
  %v2710 = vpack.c.b16 %v1958, %v1957
  %v2711 = vpack.c.b16 %v1960, %v1959
  %v2712 = vpack.c.b16 %v1962, %v1961
  %v2713 = vpack.c.b16 %v1964, %v1963
  %v2714 = vpack.c.b16 %v1966, %v1965
  %v2715 = vpack.c.b16 %v1968, %v1967
  %v2716 = vpack.c.b16 %v1970, %v1969
  %v2717 = vpack.c.b16 %v1972, %v1971
  %v2718 = vpack.c.b16 %v1974, %v1973
  %v2719 = vpack.c.b16 %v1976, %v1975
  %v2720 = vpack.c.b16 %v1978, %v1977
  %v2721 = vpack.c.b16 %v1980, %v1979
  %v2722 = vpack.c.b16 %v1982, %v1981
  %v2723 = vpack.c.b16 %v1984, %v1983
  %v2724 = vpack.c.b16 %v1986, %v1985
  %v2725 = vpack.c.b16 %v1988, %v1987
  %v2726 = vpack.c.b16 %v1990, %v1989
  %v2727 = vpack.c.b16 %v1992, %v1991
  %v2728 = vpack.c.b16 %v1994, %v1993
  %v2729 = vpack.c.b16 %v1996, %v1995
  %v2730 = vpack.c.b16 %v1998, %v1997
  %v2731 = vpack.c.b16 %v2000, %v1999
  %v2732 = vpack.c.b16 %v2002, %v2001
  %v2733 = vpack.c.b16 %v2004, %v2003
  %v2734 = vpack.c.b16 %v2006, %v2005
  %v2735 = vpack.c.b16 %v2008, %v2007
  %v2736 = vpack.c.b16 %v2010, %v2009
  %v2737 = vpack.c.b16 %v2012, %v2011
  %v2738 = vpack.c.b16 %v2014, %v2013
  %v2739 = vpack.c.b16 %v2016, %v2015
  %v2740 = vpack.c.b16 %v2018, %v2017
  %v2741 = vpack.c.b16 %v2020, %v2019
  %v2742 = vpack.c.b16 %v2022, %v2021
  %v2743 = vpack.c.b16 %v2024, %v2023
  %v2744 = vpack.c.b16 %v2026, %v2025
  %v2745 = vpack.c.b16 %v2028, %v2027
  %v2746 = vpack.c.b16 %v2030, %v2029
  %v2747 = vpack.c.b16 %v2032, %v2031
  %v2748 = vpack.c.b16 %v2034, %v2033
  %v2749 = vpack.c.b16 %v2036, %v2035
  %v2750 = vpack.c.b16 %v2038, %v2037
  %v2751 = vpack.c.b16 %v2040, %v2039
  %v2752 = vpack.c.b16 %v2042, %v2041
  %v2753 = vpack.c.b16 %v2044, %v2043
  %v2754 = vpack.c.b16 %v2046, %v2045
  %v2755 = vpack.c.b16 %v2048, %v2047
  %v2756 = vpack.c.b16 %v2050, %v2049
  %v2757 = vpack.c.b16 %v2052, %v2051
  %v2758 = vpack.c.b16 %v2054, %v2053
  %v2759 = vpack.c.b16 %v2056, %v2055
  %v2760 = vpack.c.b16 %v2058, %v2057
  %v2761 = vpack.c.b16 %v2060, %v2059
  %v2762 = vpack.c.b16 %v2062, %v2061
  %v2763 = vpack.c.b16 %v2064, %v2063
  %v2764 = vpack.c.b16 %v2066, %v2065
  %v2765 = vpack.c.b16 %v2068, %v2067
  %v2766 = vpack.c.b16 %v2070, %v2069
  %v2767 = vpack.c.b16 %v2072, %v2071
  %v2768 = vpack.c.b16 %v2074, %v2073
  %v2769 = vpack.c.b16 %v2076, %v2075
  %v2770 = vpack.c.b16 %v2078, %v2077
  %v2771 = vpack.c.b16 %v2080, %v2079
  %v2772 = vpack.c.b16 %v2082, %v2081
  %v2773 = vpack.c.b16 %v2084, %v2083
  %v2774 = vpack.c.b16 %v2086, %v2085
  %v2775 = vpack.c.b16 %v2088, %v2087
  %v2776 = vpack.c.b16 %v2090, %v2089
  %v2777 = vpack.c.b16 %v2092, %v2091
  %v2778 = vpack.c.b16 %v2094, %v2093
  %v2779 = vpack.c.b16 %v2096, %v2095
  %v2780 = vpack.c.b16 %v2098, %v2097
  %v2781 = vpack.c.b16 %v2100, %v2099
  %v2782 = vpack.c.b16 %v2102, %v2101
  %v2783 = vpack.c.b16 %v2104, %v2103
  %v2784 = vpack.c.b16 %v2106, %v2105
  %v2785 = vpack.c.b16 %v2108, %v2107
  %v2786 = vpack.c.b16 %v2110, %v2109
  %v2787 = vpack.c.b16 %v2112, %v2111
  %v2788 = vpack.c.b16 %v2114, %v2113
  %v2789 = vpack.c.b16 %v2116, %v2115
  %v2790 = vpack.c.b16 %v2118, %v2117
  %v2791 = vpack.c.b16 %v2120, %v2119
  %v2792 = vpack.c.b16 %v2122, %v2121
  %v2793 = vpack.c.b16 %v2124, %v2123
  %v2794 = vpack.c.b16 %v2126, %v2125
  %v2795 = vpack.c.b16 %v2128, %v2127
  %v2796 = vpack.c.b16 %v2130, %v2129
  %v2797 = vpack.c.b16 %v2132, %v2131
  %v2798 = vpack.c.b16 %v2134, %v2133
  %v2799 = vpack.c.b16 %v2136, %v2135
  %v2800 = vpack.c.b16 %v2138, %v2137
  %v2801 = vpack.c.b16 %v2140, %v2139
  %v2802 = vpack.c.b16 %v2142, %v2141
  %v2803 = vpack.c.b16 %v2144, %v2143
  %v2804 = vpack.c.b16 %v2146, %v2145
  %v2805 = vpack.c.b16 %v2148, %v2147
  %v2806 = vpack.c.b16 %v2150, %v2149
  %v2807 = vpack.c.b16 %v2152, %v2151
  %v2808 = vpack.c.b16 %v2154, %v2153
  %v2809 = vpack.c.b16 %v2156, %v2155
  %v2810 = vpack.c.b16 %v2158, %v2157
  %v2811 = vpack.c.b16 %v2160, %v2159
  %v2812 = vpack.c.b16 %v2162, %v2161
  %v2813 = vpack.c.b16 %v2164, %v2163
  %v2814 = vpack.c.b16 %v2166, %v2165
  %v2815 = vpack.c.b16 %v2168, %v2167
  %v2816 = vpack.c.b16 %v2170, %v2169
  %v2817 = vpack.c.b16 %v2172, %v2171
  %v2818 = vpack.c.b16 %v2174, %v2173
  %v2819 = vpack.c.b16 %v2176, %v2175
  %v2820 = vpack.c.b16 %v2178, %v2177
  %v2821 = vpack.c.b16 %v2180, %v2179
  %v2822 = vpack.c.b16 %v2182, %v2181
  %v2823 = vpack.c.b16 %v2184, %v2183
  %v2824 = vpack.c.b16 %v2186, %v2185
  %v2825 = vpack.c.b16 %v2188, %v2187
  %v2826 = vpack.c.b16 %v2190, %v2189
  %v2827 = vpack.c.b16 %v2192, %v2191
  %v2828 = vpack.c.b16 %v2194, %v2193
  %v2829 = vpack.c.b16 %v2196, %v2195
  %v2830 = vpack.c.b16 %v2198, %v2197
  %v2831 = vpack.c.b16 %v2200, %v2199
  %v2832 = vpack.c.b16 %v2202, %v2201
  %v2833 = vpack.c.b16 %v2204, %v2203
  %v2834 = vpack.c.b16 %v2206, %v2205
  %v2835 = vpack.c.b16 %v2208, %v2207
  %v2836 = vpack.c.b16 %v2210, %v2209
  %v2837 = vpack.c.b16 %v2212, %v2211
  %v2838 = vpack.c.b16 %v2214, %v2213
  %v2839 = vpack.c.b16 %v2216, %v2215
  %v2840 = vpack.c.b16 %v2218, %v2217
  %v2841 = vpack.c.b16 %v2220, %v2219
  %v2842 = vpack.c.b16 %v2222, %v2221
  %v2843 = vpack.c.b16 %v2224, %v2223
  %v2844 = vpack.c.b16 %v2226, %v2225
  %v2845 = vpack.c.b16 %v2228, %v2227
  %v2846 = vpack.c.b16 %v2230, %v2229
  %v2847 = vpack.c.b16 %v2232, %v2231
  %v2848 = vpack.c.b16 %v2234, %v2233
  %v2849 = vpack.c.b16 %v2236, %v2235
  %v2850 = vpack.c.b16 %v2238, %v2237
  %v2851 = vpack.c.b16 %v2240, %v2239
  %v2852 = vpack.c.b16 %v2242, %v2241
  %v2853 = vpack.c.b16 %v2244, %v2243
  %v2854 = vpack.c.b16 %v2246, %v2245
  %v2855 = vpack.c.b16 %v2248, %v2247
  %v2856 = vpack.c.b16 %v2250, %v2249
  %v2857 = vpack.c.b16 %v2252, %v2251
  %v2858 = vpack.c.b16 %v2254, %v2253
  %v2859 = vpack.c.b16 %v2256, %v2255
  %v2860 = vpack.c.b16 %v2258, %v2257
  %v2861 = vpack.c.b16 %v2260, %v2259
  %v2862 = vpack.c.b16 %v2262, %v2261
  %v2863 = vpack.c.b16 %v2264, %v2263
  %v2864 = vpack.c.b16 %v2266, %v2265
  %v2865 = vpack.c.b16 %v2268, %v2267
  %v2866 = vpack.c.b16 %v2270, %v2269
  %v2867 = vpack.c.b16 %v2272, %v2271
  %v2868 = vpack.c.b16 %v2274, %v2273
  %v2869 = vpack.c.b16 %v2276, %v2275
  %v2870 = vpack.c.b16 %v2278, %v2277
  %v2871 = vpack.c.b16 %v2280, %v2279
  %v2872 = vpack.c.b16 %v2282, %v2281
  %v2873 = vpack.c.b16 %v2284, %v2283
  %v2874 = vpack.c.b16 %v2286, %v2285
  %v2875 = vpack.c.b16 %v2288, %v2287
  %v2876 = vpack.c.b16 %v2290, %v2289
  %v2877 = vpack.c.b16 %v2292, %v2291
  %v2878 = vpack.c.b16 %v2294, %v2293
  %v2879 = vpack.c.b16 %v2296, %v2295
  %v2880 = vpack.c.b16 %v2298, %v2297
  %v2881 = vpack.c.b16 %v2300, %v2299
  %v2882 = vpack.c.b16 %v2302, %v2301
  %v2883 = vpack.c.b16 %v2304, %v2303
  %v2884 = vpack.c.b16 %v2306, %v2305
  %v2885 = vpack.c.b16 %v2308, %v2307
  %v2886 = vpack.c.b16 %v2310, %v2309
  %v2887 = vpack.c.b16 %v2312, %v2311
  %v2888 = vpack.c.b16 %v2314, %v2313
  %v2889 = vpack.c.b16 %v2316, %v2315
  %v2890 = vpack.c.b16 %v2318, %v2317
  %v2891 = vpack.c.b16 %v2320, %v2319
  %v2892 = vpack.c.b16 %v2322, %v2321
  %v2893 = vpack.c.b16 %v2324, %v2323
  %v2894 = vpack.c.b16 %v2326, %v2325
  %v2895 = vpack.c.b16 %v2328, %v2327
  %v2896 = vpack.c.b16 %v2330, %v2329
  %v2897 = vpack.c.b16 %v2332, %v2331
  %v2898 = vpack.c.b16 %v2334, %v2333
  %v2899 = vpack.c.b16 %v2336, %v2335
  %v2900 = vpack.c.b16 %v2338, %v2337
  %v2901 = vpack.c.b16 %v2340, %v2339
  %v2902 = vpack.c.b16 %v2342, %v2341
  %v2903 = vpack.c.b16 %v2344, %v2343
  %v2904 = vpack.c.b16 %v2346, %v2345
  %v2905 = vpack.c.b16 %v2348, %v2347
  %v2906 = vpack.c.b16 %v2350, %v2349
  %v2907 = vpack.c.b16 %v2352, %v2351
  %v2908 = vpack.c.b16 %v2354, %v2353
  %v2909 = vpack.c.b16 %v2356, %v2355
  %v2910 = vpack.c.b16 %v2358, %v2357
  %v2911 = vpack.c.b16 %v2360, %v2359
  %v2912 = vpack.c.b16 %v2362, %v2361
  %v2913 = vpack.c.b16 %v2364, %v2363
  %v2914 = vpack.c.b16 %v2366, %v2365
  %v2915 = vpack.c.b16 %v2368, %v2367
  %v2916 = vpack.c.b16 %v2370, %v2369
  %v2917 = vpack.c.b16 %v2372, %v2371
  %v2918 = vpack.c.b16 %v2374, %v2373
  %v2919 = vpack.c.b16 %v2376, %v2375
  %v2920 = vpack.c.b16 %v2378, %v2377
  %v2921 = vpack.c.b16 %v2380, %v2379
  %v2922 = vpack.c.b16 %v2382, %v2381
  %v2923 = vpack.c.b16 %v2384, %v2383
  %v2924 = vpack.c.b16 %v2386, %v2385
  %v2925 = vpack.c.b16 %v2388, %v2387
  %v2926 = vpack.c.b16 %v2390, %v2389
  %v2927 = vpack.c.b16 %v2392, %v2391
  %v2928 = vpack.c.b16 %v2394, %v2393
  %v2929 = vpack.c.b16 %v2396, %v2395
  %v2930 = vpack.c.b16 %v2398, %v2397
  %v2931 = vpack.c.b16 %v2400, %v2399
  %v2932 = vpack.c.b16 %v2402, %v2401
  %v2933 = vpack.c.b16 %v2404, %v2403
  %v2934 = vpack.c.b16 %v2406, %v2405
  %v2935 = vpack.c.b16 %v2408, %v2407
  %v2936 = vpack.c.b16 %v2410, %v2409
  %v2937 = vpack.c.b16 %v2412, %v2411
  %v2938 = vpack.c.b16 %v2414, %v2413
  %v2939 = vpack.c.b16 %v2416, %v2415
  %v2940 = vpack.c.b16 %v2418, %v2417
  %v2941 = vpack.c.b16 %v2420, %v2419
  %v2942 = vpack.c.b16 %v2422, %v2421
  %v2943 = vpack.c.b16 %v2424, %v2423
  %v2944 = vpack.c.b16 %v2426, %v2425
  %v2945 = vpack.c.b16 %v2428, %v2427
  %v2946 = vpack.c.b16 %v2430, %v2429
  %v2947 = vpack.c.b16 %v2432, %v2431
  %v2948 = vpack.c.b16 %v2434, %v2433
  %v2949 = vpack.c.b16 %v2436, %v2435
  %v2950 = vpack.c.b16 %v2438, %v2437
  %v2951 = vpack.c.b16 %v2440, %v2439
  %v2952 = vpack.c.b16 %v2442, %v2441
  %v2953 = vpack.c.b16 %v2444, %v2443
  %v2954 = vpack.c.b16 %v2446, %v2445
  %v2955 = vpack.c.b16 %v2448, %v2447
  %v2956 = vpack.c.b16 %v2450, %v2449
  %v2957 = vpack.c.b16 %v2452, %v2451
  %v2958 = vpack.c.b16 %v2454, %v2453
  %v2959 = vpack.c.b16 %v2456, %v2455
  %v2960 = vpack.c.b16 %v2458, %v2457
  %v2961 = vpack.c.b16 %v2460, %v2459
  %v2962 = vpack.c.b16 %v2462, %v2461
  %v2963 = vpack.c.b16 %v2464, %v2463
  %v2964 = vpack.c.b16 %v2466, %v2465
  %v2965 = vpack.c.b16 %v2468, %v2467
  %v2966 = vpack.c.b16 %v2470, %v2469
  %v2967 = vpack.c.b16 %v2472, %v2471
  %v2968 = vpack.c.b16 %v2474, %v2473
  %v2969 = vpack.c.b16 %v2476, %v2475
  %v2970 = vpack.c.b16 %v2478, %v2477
  %v2971 = vpack.c.b16 %v2480, %v2479
  %v2972 = vpack.c.b16 %v2482, %v2481
  %v2973 = vpack.c.b16 %v2484, %v2483
  %v2974 = vpack.c.b16 %v2486, %v2485
  %v2975 = vpack.c.b16 %v2488, %v2487
  %v2976 = vpack.c.b16 %v2490, %v2489
  %v2977 = vpack.c.b16 %v2492, %v2491
  %v2978 = vpack.c.b16 %v2494, %v2493
  %v2979 = vpack.c.b16 %v2496, %v2495
  %v2980 = vpack.c.b16 %v2498, %v2497
  %v2981 = vpack.c.b16 %v2500, %v2499
  %v2982 = vpack.c.b16 %v2502, %v2501
  %v2983 = vpack.c.b16 %v2504, %v2503
  %v2984 = vpack.c.b16 %v2506, %v2505
  %v2985 = vpack.c.b16 %v2508, %v2507
  %v2986 = vpack.c.b16 %v2510, %v2509
  %v2987 = vpack.c.b16 %v2512, %v2511
  %v2988 = vpack.c.b16 %v2514, %v2513
  %v2989 = vpack.c.b16 %v2516, %v2515
  %v2990 = vpack.c.b16 %v2518, %v2517
  %v2991 = vpack.c.b16 %v2520, %v2519
  %v2992 = vpack.c.b16 %v2522, %v2521
  %v2993 = vpack.c.b16 %v2524, %v2523
  %v2994 = vpack.c.b16 %v2526, %v2525
  %v2995 = vpack.c.b16 %v2528, %v2527
  %v2996 = vpack.c.b16 %v2530, %v2529
  %v2997 = vpack.c.b16 %v2532, %v2531
  %v2998 = vpack.c.b16 %v2534, %v2533
  %v2999 = vpack.c.b16 %v2536, %v2535
  %v3000 = vpack.c.b16 %v2538, %v2537
  %v3001 = vpack.c.b16 %v2540, %v2539
  %v3002 = vpack.c.b16 %v2542, %v2541
  %v3003 = vpack.c.b16 %v2544, %v2543
  %v3004 = vpack.c.b16 %v2546, %v2545
  %v3005 = vpack.c.b16 %v2548, %v2547
  %v3006 = vpack.c.b16 %v2550, %v2549
  %v3007 = vpack.c.b16 %v2552, %v2551
  %v3008 = vpack.c.b16 %v2554, %v2553
  %v3009 = vpack.c.b16 %v2556, %v2555
  %v3010 = vpack.c.b16 %v2558, %v2557
  %v3011 = vpack.c.b16 %v2560, %v2559
  %v3012 = vpack.c.b16 %v2562, %v2561
  %v3013 = vpack.c.b16 %v2564, %v2563
  %v3014 = vpack.c.b16 %v2566, %v2565
  %v3015 = vpack.c.b16 %v2568, %v2567
  %v3016 = vpack.c.b16 %v2570, %v2569
  %v3017 = vpack.c.b16 %v2572, %v2571
  %v3018 = vpack.c.b16 %v2574, %v2573
  %v3019 = vpack.c.b16 %v2576, %v2575
  %v3020 = vpack.c.b16 %v2578, %v2577
  %v3021 = vpack.c.b16 %v2580, %v2579
  %v3022 = vpack.c.b16 %v2582, %v2581
  %v3023 = vpack.c.b16 %v2584, %v2583
  %v3024 = vpack.c.b16 %v2586, %v2585
  %v3025 = vpack.c.b16 %v2588, %v2587
  %v3026 = vpack.c.b16 %v2590, %v2589
  %v3027 = vpack.c.b16 %v2592, %v2591
  %v3028 = vpack.c.b16 %v2594, %v2593
  %v3029 = vpack.c.b16 %v2596, %v2595
  %v3030 = vpack.c.b16 %v2598, %v2597
  %v3031 = vpack.c.b16 %v2600, %v2599
  %v3032 = vpack.c.b16 %v2602, %v2601
  %v3033 = vpack.c.b16 %v2604, %v2603
  %v3034 = vpack.c.b16 %v2606, %v2605
  %v3035 = vpack.c.b16 %v2608, %v2607
  %v3036 = vpack.c.b16 %v2610, %v2609
  %v3037 = vpack.c.b16 %v2612, %v2611
  %v3038 = vpack.c.b16 %v2614, %v2613
  %v3039 = vpack.c.b16 %v2616, %v2615
  %v3040 = vpack.c.b16 %v2618, %v2617
  %v3041 = vpack.c.b16 %v2620, %v2619
  %v3042 = vpack.c.b16 %v2622, %v2621
  %v3043 = vpack.c.b16 %v2624, %v2623
  %v3044 = vpack.c.b16 %v2626, %v2625
  %v3045 = vpack.c.b16 %v2628, %v2627
  %v3046 = vpack.c.b16 %v2630, %v2629
  %v3047 = vpack.c.b16 %v2632, %v2631
  %v3048 = vpack.c.b16 %v2634, %v2633
  %v3049 = vpack.c.b16 %v2636, %v2635
  %v3050 = vpack.c.b16 %v2638, %v2637
  %v3051 = vpack.c.b16 %v2640, %v2639
  %v3052 = vpack.c.b16 %v2642, %v2641
  %v3053 = vpack.c.b16 %v2644, %v2643
  %v3054 = vpack.c.b16 %v2646, %v2645
  %v3055 = vpack.c.b16 %v2648, %v2647
  %v3056 = vpack.c.b16 %v2650, %v2649
  %v3057 = vpack.c.b16 %v2652, %v2651
  %v3058 = vpack.c.b16 %v2654, %v2653
  %v3059 = vpack.c.b16 %v2656, %v2655
  %v3060 = vpack.c.b16 %v2658, %v2657
  %v3061 = vpack.c.b16 %v2660, %v2659
  %v3062 = vpack.c.b16 %v2662, %v2661
  %v3063 = vpack.c.b16 %v2664, %v2663
  %v3064 = vpack.c.b16 %v2666, %v2665
  %v3065 = vpack.c.b16 %v2668, %v2667
  %v3066 = vpack.c.b16 %v2670, %v2669
  %v3067 = vpack.c.b16 %v2672, %v2671
  %v3068 = vpack.c.b16 %v2674, %v2673
  %v3069 = vpack.c.b16 %v2676, %v2675
  %v3070 = vpack.c.b16 %v2678, %v2677
  %3463 = vmatprep.subr.bf16.mxu0 0
  %3464 = vmatpush1.bf16.msra.mxu0 %v2686
  %3465 = vmatprep.subr.bf16.mxu0 0
  %3466 = vmatpush1.bf16.msra.mxu0 %v2685
  %3467 = vmatprep.subr.bf16.mxu0 0
  %3468 = vmatpush1.bf16.msra.mxu0 %v2684
  %3469 = vmatprep.subr.bf16.mxu0 0
  %3470 = vmatpush1.bf16.msra.mxu0 %v2683
  %3471 = vmatprep.subr.bf16.mxu0 0
  %3472 = vmatpush1.bf16.msra.mxu0 %v2682
  %3473 = vmatprep.subr.bf16.mxu0 0
  %3474 = vmatpush1.bf16.msra.mxu0 %v2681
  %3475 = vmatprep.subr.bf16.mxu0 0
  %3476 = vmatpush1.bf16.msra.mxu0 %v2680
  %3477 = vmatprep.subr.bf16.mxu0 0
  %3478 = vmatpush1.bf16.msra.mxu0 %v2679
  %3479 = vmatprep.subr.bf16.mxu0 0
  %3480 = vmatpush2.bf16.msra.mxu0 %v2694
  %3481 = vmatprep.subr.bf16.mxu0 0
  %3482 = vmatpush2.bf16.msra.mxu0 %v2693
  %3483 = vmatprep.subr.bf16.mxu0 0
  %3484 = vmatpush2.bf16.msra.mxu0 %v2692
  %3485 = vmatprep.subr.bf16.mxu0 0
  %3486 = vmatpush2.bf16.msra.mxu0 %v2691
  %3487 = vmatprep.subr.bf16.mxu0 0
  %3488 = vmatpush2.bf16.msra.mxu0 %v2690
  %3489 = vmatprep.subr.bf16.mxu0 0
  %3490 = vmatpush2.bf16.msra.mxu0 %v2689
  %3491 = vmatprep.subr.bf16.mxu0 0
  %3492 = vmatpush2.bf16.msra.mxu0 %v2688
  %3493 = vmatprep.subr.bf16.mxu0 0
  %3494 = vmatpush2.bf16.msra.mxu0 %v2687
  %3495 = vmatprep.mubr.bf16.mxu0 %v1014
  %3496 = vmatmul.mubr.bf16.gmra.mxu0 %v1013
  %v3497 = vpop.f32.mrf.mxu0
  %v3498 = vadd.f32 %v863, %v3497
  %v3499 = vpop.f32.mrf.mxu0
  %v3500 = vpop.f32.mrf.mxu0
  %v3501 = vadd.f32 %v863, %v3500
  %v3502 = vpop.f32.mrf.mxu0
  %3503 = vdwg.mxu0
  %3504 = vmatprep.subr.bf16.mxu0 0
  %3505 = vmatpush1.bf16.msra.mxu0 %v2702
  %3506 = vmatprep.subr.bf16.mxu0 0
  %3507 = vmatpush1.bf16.msra.mxu0 %v2701
  %3508 = vmatprep.subr.bf16.mxu0 0
  %3509 = vmatpush1.bf16.msra.mxu0 %v2700
  %3510 = vmatprep.subr.bf16.mxu0 0
  %3511 = vmatpush1.bf16.msra.mxu0 %v2699
  %3512 = vmatprep.subr.bf16.mxu0 0
  %3513 = vmatpush1.bf16.msra.mxu0 %v2698
  %3514 = vmatprep.subr.bf16.mxu0 0
  %3515 = vmatpush1.bf16.msra.mxu0 %v2697
  %3516 = vmatprep.subr.bf16.mxu0 0
  %3517 = vmatpush1.bf16.msra.mxu0 %v2696
  %3518 = vmatprep.subr.bf16.mxu0 0
  %3519 = vmatpush1.bf16.msra.mxu0 %v2695
  %3520 = vmatprep.subr.bf16.mxu0 0
  %3521 = vmatpush2.bf16.msra.mxu0 %v2710
  %3522 = vmatprep.subr.bf16.mxu0 0
  %3523 = vmatpush2.bf16.msra.mxu0 %v2709
  %3524 = vmatprep.subr.bf16.mxu0 0
  %3525 = vmatpush2.bf16.msra.mxu0 %v2708
  %3526 = vmatprep.subr.bf16.mxu0 0
  %3527 = vmatpush2.bf16.msra.mxu0 %v2707
  %3528 = vmatprep.subr.bf16.mxu0 0
  %3529 = vmatpush2.bf16.msra.mxu0 %v2706
  %3530 = vmatprep.subr.bf16.mxu0 0
  %3531 = vmatpush2.bf16.msra.mxu0 %v2705
  %3532 = vmatprep.subr.bf16.mxu0 0
  %3533 = vmatpush2.bf16.msra.mxu0 %v2704
  %3534 = vmatprep.subr.bf16.mxu0 0
  %3535 = vmatpush2.bf16.msra.mxu0 %v2703
  %3536 = vmatprep.mubr.bf16.mxu0 %v1016
  %3537 = vmatmul.mubr.bf16.gmra.mxu0 %v1015
  %v3538 = vpop.f32.mrf.mxu0
  %v3539 = vadd.f32 %v3498, %v3538
  %v3540 = vpop.f32.mrf.mxu0
  %v3541 = vpop.f32.mrf.mxu0
  %v3542 = vadd.f32 %v3501, %v3541
  %v3543 = vpop.f32.mrf.mxu0
  %3544 = vdwg.mxu0
  %3545 = vmatprep.subr.bf16.mxu0 0
  %3546 = vmatpush1.bf16.msra.mxu0 %v2718
  %3547 = vmatprep.subr.bf16.mxu0 0
  %3548 = vmatpush1.bf16.msra.mxu0 %v2717
  %3549 = vmatprep.subr.bf16.mxu0 0
  %3550 = vmatpush1.bf16.msra.mxu0 %v2716
  %3551 = vmatprep.subr.bf16.mxu0 0
  %3552 = vmatpush1.bf16.msra.mxu0 %v2715
  %3553 = vmatprep.subr.bf16.mxu0 0
  %3554 = vmatpush1.bf16.msra.mxu0 %v2714
  %3555 = vmatprep.subr.bf16.mxu0 0
  %3556 = vmatpush1.bf16.msra.mxu0 %v2713
  %3557 = vmatprep.subr.bf16.mxu0 0
  %3558 = vmatpush1.bf16.msra.mxu0 %v2712
  %3559 = vmatprep.subr.bf16.mxu0 0
  %3560 = vmatpush1.bf16.msra.mxu0 %v2711
  %3561 = vmatprep.subr.bf16.mxu0 0
  %3562 = vmatpush2.bf16.msra.mxu0 %v2726
  %3563 = vmatprep.subr.bf16.mxu0 0
  %3564 = vmatpush2.bf16.msra.mxu0 %v2725
  %3565 = vmatprep.subr.bf16.mxu0 0
  %3566 = vmatpush2.bf16.msra.mxu0 %v2724
  %3567 = vmatprep.subr.bf16.mxu0 0
  %3568 = vmatpush2.bf16.msra.mxu0 %v2723
  %3569 = vmatprep.subr.bf16.mxu0 0
  %3570 = vmatpush2.bf16.msra.mxu0 %v2722
  %3571 = vmatprep.subr.bf16.mxu0 0
  %3572 = vmatpush2.bf16.msra.mxu0 %v2721
  %3573 = vmatprep.subr.bf16.mxu0 0
  %3574 = vmatpush2.bf16.msra.mxu0 %v2720
  %3575 = vmatprep.subr.bf16.mxu0 0
  %3576 = vmatpush2.bf16.msra.mxu0 %v2719
  %3577 = vmatprep.mubr.bf16.mxu0 %v1018
  %3578 = vmatmul.mubr.bf16.gmra.mxu0 %v1017
  %v3579 = vpop.f32.mrf.mxu0
  %v3580 = vadd.f32 %v3539, %v3579
  %v3581 = vpop.f32.mrf.mxu0
  %v3582 = vpop.f32.mrf.mxu0
  %v3583 = vadd.f32 %v3542, %v3582
  %v3584 = vpop.f32.mrf.mxu0
  %3585 = vdwg.mxu0
  %3586 = vmatprep.subr.bf16.mxu0 0
  %3587 = vmatpush1.bf16.msra.mxu0 %v2734
  %3588 = vmatprep.subr.bf16.mxu0 0
  %3589 = vmatpush1.bf16.msra.mxu0 %v2733
  %3590 = vmatprep.subr.bf16.mxu0 0
  %3591 = vmatpush1.bf16.msra.mxu0 %v2732
  %3592 = vmatprep.subr.bf16.mxu0 0
  %3593 = vmatpush1.bf16.msra.mxu0 %v2731
  %3594 = vmatprep.subr.bf16.mxu0 0
  %3595 = vmatpush1.bf16.msra.mxu0 %v2730
  %3596 = vmatprep.subr.bf16.mxu0 0
  %3597 = vmatpush1.bf16.msra.mxu0 %v2729
  %3598 = vmatprep.subr.bf16.mxu0 0
  %3599 = vmatpush1.bf16.msra.mxu0 %v2728
  %3600 = vmatprep.subr.bf16.mxu0 0
  %3601 = vmatpush1.bf16.msra.mxu0 %v2727
  %3602 = vmatprep.subr.bf16.mxu0 0
  %3603 = vmatpush2.bf16.msra.mxu0 %v2742
  %3604 = vmatprep.subr.bf16.mxu0 0
  %3605 = vmatpush2.bf16.msra.mxu0 %v2741
  %3606 = vmatprep.subr.bf16.mxu0 0
  %3607 = vmatpush2.bf16.msra.mxu0 %v2740
  %3608 = vmatprep.subr.bf16.mxu0 0
  %3609 = vmatpush2.bf16.msra.mxu0 %v2739
  %3610 = vmatprep.subr.bf16.mxu0 0
  %3611 = vmatpush2.bf16.msra.mxu0 %v2738
  %3612 = vmatprep.subr.bf16.mxu0 0
  %3613 = vmatpush2.bf16.msra.mxu0 %v2737
  %3614 = vmatprep.subr.bf16.mxu0 0
  %3615 = vmatpush2.bf16.msra.mxu0 %v2736
  %3616 = vmatprep.subr.bf16.mxu0 0
  %3617 = vmatpush2.bf16.msra.mxu0 %v2735
  %3618 = vmatprep.mubr.bf16.mxu0 %v1020
  %3619 = vmatmul.mubr.bf16.gmra.mxu0 %v1019
  %v3620 = vpop.f32.mrf.mxu0
  %v3621 = vadd.f32 %v3580, %v3620
  %v3622 = vpop.f32.mrf.mxu0
  %v3623 = vpop.f32.mrf.mxu0
  %v3624 = vadd.f32 %v3583, %v3623
  %v3625 = vpop.f32.mrf.mxu0
  %3626 = vdwg.mxu0
  %3627 = vmatprep.subr.bf16.mxu0 0
  %3628 = vmatpush1.bf16.msra.mxu0 %v2750
  %3629 = vmatprep.subr.bf16.mxu0 0
  %3630 = vmatpush1.bf16.msra.mxu0 %v2749
  %3631 = vmatprep.subr.bf16.mxu0 0
  %3632 = vmatpush1.bf16.msra.mxu0 %v2748
  %3633 = vmatprep.subr.bf16.mxu0 0
  %3634 = vmatpush1.bf16.msra.mxu0 %v2747
  %3635 = vmatprep.subr.bf16.mxu0 0
  %3636 = vmatpush1.bf16.msra.mxu0 %v2746
  %3637 = vmatprep.subr.bf16.mxu0 0
  %3638 = vmatpush1.bf16.msra.mxu0 %v2745
  %3639 = vmatprep.subr.bf16.mxu0 0
  %3640 = vmatpush1.bf16.msra.mxu0 %v2744
  %3641 = vmatprep.subr.bf16.mxu0 0
  %3642 = vmatpush1.bf16.msra.mxu0 %v2743
  %3643 = vmatprep.subr.bf16.mxu0 0
  %3644 = vmatpush2.bf16.msra.mxu0 %v2758
  %3645 = vmatprep.subr.bf16.mxu0 0
  %3646 = vmatpush2.bf16.msra.mxu0 %v2757
  %3647 = vmatprep.subr.bf16.mxu0 0
  %3648 = vmatpush2.bf16.msra.mxu0 %v2756
  %3649 = vmatprep.subr.bf16.mxu0 0
  %3650 = vmatpush2.bf16.msra.mxu0 %v2755
  %3651 = vmatprep.subr.bf16.mxu0 0
  %3652 = vmatpush2.bf16.msra.mxu0 %v2754
  %3653 = vmatprep.subr.bf16.mxu0 0
  %3654 = vmatpush2.bf16.msra.mxu0 %v2753
  %3655 = vmatprep.subr.bf16.mxu0 0
  %3656 = vmatpush2.bf16.msra.mxu0 %v2752
  %3657 = vmatprep.subr.bf16.mxu0 0
  %3658 = vmatpush2.bf16.msra.mxu0 %v2751
  %3659 = vmatprep.mubr.bf16.mxu0 %v1022
  %3660 = vmatmul.mubr.bf16.gmra.mxu0 %v1021
  %v3661 = vpop.f32.mrf.mxu0
  %v3662 = vadd.f32 %v3621, %v3661
  %v3663 = vpop.f32.mrf.mxu0
  %v3664 = vpop.f32.mrf.mxu0
  %v3665 = vadd.f32 %v3624, %v3664
  %v3666 = vpop.f32.mrf.mxu0
  %3667 = vdwg.mxu0
  %3668 = vmatprep.subr.bf16.mxu0 0
  %3669 = vmatpush1.bf16.msra.mxu0 %v2766
  %3670 = vmatprep.subr.bf16.mxu0 0
  %3671 = vmatpush1.bf16.msra.mxu0 %v2765
  %3672 = vmatprep.subr.bf16.mxu0 0
  %3673 = vmatpush1.bf16.msra.mxu0 %v2764
  %3674 = vmatprep.subr.bf16.mxu0 0
  %3675 = vmatpush1.bf16.msra.mxu0 %v2763
  %3676 = vmatprep.subr.bf16.mxu0 0
  %3677 = vmatpush1.bf16.msra.mxu0 %v2762
  %3678 = vmatprep.subr.bf16.mxu0 0
  %3679 = vmatpush1.bf16.msra.mxu0 %v2761
  %3680 = vmatprep.subr.bf16.mxu0 0
  %3681 = vmatpush1.bf16.msra.mxu0 %v2760
  %3682 = vmatprep.subr.bf16.mxu0 0
  %3683 = vmatpush1.bf16.msra.mxu0 %v2759
  %3684 = vmatprep.subr.bf16.mxu0 0
  %3685 = vmatpush2.bf16.msra.mxu0 %v2774
  %3686 = vmatprep.subr.bf16.mxu0 0
  %3687 = vmatpush2.bf16.msra.mxu0 %v2773
  %3688 = vmatprep.subr.bf16.mxu0 0
  %3689 = vmatpush2.bf16.msra.mxu0 %v2772
  %3690 = vmatprep.subr.bf16.mxu0 0
  %3691 = vmatpush2.bf16.msra.mxu0 %v2771
  %3692 = vmatprep.subr.bf16.mxu0 0
  %3693 = vmatpush2.bf16.msra.mxu0 %v2770
  %3694 = vmatprep.subr.bf16.mxu0 0
  %3695 = vmatpush2.bf16.msra.mxu0 %v2769
  %3696 = vmatprep.subr.bf16.mxu0 0
  %3697 = vmatpush2.bf16.msra.mxu0 %v2768
  %3698 = vmatprep.subr.bf16.mxu0 0
  %3699 = vmatpush2.bf16.msra.mxu0 %v2767
  %3700 = vmatprep.mubr.bf16.mxu0 %v1024
  %3701 = vmatmul.mubr.bf16.gmra.mxu0 %v1023
  %v3702 = vpop.f32.mrf.mxu0
  %v3703 = vadd.f32 %v3662, %v3702
  %v3704 = vpop.f32.mrf.mxu0
  %v3705 = vpop.f32.mrf.mxu0
  %v3706 = vadd.f32 %v3665, %v3705
  %v3707 = vpop.f32.mrf.mxu0
  %3708 = vdwg.mxu0
  %3709 = vmatprep.subr.bf16.mxu0 0
  %3710 = vmatpush1.bf16.msra.mxu0 %v2782
  %3711 = vmatprep.subr.bf16.mxu0 0
  %3712 = vmatpush1.bf16.msra.mxu0 %v2781
  %3713 = vmatprep.subr.bf16.mxu0 0
  %3714 = vmatpush1.bf16.msra.mxu0 %v2780
  %3715 = vmatprep.subr.bf16.mxu0 0
  %3716 = vmatpush1.bf16.msra.mxu0 %v2779
  %3717 = vmatprep.subr.bf16.mxu0 0
  %3718 = vmatpush1.bf16.msra.mxu0 %v2778
  %3719 = vmatprep.subr.bf16.mxu0 0
  %3720 = vmatpush1.bf16.msra.mxu0 %v2777
  %3721 = vmatprep.subr.bf16.mxu0 0
  %3722 = vmatpush1.bf16.msra.mxu0 %v2776
  %3723 = vmatprep.subr.bf16.mxu0 0
  %3724 = vmatpush1.bf16.msra.mxu0 %v2775
  %3725 = vmatprep.subr.bf16.mxu0 0
  %3726 = vmatpush2.bf16.msra.mxu0 %v2790
  %3727 = vmatprep.subr.bf16.mxu0 0
  %3728 = vmatpush2.bf16.msra.mxu0 %v2789
  %3729 = vmatprep.subr.bf16.mxu0 0
  %3730 = vmatpush2.bf16.msra.mxu0 %v2788
  %3731 = vmatprep.subr.bf16.mxu0 0
  %3732 = vmatpush2.bf16.msra.mxu0 %v2787
  %3733 = vmatprep.subr.bf16.mxu0 0
  %3734 = vmatpush2.bf16.msra.mxu0 %v2786
  %3735 = vmatprep.subr.bf16.mxu0 0
  %3736 = vmatpush2.bf16.msra.mxu0 %v2785
  %3737 = vmatprep.subr.bf16.mxu0 0
  %3738 = vmatpush2.bf16.msra.mxu0 %v2784
  %3739 = vmatprep.subr.bf16.mxu0 0
  %3740 = vmatpush2.bf16.msra.mxu0 %v2783
  %3741 = vmatprep.mubr.bf16.mxu0 %v1026
  %3742 = vmatmul.mubr.bf16.gmra.mxu0 %v1025
  %v3743 = vpop.f32.mrf.mxu0
  %v3744 = vadd.f32 %v3703, %v3743
  %v3745 = vpop.f32.mrf.mxu0
  %v3746 = vpop.f32.mrf.mxu0
  %v3747 = vadd.f32 %v3706, %v3746
  %v3748 = vpop.f32.mrf.mxu0
  %3749 = vdwg.mxu0
  %3750 = vmatprep.subr.bf16.mxu0 0
  %3751 = vmatpush1.bf16.msra.mxu0 %v2798
  %3752 = vmatprep.subr.bf16.mxu0 0
  %3753 = vmatpush1.bf16.msra.mxu0 %v2797
  %3754 = vmatprep.subr.bf16.mxu0 0
  %3755 = vmatpush1.bf16.msra.mxu0 %v2796
  %3756 = vmatprep.subr.bf16.mxu0 0
  %3757 = vmatpush1.bf16.msra.mxu0 %v2795
  %3758 = vmatprep.subr.bf16.mxu0 0
  %3759 = vmatpush1.bf16.msra.mxu0 %v2794
  %3760 = vmatprep.subr.bf16.mxu0 0
  %3761 = vmatpush1.bf16.msra.mxu0 %v2793
  %3762 = vmatprep.subr.bf16.mxu0 0
  %3763 = vmatpush1.bf16.msra.mxu0 %v2792
  %3764 = vmatprep.subr.bf16.mxu0 0
  %3765 = vmatpush1.bf16.msra.mxu0 %v2791
  %3766 = vmatprep.subr.bf16.mxu0 0
  %3767 = vmatpush2.bf16.msra.mxu0 %v2806
  %3768 = vmatprep.subr.bf16.mxu0 0
  %3769 = vmatpush2.bf16.msra.mxu0 %v2805
  %3770 = vmatprep.subr.bf16.mxu0 0
  %3771 = vmatpush2.bf16.msra.mxu0 %v2804
  %3772 = vmatprep.subr.bf16.mxu0 0
  %3773 = vmatpush2.bf16.msra.mxu0 %v2803
  %3774 = vmatprep.subr.bf16.mxu0 0
  %3775 = vmatpush2.bf16.msra.mxu0 %v2802
  %3776 = vmatprep.subr.bf16.mxu0 0
  %3777 = vmatpush2.bf16.msra.mxu0 %v2801
  %3778 = vmatprep.subr.bf16.mxu0 0
  %3779 = vmatpush2.bf16.msra.mxu0 %v2800
  %3780 = vmatprep.subr.bf16.mxu0 0
  %3781 = vmatpush2.bf16.msra.mxu0 %v2799
  %3782 = vmatprep.mubr.bf16.mxu0 %v1028
  %3783 = vmatmul.mubr.bf16.gmra.mxu0 %v1027
  %v3784 = vpop.f32.mrf.mxu0
  %v3785 = vadd.f32 %v3744, %v3784
  %v3786 = vpop.f32.mrf.mxu0
  %v3787 = vpop.f32.mrf.mxu0
  %v3788 = vadd.f32 %v3747, %v3787
  %v3789 = vpop.f32.mrf.mxu0
  %3790 = vdwg.mxu0
  %3791 = vmatprep.subr.bf16.mxu0 0
  %3792 = vmatpush1.bf16.msra.mxu0 %v2814
  %3793 = vmatprep.subr.bf16.mxu0 0
  %3794 = vmatpush1.bf16.msra.mxu0 %v2813
  %3795 = vmatprep.subr.bf16.mxu0 0
  %3796 = vmatpush1.bf16.msra.mxu0 %v2812
  %3797 = vmatprep.subr.bf16.mxu0 0
  %3798 = vmatpush1.bf16.msra.mxu0 %v2811
  %3799 = vmatprep.subr.bf16.mxu0 0
  %3800 = vmatpush1.bf16.msra.mxu0 %v2810
  %3801 = vmatprep.subr.bf16.mxu0 0
  %3802 = vmatpush1.bf16.msra.mxu0 %v2809
  %3803 = vmatprep.subr.bf16.mxu0 0
  %3804 = vmatpush1.bf16.msra.mxu0 %v2808
  %3805 = vmatprep.subr.bf16.mxu0 0
  %3806 = vmatpush1.bf16.msra.mxu0 %v2807
  %3807 = vmatprep.subr.bf16.mxu0 0
  %3808 = vmatpush2.bf16.msra.mxu0 %v2822
  %3809 = vmatprep.subr.bf16.mxu0 0
  %3810 = vmatpush2.bf16.msra.mxu0 %v2821
  %3811 = vmatprep.subr.bf16.mxu0 0
  %3812 = vmatpush2.bf16.msra.mxu0 %v2820
  %3813 = vmatprep.subr.bf16.mxu0 0
  %3814 = vmatpush2.bf16.msra.mxu0 %v2819
  %3815 = vmatprep.subr.bf16.mxu0 0
  %3816 = vmatpush2.bf16.msra.mxu0 %v2818
  %3817 = vmatprep.subr.bf16.mxu0 0
  %3818 = vmatpush2.bf16.msra.mxu0 %v2817
  %3819 = vmatprep.subr.bf16.mxu0 0
  %3820 = vmatpush2.bf16.msra.mxu0 %v2816
  %3821 = vmatprep.subr.bf16.mxu0 0
  %3822 = vmatpush2.bf16.msra.mxu0 %v2815
  %3823 = vmatprep.mubr.bf16.mxu0 %v1030
  %3824 = vmatmul.mubr.bf16.gmra.mxu0 %v1029
  %v3825 = vpop.f32.mrf.mxu0
  %v3826 = vadd.f32 %v3785, %v3825
  %v3827 = vpop.f32.mrf.mxu0
  %v3828 = vpop.f32.mrf.mxu0
  %v3829 = vadd.f32 %v3788, %v3828
  %v3830 = vpop.f32.mrf.mxu0
  %3831 = vdwg.mxu0
  %3832 = vmatprep.subr.bf16.mxu0 0
  %3833 = vmatpush1.bf16.msra.mxu0 %v2830
  %3834 = vmatprep.subr.bf16.mxu0 0
  %3835 = vmatpush1.bf16.msra.mxu0 %v2829
  %3836 = vmatprep.subr.bf16.mxu0 0
  %3837 = vmatpush1.bf16.msra.mxu0 %v2828
  %3838 = vmatprep.subr.bf16.mxu0 0
  %3839 = vmatpush1.bf16.msra.mxu0 %v2827
  %3840 = vmatprep.subr.bf16.mxu0 0
  %3841 = vmatpush1.bf16.msra.mxu0 %v2826
  %3842 = vmatprep.subr.bf16.mxu0 0
  %3843 = vmatpush1.bf16.msra.mxu0 %v2825
  %3844 = vmatprep.subr.bf16.mxu0 0
  %3845 = vmatpush1.bf16.msra.mxu0 %v2824
  %3846 = vmatprep.subr.bf16.mxu0 0
  %3847 = vmatpush1.bf16.msra.mxu0 %v2823
  %3848 = vmatprep.subr.bf16.mxu0 0
  %3849 = vmatpush2.bf16.msra.mxu0 %v2838
  %3850 = vmatprep.subr.bf16.mxu0 0
  %3851 = vmatpush2.bf16.msra.mxu0 %v2837
  %3852 = vmatprep.subr.bf16.mxu0 0
  %3853 = vmatpush2.bf16.msra.mxu0 %v2836
  %3854 = vmatprep.subr.bf16.mxu0 0
  %3855 = vmatpush2.bf16.msra.mxu0 %v2835
  %3856 = vmatprep.subr.bf16.mxu0 0
  %3857 = vmatpush2.bf16.msra.mxu0 %v2834
  %3858 = vmatprep.subr.bf16.mxu0 0
  %3859 = vmatpush2.bf16.msra.mxu0 %v2833
  %3860 = vmatprep.subr.bf16.mxu0 0
  %3861 = vmatpush2.bf16.msra.mxu0 %v2832
  %3862 = vmatprep.subr.bf16.mxu0 0
  %3863 = vmatpush2.bf16.msra.mxu0 %v2831
  %3864 = vmatprep.mubr.bf16.mxu0 %v1032
  %3865 = vmatmul.mubr.bf16.gmra.mxu0 %v1031
  %v3866 = vpop.f32.mrf.mxu0
  %v3867 = vadd.f32 %v3826, %v3866
  %v3868 = vpop.f32.mrf.mxu0
  %v3869 = vpop.f32.mrf.mxu0
  %v3870 = vadd.f32 %v3829, %v3869
  %v3871 = vpop.f32.mrf.mxu0
  %3872 = vdwg.mxu0
  %3873 = vmatprep.subr.bf16.mxu0 0
  %3874 = vmatpush1.bf16.msra.mxu0 %v2846
  %3875 = vmatprep.subr.bf16.mxu0 0
  %3876 = vmatpush1.bf16.msra.mxu0 %v2845
  %3877 = vmatprep.subr.bf16.mxu0 0
  %3878 = vmatpush1.bf16.msra.mxu0 %v2844
  %3879 = vmatprep.subr.bf16.mxu0 0
  %3880 = vmatpush1.bf16.msra.mxu0 %v2843
  %3881 = vmatprep.subr.bf16.mxu0 0
  %3882 = vmatpush1.bf16.msra.mxu0 %v2842
  %3883 = vmatprep.subr.bf16.mxu0 0
  %3884 = vmatpush1.bf16.msra.mxu0 %v2841
  %3885 = vmatprep.subr.bf16.mxu0 0
  %3886 = vmatpush1.bf16.msra.mxu0 %v2840
  %3887 = vmatprep.subr.bf16.mxu0 0
  %3888 = vmatpush1.bf16.msra.mxu0 %v2839
  %3889 = vmatprep.subr.bf16.mxu0 0
  %3890 = vmatpush2.bf16.msra.mxu0 %v2854
  %3891 = vmatprep.subr.bf16.mxu0 0
  %3892 = vmatpush2.bf16.msra.mxu0 %v2853
  %3893 = vmatprep.subr.bf16.mxu0 0
  %3894 = vmatpush2.bf16.msra.mxu0 %v2852
  %3895 = vmatprep.subr.bf16.mxu0 0
  %3896 = vmatpush2.bf16.msra.mxu0 %v2851
  %3897 = vmatprep.subr.bf16.mxu0 0
  %3898 = vmatpush2.bf16.msra.mxu0 %v2850
  %3899 = vmatprep.subr.bf16.mxu0 0
  %3900 = vmatpush2.bf16.msra.mxu0 %v2849
  %3901 = vmatprep.subr.bf16.mxu0 0
  %3902 = vmatpush2.bf16.msra.mxu0 %v2848
  %3903 = vmatprep.subr.bf16.mxu0 0
  %3904 = vmatpush2.bf16.msra.mxu0 %v2847
  %3905 = vmatprep.mubr.bf16.mxu0 %v1034
  %3906 = vmatmul.mubr.bf16.gmra.mxu0 %v1033
  %v3907 = vpop.f32.mrf.mxu0
  %v3908 = vadd.f32 %v3867, %v3907
  %v3909 = vpop.f32.mrf.mxu0
  %v3910 = vpop.f32.mrf.mxu0
  %v3911 = vadd.f32 %v3870, %v3910
  %v3912 = vpop.f32.mrf.mxu0
  %3913 = vdwg.mxu0
  %3914 = vmatprep.subr.bf16.mxu0 0
  %3915 = vmatpush1.bf16.msra.mxu0 %v2862
  %3916 = vmatprep.subr.bf16.mxu0 0
  %3917 = vmatpush1.bf16.msra.mxu0 %v2861
  %3918 = vmatprep.subr.bf16.mxu0 0
  %3919 = vmatpush1.bf16.msra.mxu0 %v2860
  %3920 = vmatprep.subr.bf16.mxu0 0
  %3921 = vmatpush1.bf16.msra.mxu0 %v2859
  %3922 = vmatprep.subr.bf16.mxu0 0
  %3923 = vmatpush1.bf16.msra.mxu0 %v2858
  %3924 = vmatprep.subr.bf16.mxu0 0
  %3925 = vmatpush1.bf16.msra.mxu0 %v2857
  %3926 = vmatprep.subr.bf16.mxu0 0
  %3927 = vmatpush1.bf16.msra.mxu0 %v2856
  %3928 = vmatprep.subr.bf16.mxu0 0
  %3929 = vmatpush1.bf16.msra.mxu0 %v2855
  %3930 = vmatprep.subr.bf16.mxu0 0
  %3931 = vmatpush2.bf16.msra.mxu0 %v2870
  %3932 = vmatprep.subr.bf16.mxu0 0
  %3933 = vmatpush2.bf16.msra.mxu0 %v2869
  %3934 = vmatprep.subr.bf16.mxu0 0
  %3935 = vmatpush2.bf16.msra.mxu0 %v2868
  %3936 = vmatprep.subr.bf16.mxu0 0
  %3937 = vmatpush2.bf16.msra.mxu0 %v2867
  %3938 = vmatprep.subr.bf16.mxu0 0
  %3939 = vmatpush2.bf16.msra.mxu0 %v2866
  %3940 = vmatprep.subr.bf16.mxu0 0
  %3941 = vmatpush2.bf16.msra.mxu0 %v2865
  %3942 = vmatprep.subr.bf16.mxu0 0
  %3943 = vmatpush2.bf16.msra.mxu0 %v2864
  %3944 = vmatprep.subr.bf16.mxu0 0
  %3945 = vmatpush2.bf16.msra.mxu0 %v2863
  %3946 = vmatprep.mubr.bf16.mxu0 %v1036
  %3947 = vmatmul.mubr.bf16.gmra.mxu0 %v1035
  %v3948 = vpop.f32.mrf.mxu0
  %v3949 = vadd.f32 %v3908, %v3948
  %v3950 = vpop.f32.mrf.mxu0
  %v3951 = vpop.f32.mrf.mxu0
  %v3952 = vadd.f32 %v3911, %v3951
  %v3953 = vpop.f32.mrf.mxu0
  %3954 = vdwg.mxu0
  %3955 = vmatprep.subr.bf16.mxu0 0
  %3956 = vmatpush1.bf16.msra.mxu0 %v2878
  %3957 = vmatprep.subr.bf16.mxu0 0
  %3958 = vmatpush1.bf16.msra.mxu0 %v2877
  %3959 = vmatprep.subr.bf16.mxu0 0
  %3960 = vmatpush1.bf16.msra.mxu0 %v2876
  %3961 = vmatprep.subr.bf16.mxu0 0
  %3962 = vmatpush1.bf16.msra.mxu0 %v2875
  %3963 = vmatprep.subr.bf16.mxu0 0
  %3964 = vmatpush1.bf16.msra.mxu0 %v2874
  %3965 = vmatprep.subr.bf16.mxu0 0
  %3966 = vmatpush1.bf16.msra.mxu0 %v2873
  %3967 = vmatprep.subr.bf16.mxu0 0
  %3968 = vmatpush1.bf16.msra.mxu0 %v2872
  %3969 = vmatprep.subr.bf16.mxu0 0
  %3970 = vmatpush1.bf16.msra.mxu0 %v2871
  %3971 = vmatprep.subr.bf16.mxu0 0
  %3972 = vmatpush2.bf16.msra.mxu0 %v2886
  %3973 = vmatprep.subr.bf16.mxu0 0
  %3974 = vmatpush2.bf16.msra.mxu0 %v2885
  %3975 = vmatprep.subr.bf16.mxu0 0
  %3976 = vmatpush2.bf16.msra.mxu0 %v2884
  %3977 = vmatprep.subr.bf16.mxu0 0
  %3978 = vmatpush2.bf16.msra.mxu0 %v2883
  %3979 = vmatprep.subr.bf16.mxu0 0
  %3980 = vmatpush2.bf16.msra.mxu0 %v2882
  %3981 = vmatprep.subr.bf16.mxu0 0
  %3982 = vmatpush2.bf16.msra.mxu0 %v2881
  %3983 = vmatprep.subr.bf16.mxu0 0
  %3984 = vmatpush2.bf16.msra.mxu0 %v2880
  %3985 = vmatprep.subr.bf16.mxu0 0
  %3986 = vmatpush2.bf16.msra.mxu0 %v2879
  %3987 = vmatprep.mubr.bf16.mxu0 %v1038
  %3988 = vmatmul.mubr.bf16.gmra.mxu0 %v1037
  %v3989 = vpop.f32.mrf.mxu0
  %v3990 = vadd.f32 %v3949, %v3989
  %v3991 = vpop.f32.mrf.mxu0
  %v3992 = vpop.f32.mrf.mxu0
  %v3993 = vadd.f32 %v3952, %v3992
  %v3994 = vpop.f32.mrf.mxu0
  %3995 = vdwg.mxu0
  %3996 = vmatprep.subr.bf16.mxu0 0
  %3997 = vmatpush1.bf16.msra.mxu0 %v2894
  %3998 = vmatprep.subr.bf16.mxu0 0
  %3999 = vmatpush1.bf16.msra.mxu0 %v2893
  %4000 = vmatprep.subr.bf16.mxu0 0
  %4001 = vmatpush1.bf16.msra.mxu0 %v2892
  %4002 = vmatprep.subr.bf16.mxu0 0
  %4003 = vmatpush1.bf16.msra.mxu0 %v2891
  %4004 = vmatprep.subr.bf16.mxu0 0
  %4005 = vmatpush1.bf16.msra.mxu0 %v2890
  %4006 = vmatprep.subr.bf16.mxu0 0
  %4007 = vmatpush1.bf16.msra.mxu0 %v2889
  %4008 = vmatprep.subr.bf16.mxu0 0
  %4009 = vmatpush1.bf16.msra.mxu0 %v2888
  %4010 = vmatprep.subr.bf16.mxu0 0
  %4011 = vmatpush1.bf16.msra.mxu0 %v2887
  %4012 = vmatprep.subr.bf16.mxu0 0
  %4013 = vmatpush2.bf16.msra.mxu0 %v2902
  %4014 = vmatprep.subr.bf16.mxu0 0
  %4015 = vmatpush2.bf16.msra.mxu0 %v2901
  %4016 = vmatprep.subr.bf16.mxu0 0
  %4017 = vmatpush2.bf16.msra.mxu0 %v2900
  %4018 = vmatprep.subr.bf16.mxu0 0
  %4019 = vmatpush2.bf16.msra.mxu0 %v2899
  %4020 = vmatprep.subr.bf16.mxu0 0
  %4021 = vmatpush2.bf16.msra.mxu0 %v2898
  %4022 = vmatprep.subr.bf16.mxu0 0
  %4023 = vmatpush2.bf16.msra.mxu0 %v2897
  %4024 = vmatprep.subr.bf16.mxu0 0
  %4025 = vmatpush2.bf16.msra.mxu0 %v2896
  %4026 = vmatprep.subr.bf16.mxu0 0
  %4027 = vmatpush2.bf16.msra.mxu0 %v2895
  %4028 = vmatprep.mubr.bf16.mxu0 %v1040
  %4029 = vmatmul.mubr.bf16.gmra.mxu0 %v1039
  %v4030 = vpop.f32.mrf.mxu0
  %v4031 = vadd.f32 %v3990, %v4030
  %v4032 = vpop.f32.mrf.mxu0
  %v4033 = vpop.f32.mrf.mxu0
  %v4034 = vadd.f32 %v3993, %v4033
  %v4035 = vpop.f32.mrf.mxu0
  %4036 = vdwg.mxu0
  %4037 = vmatprep.subr.bf16.mxu0 0
  %4038 = vmatpush1.bf16.msra.mxu0 %v2910
  %4039 = vmatprep.subr.bf16.mxu0 0
  %4040 = vmatpush1.bf16.msra.mxu0 %v2909
  %4041 = vmatprep.subr.bf16.mxu0 0
  %4042 = vmatpush1.bf16.msra.mxu0 %v2908
  %4043 = vmatprep.subr.bf16.mxu0 0
  %4044 = vmatpush1.bf16.msra.mxu0 %v2907
  %4045 = vmatprep.subr.bf16.mxu0 0
  %4046 = vmatpush1.bf16.msra.mxu0 %v2906
  %4047 = vmatprep.subr.bf16.mxu0 0
  %4048 = vmatpush1.bf16.msra.mxu0 %v2905
  %4049 = vmatprep.subr.bf16.mxu0 0
  %4050 = vmatpush1.bf16.msra.mxu0 %v2904
  %4051 = vmatprep.subr.bf16.mxu0 0
  %4052 = vmatpush1.bf16.msra.mxu0 %v2903
  %4053 = vmatprep.subr.bf16.mxu0 0
  %4054 = vmatpush2.bf16.msra.mxu0 %v2918
  %4055 = vmatprep.subr.bf16.mxu0 0
  %4056 = vmatpush2.bf16.msra.mxu0 %v2917
  %4057 = vmatprep.subr.bf16.mxu0 0
  %4058 = vmatpush2.bf16.msra.mxu0 %v2916
  %4059 = vmatprep.subr.bf16.mxu0 0
  %4060 = vmatpush2.bf16.msra.mxu0 %v2915
  %4061 = vmatprep.subr.bf16.mxu0 0
  %4062 = vmatpush2.bf16.msra.mxu0 %v2914
  %4063 = vmatprep.subr.bf16.mxu0 0
  %4064 = vmatpush2.bf16.msra.mxu0 %v2913
  %4065 = vmatprep.subr.bf16.mxu0 0
  %4066 = vmatpush2.bf16.msra.mxu0 %v2912
  %4067 = vmatprep.subr.bf16.mxu0 0
  %4068 = vmatpush2.bf16.msra.mxu0 %v2911
  %4069 = vmatprep.mubr.bf16.mxu0 %v1042
  %4070 = vmatmul.mubr.bf16.gmra.mxu0 %v1041
  %v4071 = vpop.f32.mrf.mxu0
  %v4072 = vadd.f32 %v4031, %v4071
  %v4073 = vpop.f32.mrf.mxu0
  %v4074 = vpop.f32.mrf.mxu0
  %v4075 = vadd.f32 %v4034, %v4074
  %v4076 = vpop.f32.mrf.mxu0
  %4077 = vdwg.mxu0
  %4078 = vmatprep.subr.bf16.mxu0 0
  %4079 = vmatpush1.bf16.msra.mxu0 %v2926
  %4080 = vmatprep.subr.bf16.mxu0 0
  %4081 = vmatpush1.bf16.msra.mxu0 %v2925
  %4082 = vmatprep.subr.bf16.mxu0 0
  %4083 = vmatpush1.bf16.msra.mxu0 %v2924
  %4084 = vmatprep.subr.bf16.mxu0 0
  %4085 = vmatpush1.bf16.msra.mxu0 %v2923
  %4086 = vmatprep.subr.bf16.mxu0 0
  %4087 = vmatpush1.bf16.msra.mxu0 %v2922
  %4088 = vmatprep.subr.bf16.mxu0 0
  %4089 = vmatpush1.bf16.msra.mxu0 %v2921
  %4090 = vmatprep.subr.bf16.mxu0 0
  %4091 = vmatpush1.bf16.msra.mxu0 %v2920
  %4092 = vmatprep.subr.bf16.mxu0 0
  %4093 = vmatpush1.bf16.msra.mxu0 %v2919
  %4094 = vmatprep.subr.bf16.mxu0 0
  %4095 = vmatpush2.bf16.msra.mxu0 %v2934
  %4096 = vmatprep.subr.bf16.mxu0 0
  %4097 = vmatpush2.bf16.msra.mxu0 %v2933
  %4098 = vmatprep.subr.bf16.mxu0 0
  %4099 = vmatpush2.bf16.msra.mxu0 %v2932
  %4100 = vmatprep.subr.bf16.mxu0 0
  %4101 = vmatpush2.bf16.msra.mxu0 %v2931
  %4102 = vmatprep.subr.bf16.mxu0 0
  %4103 = vmatpush2.bf16.msra.mxu0 %v2930
  %4104 = vmatprep.subr.bf16.mxu0 0
  %4105 = vmatpush2.bf16.msra.mxu0 %v2929
  %4106 = vmatprep.subr.bf16.mxu0 0
  %4107 = vmatpush2.bf16.msra.mxu0 %v2928
  %4108 = vmatprep.subr.bf16.mxu0 0
  %4109 = vmatpush2.bf16.msra.mxu0 %v2927
  %4110 = vmatprep.mubr.bf16.mxu0 %v1044
  %4111 = vmatmul.mubr.bf16.gmra.mxu0 %v1043
  %v4112 = vpop.f32.mrf.mxu0
  %v4113 = vadd.f32 %v4072, %v4112
  %v4114 = vpop.f32.mrf.mxu0
  %v4115 = vpop.f32.mrf.mxu0
  %v4116 = vadd.f32 %v4075, %v4115
  %v4117 = vpop.f32.mrf.mxu0
  %4118 = vdwg.mxu0
  %4119 = vmatprep.subr.bf16.mxu0 0
  %4120 = vmatpush1.bf16.msra.mxu0 %v2942
  %4121 = vmatprep.subr.bf16.mxu0 0
  %4122 = vmatpush1.bf16.msra.mxu0 %v2941
  %4123 = vmatprep.subr.bf16.mxu0 0
  %4124 = vmatpush1.bf16.msra.mxu0 %v2940
  %4125 = vmatprep.subr.bf16.mxu0 0
  %4126 = vmatpush1.bf16.msra.mxu0 %v2939
  %4127 = vmatprep.subr.bf16.mxu0 0
  %4128 = vmatpush1.bf16.msra.mxu0 %v2938
  %4129 = vmatprep.subr.bf16.mxu0 0
  %4130 = vmatpush1.bf16.msra.mxu0 %v2937
  %4131 = vmatprep.subr.bf16.mxu0 0
  %4132 = vmatpush1.bf16.msra.mxu0 %v2936
  %4133 = vmatprep.subr.bf16.mxu0 0
  %4134 = vmatpush1.bf16.msra.mxu0 %v2935
  %4135 = vmatprep.subr.bf16.mxu0 0
  %4136 = vmatpush2.bf16.msra.mxu0 %v2950
  %4137 = vmatprep.subr.bf16.mxu0 0
  %4138 = vmatpush2.bf16.msra.mxu0 %v2949
  %4139 = vmatprep.subr.bf16.mxu0 0
  %4140 = vmatpush2.bf16.msra.mxu0 %v2948
  %4141 = vmatprep.subr.bf16.mxu0 0
  %4142 = vmatpush2.bf16.msra.mxu0 %v2947
  %4143 = vmatprep.subr.bf16.mxu0 0
  %4144 = vmatpush2.bf16.msra.mxu0 %v2946
  %4145 = vmatprep.subr.bf16.mxu0 0
  %4146 = vmatpush2.bf16.msra.mxu0 %v2945
  %4147 = vmatprep.subr.bf16.mxu0 0
  %4148 = vmatpush2.bf16.msra.mxu0 %v2944
  %4149 = vmatprep.subr.bf16.mxu0 0
  %4150 = vmatpush2.bf16.msra.mxu0 %v2943
  %4151 = vmatprep.mubr.bf16.mxu0 %v1046
  %4152 = vmatmul.mubr.bf16.gmra.mxu0 %v1045
  %v4153 = vpop.f32.mrf.mxu0
  %v4154 = vadd.f32 %v4113, %v4153
  %v4155 = vpop.f32.mrf.mxu0
  %v4156 = vpop.f32.mrf.mxu0
  %v4157 = vadd.f32 %v4116, %v4156
  %v4158 = vpop.f32.mrf.mxu0
  %4159 = vdwg.mxu0
  %4160 = vmatprep.subr.bf16.mxu0 0
  %4161 = vmatpush1.bf16.msra.mxu0 %v2958
  %4162 = vmatprep.subr.bf16.mxu0 0
  %4163 = vmatpush1.bf16.msra.mxu0 %v2957
  %4164 = vmatprep.subr.bf16.mxu0 0
  %4165 = vmatpush1.bf16.msra.mxu0 %v2956
  %4166 = vmatprep.subr.bf16.mxu0 0
  %4167 = vmatpush1.bf16.msra.mxu0 %v2955
  %4168 = vmatprep.subr.bf16.mxu0 0
  %4169 = vmatpush1.bf16.msra.mxu0 %v2954
  %4170 = vmatprep.subr.bf16.mxu0 0
  %4171 = vmatpush1.bf16.msra.mxu0 %v2953
  %4172 = vmatprep.subr.bf16.mxu0 0
  %4173 = vmatpush1.bf16.msra.mxu0 %v2952
  %4174 = vmatprep.subr.bf16.mxu0 0
  %4175 = vmatpush1.bf16.msra.mxu0 %v2951
  %4176 = vmatprep.subr.bf16.mxu0 0
  %4177 = vmatpush2.bf16.msra.mxu0 %v2966
  %4178 = vmatprep.subr.bf16.mxu0 0
  %4179 = vmatpush2.bf16.msra.mxu0 %v2965
  %4180 = vmatprep.subr.bf16.mxu0 0
  %4181 = vmatpush2.bf16.msra.mxu0 %v2964
  %4182 = vmatprep.subr.bf16.mxu0 0
  %4183 = vmatpush2.bf16.msra.mxu0 %v2963
  %4184 = vmatprep.subr.bf16.mxu0 0
  %4185 = vmatpush2.bf16.msra.mxu0 %v2962
  %4186 = vmatprep.subr.bf16.mxu0 0
  %4187 = vmatpush2.bf16.msra.mxu0 %v2961
  %4188 = vmatprep.subr.bf16.mxu0 0
  %4189 = vmatpush2.bf16.msra.mxu0 %v2960
  %4190 = vmatprep.subr.bf16.mxu0 0
  %4191 = vmatpush2.bf16.msra.mxu0 %v2959
  %4192 = vmatprep.mubr.bf16.mxu0 %v1048
  %4193 = vmatmul.mubr.bf16.gmra.mxu0 %v1047
  %v4194 = vpop.f32.mrf.mxu0
  %v4195 = vadd.f32 %v4154, %v4194
  %v4196 = vpop.f32.mrf.mxu0
  %v4197 = vpop.f32.mrf.mxu0
  %v4198 = vadd.f32 %v4157, %v4197
  %v4199 = vpop.f32.mrf.mxu0
  %4200 = vdwg.mxu0
  %4201 = vmatprep.subr.bf16.mxu0 0
  %4202 = vmatpush1.bf16.msra.mxu0 %v2974
  %4203 = vmatprep.subr.bf16.mxu0 0
  %4204 = vmatpush1.bf16.msra.mxu0 %v2973
  %4205 = vmatprep.subr.bf16.mxu0 0
  %4206 = vmatpush1.bf16.msra.mxu0 %v2972
  %4207 = vmatprep.subr.bf16.mxu0 0
  %4208 = vmatpush1.bf16.msra.mxu0 %v2971
  %4209 = vmatprep.subr.bf16.mxu0 0
  %4210 = vmatpush1.bf16.msra.mxu0 %v2970
  %4211 = vmatprep.subr.bf16.mxu0 0
  %4212 = vmatpush1.bf16.msra.mxu0 %v2969
  %4213 = vmatprep.subr.bf16.mxu0 0
  %4214 = vmatpush1.bf16.msra.mxu0 %v2968
  %4215 = vmatprep.subr.bf16.mxu0 0
  %4216 = vmatpush1.bf16.msra.mxu0 %v2967
  %4217 = vmatprep.subr.bf16.mxu0 0
  %4218 = vmatpush2.bf16.msra.mxu0 %v2982
  %4219 = vmatprep.subr.bf16.mxu0 0
  %4220 = vmatpush2.bf16.msra.mxu0 %v2981
  %4221 = vmatprep.subr.bf16.mxu0 0
  %4222 = vmatpush2.bf16.msra.mxu0 %v2980
  %4223 = vmatprep.subr.bf16.mxu0 0
  %4224 = vmatpush2.bf16.msra.mxu0 %v2979
  %4225 = vmatprep.subr.bf16.mxu0 0
  %4226 = vmatpush2.bf16.msra.mxu0 %v2978
  %4227 = vmatprep.subr.bf16.mxu0 0
  %4228 = vmatpush2.bf16.msra.mxu0 %v2977
  %4229 = vmatprep.subr.bf16.mxu0 0
  %4230 = vmatpush2.bf16.msra.mxu0 %v2976
  %4231 = vmatprep.subr.bf16.mxu0 0
  %4232 = vmatpush2.bf16.msra.mxu0 %v2975
  %4233 = vmatprep.mubr.bf16.mxu0 %v1050
  %4234 = vmatmul.mubr.bf16.gmra.mxu0 %v1049
  %v4235 = vpop.f32.mrf.mxu0
  %v4236 = vadd.f32 %v4195, %v4235
  %v4237 = vpop.f32.mrf.mxu0
  %v4238 = vpop.f32.mrf.mxu0
  %v4239 = vadd.f32 %v4198, %v4238
  %v4240 = vpop.f32.mrf.mxu0
  %4241 = vdwg.mxu0
  %4242 = vmatprep.subr.bf16.mxu0 0
  %4243 = vmatpush1.bf16.msra.mxu0 %v2990
  %4244 = vmatprep.subr.bf16.mxu0 0
  %4245 = vmatpush1.bf16.msra.mxu0 %v2989
  %4246 = vmatprep.subr.bf16.mxu0 0
  %4247 = vmatpush1.bf16.msra.mxu0 %v2988
  %4248 = vmatprep.subr.bf16.mxu0 0
  %4249 = vmatpush1.bf16.msra.mxu0 %v2987
  %4250 = vmatprep.subr.bf16.mxu0 0
  %4251 = vmatpush1.bf16.msra.mxu0 %v2986
  %4252 = vmatprep.subr.bf16.mxu0 0
  %4253 = vmatpush1.bf16.msra.mxu0 %v2985
  %4254 = vmatprep.subr.bf16.mxu0 0
  %4255 = vmatpush1.bf16.msra.mxu0 %v2984
  %4256 = vmatprep.subr.bf16.mxu0 0
  %4257 = vmatpush1.bf16.msra.mxu0 %v2983
  %4258 = vmatprep.subr.bf16.mxu0 0
  %4259 = vmatpush2.bf16.msra.mxu0 %v2998
  %4260 = vmatprep.subr.bf16.mxu0 0
  %4261 = vmatpush2.bf16.msra.mxu0 %v2997
  %4262 = vmatprep.subr.bf16.mxu0 0
  %4263 = vmatpush2.bf16.msra.mxu0 %v2996
  %4264 = vmatprep.subr.bf16.mxu0 0
  %4265 = vmatpush2.bf16.msra.mxu0 %v2995
  %4266 = vmatprep.subr.bf16.mxu0 0
  %4267 = vmatpush2.bf16.msra.mxu0 %v2994
  %4268 = vmatprep.subr.bf16.mxu0 0
  %4269 = vmatpush2.bf16.msra.mxu0 %v2993
  %4270 = vmatprep.subr.bf16.mxu0 0
  %4271 = vmatpush2.bf16.msra.mxu0 %v2992
  %4272 = vmatprep.subr.bf16.mxu0 0
  %4273 = vmatpush2.bf16.msra.mxu0 %v2991
  %4274 = vmatprep.mubr.bf16.mxu0 %v1052
  %4275 = vmatmul.mubr.bf16.gmra.mxu0 %v1051
  %v4276 = vpop.f32.mrf.mxu0
  %v4277 = vadd.f32 %v4236, %v4276
  %v4278 = vpop.f32.mrf.mxu0
  %v4279 = vpop.f32.mrf.mxu0
  %v4280 = vadd.f32 %v4239, %v4279
  %v4281 = vpop.f32.mrf.mxu0
  %4282 = vdwg.mxu0
  %4283 = vmatprep.subr.bf16.mxu0 0
  %4284 = vmatpush1.bf16.msra.mxu0 %v3006
  %4285 = vmatprep.subr.bf16.mxu0 0
  %4286 = vmatpush1.bf16.msra.mxu0 %v3005
  %4287 = vmatprep.subr.bf16.mxu0 0
  %4288 = vmatpush1.bf16.msra.mxu0 %v3004
  %4289 = vmatprep.subr.bf16.mxu0 0
  %4290 = vmatpush1.bf16.msra.mxu0 %v3003
  %4291 = vmatprep.subr.bf16.mxu0 0
  %4292 = vmatpush1.bf16.msra.mxu0 %v3002
  %4293 = vmatprep.subr.bf16.mxu0 0
  %4294 = vmatpush1.bf16.msra.mxu0 %v3001
  %4295 = vmatprep.subr.bf16.mxu0 0
  %4296 = vmatpush1.bf16.msra.mxu0 %v3000
  %4297 = vmatprep.subr.bf16.mxu0 0
  %4298 = vmatpush1.bf16.msra.mxu0 %v2999
  %4299 = vmatprep.subr.bf16.mxu0 0
  %4300 = vmatpush2.bf16.msra.mxu0 %v3014
  %4301 = vmatprep.subr.bf16.mxu0 0
  %4302 = vmatpush2.bf16.msra.mxu0 %v3013
  %4303 = vmatprep.subr.bf16.mxu0 0
  %4304 = vmatpush2.bf16.msra.mxu0 %v3012
  %4305 = vmatprep.subr.bf16.mxu0 0
  %4306 = vmatpush2.bf16.msra.mxu0 %v3011
  %4307 = vmatprep.subr.bf16.mxu0 0
  %4308 = vmatpush2.bf16.msra.mxu0 %v3010
  %4309 = vmatprep.subr.bf16.mxu0 0
  %4310 = vmatpush2.bf16.msra.mxu0 %v3009
  %4311 = vmatprep.subr.bf16.mxu0 0
  %4312 = vmatpush2.bf16.msra.mxu0 %v3008
  %4313 = vmatprep.subr.bf16.mxu0 0
  %4314 = vmatpush2.bf16.msra.mxu0 %v3007
  %4315 = vmatprep.mubr.bf16.mxu0 %v1054
  %4316 = vmatmul.mubr.bf16.gmra.mxu0 %v1053
  %v4317 = vpop.f32.mrf.mxu0
  %v4318 = vadd.f32 %v4277, %v4317
  %v4319 = vpop.f32.mrf.mxu0
  %v4320 = vpop.f32.mrf.mxu0
  %v4321 = vadd.f32 %v4280, %v4320
  %v4322 = vpop.f32.mrf.mxu0
  %4323 = vdwg.mxu0
  %4324 = vmatprep.subr.bf16.mxu0 0
  %4325 = vmatpush1.bf16.msra.mxu0 %v3022
  %4326 = vmatprep.subr.bf16.mxu0 0
  %4327 = vmatpush1.bf16.msra.mxu0 %v3021
  %4328 = vmatprep.subr.bf16.mxu0 0
  %4329 = vmatpush1.bf16.msra.mxu0 %v3020
  %4330 = vmatprep.subr.bf16.mxu0 0
  %4331 = vmatpush1.bf16.msra.mxu0 %v3019
  %4332 = vmatprep.subr.bf16.mxu0 0
  %4333 = vmatpush1.bf16.msra.mxu0 %v3018
  %4334 = vmatprep.subr.bf16.mxu0 0
  %4335 = vmatpush1.bf16.msra.mxu0 %v3017
  %4336 = vmatprep.subr.bf16.mxu0 0
  %4337 = vmatpush1.bf16.msra.mxu0 %v3016
  %4338 = vmatprep.subr.bf16.mxu0 0
  %4339 = vmatpush1.bf16.msra.mxu0 %v3015
  %4340 = vmatprep.subr.bf16.mxu0 0
  %4341 = vmatpush2.bf16.msra.mxu0 %v3030
  %4342 = vmatprep.subr.bf16.mxu0 0
  %4343 = vmatpush2.bf16.msra.mxu0 %v3029
  %4344 = vmatprep.subr.bf16.mxu0 0
  %4345 = vmatpush2.bf16.msra.mxu0 %v3028
  %4346 = vmatprep.subr.bf16.mxu0 0
  %4347 = vmatpush2.bf16.msra.mxu0 %v3027
  %4348 = vmatprep.subr.bf16.mxu0 0
  %4349 = vmatpush2.bf16.msra.mxu0 %v3026
  %4350 = vmatprep.subr.bf16.mxu0 0
  %4351 = vmatpush2.bf16.msra.mxu0 %v3025
  %4352 = vmatprep.subr.bf16.mxu0 0
  %4353 = vmatpush2.bf16.msra.mxu0 %v3024
  %4354 = vmatprep.subr.bf16.mxu0 0
  %4355 = vmatpush2.bf16.msra.mxu0 %v3023
  %4356 = vmatprep.mubr.bf16.mxu0 %v1056
  %4357 = vmatmul.mubr.bf16.gmra.mxu0 %v1055
  %v4358 = vpop.f32.mrf.mxu0
  %v4359 = vadd.f32 %v4318, %v4358
  %v4360 = vpop.f32.mrf.mxu0
  %v4361 = vpop.f32.mrf.mxu0
  %v4362 = vadd.f32 %v4321, %v4361
  %v4363 = vpop.f32.mrf.mxu0
  %4364 = vdwg.mxu0
  %4365 = vmatprep.subr.bf16.mxu0 0
  %4366 = vmatpush1.bf16.msra.mxu0 %v3038
  %4367 = vmatprep.subr.bf16.mxu0 0
  %4368 = vmatpush1.bf16.msra.mxu0 %v3037
  %4369 = vmatprep.subr.bf16.mxu0 0
  %4370 = vmatpush1.bf16.msra.mxu0 %v3036
  %4371 = vmatprep.subr.bf16.mxu0 0
  %4372 = vmatpush1.bf16.msra.mxu0 %v3035
  %4373 = vmatprep.subr.bf16.mxu0 0
  %4374 = vmatpush1.bf16.msra.mxu0 %v3034
  %4375 = vmatprep.subr.bf16.mxu0 0
  %4376 = vmatpush1.bf16.msra.mxu0 %v3033
  %4377 = vmatprep.subr.bf16.mxu0 0
  %4378 = vmatpush1.bf16.msra.mxu0 %v3032
  %4379 = vmatprep.subr.bf16.mxu0 0
  %4380 = vmatpush1.bf16.msra.mxu0 %v3031
  %4381 = vmatprep.subr.bf16.mxu0 0
  %4382 = vmatpush2.bf16.msra.mxu0 %v3046
  %4383 = vmatprep.subr.bf16.mxu0 0
  %4384 = vmatpush2.bf16.msra.mxu0 %v3045
  %4385 = vmatprep.subr.bf16.mxu0 0
  %4386 = vmatpush2.bf16.msra.mxu0 %v3044
  %4387 = vmatprep.subr.bf16.mxu0 0
  %4388 = vmatpush2.bf16.msra.mxu0 %v3043
  %4389 = vmatprep.subr.bf16.mxu0 0
  %4390 = vmatpush2.bf16.msra.mxu0 %v3042
  %4391 = vmatprep.subr.bf16.mxu0 0
  %4392 = vmatpush2.bf16.msra.mxu0 %v3041
  %4393 = vmatprep.subr.bf16.mxu0 0
  %4394 = vmatpush2.bf16.msra.mxu0 %v3040
  %4395 = vmatprep.subr.bf16.mxu0 0
  %4396 = vmatpush2.bf16.msra.mxu0 %v3039
  %4397 = vmatprep.mubr.bf16.mxu0 %v1058
  %4398 = vmatmul.mubr.bf16.gmra.mxu0 %v1057
  %v4399 = vpop.f32.mrf.mxu0
  %v4400 = vadd.f32 %v4359, %v4399
  %v4401 = vpop.f32.mrf.mxu0
  %v4402 = vpop.f32.mrf.mxu0
  %v4403 = vadd.f32 %v4362, %v4402
  %v4404 = vpop.f32.mrf.mxu0
  %4405 = vdwg.mxu0
  %4406 = vmatprep.subr.bf16.mxu0 0
  %4407 = vmatpush1.bf16.msra.mxu0 %v3054
  %4408 = vmatprep.subr.bf16.mxu0 0
  %4409 = vmatpush1.bf16.msra.mxu0 %v3053
  %4410 = vmatprep.subr.bf16.mxu0 0
  %4411 = vmatpush1.bf16.msra.mxu0 %v3052
  %4412 = vmatprep.subr.bf16.mxu0 0
  %4413 = vmatpush1.bf16.msra.mxu0 %v3051
  %4414 = vmatprep.subr.bf16.mxu0 0
  %4415 = vmatpush1.bf16.msra.mxu0 %v3050
  %4416 = vmatprep.subr.bf16.mxu0 0
  %4417 = vmatpush1.bf16.msra.mxu0 %v3049
  %4418 = vmatprep.subr.bf16.mxu0 0
  %4419 = vmatpush1.bf16.msra.mxu0 %v3048
  %4420 = vmatprep.subr.bf16.mxu0 0
  %4421 = vmatpush1.bf16.msra.mxu0 %v3047
  %4422 = vmatprep.subr.bf16.mxu0 0
  %4423 = vmatpush2.bf16.msra.mxu0 %v3062
  %4424 = vmatprep.subr.bf16.mxu0 0
  %4425 = vmatpush2.bf16.msra.mxu0 %v3061
  %4426 = vmatprep.subr.bf16.mxu0 0
  %4427 = vmatpush2.bf16.msra.mxu0 %v3060
  %4428 = vmatprep.subr.bf16.mxu0 0
  %4429 = vmatpush2.bf16.msra.mxu0 %v3059
  %4430 = vmatprep.subr.bf16.mxu0 0
  %4431 = vmatpush2.bf16.msra.mxu0 %v3058
  %4432 = vmatprep.subr.bf16.mxu0 0
  %4433 = vmatpush2.bf16.msra.mxu0 %v3057
  %4434 = vmatprep.subr.bf16.mxu0 0
  %4435 = vmatpush2.bf16.msra.mxu0 %v3056
  %4436 = vmatprep.subr.bf16.mxu0 0
  %4437 = vmatpush2.bf16.msra.mxu0 %v3055
  %4438 = vmatprep.mubr.bf16.mxu0 %v1060
  %4439 = vmatmul.mubr.bf16.gmra.mxu0 %v1059
  %v4440 = vpop.f32.mrf.mxu0
  %v4441 = vadd.f32 %v4400, %v4440
  %v4442 = vpop.f32.mrf.mxu0
  %v4443 = vpop.f32.mrf.mxu0
  %v4444 = vadd.f32 %v4403, %v4443
  %v4445 = vpop.f32.mrf.mxu0
  %4446 = vdwg.mxu0
  %4447 = vmatprep.subr.bf16.mxu0 0
  %4448 = vmatpush1.bf16.msra.mxu0 %v3070
  %4449 = vmatprep.subr.bf16.mxu0 0
  %4450 = vmatpush1.bf16.msra.mxu0 %v3069
  %4451 = vmatprep.subr.bf16.mxu0 0
  %4452 = vmatpush1.bf16.msra.mxu0 %v3068
  %4453 = vmatprep.subr.bf16.mxu0 0
  %4454 = vmatpush1.bf16.msra.mxu0 %v3067
  %4455 = vmatprep.subr.bf16.mxu0 0
  %4456 = vmatpush1.bf16.msra.mxu0 %v3066
  %4457 = vmatprep.subr.bf16.mxu0 0
  %4458 = vmatpush1.bf16.msra.mxu0 %v3065
  %4459 = vmatprep.subr.bf16.mxu0 0
  %4460 = vmatpush1.bf16.msra.mxu0 %v3064
  %4461 = vmatprep.subr.bf16.mxu0 0
  %4462 = vmatpush1.bf16.msra.mxu0 %v3063
  %4463 = vmatprep.subr.bf16.mxu0 0
  %4464 = vmatpush2.bf16.msra.mxu0 0
  %4465 = vmatprep.subr.bf16.mxu0 0
  %4466 = vmatpush2.bf16.msra.mxu0 0
  %4467 = vmatprep.subr.bf16.mxu0 0
  %4468 = vmatpush2.bf16.msra.mxu0 0
  %4469 = vmatprep.subr.bf16.mxu0 0
  %4470 = vmatpush2.bf16.msra.mxu0 0
  %4471 = vmatprep.subr.bf16.mxu0 0
  %4472 = vmatpush2.bf16.msra.mxu0 0
  %4473 = vmatprep.subr.bf16.mxu0 0
  %4474 = vmatpush2.bf16.msra.mxu0 0
  %4475 = vmatprep.subr.bf16.mxu0 0
  %4476 = vmatpush2.bf16.msra.mxu0 0
  %4477 = vmatprep.subr.bf16.mxu0 0
  %4478 = vmatpush2.bf16.msra.mxu0 0
  %4479 = vmatprep.mubr.bf16.mxu0 0
  %4480 = vmatmul.mubr.bf16.gmra.mxu0 %v1061
  %v4481 = vpop.f32.mrf.mxu0
  %v4482 = vadd.f32 %v4441, %v4481
  %v4483 = vpop.f32.mrf.mxu0
  %v4484 = vpop.f32.mrf.mxu0
  %v4485 = vadd.f32 %v4444, %v4484
  %v4486 = vpop.f32.mrf.mxu0
  %4487 = vdwg.mxu0
  %v4488 = vtanh.pop %v4482
  %v4489 = vtanh.pop %v4485
  %v4490 = vpack.c.bf16 %v4489, %v4488
  %v4491 = vld [vmem:[%s3] sm:$0xf]
  %v4492 = vld [vmem:[%s3 + $0x4] sm:$0xf]
  %v4493 = vld [vmem:[%s3 + $0x8] sm:$0xf]
  %v4494 = vld [vmem:[%s3 + $0xc] sm:$0xf]
  %v4495 = vld [vmem:[%s3 + $0x10] sm:$0xf]
  %v4496 = vld [vmem:[%s3 + $0x14] sm:$0xf]
  %v4497 = vld [vmem:[%s3 + $0x18] sm:$0xf]
  %v4498 = vld [vmem:[%s3 + $0x1c] sm:$0xf]
  %v4499 = vld [vmem:[%s3 + $0x20] sm:$0xf]
  %v4500 = vld [vmem:[%s3 + $0x24] sm:$0xf]
  %v4501 = vld [vmem:[%s3 + $0x28] sm:$0xf]
  %v4502 = vld [vmem:[%s3 + $0x2c] sm:$0xf]
  %v4503 = vld [vmem:[%s3 + $0x30] sm:$0xf]
  %v4504 = vld [vmem:[%s3 + $0x34] sm:$0xf]
  %v4505 = vld [vmem:[%s3 + $0x38] sm:$0xf]
  %v4506 = vld [vmem:[%s3 + $0x3c] sm:$0xf]
  %v4523 = vunpack.c.l.b16 %v4491
  %v4524 = vunpack.c.l.b16 %v4492
  %v4525 = vunpack.c.l.b16 %v4493
  %v4526 = vunpack.c.l.b16 %v4494
  %v4527 = vunpack.c.l.b16 %v4495
  %v4528 = vunpack.c.l.b16 %v4496
  %v4529 = vunpack.c.l.b16 %v4497
  %v4530 = vunpack.c.l.b16 %v4498
  %v4531 = vunpack.c.l.b16 %v4499
  %v4532 = vunpack.c.l.b16 %v4500
  %v4533 = vunpack.c.l.b16 %v4501
  %v4534 = vunpack.c.l.b16 %v4502
  %v4535 = vunpack.c.l.b16 %v4503
  %v4536 = vunpack.c.l.b16 %v4504
  %v4537 = vunpack.c.l.b16 %v4505
  %v4538 = vunpack.c.l.b16 %v4506
  %v4539 = vpack.c.b16 %v4524, %v4523
  %v4540 = vpack.c.b16 %v4526, %v4525
  %v4541 = vpack.c.b16 %v4528, %v4527
  %v4542 = vpack.c.b16 %v4530, %v4529
  %v4543 = vpack.c.b16 %v4532, %v4531
  %v4544 = vpack.c.b16 %v4534, %v4533
  %v4545 = vpack.c.b16 %v4536, %v4535
  %v4546 = vpack.c.b16 %v4538, %v4537
  %4555 = vmatprep.subr.bf16.mxu0 0
  %4556 = vmatpush1.bf16.msra.mxu0 %v4546
  %4557 = vmatprep.subr.bf16.mxu0 0
  %4558 = vmatpush1.bf16.msra.mxu0 %v4545
  %4559 = vmatprep.subr.bf16.mxu0 0
  %4560 = vmatpush1.bf16.msra.mxu0 %v4544
  %4561 = vmatprep.subr.bf16.mxu0 0
  %4562 = vmatpush1.bf16.msra.mxu0 %v4543
  %4563 = vmatprep.subr.bf16.mxu0 0
  %4564 = vmatpush1.bf16.msra.mxu0 %v4542
  %4565 = vmatprep.subr.bf16.mxu0 0
  %4566 = vmatpush1.bf16.msra.mxu0 %v4541
  %4567 = vmatprep.subr.bf16.mxu0 0
  %4568 = vmatpush1.bf16.msra.mxu0 %v4540
  %4569 = vmatprep.subr.bf16.mxu0 0
  %4570 = vmatpush1.bf16.msra.mxu0 %v4539
  %4571 = vmatprep.subr.bf16.mxu0 0
  %4572 = vmatpush2.bf16.msra.mxu0 0
  %4573 = vmatprep.subr.bf16.mxu0 0
  %4574 = vmatpush2.bf16.msra.mxu0 0
  %4575 = vmatprep.subr.bf16.mxu0 0
  %4576 = vmatpush2.bf16.msra.mxu0 0
  %4577 = vmatprep.subr.bf16.mxu0 0
  %4578 = vmatpush2.bf16.msra.mxu0 0
  %4579 = vmatprep.subr.bf16.mxu0 0
  %4580 = vmatpush2.bf16.msra.mxu0 0
  %4581 = vmatprep.subr.bf16.mxu0 0
  %4582 = vmatpush2.bf16.msra.mxu0 0
  %4583 = vmatprep.subr.bf16.mxu0 0
  %4584 = vmatpush2.bf16.msra.mxu0 0
  %4585 = vmatprep.subr.bf16.mxu0 0
  %4586 = vmatpush2.bf16.msra.mxu0 0
  %4587 = vmatprep.mubr.bf16.mxu0 0
  %4588 = vmatmul.mubr.bf16.gmra.mxu0 %v4490
  %v4589 = vpop.f32.mrf.mxu0
  %v4590 = vadd.f32 0.0, %v4589
  %v4591 = vpop.f32.mrf.mxu0
  %v4592 = vpop.f32.mrf.mxu0
  %v4593 = vadd.f32 0.0, %v4592
  %v4594 = vpop.f32.mrf.mxu0
  %4595 = vdwg.mxu0
  %v4596 = vtanh.pop %v4590
  %v4597 = vtanh.pop %v4593
  %v4598 = vmul.f32 %v4596, 0.01
  %v4599 = vmul.f32 %v4597, 0.01
  %v4600 = vpack.c.bf16 %v4599, %v4598
  %v4601 = vld [vmem:[%s4] sm:$0xf]
  %v4602 = vld [vmem:[%s4 + $0x4] sm:$0xf]
  %v4603 = vld [vmem:[%s4 + $0x8] sm:$0xf]
  %v4604 = vld [vmem:[%s4 + $0xc] sm:$0xf]
  %v4605 = vld [vmem:[%s4 + $0x10] sm:$0xf]
  %v4606 = vld [vmem:[%s4 + $0x14] sm:$0xf]
  %v4607 = vld [vmem:[%s4 + $0x18] sm:$0xf]
  %v4608 = vld [vmem:[%s4 + $0x1c] sm:$0xf]
  %v4609 = vld [vmem:[%s4 + $0x20] sm:$0xf]
  %v4610 = vld [vmem:[%s4 + $0x24] sm:$0xf]
  %v4611 = vld [vmem:[%s4 + $0x28] sm:$0xf]
  %v4612 = vld [vmem:[%s4 + $0x2c] sm:$0xf]
  %v4613 = vld [vmem:[%s4 + $0x30] sm:$0xf]
  %v4614 = vld [vmem:[%s4 + $0x34] sm:$0xf]
  %v4615 = vld [vmem:[%s4 + $0x38] sm:$0xf]
  %v4616 = vld [vmem:[%s4 + $0x3c] sm:$0xf]
  %v4617 = vld [vmem:[%s5] sm:$0x1]
  %v4619 = vlaneseq
  %v4620 = vshrl.u32 %v4619, 7
  %v4621 = vsub.s32 0, %v4620
  %v4622 = vrot.slane %v4617, %v4621
  %v4640 = vunpack.c.l.b16 %v4601
  %v4641 = vunpack.c.l.b16 %v4602
  %v4642 = vunpack.c.l.b16 %v4603
  %v4643 = vunpack.c.l.b16 %v4604
  %v4644 = vunpack.c.l.b16 %v4605
  %v4645 = vunpack.c.l.b16 %v4606
  %v4646 = vunpack.c.l.b16 %v4607
  %v4647 = vunpack.c.l.b16 %v4608
  %v4648 = vunpack.c.l.b16 %v4609
  %v4649 = vunpack.c.l.b16 %v4610
  %v4650 = vunpack.c.l.b16 %v4611
  %v4651 = vunpack.c.l.b16 %v4612
  %v4652 = vunpack.c.l.b16 %v4613
  %v4653 = vunpack.c.l.b16 %v4614
  %v4654 = vunpack.c.l.b16 %v4615
  %v4655 = vunpack.c.l.b16 %v4616
  %v4656 = vpack.c.b16 %v4641, %v4640
  %v4657 = vpack.c.b16 %v4643, %v4642
  %v4658 = vpack.c.b16 %v4645, %v4644
  %v4659 = vpack.c.b16 %v4647, %v4646
  %v4660 = vpack.c.b16 %v4649, %v4648
  %v4661 = vpack.c.b16 %v4651, %v4650
  %v4662 = vpack.c.b16 %v4653, %v4652
  %v4663 = vpack.c.b16 %v4655, %v4654
  %4672 = vmatprep.subr.bf16.mxu0 0
  %4673 = vmatpush1.bf16.msra.mxu0 %v4663
  %4674 = vmatprep.subr.bf16.mxu0 0
  %4675 = vmatpush1.bf16.msra.mxu0 %v4662
  %4676 = vmatprep.subr.bf16.mxu0 0
  %4677 = vmatpush1.bf16.msra.mxu0 %v4661
  %4678 = vmatprep.subr.bf16.mxu0 0
  %4679 = vmatpush1.bf16.msra.mxu0 %v4660
  %4680 = vmatprep.subr.bf16.mxu0 0
  %4681 = vmatpush1.bf16.msra.mxu0 %v4659
  %4682 = vmatprep.subr.bf16.mxu0 0
  %4683 = vmatpush1.bf16.msra.mxu0 %v4658
  %4684 = vmatprep.subr.bf16.mxu0 0
  %4685 = vmatpush1.bf16.msra.mxu0 %v4657
  %4686 = vmatprep.subr.bf16.mxu0 0
  %4687 = vmatpush1.bf16.msra.mxu0 %v4656
  %4688 = vmatprep.subr.bf16.mxu0 0
  %4689 = vmatpush2.bf16.msra.mxu0 0
  %4690 = vmatprep.subr.bf16.mxu0 0
  %4691 = vmatpush2.bf16.msra.mxu0 0
  %4692 = vmatprep.subr.bf16.mxu0 0
  %4693 = vmatpush2.bf16.msra.mxu0 0
  %4694 = vmatprep.subr.bf16.mxu0 0
  %4695 = vmatpush2.bf16.msra.mxu0 0
  %4696 = vmatprep.subr.bf16.mxu0 0
  %4697 = vmatpush2.bf16.msra.mxu0 0
  %4698 = vmatprep.subr.bf16.mxu0 0
  %4699 = vmatpush2.bf16.msra.mxu0 0
  %4700 = vmatprep.subr.bf16.mxu0 0
  %4701 = vmatpush2.bf16.msra.mxu0 0
  %4702 = vmatprep.subr.bf16.mxu0 0
  %4703 = vmatpush2.bf16.msra.mxu0 0
  %4704 = vmatprep.mubr.bf16.mxu0 0
  %4705 = vmatmul.mubr.bf16.gmra.mxu0 %v4600
  %v4706 = vpop.f32.mrf.mxu0
  %v4707 = vadd.f32 %v4622, %v4706
  %v4708 = vpop.f32.mrf.mxu0
  %v4709 = vpop.f32.mrf.mxu0
  %v4710 = vadd.f32 %v4622, %v4709
  %v4711 = vpop.f32.mrf.mxu0
  %4712 = vdwg.mxu0
  %4713 = vst [vmem:[%s6] sm:$0xff] %v4707
  %4714 = vst [vmem:[%s6 + $0x8] sm:$0xff] %v4710
  // Predicated region
  $region26: #{run.7} parent=0 // pred_check
    _
  $region27: #{run.7} parent=0 // pred_check_branch
    %4716 = sbr.rel (0) target = $region29
  $region28: #{run.7} parent=0 // pred_region
    _
  $region29: #{run.7} parent=0 // pred_fallthru
    _
  // Predicated region
  $region30: #{run.7} parent=0 // pred_check
    _
  $region31: #{run.7} parent=0 // pred_check_branch
    %4718 = sbr.rel (0) target = $region33
  $region32: #{run.7} parent=0 // pred_region
    _
  $region33: #{run.7} parent=0 // pred_fallthru
    _

</llo_original>
